<compile_context>
chip_gen: v6e
topology: v6e:2x2x1
jax: 0.10.0
libtpu: 0.0.40
codegen_flags: <defaults>
</compile_context>

<pallas_src>
import jax
import jax.numpy as jnp
from jax.experimental import pallas as pl
from jax.experimental.pallas import tpu as pltpu

SIZE = 28
INPUT_SIZE = SIZE * SIZE        # 784
N_HIDDEN = 600
N_Z = 50

# Lane-padded (multiple-of-128) widths -> unmasked vst + full MXU passes.
PAD_IN = 896                    # 784 -> 7*128
PAD_H = 640                     # 600 -> 5*128
PAD_Z = 128                     # 50  -> 128


def _round_up(v, m):
    return -(-v // m) * m


# ----------------------------------------------------------------------------
# Fused forward kernel
# ----------------------------------------------------------------------------
def _vae_fused_kernel(
        x_ref, eps_ref,
        w0_ref, b0_ref,          # enc Linear(784, 600)
        w1_ref, b1_ref,          # enc Linear(600, 600)
        w2m_ref, b2m_ref,        # enc Linear(600, 100) -- mu head  (cols :50)
        w2v_ref, b2v_ref,        # enc Linear(600, 100) -- log_var head (cols 50:)
        w3_ref, b3_ref,          # dec Linear(50, 600)
        w4_ref, b4_ref,          # dec Linear(600, 600)
        w5_ref, b5_ref,          # dec Linear(600, 784)
        xrec_ref, mu_ref, lv_ref, z_ref):
    f32 = jnp.float32

    def dense(h, w_ref, b_ref):
        # bf16 operands on the MXU, f32 accumulation, f32 bias add.
        y = jnp.dot(h.astype(jnp.bfloat16), w_ref[...],
                    preferred_element_type=f32)
        return y + b_ref[...]

    def softplus(y):
        # numerically stable: max(y, 0) + log1p(exp(-|y|))
        return jnp.maximum(y, 0.0) + jnp.log1p(jnp.exp(-jnp.abs(y)))

    # ---- encoder ----
    x = x_ref[...]
    h = softplus(dense(x, w0_ref, b0_ref))
    h = softplus(dense(h, w1_ref, b1_ref))
    mu = dense(h, w2m_ref, b2m_ref)          # (TB, PAD_Z), padded lanes = 0
    lv = dense(h, w2v_ref, b2v_ref)          # (TB, PAD_Z), padded lanes = 0

    # ---- reparameterization trick: z = mu + eps * exp(0.5 * log_var) ----
    z = mu + eps_ref[...] * jnp.exp(0.5 * lv)

    # ---- decoder ----
    d = softplus(dense(z, w3_ref, b3_ref))
    d = softplus(dense(d, w4_ref, b4_ref))
    logits = dense(d, w5_ref, b5_ref)
    # sigmoid: EUP reciprocal on the otherwise-idle slot; clamp guards the
    # approx rounding so the result stays in [0, 1].
    xrec = pl.reciprocal(1.0 + jnp.exp(-logits), approx=True)
    xrec = jnp.minimum(jnp.maximum(xrec, 0.0), 1.0)

    xrec_ref[...] = xrec
    mu_ref[...] = mu
    lv_ref[...] = lv
    z_ref[...] = z


# ----------------------------------------------------------------------------
# Parameter init (PyTorch nn.Linear-style uniform), padded + bf16 weights
# ----------------------------------------------------------------------------
def _init_linear_padded(key, in_f, out_f, in_pad, out_pad):
    """U(-1/sqrt(fan_in), 1/sqrt(fan_in)); weight transposed to (in, out) for
    x @ W, zero-padded to lane-aligned shape, cast to bf16.  Bias stays f32."""
    kw, kb = jax.random.split(key)
    bound = 1.0 / (in_f ** 0.5)
    w = jax.random.uniform(kw, (in_f, out_f), jnp.float32, -bound, bound)
    b = jax.random.uniform(kb, (out_f,), jnp.float32, -bound, bound)
    w_p = jnp.zeros((in_pad, out_pad), jnp.bfloat16)
    w_p = w_p.at[:in_f, :out_f].set(w.astype(jnp.bfloat16))
    b_p = jnp.zeros((1, out_pad), jnp.float32).at[0, :out_f].set(b)
    return w_p, b_p


def init_params(key):
    keys = jax.random.split(key, 6)
    enc0 = _init_linear_padded(keys[0], INPUT_SIZE, N_HIDDEN, PAD_IN, PAD_H)
    enc1 = _init_linear_padded(keys[1], N_HIDDEN, N_HIDDEN, PAD_H, PAD_H)

    # encoder head Linear(600, 2*N_z): init as one layer (matching PyTorch),
    # then split into mu / log_var halves so each head gets its own
    # lane-padded weight slab (no sub-128 lane slicing in the kernel).
    kw, kb = jax.random.split(keys[2])
    bound = 1.0 / (N_HIDDEN ** 0.5)
    w2 = jax.random.uniform(kw, (N_HIDDEN, 2 * N_Z), jnp.float32, -bound, bound)
    b2 = jax.random.uniform(kb, (2 * N_Z,), jnp.float32, -bound, bound)
    w2m = jnp.zeros((PAD_H, PAD_Z), jnp.bfloat16).at[:N_HIDDEN, :N_Z].set(
        w2[:, :N_Z].astype(jnp.bfloat16))
    w2v = jnp.zeros((PAD_H, PAD_Z), jnp.bfloat16).at[:N_HIDDEN, :N_Z].set(
        w2[:, N_Z:].astype(jnp.bfloat16))
    b2m = jnp.zeros((1, PAD_Z), jnp.float32).at[0, :N_Z].set(b2[:N_Z])
    b2v = jnp.zeros((1, PAD_Z), jnp.float32).at[0, :N_Z].set(b2[N_Z:])

    dec0 = _init_linear_padded(keys[3], N_Z, N_HIDDEN, PAD_Z, PAD_H)
    dec1 = _init_linear_padded(keys[4], N_HIDDEN, N_HIDDEN, PAD_H, PAD_H)
    dec2 = _init_linear_padded(keys[5], N_HIDDEN, INPUT_SIZE, PAD_H, PAD_IN)

    return {"enc0": enc0, "enc1": enc1,
            "enc2_mu": (w2m, b2m), "enc2_lv": (w2v, b2v),
            "dec0": dec0, "dec1": dec1, "dec2": dec2}


# ----------------------------------------------------------------------------
# Forward pass (single pallas_call)
# ----------------------------------------------------------------------------
def linear_vae_forward(params, x, eps):
    """x: (B, 784) f32, eps: (B, 50) f32 (the randn_like sample).
    Returns (x_reconstruction, mu, log_var, z_sampled), like PyTorch forward()."""
    B = x.shape[0]
    # 256-row batch tiles fill the v6e/v7x MXU; tiny batches round up to the
    # 8-row sublane granule and run as a single block.
    TB = 256 if B >= 256 else _round_up(max(B, 1), 8)
    Bp = _round_up(B, TB)

    x_p = jnp.zeros((Bp, PAD_IN), jnp.float32).at[:B, :INPUT_SIZE].set(x)
    eps_p = jnp.zeros((Bp, PAD_Z), jnp.float32).at[:B, :N_Z].set(eps)

    weights = []
    for name in ("enc0", "enc1", "enc2_mu", "enc2_lv", "dec0", "dec1", "dec2"):
        weights.extend(params[name])

    def tile_spec(n):
        return pl.BlockSpec((TB, n), lambda i: (i, 0))

    in_specs = ([tile_spec(PAD_IN), tile_spec(PAD_Z)]
                # weights/biases: full block, constant index_map -> stay
                # VMEM-resident across all batch tiles (no re-DMA per step).
                + [pl.BlockSpec(a.shape, lambda i: (0, 0)) for a in weights])
    out_specs = (tile_spec(PAD_IN), tile_spec(PAD_Z),
                 tile_spec(PAD_Z), tile_spec(PAD_Z))
    out_shape = (jax.ShapeDtypeStruct((Bp, PAD_IN), jnp.float32),
                 jax.ShapeDtypeStruct((Bp, PAD_Z), jnp.float32),
                 jax.ShapeDtypeStruct((Bp, PAD_Z), jnp.float32),
                 jax.ShapeDtypeStruct((Bp, PAD_Z), jnp.float32))

    xrec_p, mu_p, lv_p, z_p = pl.pallas_call(
        _vae_fused_kernel,
        out_shape=out_shape,
        grid=(Bp // TB,),
        in_specs=in_specs,
        out_specs=out_specs,
        compiler_params=pltpu.CompilerParams(
            dimension_semantics=("parallel",),      # shard batch tiles over TCs
            vmem_limit_bytes=48 << 20),             # > v5e 16 MiB scoped default
    )(x_p, eps_p, *weights)

    return (xrec_p[:B, :INPUT_SIZE], mu_p[:B, :N_Z],
            lv_p[:B, :N_Z], z_p[:B, :N_Z])


if __name__ == "__main__":
    key = jax.random.PRNGKey(0)
    k_params, k_x, k_eps = jax.random.split(key, 3)

    B = 2  # small batch
    params = init_params(k_params)
    x = jax.random.uniform(k_x, (B, INPUT_SIZE), jnp.float32)   # flattened 28x28 "images"
    # TODO(synk): eps is generated host-side (matching torch.randn_like) rather
    # than with pltpu.prng_* in-kernel, to keep the sample deterministic/visible.
    eps = jax.random.normal(k_eps, (B, N_Z), jnp.float32)

    fwd = jax.jit(linear_vae_forward)
    x_rec, mu, log_var, z = fwd(params, x, eps)
    jax.block_until_ready((x_rec, mu, log_var, z))

    assert x_rec.shape == (B, INPUT_SIZE)
    assert mu.shape == (B, N_Z)
    assert log_var.shape == (B, N_Z)
    assert z.shape == (B, N_Z)
    assert bool(jnp.all(jnp.isfinite(x_rec)))
    assert bool(jnp.all((x_rec >= 0.0) & (x_rec <= 1.0)))  # sigmoid output range
    # reparameterization consistency: z == mu + eps * exp(0.5 * log_var)
    z_check = mu + eps * jnp.exp(0.5 * log_var)
    assert bool(jnp.allclose(z, z_check, atol=1e-3, rtol=1e-3))

    print("KERNEL_OK")
</pallas_src>

<mosaic_0001>
module attributes {stable_mosaic.version = 11 : i64} {
  func.func @_vae_fused_kernel(%arg0: i32, %arg1: memref<8x896xf32, #tpu.memory_space<vmem>>, %arg2: memref<8x128xf32, #tpu.memory_space<vmem>>, %arg3: memref<896x640xbf16, #tpu.memory_space<vmem>>, %arg4: memref<1x640xf32, #tpu.memory_space<vmem>>, %arg5: memref<640x640xbf16, #tpu.memory_space<vmem>>, %arg6: memref<1x640xf32, #tpu.memory_space<vmem>>, %arg7: memref<640x128xbf16, #tpu.memory_space<vmem>>, %arg8: memref<1x128xf32, #tpu.memory_space<vmem>>, %arg9: memref<640x128xbf16, #tpu.memory_space<vmem>>, %arg10: memref<1x128xf32, #tpu.memory_space<vmem>>, %arg11: memref<128x640xbf16, #tpu.memory_space<vmem>>, %arg12: memref<1x640xf32, #tpu.memory_space<vmem>>, %arg13: memref<640x640xbf16, #tpu.memory_space<vmem>>, %arg14: memref<1x640xf32, #tpu.memory_space<vmem>>, %arg15: memref<640x896xbf16, #tpu.memory_space<vmem>>, %arg16: memref<1x896xf32, #tpu.memory_space<vmem>>, %arg17: memref<8x896xf32, #tpu.memory_space<vmem>>, %arg18: memref<8x128xf32, #tpu.memory_space<vmem>>, %arg19: memref<8x128xf32, #tpu.memory_space<vmem>>, %arg20: memref<8x128xf32, #tpu.memory_space<vmem>>) attributes {dimension_semantics = [#tpu.dimension_semantics<parallel>], iteration_bounds = array<i64: 1>, scalar_prefetch = 0 : i64, scratch_operands = 0 : i64, tpu.core_type = #tpu.core_type<tc>, window_params = [{transform_indices = @transform_0, window_bounds = array<i64: 8, 896>}, {transform_indices = @transform_1, window_bounds = array<i64: 8, 128>}, {pipeline_mode = #tpu.pipeline_mode<synchronous>, transform_indices = @transform_2, window_bounds = array<i64: 896, 640>}, {pipeline_mode = #tpu.pipeline_mode<synchronous>, transform_indices = @transform_3, window_bounds = array<i64: 1, 640>}, {pipeline_mode = #tpu.pipeline_mode<synchronous>, transform_indices = @transform_4, window_bounds = array<i64: 640, 640>}, {pipeline_mode = #tpu.pipeline_mode<synchronous>, transform_indices = @transform_5, window_bounds = array<i64: 1, 640>}, {pipeline_mode = #tpu.pipeline_mode<synchronous>, transform_indices = @transform_6, window_bounds = array<i64: 640, 128>}, {pipeline_mode = #tpu.pipeline_mode<synchronous>, transform_indices = @transform_7, window_bounds = array<i64: 1, 128>}, {pipeline_mode = #tpu.pipeline_mode<synchronous>, transform_indices = @transform_8, window_bounds = array<i64: 640, 128>}, {pipeline_mode = #tpu.pipeline_mode<synchronous>, transform_indices = @transform_9, window_bounds = array<i64: 1, 128>}, {pipeline_mode = #tpu.pipeline_mode<synchronous>, transform_indices = @transform_10, window_bounds = array<i64: 128, 640>}, {pipeline_mode = #tpu.pipeline_mode<synchronous>, transform_indices = @transform_11, window_bounds = array<i64: 1, 640>}, {pipeline_mode = #tpu.pipeline_mode<synchronous>, transform_indices = @transform_12, window_bounds = array<i64: 640, 640>}, {pipeline_mode = #tpu.pipeline_mode<synchronous>, transform_indices = @transform_13, window_bounds = array<i64: 1, 640>}, {pipeline_mode = #tpu.pipeline_mode<synchronous>, transform_indices = @transform_14, window_bounds = array<i64: 640, 896>}, {pipeline_mode = #tpu.pipeline_mode<synchronous>, transform_indices = @transform_15, window_bounds = array<i64: 1, 896>}, {transform_indices = @transform_16, window_bounds = array<i64: 8, 896>}, {transform_indices = @transform_17, window_bounds = array<i64: 8, 128>}, {transform_indices = @transform_18, window_bounds = array<i64: 8, 128>}, {transform_indices = @transform_19, window_bounds = array<i64: 8, 128>}]} {
    %c0 = arith.constant 0 : index
    %c0_0 = arith.constant 0 : index
    %0 = vector.load %arg1[%c0, %c0_0] : memref<8x896xf32, #tpu.memory_space<vmem>>, vector<8x896xf32>
    %1 = arith.truncf %0 : vector<8x896xf32> to vector<8x896xbf16>
    %c0_1 = arith.constant 0 : index
    %c0_2 = arith.constant 0 : index
    %2 = vector.load %arg3[%c0_1, %c0_2] : memref<896x640xbf16, #tpu.memory_space<vmem>>, vector<896x640xbf16>
    %cst = arith.constant dense<0.000000e+00> : vector<8x640xf32>
    %3 = tpu.matmul %1, %2, %cst {dimension_numbers = #tpu.dot_dimension_numbers<[1], [0], [0], [1], [0, 0, 1, 1], [], []>} : vector<8x896xbf16>, vector<896x640xbf16>, vector<8x640xf32> -> vector<8x640xf32>
    %c0_3 = arith.constant 0 : index
    %c0_4 = arith.constant 0 : index
    %4 = vector.load %arg4[%c0_3, %c0_4] : memref<1x640xf32, #tpu.memory_space<vmem>>, vector<1x640xf32>
    %5 = vector.broadcast %4 : vector<1x640xf32> to vector<8x640xf32>
    %6 = arith.addf %3, %5 : vector<8x640xf32>
    %cst_5 = arith.constant 0.000000e+00 : f32
    %7 = vector.broadcast %cst_5 : f32 to vector<8x640xf32>
    %8 = arith.maximumf %6, %7 : vector<8x640xf32>
    %9 = math.absf %6 : vector<8x640xf32>
    %cst_6 = arith.constant 0.000000e+00 : f32
    %10 = vector.broadcast %cst_6 : f32 to vector<8x640xf32>
    %11 = arith.subf %10, %9 : vector<8x640xf32>
    %12 = math.exp %11 : vector<8x640xf32>
    %13 = math.log1p %12 : vector<8x640xf32>
    %14 = arith.addf %8, %13 : vector<8x640xf32>
    %15 = arith.truncf %14 : vector<8x640xf32> to vector<8x640xbf16>
    %c0_7 = arith.constant 0 : index
    %c0_8 = arith.constant 0 : index
    %16 = vector.load %arg5[%c0_7, %c0_8] : memref<640x640xbf16, #tpu.memory_space<vmem>>, vector<640x640xbf16>
    %cst_9 = arith.constant dense<0.000000e+00> : vector<8x640xf32>
    %17 = tpu.matmul %15, %16, %cst_9 {dimension_numbers = #tpu.dot_dimension_numbers<[1], [0], [0], [1], [0, 0, 1, 1], [], []>} : vector<8x640xbf16>, vector<640x640xbf16>, vector<8x640xf32> -> vector<8x640xf32>
    %c0_10 = arith.constant 0 : index
    %c0_11 = arith.constant 0 : index
    %18 = vector.load %arg6[%c0_10, %c0_11] : memref<1x640xf32, #tpu.memory_space<vmem>>, vector<1x640xf32>
    %19 = vector.broadcast %18 : vector<1x640xf32> to vector<8x640xf32>
    %20 = arith.addf %17, %19 : vector<8x640xf32>
    %cst_12 = arith.constant 0.000000e+00 : f32
    %21 = vector.broadcast %cst_12 : f32 to vector<8x640xf32>
    %22 = arith.maximumf %20, %21 : vector<8x640xf32>
    %23 = math.absf %20 : vector<8x640xf32>
    %cst_13 = arith.constant 0.000000e+00 : f32
    %24 = vector.broadcast %cst_13 : f32 to vector<8x640xf32>
    %25 = arith.subf %24, %23 : vector<8x640xf32>
    %26 = math.exp %25 : vector<8x640xf32>
    %27 = math.log1p %26 : vector<8x640xf32>
    %28 = arith.addf %22, %27 : vector<8x640xf32>
    %29 = arith.truncf %28 : vector<8x640xf32> to vector<8x640xbf16>
    %c0_14 = arith.constant 0 : index
    %c0_15 = arith.constant 0 : index
    %30 = vector.load %arg7[%c0_14, %c0_15] : memref<640x128xbf16, #tpu.memory_space<vmem>>, vector<640x128xbf16>
    %cst_16 = arith.constant dense<0.000000e+00> : vector<8x128xf32>
    %31 = tpu.matmul %29, %30, %cst_16 {dimension_numbers = #tpu.dot_dimension_numbers<[1], [0], [0], [1], [0, 0, 1, 1], [], []>} : vector<8x640xbf16>, vector<640x128xbf16>, vector<8x128xf32> -> vector<8x128xf32>
    %c0_17 = arith.constant 0 : index
    %c0_18 = arith.constant 0 : index
    %32 = vector.load %arg8[%c0_17, %c0_18] : memref<1x128xf32, #tpu.memory_space<vmem>>, vector<1x128xf32>
    %33 = vector.broadcast %32 : vector<1x128xf32> to vector<8x128xf32>
    %34 = arith.addf %31, %33 : vector<8x128xf32>
    %35 = arith.truncf %28 : vector<8x640xf32> to vector<8x640xbf16>
    %c0_19 = arith.constant 0 : index
    %c0_20 = arith.constant 0 : index
    %36 = vector.load %arg9[%c0_19, %c0_20] : memref<640x128xbf16, #tpu.memory_space<vmem>>, vector<640x128xbf16>
    %cst_21 = arith.constant dense<0.000000e+00> : vector<8x128xf32>
    %37 = tpu.matmul %35, %36, %cst_21 {dimension_numbers = #tpu.dot_dimension_numbers<[1], [0], [0], [1], [0, 0, 1, 1], [], []>} : vector<8x640xbf16>, vector<640x128xbf16>, vector<8x128xf32> -> vector<8x128xf32>
    %c0_22 = arith.constant 0 : index
    %c0_23 = arith.constant 0 : index
    %38 = vector.load %arg10[%c0_22, %c0_23] : memref<1x128xf32, #tpu.memory_space<vmem>>, vector<1x128xf32>
    %39 = vector.broadcast %38 : vector<1x128xf32> to vector<8x128xf32>
    %40 = arith.addf %37, %39 : vector<8x128xf32>
    %c0_24 = arith.constant 0 : index
    %c0_25 = arith.constant 0 : index
    %41 = vector.load %arg2[%c0_24, %c0_25] : memref<8x128xf32, #tpu.memory_space<vmem>>, vector<8x128xf32>
    %cst_26 = arith.constant 5.000000e-01 : f32
    %42 = vector.broadcast %cst_26 : f32 to vector<8x128xf32>
    %43 = arith.mulf %42, %40 : vector<8x128xf32>
    %44 = math.exp %43 : vector<8x128xf32>
    %45 = arith.mulf %41, %44 : vector<8x128xf32>
    %46 = arith.addf %34, %45 : vector<8x128xf32>
    %47 = arith.truncf %46 : vector<8x128xf32> to vector<8x128xbf16>
    %c0_27 = arith.constant 0 : index
    %c0_28 = arith.constant 0 : index
    %48 = vector.load %arg11[%c0_27, %c0_28] : memref<128x640xbf16, #tpu.memory_space<vmem>>, vector<128x640xbf16>
    %cst_29 = arith.constant dense<0.000000e+00> : vector<8x640xf32>
    %49 = tpu.matmul %47, %48, %cst_29 {dimension_numbers = #tpu.dot_dimension_numbers<[1], [0], [0], [1], [0, 0, 1, 1], [], []>} : vector<8x128xbf16>, vector<128x640xbf16>, vector<8x640xf32> -> vector<8x640xf32>
    %c0_30 = arith.constant 0 : index
    %c0_31 = arith.constant 0 : index
    %50 = vector.load %arg12[%c0_30, %c0_31] : memref<1x640xf32, #tpu.memory_space<vmem>>, vector<1x640xf32>
    %51 = vector.broadcast %50 : vector<1x640xf32> to vector<8x640xf32>
    %52 = arith.addf %49, %51 : vector<8x640xf32>
    %cst_32 = arith.constant 0.000000e+00 : f32
    %53 = vector.broadcast %cst_32 : f32 to vector<8x640xf32>
    %54 = arith.maximumf %52, %53 : vector<8x640xf32>
    %55 = math.absf %52 : vector<8x640xf32>
    %cst_33 = arith.constant 0.000000e+00 : f32
    %56 = vector.broadcast %cst_33 : f32 to vector<8x640xf32>
    %57 = arith.subf %56, %55 : vector<8x640xf32>
    %58 = math.exp %57 : vector<8x640xf32>
    %59 = math.log1p %58 : vector<8x640xf32>
    %60 = arith.addf %54, %59 : vector<8x640xf32>
    %61 = arith.truncf %60 : vector<8x640xf32> to vector<8x640xbf16>
    %c0_34 = arith.constant 0 : index
    %c0_35 = arith.constant 0 : index
    %62 = vector.load %arg13[%c0_34, %c0_35] : memref<640x640xbf16, #tpu.memory_space<vmem>>, vector<640x640xbf16>
    %cst_36 = arith.constant dense<0.000000e+00> : vector<8x640xf32>
    %63 = tpu.matmul %61, %62, %cst_36 {dimension_numbers = #tpu.dot_dimension_numbers<[1], [0], [0], [1], [0, 0, 1, 1], [], []>} : vector<8x640xbf16>, vector<640x640xbf16>, vector<8x640xf32> -> vector<8x640xf32>
    %c0_37 = arith.constant 0 : index
    %c0_38 = arith.constant 0 : index
    %64 = vector.load %arg14[%c0_37, %c0_38] : memref<1x640xf32, #tpu.memory_space<vmem>>, vector<1x640xf32>
    %65 = vector.broadcast %64 : vector<1x640xf32> to vector<8x640xf32>
    %66 = arith.addf %63, %65 : vector<8x640xf32>
    %cst_39 = arith.constant 0.000000e+00 : f32
    %67 = vector.broadcast %cst_39 : f32 to vector<8x640xf32>
    %68 = arith.maximumf %66, %67 : vector<8x640xf32>
    %69 = math.absf %66 : vector<8x640xf32>
    %cst_40 = arith.constant 0.000000e+00 : f32
    %70 = vector.broadcast %cst_40 : f32 to vector<8x640xf32>
    %71 = arith.subf %70, %69 : vector<8x640xf32>
    %72 = math.exp %71 : vector<8x640xf32>
    %73 = math.log1p %72 : vector<8x640xf32>
    %74 = arith.addf %68, %73 : vector<8x640xf32>
    %75 = arith.truncf %74 : vector<8x640xf32> to vector<8x640xbf16>
    %c0_41 = arith.constant 0 : index
    %c0_42 = arith.constant 0 : index
    %76 = vector.load %arg15[%c0_41, %c0_42] : memref<640x896xbf16, #tpu.memory_space<vmem>>, vector<640x896xbf16>
    %cst_43 = arith.constant dense<0.000000e+00> : vector<8x896xf32>
    %77 = tpu.matmul %75, %76, %cst_43 {dimension_numbers = #tpu.dot_dimension_numbers<[1], [0], [0], [1], [0, 0, 1, 1], [], []>} : vector<8x640xbf16>, vector<640x896xbf16>, vector<8x896xf32> -> vector<8x896xf32>
    %c0_44 = arith.constant 0 : index
    %c0_45 = arith.constant 0 : index
    %78 = vector.load %arg16[%c0_44, %c0_45] : memref<1x896xf32, #tpu.memory_space<vmem>>, vector<1x896xf32>
    %79 = vector.broadcast %78 : vector<1x896xf32> to vector<8x896xf32>
    %80 = arith.addf %77, %79 : vector<8x896xf32>
    %cst_46 = arith.constant 0.000000e+00 : f32
    %81 = vector.broadcast %cst_46 : f32 to vector<8x896xf32>
    %82 = arith.subf %81, %80 : vector<8x896xf32>
    %83 = math.exp %82 : vector<8x896xf32>
    %cst_47 = arith.constant 1.000000e+00 : f32
    %84 = vector.broadcast %cst_47 : f32 to vector<8x896xf32>
    %85 = arith.addf %84, %83 : vector<8x896xf32>
    %86 = tpu.reciprocal %85 {approx = true} : vector<8x896xf32> -> vector<8x896xf32>
    %cst_48 = arith.constant 0.000000e+00 : f32
    %87 = vector.broadcast %cst_48 : f32 to vector<8x896xf32>
    %88 = arith.maximumf %86, %87 : vector<8x896xf32>
    %cst_49 = arith.constant 1.000000e+00 : f32
    %89 = vector.broadcast %cst_49 : f32 to vector<8x896xf32>
    %90 = arith.minimumf %88, %89 : vector<8x896xf32>
    %c0_50 = arith.constant 0 : index
    %c0_51 = arith.constant 0 : index
    %91 = vector.load %arg17[%c0_50, %c0_51] : memref<8x896xf32, #tpu.memory_space<vmem>>, vector<8x896xf32>
    tpu.vector_store %arg17[%c0_50, %c0_51], %90 {strides = array<i32>} : memref<8x896xf32, #tpu.memory_space<vmem>>, vector<8x896xf32>,
    %c0_52 = arith.constant 0 : index
    %c0_53 = arith.constant 0 : index
    %92 = vector.load %arg18[%c0_52, %c0_53] : memref<8x128xf32, #tpu.memory_space<vmem>>, vector<8x128xf32>
    tpu.vector_store %arg18[%c0_52, %c0_53], %34 {strides = array<i32>} : memref<8x128xf32, #tpu.memory_space<vmem>>, vector<8x128xf32>,
    %c0_54 = arith.constant 0 : index
    %c0_55 = arith.constant 0 : index
    %93 = vector.load %arg19[%c0_54, %c0_55] : memref<8x128xf32, #tpu.memory_space<vmem>>, vector<8x128xf32>
    tpu.vector_store %arg19[%c0_54, %c0_55], %40 {strides = array<i32>} : memref<8x128xf32, #tpu.memory_space<vmem>>, vector<8x128xf32>,
    %c0_56 = arith.constant 0 : index
    %c0_57 = arith.constant 0 : index
    %94 = vector.load %arg20[%c0_56, %c0_57] : memref<8x128xf32, #tpu.memory_space<vmem>>, vector<8x128xf32>
    tpu.vector_store %arg20[%c0_56, %c0_57], %46 {strides = array<i32>} : memref<8x128xf32, #tpu.memory_space<vmem>>, vector<8x128xf32>,
    return
  }
  func.func @transform_0(%arg0: i32) -> (i32, i32) {
    %c0_i32 = arith.constant 0 : i32
    %c0_i32_0 = arith.constant 0 : i32
    return %arg0, %c0_i32 : i32, i32
  }
  func.func @transform_1(%arg0: i32) -> (i32, i32) {
    %c0_i32 = arith.constant 0 : i32
    %c0_i32_0 = arith.constant 0 : i32
    return %arg0, %c0_i32 : i32, i32
  }
  func.func @transform_2(%arg0: i32) -> (i32, i32) {
    %c0_i32 = arith.constant 0 : i32
    %c0_i32_0 = arith.constant 0 : i32
    %c0_i32_1 = arith.constant 0 : i32
    return %c0_i32, %c0_i32_0 : i32, i32
  }
  func.func @transform_3(%arg0: i32) -> (i32, i32) {
    %c0_i32 = arith.constant 0 : i32
    %c0_i32_0 = arith.constant 0 : i32
    %c0_i32_1 = arith.constant 0 : i32
    return %c0_i32, %c0_i32_0 : i32, i32
  }
  func.func @transform_4(%arg0: i32) -> (i32, i32) {
    %c0_i32 = arith.constant 0 : i32
    %c0_i32_0 = arith.constant 0 : i32
    %c0_i32_1 = arith.constant 0 : i32
    return %c0_i32, %c0_i32_0 : i32, i32
  }
  func.func @transform_5(%arg0: i32) -> (i32, i32) {
    %c0_i32 = arith.constant 0 : i32
    %c0_i32_0 = arith.constant 0 : i32
    %c0_i32_1 = arith.constant 0 : i32
    return %c0_i32, %c0_i32_0 : i32, i32
  }
  func.func @transform_6(%arg0: i32) -> (i32, i32) {
    %c0_i32 = arith.constant 0 : i32
    %c0_i32_0 = arith.constant 0 : i32
    %c0_i32_1 = arith.constant 0 : i32
    return %c0_i32, %c0_i32_0 : i32, i32
  }
  func.func @transform_7(%arg0: i32) -> (i32, i32) {
    %c0_i32 = arith.constant 0 : i32
    %c0_i32_0 = arith.constant 0 : i32
    %c0_i32_1 = arith.constant 0 : i32
    return %c0_i32, %c0_i32_0 : i32, i32
  }
  func.func @transform_8(%arg0: i32) -> (i32, i32) {
    %c0_i32 = arith.constant 0 : i32
    %c0_i32_0 = arith.constant 0 : i32
    %c0_i32_1 = arith.constant 0 : i32
    return %c0_i32, %c0_i32_0 : i32, i32
  }
  func.func @transform_9(%arg0: i32) -> (i32, i32) {
    %c0_i32 = arith.constant 0 : i32
    %c0_i32_0 = arith.constant 0 : i32
    %c0_i32_1 = arith.constant 0 : i32
    return %c0_i32, %c0_i32_0 : i32, i32
  }
  func.func @transform_10(%arg0: i32) -> (i32, i32) {
    %c0_i32 = arith.constant 0 : i32
    %c0_i32_0 = arith.constant 0 : i32
    %c0_i32_1 = arith.constant 0 : i32
    return %c0_i32, %c0_i32_0 : i32, i32
  }
  func.func @transform_11(%arg0: i32) -> (i32, i32) {
    %c0_i32 = arith.constant 0 : i32
    %c0_i32_0 = arith.constant 0 : i32
    %c0_i32_1 = arith.constant 0 : i32
    return %c0_i32, %c0_i32_0 : i32, i32
  }
  func.func @transform_12(%arg0: i32) -> (i32, i32) {
    %c0_i32 = arith.constant 0 : i32
    %c0_i32_0 = arith.constant 0 : i32
    %c0_i32_1 = arith.constant 0 : i32
    return %c0_i32, %c0_i32_0 : i32, i32
  }
  func.func @transform_13(%arg0: i32) -> (i32, i32) {
    %c0_i32 = arith.constant 0 : i32
    %c0_i32_0 = arith.constant 0 : i32
    %c0_i32_1 = arith.constant 0 : i32
    return %c0_i32, %c0_i32_0 : i32, i32
  }
  func.func @transform_14(%arg0: i32) -> (i32, i32) {
    %c0_i32 = arith.constant 0 : i32
    %c0_i32_0 = arith.constant 0 : i32
    %c0_i32_1 = arith.constant 0 : i32
    return %c0_i32, %c0_i32_0 : i32, i32
  }
  func.func @transform_15(%arg0: i32) -> (i32, i32) {
    %c0_i32 = arith.constant 0 : i32
    %c0_i32_0 = arith.constant 0 : i32
    %c0_i32_1 = arith.constant 0 : i32
    return %c0_i32, %c0_i32_0 : i32, i32
  }
  func.func @transform_16(%arg0: i32) -> (i32, i32) {
    %c0_i32 = arith.constant 0 : i32
    %c0_i32_0 = arith.constant 0 : i32
    return %arg0, %c0_i32 : i32, i32
  }
  func.func @transform_17(%arg0: i32) -> (i32, i32) {
    %c0_i32 = arith.constant 0 : i32
    %c0_i32_0 = arith.constant 0 : i32
    return %arg0, %c0_i32 : i32, i32
  }
  func.func @transform_18(%arg0: i32) -> (i32, i32) {
    %c0_i32 = arith.constant 0 : i32
    %c0_i32_0 = arith.constant 0 : i32
    return %arg0, %c0_i32 : i32, i32
  }
  func.func @transform_19(%arg0: i32) -> (i32, i32) {
    %c0_i32 = arith.constant 0 : i32
    %c0_i32_0 = arith.constant 0 : i32
    return %arg0, %c0_i32 : i32, i32
  }
}

</mosaic_0001>

<llo_original>
// kernel: linear_vae_forward.1
$region0: #{linear_vae_forward.1}
  #allocation0 [shape = 'u32[]', space=smem, size = 0x4, offset = 0x4, fixed_abs, tag = 'smem constant byte address 0x4 - core index']
  #allocation1 [shape = 'u32[144,128]{1,0:T(1,128)}', space=vmem, size = 0x12000, scoped, tag = 'internal scratch']
  %s0 = inlined_call_operand.vmem [shape: f32[8,896], index: 0, kind: input, shape index: {}]
  %s1 = inlined_call_operand.vmem [shape: f32[8,128], index: 1, kind: input, shape index: {}]
  %s2 = inlined_call_operand.hbm [shape: bf16[896,640], index: 2, kind: input, shape index: {}]
  %s3 = inlined_call_operand.hbm [shape: f32[1,640], index: 3, kind: input, shape index: {}]
  %s4 = inlined_call_operand.hbm [shape: bf16[640,640], index: 4, kind: input, shape index: {}]
  %s5 = inlined_call_operand.hbm [shape: f32[1,640], index: 5, kind: input, shape index: {}]
  %s6 = inlined_call_operand.hbm [shape: bf16[640,128], index: 6, kind: input, shape index: {}]
  %s7 = inlined_call_operand.hbm [shape: f32[1,128], index: 7, kind: input, shape index: {}]
  %s8 = inlined_call_operand.hbm [shape: bf16[640,128], index: 8, kind: input, shape index: {}]
  %s9 = inlined_call_operand.hbm [shape: f32[1,128], index: 9, kind: input, shape index: {}]
  %s10 = inlined_call_operand.hbm [shape: bf16[128,640], index: 10, kind: input, shape index: {}]
  %s11 = inlined_call_operand.hbm [shape: f32[1,640], index: 11, kind: input, shape index: {}]
  %s12 = inlined_call_operand.hbm [shape: bf16[640,640], index: 12, kind: input, shape index: {}]
  %s13 = inlined_call_operand.hbm [shape: f32[1,640], index: 13, kind: input, shape index: {}]
  %s14 = inlined_call_operand.hbm [shape: bf16[640,896], index: 14, kind: input, shape index: {}]
  %s15 = inlined_call_operand.hbm [shape: f32[1,896], index: 15, kind: input, shape index: {}]
  %s16 = inlined_call_operand.vmem [shape: f32[8,896], index: 16, kind: output, shape index: {0}]
  %s17 = inlined_call_operand.vmem [shape: f32[8,128], index: 17, kind: output, shape index: {1}]
  %s18 = inlined_call_operand.vmem [shape: f32[8,128], index: 18, kind: output, shape index: {2}]
  %s19 = inlined_call_operand.vmem [shape: f32[8,128], index: 19, kind: output, shape index: {3}]
  %20 = xla_tuple %s16, %s17, %s18, %s19
  %s21 = sld [smem:[#allocation0]]
  $region154: #{linear_vae_forward.1} parent=0
    _
  %s23 = ssub.s32 1, %s21
  %s24 = scalar_select 0, %s23, %s21
  $region1: #{linear_vae_forward.1} parent=0
    #allocation2 [shape = 'u8[1146880]{0}', space=vmem, size = 0x118000, scoped, tag = 'input window, operand 2, single buffered']
    #allocation3 [shape = 's32[1]{0}', space=sflag, size = 0x4, scoped, tag = 'scoped memory for linear_vae_forward.1']
    #allocation4 [shape = 'u8[2560]{0}', space=vmem, size = 0xc00, scoped, tag = 'input window, operand 3, single buffered']
    #allocation5 [shape = 's32[1]{0}', space=sflag, size = 0x4, scoped, tag = 'scoped memory for linear_vae_forward.1']
    #allocation6 [shape = 'u8[819200]{0}', space=vmem, size = 0xc8000, scoped, tag = 'input window, operand 4, single buffered']
    #allocation7 [shape = 'u8[2560]{0}', space=vmem, size = 0xc00, scoped, tag = 'input window, operand 5, single buffered']
    #allocation8 [shape = 's32[1]{0}', space=sflag, size = 0x4, scoped, tag = 'scoped memory for linear_vae_forward.1']
    #allocation9 [shape = 'u8[163840]{0}', space=vmem, size = 0x28000, scoped, tag = 'input window, operand 6, single buffered']
    #allocation10 [shape = 'u8[512]{0}', space=vmem, size = 0x400, scoped, tag = 'input window, operand 7, single buffered']
    #allocation11 [shape = 's32[1]{0}', space=sflag, size = 0x4, scoped, tag = 'scoped memory for linear_vae_forward.1']
    #allocation12 [shape = 'u8[163840]{0}', space=vmem, size = 0x28000, scoped, tag = 'input window, operand 8, single buffered']
    #allocation13 [shape = 'u8[512]{0}', space=vmem, size = 0x400, scoped, tag = 'input window, operand 9, single buffered']
    #allocation14 [shape = 's32[1]{0}', space=sflag, size = 0x4, scoped, tag = 'scoped memory for linear_vae_forward.1']
    #allocation15 [shape = 'u8[163840]{0}', space=vmem, size = 0x28000, scoped, tag = 'input window, operand 10, single buffered']
    #allocation16 [shape = 'u8[2560]{0}', space=vmem, size = 0xc00, scoped, tag = 'input window, operand 11, single buffered']
    #allocation17 [shape = 's32[1]{0}', space=sflag, size = 0x4, scoped, tag = 'scoped memory for linear_vae_forward.1']
    #allocation18 [shape = 'u8[819200]{0}', space=vmem, size = 0xc8000, scoped, tag = 'input window, operand 12, single buffered']
    #allocation19 [shape = 'u8[2560]{0}', space=vmem, size = 0xc00, scoped, tag = 'input window, operand 13, single buffered']
    #allocation20 [shape = 's32[1]{0}', space=sflag, size = 0x4, scoped, tag = 'scoped memory for linear_vae_forward.1']
    #allocation21 [shape = 'u8[1146880]{0}', space=vmem, size = 0x118000, scoped, tag = 'input window, operand 14, single buffered']
    #allocation22 [shape = 'u8[3584]{0}', space=vmem, size = 0x1000, scoped, tag = 'input window, operand 15, single buffered']
    #allocation23 [shape = 's32[1]{0}', space=sflag, size = 0x4, scoped, tag = 'scoped memory for linear_vae_forward.1']
    %25 = vsyncpa [#allocation3], 0
    %26 = vsyncpa [#allocation5], 0
    %27 = vsyncpa [#allocation8], 0
    %28 = vsyncpa [#allocation11], 0
    %29 = vsyncpa [#allocation14], 0
    %30 = vsyncpa [#allocation17], 0
    %31 = vsyncpa [#allocation20], 0
    %32 = vsyncpa [#allocation23], 0
    // Predicated region
    $region2: #{linear_vae_forward.1} parent=1 // pred_check
      _
    $region3: #{linear_vae_forward.1} parent=1 // pred_check_branch
      %34 = sbr.rel (0) target = $region5
    $region4: #{linear_vae_forward.1} parent=1 // pred_region
      _
    $region5: #{linear_vae_forward.1} parent=1 // pred_fallthru
      _
    // Predicated region
    $region6: #{linear_vae_forward.1} parent=1 // pred_check
      _
    $region7: #{linear_vae_forward.1} parent=1 // pred_check_branch
      %36 = sbr.rel (0) target = $region9
    $region8: #{linear_vae_forward.1} parent=1 // pred_region
      _
    $region9: #{linear_vae_forward.1} parent=1 // pred_fallthru
      _
    // Predicated region
    $region10: #{linear_vae_forward.1} parent=1 // pred_check
      _
    $region11: #{linear_vae_forward.1} parent=1 // pred_check_branch
      %38 = sbr.rel (0) target = $region13
    $region12: #{linear_vae_forward.1} parent=1 // pred_region
      %s40 = ssub.s32 35840, 35840
      %41 = vsyncadd [#allocation3], %s40
      %s42 = sshll.u32 [#allocation2], 4
      %s43 = int_to_ptr.vmem [resolvable:$true] %s42
      %48 = dma.hbm_to_vmem [thread:$0]  %s2, 35840, %s43, [#allocation3], 320, 320, 20
    $region13: #{linear_vae_forward.1} parent=1 // pred_fallthru
      _
    // Predicated region
    $region14: #{linear_vae_forward.1} parent=1 // pred_check
      _
    $region15: #{linear_vae_forward.1} parent=1 // pred_check_branch
      %50 = sbr.rel (0) target = $region17
    $region16: #{linear_vae_forward.1} parent=1 // pred_region
      %s52 = ssub.s32 80, 80
      %53 = vsyncadd [#allocation5], %s52
      %s55 = sshll.u32 [#allocation4], 4
      %s56 = int_to_ptr.vmem [resolvable:$true] %s55
      %58 = dma.hbm_to_vmem [thread:$0]  %s3, 80, %s56, [#allocation5]
    $region17: #{linear_vae_forward.1} parent=1 // pred_fallthru
      _
    // Predicated region
    $region18: #{linear_vae_forward.1} parent=1 // pred_check
      _
    $region19: #{linear_vae_forward.1} parent=1 // pred_check_branch
      %60 = sbr.rel (0) target = $region21
    $region20: #{linear_vae_forward.1} parent=1 // pred_region
      %s62 = ssub.s32 25600, 25600
      %63 = vsyncadd [#allocation5], %s62
      %s64 = sshll.u32 [#allocation6], 4
      %s65 = int_to_ptr.vmem [resolvable:$true] %s64
      %70 = dma.hbm_to_vmem [thread:$0]  %s4, 25600, %s65, [#allocation5], 320, 320, 20
    $region21: #{linear_vae_forward.1} parent=1 // pred_fallthru
      _
    // Predicated region
    $region22: #{linear_vae_forward.1} parent=1 // pred_check
      _
    $region23: #{linear_vae_forward.1} parent=1 // pred_check_branch
      %72 = sbr.rel (0) target = $region25
    $region24: #{linear_vae_forward.1} parent=1 // pred_region
      %s74 = ssub.s32 80, 80
      %75 = vsyncadd [#allocation8], %s74
      %s77 = sshll.u32 [#allocation7], 4
      %s78 = int_to_ptr.vmem [resolvable:$true] %s77
      %80 = dma.hbm_to_vmem [thread:$0]  %s5, 80, %s78, [#allocation8]
    $region25: #{linear_vae_forward.1} parent=1 // pred_fallthru
      _
    // Predicated region
    $region26: #{linear_vae_forward.1} parent=1 // pred_check
      _
    $region27: #{linear_vae_forward.1} parent=1 // pred_check_branch
      %82 = sbr.rel (0) target = $region29
    $region28: #{linear_vae_forward.1} parent=1 // pred_region
      %s84 = ssub.s32 5120, 5120
      %85 = vsyncadd [#allocation8], %s84
      %s86 = sshll.u32 [#allocation9], 4
      %s87 = int_to_ptr.vmem [resolvable:$true] %s86
      %92 = dma.hbm_to_vmem [thread:$0]  %s6, 5120, %s87, [#allocation8], 64, 64, 4
    $region29: #{linear_vae_forward.1} parent=1 // pred_fallthru
      _
    // Predicated region
    $region30: #{linear_vae_forward.1} parent=1 // pred_check
      _
    $region31: #{linear_vae_forward.1} parent=1 // pred_check_branch
      %94 = sbr.rel (0) target = $region33
    $region32: #{linear_vae_forward.1} parent=1 // pred_region
      %s96 = ssub.s32 16, 16
      %97 = vsyncadd [#allocation11], %s96
      %s99 = sshll.u32 [#allocation10], 4
      %s100 = int_to_ptr.vmem [resolvable:$true] %s99
      %102 = dma.hbm_to_vmem [thread:$0]  %s7, 16, %s100, [#allocation11]
    $region33: #{linear_vae_forward.1} parent=1 // pred_fallthru
      _
    // Predicated region
    $region34: #{linear_vae_forward.1} parent=1 // pred_check
      _
    $region35: #{linear_vae_forward.1} parent=1 // pred_check_branch
      %104 = sbr.rel (0) target = $region37
    $region36: #{linear_vae_forward.1} parent=1 // pred_region
      %s106 = ssub.s32 5120, 5120
      %107 = vsyncadd [#allocation11], %s106
      %s108 = sshll.u32 [#allocation12], 4
      %s109 = int_to_ptr.vmem [resolvable:$true] %s108
      %114 = dma.hbm_to_vmem [thread:$0]  %s8, 5120, %s109, [#allocation11], 64, 64, 4
    $region37: #{linear_vae_forward.1} parent=1 // pred_fallthru
      _
    // Predicated region
    $region38: #{linear_vae_forward.1} parent=1 // pred_check
      _
    $region39: #{linear_vae_forward.1} parent=1 // pred_check_branch
      %116 = sbr.rel (0) target = $region41
    $region40: #{linear_vae_forward.1} parent=1 // pred_region
      %s118 = ssub.s32 16, 16
      %119 = vsyncadd [#allocation14], %s118
      %s121 = sshll.u32 [#allocation13], 4
      %s122 = int_to_ptr.vmem [resolvable:$true] %s121
      %124 = dma.hbm_to_vmem [thread:$0]  %s9, 16, %s122, [#allocation14]
    $region41: #{linear_vae_forward.1} parent=1 // pred_fallthru
      _
    // Predicated region
    $region42: #{linear_vae_forward.1} parent=1 // pred_check
      _
    $region43: #{linear_vae_forward.1} parent=1 // pred_check_branch
      %126 = sbr.rel (0) target = $region45
    $region44: #{linear_vae_forward.1} parent=1 // pred_region
      %s128 = ssub.s32 5120, 5120
      %129 = vsyncadd [#allocation14], %s128
      %s130 = sshll.u32 [#allocation15], 4
      %s131 = int_to_ptr.vmem [resolvable:$true] %s130
      %136 = dma.hbm_to_vmem [thread:$0]  %s10, 5120, %s131, [#allocation14], 320, 320, 20
    $region45: #{linear_vae_forward.1} parent=1 // pred_fallthru
      _
    // Predicated region
    $region46: #{linear_vae_forward.1} parent=1 // pred_check
      _
    $region47: #{linear_vae_forward.1} parent=1 // pred_check_branch
      %138 = sbr.rel (0) target = $region49
    $region48: #{linear_vae_forward.1} parent=1 // pred_region
      %s140 = ssub.s32 80, 80
      %141 = vsyncadd [#allocation17], %s140
      %s143 = sshll.u32 [#allocation16], 4
      %s144 = int_to_ptr.vmem [resolvable:$true] %s143
      %146 = dma.hbm_to_vmem [thread:$0]  %s11, 80, %s144, [#allocation17]
    $region49: #{linear_vae_forward.1} parent=1 // pred_fallthru
      _
    // Predicated region
    $region50: #{linear_vae_forward.1} parent=1 // pred_check
      _
    $region51: #{linear_vae_forward.1} parent=1 // pred_check_branch
      %148 = sbr.rel (0) target = $region53
    $region52: #{linear_vae_forward.1} parent=1 // pred_region
      %s150 = ssub.s32 25600, 25600
      %151 = vsyncadd [#allocation17], %s150
      %s152 = sshll.u32 [#allocation18], 4
      %s153 = int_to_ptr.vmem [resolvable:$true] %s152
      %158 = dma.hbm_to_vmem [thread:$0]  %s12, 25600, %s153, [#allocation17], 320, 320, 20
    $region53: #{linear_vae_forward.1} parent=1 // pred_fallthru
      _
    // Predicated region
    $region54: #{linear_vae_forward.1} parent=1 // pred_check
      _
    $region55: #{linear_vae_forward.1} parent=1 // pred_check_branch
      %160 = sbr.rel (0) target = $region57
    $region56: #{linear_vae_forward.1} parent=1 // pred_region
      %s162 = ssub.s32 80, 80
      %163 = vsyncadd [#allocation20], %s162
      %s165 = sshll.u32 [#allocation19], 4
      %s166 = int_to_ptr.vmem [resolvable:$true] %s165
      %168 = dma.hbm_to_vmem [thread:$0]  %s13, 80, %s166, [#allocation20]
    $region57: #{linear_vae_forward.1} parent=1 // pred_fallthru
      _
    // Predicated region
    $region58: #{linear_vae_forward.1} parent=1 // pred_check
      _
    $region59: #{linear_vae_forward.1} parent=1 // pred_check_branch
      %170 = sbr.rel (0) target = $region61
    $region60: #{linear_vae_forward.1} parent=1 // pred_region
      %s172 = ssub.s32 35840, 35840
      %173 = vsyncadd [#allocation20], %s172
      %s174 = sshll.u32 [#allocation21], 4
      %s175 = int_to_ptr.vmem [resolvable:$true] %s174
      %180 = dma.hbm_to_vmem [thread:$0]  %s14, 35840, %s175, [#allocation20], 448, 448, 28
    $region61: #{linear_vae_forward.1} parent=1 // pred_fallthru
      _
    // Predicated region
    $region62: #{linear_vae_forward.1} parent=1 // pred_check
      _
    $region63: #{linear_vae_forward.1} parent=1 // pred_check_branch
      %182 = sbr.rel (0) target = $region65
    $region64: #{linear_vae_forward.1} parent=1 // pred_region
      %s184 = ssub.s32 112, 112
      %185 = vsyncadd [#allocation23], %s184
      %s187 = sshll.u32 [#allocation22], 4
      %s188 = int_to_ptr.vmem [resolvable:$true] %s187
      %190 = dma.hbm_to_vmem [thread:$0]  %s15, 112, %s188, [#allocation23]
    $region65: #{linear_vae_forward.1} parent=1 // pred_fallthru
      _
    // Predicated region
    $region66: #{linear_vae_forward.1} parent=1 // pred_check
      _
    $region67: #{linear_vae_forward.1} parent=1 // pred_check_branch
      %192 = sbr.rel (0) target = $region69
    $region68: #{linear_vae_forward.1} parent=1 // pred_region
      %193 = dma.done [#allocation3], 35840
    $region69: #{linear_vae_forward.1} parent=1 // pred_fallthru
      _
    // Predicated region
    $region70: #{linear_vae_forward.1} parent=1 // pred_check
      _
    $region71: #{linear_vae_forward.1} parent=1 // pred_check_branch
      %195 = sbr.rel (0) target = $region73
    $region72: #{linear_vae_forward.1} parent=1 // pred_region
      %196 = dma.done [#allocation5], 80
    $region73: #{linear_vae_forward.1} parent=1 // pred_fallthru
      _
    // Predicated region
    $region74: #{linear_vae_forward.1} parent=1 // pred_check
      _
    $region75: #{linear_vae_forward.1} parent=1 // pred_check_branch
      %198 = sbr.rel (0) target = $region77
    $region76: #{linear_vae_forward.1} parent=1 // pred_region
      %199 = dma.done [#allocation5], 25600
    $region77: #{linear_vae_forward.1} parent=1 // pred_fallthru
      _
    // Predicated region
    $region78: #{linear_vae_forward.1} parent=1 // pred_check
      _
    $region79: #{linear_vae_forward.1} parent=1 // pred_check_branch
      %201 = sbr.rel (0) target = $region81
    $region80: #{linear_vae_forward.1} parent=1 // pred_region
      %202 = dma.done [#allocation8], 80
    $region81: #{linear_vae_forward.1} parent=1 // pred_fallthru
      _
    // Predicated region
    $region82: #{linear_vae_forward.1} parent=1 // pred_check
      _
    $region83: #{linear_vae_forward.1} parent=1 // pred_check_branch
      %204 = sbr.rel (0) target = $region85
    $region84: #{linear_vae_forward.1} parent=1 // pred_region
      %205 = dma.done [#allocation8], 5120
    $region85: #{linear_vae_forward.1} parent=1 // pred_fallthru
      _
    // Predicated region
    $region86: #{linear_vae_forward.1} parent=1 // pred_check
      _
    $region87: #{linear_vae_forward.1} parent=1 // pred_check_branch
      %207 = sbr.rel (0) target = $region89
    $region88: #{linear_vae_forward.1} parent=1 // pred_region
      %208 = dma.done [#allocation11], 16
    $region89: #{linear_vae_forward.1} parent=1 // pred_fallthru
      _
    // Predicated region
    $region90: #{linear_vae_forward.1} parent=1 // pred_check
      _
    $region91: #{linear_vae_forward.1} parent=1 // pred_check_branch
      %210 = sbr.rel (0) target = $region93
    $region92: #{linear_vae_forward.1} parent=1 // pred_region
      %211 = dma.done [#allocation11], 5120
    $region93: #{linear_vae_forward.1} parent=1 // pred_fallthru
      _
    // Predicated region
    $region94: #{linear_vae_forward.1} parent=1 // pred_check
      _
    $region95: #{linear_vae_forward.1} parent=1 // pred_check_branch
      %213 = sbr.rel (0) target = $region97
    $region96: #{linear_vae_forward.1} parent=1 // pred_region
      %214 = dma.done [#allocation14], 16
    $region97: #{linear_vae_forward.1} parent=1 // pred_fallthru
      _
    // Predicated region
    $region98: #{linear_vae_forward.1} parent=1 // pred_check
      _
    $region99: #{linear_vae_forward.1} parent=1 // pred_check_branch
      %216 = sbr.rel (0) target = $region101
    $region100: #{linear_vae_forward.1} parent=1 // pred_region
      %217 = dma.done [#allocation14], 5120
    $region101: #{linear_vae_forward.1} parent=1 // pred_fallthru
      _
    // Predicated region
    $region102: #{linear_vae_forward.1} parent=1 // pred_check
      _
    $region103: #{linear_vae_forward.1} parent=1 // pred_check_branch
      %219 = sbr.rel (0) target = $region105
    $region104: #{linear_vae_forward.1} parent=1 // pred_region
      %220 = dma.done [#allocation17], 80
    $region105: #{linear_vae_forward.1} parent=1 // pred_fallthru
      _
    // Predicated region
    $region106: #{linear_vae_forward.1} parent=1 // pred_check
      _
    $region107: #{linear_vae_forward.1} parent=1 // pred_check_branch
      %222 = sbr.rel (0) target = $region109
    $region108: #{linear_vae_forward.1} parent=1 // pred_region
      %223 = dma.done [#allocation17], 25600
    $region109: #{linear_vae_forward.1} parent=1 // pred_fallthru
      _
    // Predicated region
    $region110: #{linear_vae_forward.1} parent=1 // pred_check
      _
    $region111: #{linear_vae_forward.1} parent=1 // pred_check_branch
      %225 = sbr.rel (0) target = $region113
    $region112: #{linear_vae_forward.1} parent=1 // pred_region
      %226 = dma.done [#allocation20], 80
    $region113: #{linear_vae_forward.1} parent=1 // pred_fallthru
      _
    // Predicated region
    $region114: #{linear_vae_forward.1} parent=1 // pred_check
      _
    $region115: #{linear_vae_forward.1} parent=1 // pred_check_branch
      %228 = sbr.rel (0) target = $region117
    $region116: #{linear_vae_forward.1} parent=1 // pred_region
      %229 = dma.done [#allocation20], 35840
    $region117: #{linear_vae_forward.1} parent=1 // pred_fallthru
      _
    // Predicated region
    $region118: #{linear_vae_forward.1} parent=1 // pred_check
      _
    $region119: #{linear_vae_forward.1} parent=1 // pred_check_branch
      %231 = sbr.rel (0) target = $region121
    $region120: #{linear_vae_forward.1} parent=1 // pred_region
      %232 = dma.done [#allocation23], 112
    $region121: #{linear_vae_forward.1} parent=1 // pred_fallthru
      _
    %v234 = vld [vmem:[%s0] sm:$0xff]
    %v235 = vld [vmem:[%s0 + $0x8] sm:$0xff]
    %v236 = vld [vmem:[%s0 + $0x10] sm:$0xff]
    %v237 = vld [vmem:[%s0 + $0x18] sm:$0xff]
    %v238 = vld [vmem:[%s0 + $0x20] sm:$0xff]
    %v239 = vld [vmem:[%s0 + $0x28] sm:$0xff]
    %v240 = vld [vmem:[%s0 + $0x30] sm:$0xff]
    %v241 = vpack.c.bf16 %v234, %v234
    %v242 = vpack.c.bf16 %v235, %v235
    %v243 = vpack.c.bf16 %v236, %v236
    %v244 = vpack.c.bf16 %v237, %v237
    %v245 = vpack.c.bf16 %v238, %v238
    %v246 = vpack.c.bf16 %v239, %v239
    %v247 = vpack.c.bf16 %v240, %v240
    %v248 = vld [vmem:[#allocation2] sm:$0xff]
    %v249 = vld [vmem:[#allocation2 + $0x8] sm:$0xff]
    %v250 = vld [vmem:[#allocation2 + $0x10] sm:$0xf]
    %v251 = vld [vmem:[#allocation2 + $0x14] sm:$0xff]
    %v252 = vld [vmem:[#allocation2 + $0x1c] sm:$0xff]
    %v253 = vld [vmem:[#allocation2 + $0x24] sm:$0xf]
    %v254 = vld [vmem:[#allocation2 + $0x28] sm:$0xff]
    %v255 = vld [vmem:[#allocation2 + $0x30] sm:$0xff]
    %v256 = vld [vmem:[#allocation2 + $0x38] sm:$0xf]
    %v257 = vld [vmem:[#allocation2 + $0x3c] sm:$0xff]
    %v258 = vld [vmem:[#allocation2 + $0x44] sm:$0xff]
    %v259 = vld [vmem:[#allocation2 + $0x4c] sm:$0xf]
    %v260 = vld [vmem:[#allocation2 + $0x50] sm:$0xff]
    %v261 = vld [vmem:[#allocation2 + $0x58] sm:$0xff]
    %v262 = vld [vmem:[#allocation2 + $0x60] sm:$0xf]
    %v263 = vld [vmem:[#allocation2 + $0x64] sm:$0xff]
    %v264 = vld [vmem:[#allocation2 + $0x6c] sm:$0xff]
    %v265 = vld [vmem:[#allocation2 + $0x74] sm:$0xf]
    %v266 = vld [vmem:[#allocation2 + $0x78] sm:$0xff]
    %v267 = vld [vmem:[#allocation2 + $0x80] sm:$0xff]
    %v268 = vld [vmem:[#allocation2 + $0x88] sm:$0xf]
    %v269 = vld [vmem:[#allocation2 + $0x8c] sm:$0xff]
    %v270 = vld [vmem:[#allocation2 + $0x94] sm:$0xff]
    %v271 = vld [vmem:[#allocation2 + $0x9c] sm:$0xf]
    %v272 = vld [vmem:[#allocation2 + $0xa0] sm:$0xff]
    %v273 = vld [vmem:[#allocation2 + $0xa8] sm:$0xff]
    %v274 = vld [vmem:[#allocation2 + $0xb0] sm:$0xf]
    %v275 = vld [vmem:[#allocation2 + $0xb4] sm:$0xff]
    %v276 = vld [vmem:[#allocation2 + $0xbc] sm:$0xff]
    %v277 = vld [vmem:[#allocation2 + $0xc4] sm:$0xf]
    %v278 = vld [vmem:[#allocation2 + $0xc8] sm:$0xff]
    %v279 = vld [vmem:[#allocation2 + $0xd0] sm:$0xff]
    %v280 = vld [vmem:[#allocation2 + $0xd8] sm:$0xf]
    %v281 = vld [vmem:[#allocation2 + $0xdc] sm:$0xff]
    %v282 = vld [vmem:[#allocation2 + $0xe4] sm:$0xff]
    %v283 = vld [vmem:[#allocation2 + $0xec] sm:$0xf]
    %v284 = vld [vmem:[#allocation2 + $0xf0] sm:$0xff]
    %v285 = vld [vmem:[#allocation2 + $0xf8] sm:$0xff]
    %v286 = vld [vmem:[#allocation2 + $0x100] sm:$0xf]
    %v287 = vld [vmem:[#allocation2 + $0x104] sm:$0xff]
    %v288 = vld [vmem:[#allocation2 + $0x10c] sm:$0xff]
    %v289 = vld [vmem:[#allocation2 + $0x114] sm:$0xf]
    %v290 = vld [vmem:[#allocation2 + $0x118] sm:$0xff]
    %v291 = vld [vmem:[#allocation2 + $0x120] sm:$0xff]
    %v292 = vld [vmem:[#allocation2 + $0x128] sm:$0xf]
    %v293 = vld [vmem:[#allocation2 + $0x12c] sm:$0xff]
    %v294 = vld [vmem:[#allocation2 + $0x134] sm:$0xff]
    %v295 = vld [vmem:[#allocation2 + $0x13c] sm:$0xf]
    %v296 = vld [vmem:[#allocation2 + $0x140] sm:$0xff]
    %v297 = vld [vmem:[#allocation2 + $0x148] sm:$0xff]
    %v298 = vld [vmem:[#allocation2 + $0x150] sm:$0xf]
    %v299 = vld [vmem:[#allocation2 + $0x154] sm:$0xff]
    %v300 = vld [vmem:[#allocation2 + $0x15c] sm:$0xff]
    %v301 = vld [vmem:[#allocation2 + $0x164] sm:$0xf]
    %v302 = vld [vmem:[#allocation2 + $0x168] sm:$0xff]
    %v303 = vld [vmem:[#allocation2 + $0x170] sm:$0xff]
    %v304 = vld [vmem:[#allocation2 + $0x178] sm:$0xf]
    %v305 = vld [vmem:[#allocation2 + $0x17c] sm:$0xff]
    %v306 = vld [vmem:[#allocation2 + $0x184] sm:$0xff]
    %v307 = vld [vmem:[#allocation2 + $0x18c] sm:$0xf]
    %v308 = vld [vmem:[#allocation2 + $0x190] sm:$0xff]
    %v309 = vld [vmem:[#allocation2 + $0x198] sm:$0xff]
    %v310 = vld [vmem:[#allocation2 + $0x1a0] sm:$0xf]
    %v311 = vld [vmem:[#allocation2 + $0x1a4] sm:$0xff]
    %v312 = vld [vmem:[#allocation2 + $0x1ac] sm:$0xff]
    %v313 = vld [vmem:[#allocation2 + $0x1b4] sm:$0xf]
    %v314 = vld [vmem:[#allocation2 + $0x1b8] sm:$0xff]
    %v315 = vld [vmem:[#allocation2 + $0x1c0] sm:$0xff]
    %v316 = vld [vmem:[#allocation2 + $0x1c8] sm:$0xf]
    %v317 = vld [vmem:[#allocation2 + $0x1cc] sm:$0xff]
    %v318 = vld [vmem:[#allocation2 + $0x1d4] sm:$0xff]
    %v319 = vld [vmem:[#allocation2 + $0x1dc] sm:$0xf]
    %v320 = vld [vmem:[#allocation2 + $0x1e0] sm:$0xff]
    %v321 = vld [vmem:[#allocation2 + $0x1e8] sm:$0xff]
    %v322 = vld [vmem:[#allocation2 + $0x1f0] sm:$0xf]
    %v323 = vld [vmem:[#allocation2 + $0x1f4] sm:$0xff]
    %v324 = vld [vmem:[#allocation2 + $0x1fc] sm:$0xff]
    %v325 = vld [vmem:[#allocation2 + $0x204] sm:$0xf]
    %v326 = vld [vmem:[#allocation2 + $0x208] sm:$0xff]
    %v327 = vld [vmem:[#allocation2 + $0x210] sm:$0xff]
    %v328 = vld [vmem:[#allocation2 + $0x218] sm:$0xf]
    %v329 = vld [vmem:[#allocation2 + $0x21c] sm:$0xff]
    %v330 = vld [vmem:[#allocation2 + $0x224] sm:$0xff]
    %v331 = vld [vmem:[#allocation2 + $0x22c] sm:$0xf]
    %v332 = vld [vmem:[#allocation2 + $0x230] sm:$0xff]
    %v333 = vld [vmem:[#allocation2 + $0x238] sm:$0xff]
    %v334 = vld [vmem:[#allocation2 + $0x240] sm:$0xf]
    %v335 = vld [vmem:[#allocation2 + $0x244] sm:$0xff]
    %v336 = vld [vmem:[#allocation2 + $0x24c] sm:$0xff]
    %v337 = vld [vmem:[#allocation2 + $0x254] sm:$0xf]
    %v338 = vld [vmem:[#allocation2 + $0x258] sm:$0xff]
    %v339 = vld [vmem:[#allocation2 + $0x260] sm:$0xff]
    %v340 = vld [vmem:[#allocation2 + $0x268] sm:$0xf]
    %v341 = vld [vmem:[#allocation2 + $0x26c] sm:$0xff]
    %v342 = vld [vmem:[#allocation2 + $0x274] sm:$0xff]
    %v343 = vld [vmem:[#allocation2 + $0x27c] sm:$0xf]
    %v344 = vld [vmem:[#allocation2 + $0x280] sm:$0xff]
    %v345 = vld [vmem:[#allocation2 + $0x288] sm:$0xff]
    %v346 = vld [vmem:[#allocation2 + $0x290] sm:$0xf]
    %v347 = vld [vmem:[#allocation2 + $0x294] sm:$0xff]
    %v348 = vld [vmem:[#allocation2 + $0x29c] sm:$0xff]
    %v349 = vld [vmem:[#allocation2 + $0x2a4] sm:$0xf]
    %v350 = vld [vmem:[#allocation2 + $0x2a8] sm:$0xff]
    %v351 = vld [vmem:[#allocation2 + $0x2b0] sm:$0xff]
    %v352 = vld [vmem:[#allocation2 + $0x2b8] sm:$0xf]
    %v353 = vld [vmem:[#allocation2 + $0x2bc] sm:$0xff]
    %v354 = vld [vmem:[#allocation2 + $0x2c4] sm:$0xff]
    %v355 = vld [vmem:[#allocation2 + $0x2cc] sm:$0xf]
    %v356 = vld [vmem:[#allocation2 + $0x2d0] sm:$0xff]
    %v357 = vld [vmem:[#allocation2 + $0x2d8] sm:$0xff]
    %v358 = vld [vmem:[#allocation2 + $0x2e0] sm:$0xf]
    %v359 = vld [vmem:[#allocation2 + $0x2e4] sm:$0xff]
    %v360 = vld [vmem:[#allocation2 + $0x2ec] sm:$0xff]
    %v361 = vld [vmem:[#allocation2 + $0x2f4] sm:$0xf]
    %v362 = vld [vmem:[#allocation2 + $0x2f8] sm:$0xff]
    %v363 = vld [vmem:[#allocation2 + $0x300] sm:$0xff]
    %v364 = vld [vmem:[#allocation2 + $0x308] sm:$0xf]
    %v365 = vld [vmem:[#allocation2 + $0x30c] sm:$0xff]
    %v366 = vld [vmem:[#allocation2 + $0x314] sm:$0xff]
    %v367 = vld [vmem:[#allocation2 + $0x31c] sm:$0xf]
    %v368 = vld [vmem:[#allocation2 + $0x320] sm:$0xff]
    %v369 = vld [vmem:[#allocation2 + $0x328] sm:$0xff]
    %v370 = vld [vmem:[#allocation2 + $0x330] sm:$0xf]
    %v371 = vld [vmem:[#allocation2 + $0x334] sm:$0xff]
    %v372 = vld [vmem:[#allocation2 + $0x33c] sm:$0xff]
    %v373 = vld [vmem:[#allocation2 + $0x344] sm:$0xf]
    %v374 = vld [vmem:[#allocation2 + $0x348] sm:$0xff]
    %v375 = vld [vmem:[#allocation2 + $0x350] sm:$0xff]
    %v376 = vld [vmem:[#allocation2 + $0x358] sm:$0xf]
    %v377 = vld [vmem:[#allocation2 + $0x35c] sm:$0xff]
    %v378 = vld [vmem:[#allocation2 + $0x364] sm:$0xff]
    %v379 = vld [vmem:[#allocation2 + $0x36c] sm:$0xf]
    %v380 = vld [vmem:[#allocation2 + $0x370] sm:$0xff]
    %v381 = vld [vmem:[#allocation2 + $0x378] sm:$0xff]
    %v382 = vld [vmem:[#allocation2 + $0x380] sm:$0xf]
    %v383 = vld [vmem:[#allocation2 + $0x384] sm:$0xff]
    %v384 = vld [vmem:[#allocation2 + $0x38c] sm:$0xff]
    %v385 = vld [vmem:[#allocation2 + $0x394] sm:$0xf]
    %v386 = vld [vmem:[#allocation2 + $0x398] sm:$0xff]
    %v387 = vld [vmem:[#allocation2 + $0x3a0] sm:$0xff]
    %v388 = vld [vmem:[#allocation2 + $0x3a8] sm:$0xf]
    %v389 = vld [vmem:[#allocation2 + $0x3ac] sm:$0xff]
    %v390 = vld [vmem:[#allocation2 + $0x3b4] sm:$0xff]
    %v391 = vld [vmem:[#allocation2 + $0x3bc] sm:$0xf]
    %v392 = vld [vmem:[#allocation2 + $0x3c0] sm:$0xff]
    %v393 = vld [vmem:[#allocation2 + $0x3c8] sm:$0xff]
    %v394 = vld [vmem:[#allocation2 + $0x3d0] sm:$0xf]
    %v395 = vld [vmem:[#allocation2 + $0x3d4] sm:$0xff]
    %v396 = vld [vmem:[#allocation2 + $0x3dc] sm:$0xff]
    %v397 = vld [vmem:[#allocation2 + $0x3e4] sm:$0xf]
    %v398 = vld [vmem:[#allocation2 + $0x3e8] sm:$0xff]
    %v399 = vld [vmem:[#allocation2 + $0x3f0] sm:$0xff]
    %v400 = vld [vmem:[#allocation2 + $0x3f8] sm:$0xf]
    %v401 = vld [vmem:[#allocation2 + $0x3fc] sm:$0xff]
    %v402 = vld [vmem:[#allocation2 + $0x404] sm:$0xff]
    %v403 = vld [vmem:[#allocation2 + $0x40c] sm:$0xf]
    %v404 = vld [vmem:[#allocation2 + $0x410] sm:$0xff]
    %v405 = vld [vmem:[#allocation2 + $0x418] sm:$0xff]
    %v406 = vld [vmem:[#allocation2 + $0x420] sm:$0xf]
    %v407 = vld [vmem:[#allocation2 + $0x424] sm:$0xff]
    %v408 = vld [vmem:[#allocation2 + $0x42c] sm:$0xff]
    %v409 = vld [vmem:[#allocation2 + $0x434] sm:$0xf]
    %v410 = vld [vmem:[#allocation2 + $0x438] sm:$0xff]
    %v411 = vld [vmem:[#allocation2 + $0x440] sm:$0xff]
    %v412 = vld [vmem:[#allocation2 + $0x448] sm:$0xf]
    %v413 = vld [vmem:[#allocation2 + $0x44c] sm:$0xff]
    %v414 = vld [vmem:[#allocation2 + $0x454] sm:$0xff]
    %v415 = vld [vmem:[#allocation2 + $0x45c] sm:$0xf]
    %v416 = vld [vmem:[#allocation2 + $0x460] sm:$0xff]
    %v417 = vld [vmem:[#allocation2 + $0x468] sm:$0xff]
    %v418 = vld [vmem:[#allocation2 + $0x470] sm:$0xf]
    %v419 = vld [vmem:[#allocation2 + $0x474] sm:$0xff]
    %v420 = vld [vmem:[#allocation2 + $0x47c] sm:$0xff]
    %v421 = vld [vmem:[#allocation2 + $0x484] sm:$0xf]
    %v422 = vld [vmem:[#allocation2 + $0x488] sm:$0xff]
    %v423 = vld [vmem:[#allocation2 + $0x490] sm:$0xff]
    %v424 = vld [vmem:[#allocation2 + $0x498] sm:$0xf]
    %v425 = vld [vmem:[#allocation2 + $0x49c] sm:$0xff]
    %v426 = vld [vmem:[#allocation2 + $0x4a4] sm:$0xff]
    %v427 = vld [vmem:[#allocation2 + $0x4ac] sm:$0xf]
    %v428 = vld [vmem:[#allocation2 + $0x4b0] sm:$0xff]
    %v429 = vld [vmem:[#allocation2 + $0x4b8] sm:$0xff]
    %v430 = vld [vmem:[#allocation2 + $0x4c0] sm:$0xf]
    %v431 = vld [vmem:[#allocation2 + $0x4c4] sm:$0xff]
    %v432 = vld [vmem:[#allocation2 + $0x4cc] sm:$0xff]
    %v433 = vld [vmem:[#allocation2 + $0x4d4] sm:$0xf]
    %v434 = vld [vmem:[#allocation2 + $0x4d8] sm:$0xff]
    %v435 = vld [vmem:[#allocation2 + $0x4e0] sm:$0xff]
    %v436 = vld [vmem:[#allocation2 + $0x4e8] sm:$0xf]
    %v437 = vld [vmem:[#allocation2 + $0x4ec] sm:$0xff]
    %v438 = vld [vmem:[#allocation2 + $0x4f4] sm:$0xff]
    %v439 = vld [vmem:[#allocation2 + $0x4fc] sm:$0xf]
    %v440 = vld [vmem:[#allocation2 + $0x500] sm:$0xff]
    %v441 = vld [vmem:[#allocation2 + $0x508] sm:$0xff]
    %v442 = vld [vmem:[#allocation2 + $0x510] sm:$0xf]
    %v443 = vld [vmem:[#allocation2 + $0x514] sm:$0xff]
    %v444 = vld [vmem:[#allocation2 + $0x51c] sm:$0xff]
    %v445 = vld [vmem:[#allocation2 + $0x524] sm:$0xf]
    %v446 = vld [vmem:[#allocation2 + $0x528] sm:$0xff]
    %v447 = vld [vmem:[#allocation2 + $0x530] sm:$0xff]
    %v448 = vld [vmem:[#allocation2 + $0x538] sm:$0xf]
    %v449 = vld [vmem:[#allocation2 + $0x53c] sm:$0xff]
    %v450 = vld [vmem:[#allocation2 + $0x544] sm:$0xff]
    %v451 = vld [vmem:[#allocation2 + $0x54c] sm:$0xf]
    %v452 = vld [vmem:[#allocation2 + $0x550] sm:$0xff]
    %v453 = vld [vmem:[#allocation2 + $0x558] sm:$0xff]
    %v454 = vld [vmem:[#allocation2 + $0x560] sm:$0xf]
    %v455 = vld [vmem:[#allocation2 + $0x564] sm:$0xff]
    %v456 = vld [vmem:[#allocation2 + $0x56c] sm:$0xff]
    %v457 = vld [vmem:[#allocation2 + $0x574] sm:$0xf]
    %v458 = vld [vmem:[#allocation2 + $0x578] sm:$0xff]
    %v459 = vld [vmem:[#allocation2 + $0x580] sm:$0xff]
    %v460 = vld [vmem:[#allocation2 + $0x588] sm:$0xf]
    %v461 = vld [vmem:[#allocation2 + $0x58c] sm:$0xff]
    %v462 = vld [vmem:[#allocation2 + $0x594] sm:$0xff]
    %v463 = vld [vmem:[#allocation2 + $0x59c] sm:$0xf]
    %v464 = vld [vmem:[#allocation2 + $0x5a0] sm:$0xff]
    %v465 = vld [vmem:[#allocation2 + $0x5a8] sm:$0xff]
    %v466 = vld [vmem:[#allocation2 + $0x5b0] sm:$0xf]
    %v467 = vld [vmem:[#allocation2 + $0x5b4] sm:$0xff]
    %v468 = vld [vmem:[#allocation2 + $0x5bc] sm:$0xff]
    %v469 = vld [vmem:[#allocation2 + $0x5c4] sm:$0xf]
    %v470 = vld [vmem:[#allocation2 + $0x5c8] sm:$0xff]
    %v471 = vld [vmem:[#allocation2 + $0x5d0] sm:$0xff]
    %v472 = vld [vmem:[#allocation2 + $0x5d8] sm:$0xf]
    %v473 = vld [vmem:[#allocation2 + $0x5dc] sm:$0xff]
    %v474 = vld [vmem:[#allocation2 + $0x5e4] sm:$0xff]
    %v475 = vld [vmem:[#allocation2 + $0x5ec] sm:$0xf]
    %v476 = vld [vmem:[#allocation2 + $0x5f0] sm:$0xff]
    %v477 = vld [vmem:[#allocation2 + $0x5f8] sm:$0xff]
    %v478 = vld [vmem:[#allocation2 + $0x600] sm:$0xf]
    %v479 = vld [vmem:[#allocation2 + $0x604] sm:$0xff]
    %v480 = vld [vmem:[#allocation2 + $0x60c] sm:$0xff]
    %v481 = vld [vmem:[#allocation2 + $0x614] sm:$0xf]
    %v482 = vld [vmem:[#allocation2 + $0x618] sm:$0xff]
    %v483 = vld [vmem:[#allocation2 + $0x620] sm:$0xff]
    %v484 = vld [vmem:[#allocation2 + $0x628] sm:$0xf]
    %v485 = vld [vmem:[#allocation2 + $0x62c] sm:$0xff]
    %v486 = vld [vmem:[#allocation2 + $0x634] sm:$0xff]
    %v487 = vld [vmem:[#allocation2 + $0x63c] sm:$0xf]
    %v488 = vld [vmem:[#allocation2 + $0x640] sm:$0xff]
    %v489 = vld [vmem:[#allocation2 + $0x648] sm:$0xff]
    %v490 = vld [vmem:[#allocation2 + $0x650] sm:$0xf]
    %v491 = vld [vmem:[#allocation2 + $0x654] sm:$0xff]
    %v492 = vld [vmem:[#allocation2 + $0x65c] sm:$0xff]
    %v493 = vld [vmem:[#allocation2 + $0x664] sm:$0xf]
    %v494 = vld [vmem:[#allocation2 + $0x668] sm:$0xff]
    %v495 = vld [vmem:[#allocation2 + $0x670] sm:$0xff]
    %v496 = vld [vmem:[#allocation2 + $0x678] sm:$0xf]
    %v497 = vld [vmem:[#allocation2 + $0x67c] sm:$0xff]
    %v498 = vld [vmem:[#allocation2 + $0x684] sm:$0xff]
    %v499 = vld [vmem:[#allocation2 + $0x68c] sm:$0xf]
    %v500 = vld [vmem:[#allocation2 + $0x690] sm:$0xff]
    %v501 = vld [vmem:[#allocation2 + $0x698] sm:$0xff]
    %v502 = vld [vmem:[#allocation2 + $0x6a0] sm:$0xf]
    %v503 = vld [vmem:[#allocation2 + $0x6a4] sm:$0xff]
    %v504 = vld [vmem:[#allocation2 + $0x6ac] sm:$0xff]
    %v505 = vld [vmem:[#allocation2 + $0x6b4] sm:$0xf]
    %v506 = vld [vmem:[#allocation2 + $0x6b8] sm:$0xff]
    %v507 = vld [vmem:[#allocation2 + $0x6c0] sm:$0xff]
    %v508 = vld [vmem:[#allocation2 + $0x6c8] sm:$0xf]
    %v509 = vld [vmem:[#allocation2 + $0x6cc] sm:$0xff]
    %v510 = vld [vmem:[#allocation2 + $0x6d4] sm:$0xff]
    %v511 = vld [vmem:[#allocation2 + $0x6dc] sm:$0xf]
    %v512 = vld [vmem:[#allocation2 + $0x6e0] sm:$0xff]
    %v513 = vld [vmem:[#allocation2 + $0x6e8] sm:$0xff]
    %v514 = vld [vmem:[#allocation2 + $0x6f0] sm:$0xf]
    %v515 = vld [vmem:[#allocation2 + $0x6f4] sm:$0xff]
    %v516 = vld [vmem:[#allocation2 + $0x6fc] sm:$0xff]
    %v517 = vld [vmem:[#allocation2 + $0x704] sm:$0xf]
    %v518 = vld [vmem:[#allocation2 + $0x708] sm:$0xff]
    %v519 = vld [vmem:[#allocation2 + $0x710] sm:$0xff]
    %v520 = vld [vmem:[#allocation2 + $0x718] sm:$0xf]
    %v521 = vld [vmem:[#allocation2 + $0x71c] sm:$0xff]
    %v522 = vld [vmem:[#allocation2 + $0x724] sm:$0xff]
    %v523 = vld [vmem:[#allocation2 + $0x72c] sm:$0xf]
    %v524 = vld [vmem:[#allocation2 + $0x730] sm:$0xff]
    %v525 = vld [vmem:[#allocation2 + $0x738] sm:$0xff]
    %v526 = vld [vmem:[#allocation2 + $0x740] sm:$0xf]
    %v527 = vld [vmem:[#allocation2 + $0x744] sm:$0xff]
    %v528 = vld [vmem:[#allocation2 + $0x74c] sm:$0xff]
    %v529 = vld [vmem:[#allocation2 + $0x754] sm:$0xf]
    %v530 = vld [vmem:[#allocation2 + $0x758] sm:$0xff]
    %v531 = vld [vmem:[#allocation2 + $0x760] sm:$0xff]
    %v532 = vld [vmem:[#allocation2 + $0x768] sm:$0xf]
    %v533 = vld [vmem:[#allocation2 + $0x76c] sm:$0xff]
    %v534 = vld [vmem:[#allocation2 + $0x774] sm:$0xff]
    %v535 = vld [vmem:[#allocation2 + $0x77c] sm:$0xf]
    %v536 = vld [vmem:[#allocation2 + $0x780] sm:$0xff]
    %v537 = vld [vmem:[#allocation2 + $0x788] sm:$0xff]
    %v538 = vld [vmem:[#allocation2 + $0x790] sm:$0xf]
    %v539 = vld [vmem:[#allocation2 + $0x794] sm:$0xff]
    %v540 = vld [vmem:[#allocation2 + $0x79c] sm:$0xff]
    %v541 = vld [vmem:[#allocation2 + $0x7a4] sm:$0xf]
    %v542 = vld [vmem:[#allocation2 + $0x7a8] sm:$0xff]
    %v543 = vld [vmem:[#allocation2 + $0x7b0] sm:$0xff]
    %v544 = vld [vmem:[#allocation2 + $0x7b8] sm:$0xf]
    %v545 = vld [vmem:[#allocation2 + $0x7bc] sm:$0xff]
    %v546 = vld [vmem:[#allocation2 + $0x7c4] sm:$0xff]
    %v547 = vld [vmem:[#allocation2 + $0x7cc] sm:$0xf]
    %v548 = vld [vmem:[#allocation2 + $0x7d0] sm:$0xff]
    %v549 = vld [vmem:[#allocation2 + $0x7d8] sm:$0xff]
    %v550 = vld [vmem:[#allocation2 + $0x7e0] sm:$0xf]
    %v551 = vld [vmem:[#allocation2 + $0x7e4] sm:$0xff]
    %v552 = vld [vmem:[#allocation2 + $0x7ec] sm:$0xff]
    %v553 = vld [vmem:[#allocation2 + $0x7f4] sm:$0xf]
    %v554 = vld [vmem:[#allocation2 + $0x7f8] sm:$0xff]
    %v555 = vld [vmem:[#allocation2 + $0x800] sm:$0xff]
    %v556 = vld [vmem:[#allocation2 + $0x808] sm:$0xf]
    %v557 = vld [vmem:[#allocation2 + $0x80c] sm:$0xff]
    %v558 = vld [vmem:[#allocation2 + $0x814] sm:$0xff]
    %v559 = vld [vmem:[#allocation2 + $0x81c] sm:$0xf]
    %v560 = vld [vmem:[#allocation2 + $0x820] sm:$0xff]
    %v561 = vld [vmem:[#allocation2 + $0x828] sm:$0xff]
    %v562 = vld [vmem:[#allocation2 + $0x830] sm:$0xf]
    %v563 = vld [vmem:[#allocation2 + $0x834] sm:$0xff]
    %v564 = vld [vmem:[#allocation2 + $0x83c] sm:$0xff]
    %v565 = vld [vmem:[#allocation2 + $0x844] sm:$0xf]
    %v566 = vld [vmem:[#allocation2 + $0x848] sm:$0xff]
    %v567 = vld [vmem:[#allocation2 + $0x850] sm:$0xff]
    %v568 = vld [vmem:[#allocation2 + $0x858] sm:$0xf]
    %v569 = vld [vmem:[#allocation2 + $0x85c] sm:$0xff]
    %v570 = vld [vmem:[#allocation2 + $0x864] sm:$0xff]
    %v571 = vld [vmem:[#allocation2 + $0x86c] sm:$0xf]
    %v572 = vld [vmem:[#allocation2 + $0x870] sm:$0xff]
    %v573 = vld [vmem:[#allocation2 + $0x878] sm:$0xff]
    %v574 = vld [vmem:[#allocation2 + $0x880] sm:$0xf]
    %v575 = vld [vmem:[#allocation2 + $0x884] sm:$0xff]
    %v576 = vld [vmem:[#allocation2 + $0x88c] sm:$0xff]
    %v577 = vld [vmem:[#allocation2 + $0x894] sm:$0xf]
    %v578 = vld [vmem:[#allocation2 + $0x898] sm:$0xff]
    %v579 = vld [vmem:[#allocation2 + $0x8a0] sm:$0xff]
    %v580 = vld [vmem:[#allocation2 + $0x8a8] sm:$0xf]
    %v581 = vld [vmem:[#allocation2 + $0x8ac] sm:$0xff]
    %v582 = vld [vmem:[#allocation2 + $0x8b4] sm:$0xff]
    %v583 = vld [vmem:[#allocation2 + $0x8bc] sm:$0xf]
    %v584 = vld [vmem:[#allocation4] sm:$0x1f]
    %v586 = vlaneseq
    %v587 = vshrl.u32 %v586, 7
    %v588 = vsub.s32 0, %v587
    %v589 = vrot.slane %v584, %v588
    %v590 = vlaneseq
    %v591 = vshrl.u32 %v590, 7
    %v592 = vsub.s32 1, %v591
    %v593 = vrot.slane %v584, %v592
    %v594 = vlaneseq
    %v595 = vshrl.u32 %v594, 7
    %v596 = vsub.s32 2, %v595
    %v597 = vrot.slane %v584, %v596
    %v598 = vlaneseq
    %v599 = vshrl.u32 %v598, 7
    %v600 = vsub.s32 3, %v599
    %v601 = vrot.slane %v584, %v600
    %v602 = vlaneseq
    %v603 = vshrl.u32 %v602, 7
    %v604 = vsub.s32 4, %v603
    %v605 = vrot.slane %v584, %v604
    %v947 = vunpack.c.l.b16 %v248
    %v948 = vunpack.c.h.b16 %v248
    %v949 = vunpack.c.l.b16 %v249
    %v950 = vunpack.c.h.b16 %v249
    %v951 = vunpack.c.l.b16 %v250
    %v952 = vunpack.c.l.b16 %v251
    %v953 = vunpack.c.h.b16 %v251
    %v954 = vunpack.c.l.b16 %v252
    %v955 = vunpack.c.h.b16 %v252
    %v956 = vunpack.c.l.b16 %v253
    %v957 = vunpack.c.l.b16 %v254
    %v958 = vunpack.c.h.b16 %v254
    %v959 = vunpack.c.l.b16 %v255
    %v960 = vunpack.c.h.b16 %v255
    %v961 = vunpack.c.l.b16 %v256
    %v962 = vunpack.c.l.b16 %v257
    %v963 = vunpack.c.h.b16 %v257
    %v964 = vunpack.c.l.b16 %v258
    %v965 = vunpack.c.h.b16 %v258
    %v966 = vunpack.c.l.b16 %v259
    %v967 = vunpack.c.l.b16 %v260
    %v968 = vunpack.c.h.b16 %v260
    %v969 = vunpack.c.l.b16 %v261
    %v970 = vunpack.c.h.b16 %v261
    %v971 = vunpack.c.l.b16 %v262
    %v972 = vunpack.c.l.b16 %v263
    %v973 = vunpack.c.h.b16 %v263
    %v974 = vunpack.c.l.b16 %v264
    %v975 = vunpack.c.h.b16 %v264
    %v976 = vunpack.c.l.b16 %v265
    %v977 = vunpack.c.l.b16 %v266
    %v978 = vunpack.c.h.b16 %v266
    %v979 = vunpack.c.l.b16 %v267
    %v980 = vunpack.c.h.b16 %v267
    %v981 = vunpack.c.l.b16 %v268
    %v982 = vunpack.c.l.b16 %v269
    %v983 = vunpack.c.h.b16 %v269
    %v984 = vunpack.c.l.b16 %v270
    %v985 = vunpack.c.h.b16 %v270
    %v986 = vunpack.c.l.b16 %v271
    %v987 = vunpack.c.l.b16 %v272
    %v988 = vunpack.c.h.b16 %v272
    %v989 = vunpack.c.l.b16 %v273
    %v990 = vunpack.c.h.b16 %v273
    %v991 = vunpack.c.l.b16 %v274
    %v992 = vunpack.c.l.b16 %v275
    %v993 = vunpack.c.h.b16 %v275
    %v994 = vunpack.c.l.b16 %v276
    %v995 = vunpack.c.h.b16 %v276
    %v996 = vunpack.c.l.b16 %v277
    %v997 = vunpack.c.l.b16 %v278
    %v998 = vunpack.c.h.b16 %v278
    %v999 = vunpack.c.l.b16 %v279
    %v1000 = vunpack.c.h.b16 %v279
    %v1001 = vunpack.c.l.b16 %v280
    %v1002 = vunpack.c.l.b16 %v281
    %v1003 = vunpack.c.h.b16 %v281
    %v1004 = vunpack.c.l.b16 %v282
    %v1005 = vunpack.c.h.b16 %v282
    %v1006 = vunpack.c.l.b16 %v283
    %v1007 = vunpack.c.l.b16 %v284
    %v1008 = vunpack.c.h.b16 %v284
    %v1009 = vunpack.c.l.b16 %v285
    %v1010 = vunpack.c.h.b16 %v285
    %v1011 = vunpack.c.l.b16 %v286
    %v1012 = vunpack.c.l.b16 %v287
    %v1013 = vunpack.c.h.b16 %v287
    %v1014 = vunpack.c.l.b16 %v288
    %v1015 = vunpack.c.h.b16 %v288
    %v1016 = vunpack.c.l.b16 %v289
    %v1017 = vunpack.c.l.b16 %v290
    %v1018 = vunpack.c.h.b16 %v290
    %v1019 = vunpack.c.l.b16 %v291
    %v1020 = vunpack.c.h.b16 %v291
    %v1021 = vunpack.c.l.b16 %v292
    %v1022 = vunpack.c.l.b16 %v293
    %v1023 = vunpack.c.h.b16 %v293
    %v1024 = vunpack.c.l.b16 %v294
    %v1025 = vunpack.c.h.b16 %v294
    %v1026 = vunpack.c.l.b16 %v295
    %v1027 = vunpack.c.l.b16 %v296
    %v1028 = vunpack.c.h.b16 %v296
    %v1029 = vunpack.c.l.b16 %v297
    %v1030 = vunpack.c.h.b16 %v297
    %v1031 = vunpack.c.l.b16 %v298
    %v1032 = vunpack.c.l.b16 %v299
    %v1033 = vunpack.c.h.b16 %v299
    %v1034 = vunpack.c.l.b16 %v300
    %v1035 = vunpack.c.h.b16 %v300
    %v1036 = vunpack.c.l.b16 %v301
    %v1037 = vunpack.c.l.b16 %v302
    %v1038 = vunpack.c.h.b16 %v302
    %v1039 = vunpack.c.l.b16 %v303
    %v1040 = vunpack.c.h.b16 %v303
    %v1041 = vunpack.c.l.b16 %v304
    %v1042 = vunpack.c.l.b16 %v305
    %v1043 = vunpack.c.h.b16 %v305
    %v1044 = vunpack.c.l.b16 %v306
    %v1045 = vunpack.c.h.b16 %v306
    %v1046 = vunpack.c.l.b16 %v307
    %v1047 = vunpack.c.l.b16 %v308
    %v1048 = vunpack.c.h.b16 %v308
    %v1049 = vunpack.c.l.b16 %v309
    %v1050 = vunpack.c.h.b16 %v309
    %v1051 = vunpack.c.l.b16 %v310
    %v1052 = vunpack.c.l.b16 %v311
    %v1053 = vunpack.c.h.b16 %v311
    %v1054 = vunpack.c.l.b16 %v312
    %v1055 = vunpack.c.h.b16 %v312
    %v1056 = vunpack.c.l.b16 %v313
    %v1057 = vunpack.c.l.b16 %v314
    %v1058 = vunpack.c.h.b16 %v314
    %v1059 = vunpack.c.l.b16 %v315
    %v1060 = vunpack.c.h.b16 %v315
    %v1061 = vunpack.c.l.b16 %v316
    %v1062 = vunpack.c.l.b16 %v317
    %v1063 = vunpack.c.h.b16 %v317
    %v1064 = vunpack.c.l.b16 %v318
    %v1065 = vunpack.c.h.b16 %v318
    %v1066 = vunpack.c.l.b16 %v319
    %v1067 = vunpack.c.l.b16 %v320
    %v1068 = vunpack.c.h.b16 %v320
    %v1069 = vunpack.c.l.b16 %v321
    %v1070 = vunpack.c.h.b16 %v321
    %v1071 = vunpack.c.l.b16 %v322
    %v1072 = vunpack.c.l.b16 %v323
    %v1073 = vunpack.c.h.b16 %v323
    %v1074 = vunpack.c.l.b16 %v324
    %v1075 = vunpack.c.h.b16 %v324
    %v1076 = vunpack.c.l.b16 %v325
    %v1077 = vunpack.c.l.b16 %v326
    %v1078 = vunpack.c.h.b16 %v326
    %v1079 = vunpack.c.l.b16 %v327
    %v1080 = vunpack.c.h.b16 %v327
    %v1081 = vunpack.c.l.b16 %v328
    %v1082 = vunpack.c.l.b16 %v329
    %v1083 = vunpack.c.h.b16 %v329
    %v1084 = vunpack.c.l.b16 %v330
    %v1085 = vunpack.c.h.b16 %v330
    %v1086 = vunpack.c.l.b16 %v331
    %v1087 = vunpack.c.l.b16 %v332
    %v1088 = vunpack.c.h.b16 %v332
    %v1089 = vunpack.c.l.b16 %v333
    %v1090 = vunpack.c.h.b16 %v333
    %v1091 = vunpack.c.l.b16 %v334
    %v1092 = vunpack.c.l.b16 %v335
    %v1093 = vunpack.c.h.b16 %v335
    %v1094 = vunpack.c.l.b16 %v336
    %v1095 = vunpack.c.h.b16 %v336
    %v1096 = vunpack.c.l.b16 %v337
    %v1097 = vunpack.c.l.b16 %v338
    %v1098 = vunpack.c.h.b16 %v338
    %v1099 = vunpack.c.l.b16 %v339
    %v1100 = vunpack.c.h.b16 %v339
    %v1101 = vunpack.c.l.b16 %v340
    %v1102 = vunpack.c.l.b16 %v341
    %v1103 = vunpack.c.h.b16 %v341
    %v1104 = vunpack.c.l.b16 %v342
    %v1105 = vunpack.c.h.b16 %v342
    %v1106 = vunpack.c.l.b16 %v343
    %v1107 = vunpack.c.l.b16 %v344
    %v1108 = vunpack.c.h.b16 %v344
    %v1109 = vunpack.c.l.b16 %v345
    %v1110 = vunpack.c.h.b16 %v345
    %v1111 = vunpack.c.l.b16 %v346
    %v1112 = vunpack.c.l.b16 %v347
    %v1113 = vunpack.c.h.b16 %v347
    %v1114 = vunpack.c.l.b16 %v348
    %v1115 = vunpack.c.h.b16 %v348
    %v1116 = vunpack.c.l.b16 %v349
    %v1117 = vunpack.c.l.b16 %v350
    %v1118 = vunpack.c.h.b16 %v350
    %v1119 = vunpack.c.l.b16 %v351
    %v1120 = vunpack.c.h.b16 %v351
    %v1121 = vunpack.c.l.b16 %v352
    %v1122 = vunpack.c.l.b16 %v353
    %v1123 = vunpack.c.h.b16 %v353
    %v1124 = vunpack.c.l.b16 %v354
    %v1125 = vunpack.c.h.b16 %v354
    %v1126 = vunpack.c.l.b16 %v355
    %v1127 = vunpack.c.l.b16 %v356
    %v1128 = vunpack.c.h.b16 %v356
    %v1129 = vunpack.c.l.b16 %v357
    %v1130 = vunpack.c.h.b16 %v357
    %v1131 = vunpack.c.l.b16 %v358
    %v1132 = vunpack.c.l.b16 %v359
    %v1133 = vunpack.c.h.b16 %v359
    %v1134 = vunpack.c.l.b16 %v360
    %v1135 = vunpack.c.h.b16 %v360
    %v1136 = vunpack.c.l.b16 %v361
    %v1137 = vunpack.c.l.b16 %v362
    %v1138 = vunpack.c.h.b16 %v362
    %v1139 = vunpack.c.l.b16 %v363
    %v1140 = vunpack.c.h.b16 %v363
    %v1141 = vunpack.c.l.b16 %v364
    %v1142 = vunpack.c.l.b16 %v365
    %v1143 = vunpack.c.h.b16 %v365
    %v1144 = vunpack.c.l.b16 %v366
    %v1145 = vunpack.c.h.b16 %v366
    %v1146 = vunpack.c.l.b16 %v367
    %v1147 = vunpack.c.l.b16 %v368
    %v1148 = vunpack.c.h.b16 %v368
    %v1149 = vunpack.c.l.b16 %v369
    %v1150 = vunpack.c.h.b16 %v369
    %v1151 = vunpack.c.l.b16 %v370
    %v1152 = vunpack.c.l.b16 %v371
    %v1153 = vunpack.c.h.b16 %v371
    %v1154 = vunpack.c.l.b16 %v372
    %v1155 = vunpack.c.h.b16 %v372
    %v1156 = vunpack.c.l.b16 %v373
    %v1157 = vunpack.c.l.b16 %v374
    %v1158 = vunpack.c.h.b16 %v374
    %v1159 = vunpack.c.l.b16 %v375
    %v1160 = vunpack.c.h.b16 %v375
    %v1161 = vunpack.c.l.b16 %v376
    %v1162 = vunpack.c.l.b16 %v377
    %v1163 = vunpack.c.h.b16 %v377
    %v1164 = vunpack.c.l.b16 %v378
    %v1165 = vunpack.c.h.b16 %v378
    %v1166 = vunpack.c.l.b16 %v379
    %v1167 = vunpack.c.l.b16 %v380
    %v1168 = vunpack.c.h.b16 %v380
    %v1169 = vunpack.c.l.b16 %v381
    %v1170 = vunpack.c.h.b16 %v381
    %v1171 = vunpack.c.l.b16 %v382
    %v1172 = vunpack.c.l.b16 %v383
    %v1173 = vunpack.c.h.b16 %v383
    %v1174 = vunpack.c.l.b16 %v384
    %v1175 = vunpack.c.h.b16 %v384
    %v1176 = vunpack.c.l.b16 %v385
    %v1177 = vunpack.c.l.b16 %v386
    %v1178 = vunpack.c.h.b16 %v386
    %v1179 = vunpack.c.l.b16 %v387
    %v1180 = vunpack.c.h.b16 %v387
    %v1181 = vunpack.c.l.b16 %v388
    %v1182 = vunpack.c.l.b16 %v389
    %v1183 = vunpack.c.h.b16 %v389
    %v1184 = vunpack.c.l.b16 %v390
    %v1185 = vunpack.c.h.b16 %v390
    %v1186 = vunpack.c.l.b16 %v391
    %v1187 = vunpack.c.l.b16 %v392
    %v1188 = vunpack.c.h.b16 %v392
    %v1189 = vunpack.c.l.b16 %v393
    %v1190 = vunpack.c.h.b16 %v393
    %v1191 = vunpack.c.l.b16 %v394
    %v1192 = vunpack.c.l.b16 %v395
    %v1193 = vunpack.c.h.b16 %v395
    %v1194 = vunpack.c.l.b16 %v396
    %v1195 = vunpack.c.h.b16 %v396
    %v1196 = vunpack.c.l.b16 %v397
    %v1197 = vunpack.c.l.b16 %v398
    %v1198 = vunpack.c.h.b16 %v398
    %v1199 = vunpack.c.l.b16 %v399
    %v1200 = vunpack.c.h.b16 %v399
    %v1201 = vunpack.c.l.b16 %v400
    %v1202 = vunpack.c.l.b16 %v401
    %v1203 = vunpack.c.h.b16 %v401
    %v1204 = vunpack.c.l.b16 %v402
    %v1205 = vunpack.c.h.b16 %v402
    %v1206 = vunpack.c.l.b16 %v403
    %v1207 = vunpack.c.l.b16 %v404
    %v1208 = vunpack.c.h.b16 %v404
    %v1209 = vunpack.c.l.b16 %v405
    %v1210 = vunpack.c.h.b16 %v405
    %v1211 = vunpack.c.l.b16 %v406
    %v1212 = vunpack.c.l.b16 %v407
    %v1213 = vunpack.c.h.b16 %v407
    %v1214 = vunpack.c.l.b16 %v408
    %v1215 = vunpack.c.h.b16 %v408
    %v1216 = vunpack.c.l.b16 %v409
    %v1217 = vunpack.c.l.b16 %v410
    %v1218 = vunpack.c.h.b16 %v410
    %v1219 = vunpack.c.l.b16 %v411
    %v1220 = vunpack.c.h.b16 %v411
    %v1221 = vunpack.c.l.b16 %v412
    %v1222 = vunpack.c.l.b16 %v413
    %v1223 = vunpack.c.h.b16 %v413
    %v1224 = vunpack.c.l.b16 %v414
    %v1225 = vunpack.c.h.b16 %v414
    %v1226 = vunpack.c.l.b16 %v415
    %v1227 = vunpack.c.l.b16 %v416
    %v1228 = vunpack.c.h.b16 %v416
    %v1229 = vunpack.c.l.b16 %v417
    %v1230 = vunpack.c.h.b16 %v417
    %v1231 = vunpack.c.l.b16 %v418
    %v1232 = vunpack.c.l.b16 %v419
    %v1233 = vunpack.c.h.b16 %v419
    %v1234 = vunpack.c.l.b16 %v420
    %v1235 = vunpack.c.h.b16 %v420
    %v1236 = vunpack.c.l.b16 %v421
    %v1237 = vunpack.c.l.b16 %v422
    %v1238 = vunpack.c.h.b16 %v422
    %v1239 = vunpack.c.l.b16 %v423
    %v1240 = vunpack.c.h.b16 %v423
    %v1241 = vunpack.c.l.b16 %v424
    %v1242 = vunpack.c.l.b16 %v425
    %v1243 = vunpack.c.h.b16 %v425
    %v1244 = vunpack.c.l.b16 %v426
    %v1245 = vunpack.c.h.b16 %v426
    %v1246 = vunpack.c.l.b16 %v427
    %v1247 = vunpack.c.l.b16 %v428
    %v1248 = vunpack.c.h.b16 %v428
    %v1249 = vunpack.c.l.b16 %v429
    %v1250 = vunpack.c.h.b16 %v429
    %v1251 = vunpack.c.l.b16 %v430
    %v1252 = vunpack.c.l.b16 %v431
    %v1253 = vunpack.c.h.b16 %v431
    %v1254 = vunpack.c.l.b16 %v432
    %v1255 = vunpack.c.h.b16 %v432
    %v1256 = vunpack.c.l.b16 %v433
    %v1257 = vunpack.c.l.b16 %v434
    %v1258 = vunpack.c.h.b16 %v434
    %v1259 = vunpack.c.l.b16 %v435
    %v1260 = vunpack.c.h.b16 %v435
    %v1261 = vunpack.c.l.b16 %v436
    %v1262 = vunpack.c.l.b16 %v437
    %v1263 = vunpack.c.h.b16 %v437
    %v1264 = vunpack.c.l.b16 %v438
    %v1265 = vunpack.c.h.b16 %v438
    %v1266 = vunpack.c.l.b16 %v439
    %v1267 = vunpack.c.l.b16 %v440
    %v1268 = vunpack.c.h.b16 %v440
    %v1269 = vunpack.c.l.b16 %v441
    %v1270 = vunpack.c.h.b16 %v441
    %v1271 = vunpack.c.l.b16 %v442
    %v1272 = vunpack.c.l.b16 %v443
    %v1273 = vunpack.c.h.b16 %v443
    %v1274 = vunpack.c.l.b16 %v444
    %v1275 = vunpack.c.h.b16 %v444
    %v1276 = vunpack.c.l.b16 %v445
    %v1277 = vunpack.c.l.b16 %v446
    %v1278 = vunpack.c.h.b16 %v446
    %v1279 = vunpack.c.l.b16 %v447
    %v1280 = vunpack.c.h.b16 %v447
    %v1281 = vunpack.c.l.b16 %v448
    %v1282 = vunpack.c.l.b16 %v449
    %v1283 = vunpack.c.h.b16 %v449
    %v1284 = vunpack.c.l.b16 %v450
    %v1285 = vunpack.c.h.b16 %v450
    %v1286 = vunpack.c.l.b16 %v451
    %v1287 = vunpack.c.l.b16 %v452
    %v1288 = vunpack.c.h.b16 %v452
    %v1289 = vunpack.c.l.b16 %v453
    %v1290 = vunpack.c.h.b16 %v453
    %v1291 = vunpack.c.l.b16 %v454
    %v1292 = vunpack.c.l.b16 %v455
    %v1293 = vunpack.c.h.b16 %v455
    %v1294 = vunpack.c.l.b16 %v456
    %v1295 = vunpack.c.h.b16 %v456
    %v1296 = vunpack.c.l.b16 %v457
    %v1297 = vunpack.c.l.b16 %v458
    %v1298 = vunpack.c.h.b16 %v458
    %v1299 = vunpack.c.l.b16 %v459
    %v1300 = vunpack.c.h.b16 %v459
    %v1301 = vunpack.c.l.b16 %v460
    %v1302 = vunpack.c.l.b16 %v461
    %v1303 = vunpack.c.h.b16 %v461
    %v1304 = vunpack.c.l.b16 %v462
    %v1305 = vunpack.c.h.b16 %v462
    %v1306 = vunpack.c.l.b16 %v463
    %v1307 = vunpack.c.l.b16 %v464
    %v1308 = vunpack.c.h.b16 %v464
    %v1309 = vunpack.c.l.b16 %v465
    %v1310 = vunpack.c.h.b16 %v465
    %v1311 = vunpack.c.l.b16 %v466
    %v1312 = vunpack.c.l.b16 %v467
    %v1313 = vunpack.c.h.b16 %v467
    %v1314 = vunpack.c.l.b16 %v468
    %v1315 = vunpack.c.h.b16 %v468
    %v1316 = vunpack.c.l.b16 %v469
    %v1317 = vunpack.c.l.b16 %v470
    %v1318 = vunpack.c.h.b16 %v470
    %v1319 = vunpack.c.l.b16 %v471
    %v1320 = vunpack.c.h.b16 %v471
    %v1321 = vunpack.c.l.b16 %v472
    %v1322 = vunpack.c.l.b16 %v473
    %v1323 = vunpack.c.h.b16 %v473
    %v1324 = vunpack.c.l.b16 %v474
    %v1325 = vunpack.c.h.b16 %v474
    %v1326 = vunpack.c.l.b16 %v475
    %v1327 = vunpack.c.l.b16 %v476
    %v1328 = vunpack.c.h.b16 %v476
    %v1329 = vunpack.c.l.b16 %v477
    %v1330 = vunpack.c.h.b16 %v477
    %v1331 = vunpack.c.l.b16 %v478
    %v1332 = vunpack.c.l.b16 %v479
    %v1333 = vunpack.c.h.b16 %v479
    %v1334 = vunpack.c.l.b16 %v480
    %v1335 = vunpack.c.h.b16 %v480
    %v1336 = vunpack.c.l.b16 %v481
    %v1337 = vunpack.c.l.b16 %v482
    %v1338 = vunpack.c.h.b16 %v482
    %v1339 = vunpack.c.l.b16 %v483
    %v1340 = vunpack.c.h.b16 %v483
    %v1341 = vunpack.c.l.b16 %v484
    %v1342 = vunpack.c.l.b16 %v485
    %v1343 = vunpack.c.h.b16 %v485
    %v1344 = vunpack.c.l.b16 %v486
    %v1345 = vunpack.c.h.b16 %v486
    %v1346 = vunpack.c.l.b16 %v487
    %v1347 = vunpack.c.l.b16 %v488
    %v1348 = vunpack.c.h.b16 %v488
    %v1349 = vunpack.c.l.b16 %v489
    %v1350 = vunpack.c.h.b16 %v489
    %v1351 = vunpack.c.l.b16 %v490
    %v1352 = vunpack.c.l.b16 %v491
    %v1353 = vunpack.c.h.b16 %v491
    %v1354 = vunpack.c.l.b16 %v492
    %v1355 = vunpack.c.h.b16 %v492
    %v1356 = vunpack.c.l.b16 %v493
    %v1357 = vunpack.c.l.b16 %v494
    %v1358 = vunpack.c.h.b16 %v494
    %v1359 = vunpack.c.l.b16 %v495
    %v1360 = vunpack.c.h.b16 %v495
    %v1361 = vunpack.c.l.b16 %v496
    %v1362 = vunpack.c.l.b16 %v497
    %v1363 = vunpack.c.h.b16 %v497
    %v1364 = vunpack.c.l.b16 %v498
    %v1365 = vunpack.c.h.b16 %v498
    %v1366 = vunpack.c.l.b16 %v499
    %v1367 = vunpack.c.l.b16 %v500
    %v1368 = vunpack.c.h.b16 %v500
    %v1369 = vunpack.c.l.b16 %v501
    %v1370 = vunpack.c.h.b16 %v501
    %v1371 = vunpack.c.l.b16 %v502
    %v1372 = vunpack.c.l.b16 %v503
    %v1373 = vunpack.c.h.b16 %v503
    %v1374 = vunpack.c.l.b16 %v504
    %v1375 = vunpack.c.h.b16 %v504
    %v1376 = vunpack.c.l.b16 %v505
    %v1377 = vunpack.c.l.b16 %v506
    %v1378 = vunpack.c.h.b16 %v506
    %v1379 = vunpack.c.l.b16 %v507
    %v1380 = vunpack.c.h.b16 %v507
    %v1381 = vunpack.c.l.b16 %v508
    %v1382 = vunpack.c.l.b16 %v509
    %v1383 = vunpack.c.h.b16 %v509
    %v1384 = vunpack.c.l.b16 %v510
    %v1385 = vunpack.c.h.b16 %v510
    %v1386 = vunpack.c.l.b16 %v511
    %v1387 = vunpack.c.l.b16 %v512
    %v1388 = vunpack.c.h.b16 %v512
    %v1389 = vunpack.c.l.b16 %v513
    %v1390 = vunpack.c.h.b16 %v513
    %v1391 = vunpack.c.l.b16 %v514
    %v1392 = vunpack.c.l.b16 %v515
    %v1393 = vunpack.c.h.b16 %v515
    %v1394 = vunpack.c.l.b16 %v516
    %v1395 = vunpack.c.h.b16 %v516
    %v1396 = vunpack.c.l.b16 %v517
    %v1397 = vunpack.c.l.b16 %v518
    %v1398 = vunpack.c.h.b16 %v518
    %v1399 = vunpack.c.l.b16 %v519
    %v1400 = vunpack.c.h.b16 %v519
    %v1401 = vunpack.c.l.b16 %v520
    %v1402 = vunpack.c.l.b16 %v521
    %v1403 = vunpack.c.h.b16 %v521
    %v1404 = vunpack.c.l.b16 %v522
    %v1405 = vunpack.c.h.b16 %v522
    %v1406 = vunpack.c.l.b16 %v523
    %v1407 = vunpack.c.l.b16 %v524
    %v1408 = vunpack.c.h.b16 %v524
    %v1409 = vunpack.c.l.b16 %v525
    %v1410 = vunpack.c.h.b16 %v525
    %v1411 = vunpack.c.l.b16 %v526
    %v1412 = vunpack.c.l.b16 %v527
    %v1413 = vunpack.c.h.b16 %v527
    %v1414 = vunpack.c.l.b16 %v528
    %v1415 = vunpack.c.h.b16 %v528
    %v1416 = vunpack.c.l.b16 %v529
    %v1417 = vunpack.c.l.b16 %v530
    %v1418 = vunpack.c.h.b16 %v530
    %v1419 = vunpack.c.l.b16 %v531
    %v1420 = vunpack.c.h.b16 %v531
    %v1421 = vunpack.c.l.b16 %v532
    %v1422 = vunpack.c.l.b16 %v533
    %v1423 = vunpack.c.h.b16 %v533
    %v1424 = vunpack.c.l.b16 %v534
    %v1425 = vunpack.c.h.b16 %v534
    %v1426 = vunpack.c.l.b16 %v535
    %v1427 = vunpack.c.l.b16 %v536
    %v1428 = vunpack.c.h.b16 %v536
    %v1429 = vunpack.c.l.b16 %v537
    %v1430 = vunpack.c.h.b16 %v537
    %v1431 = vunpack.c.l.b16 %v538
    %v1432 = vunpack.c.l.b16 %v539
    %v1433 = vunpack.c.h.b16 %v539
    %v1434 = vunpack.c.l.b16 %v540
    %v1435 = vunpack.c.h.b16 %v540
    %v1436 = vunpack.c.l.b16 %v541
    %v1437 = vunpack.c.l.b16 %v542
    %v1438 = vunpack.c.h.b16 %v542
    %v1439 = vunpack.c.l.b16 %v543
    %v1440 = vunpack.c.h.b16 %v543
    %v1441 = vunpack.c.l.b16 %v544
    %v1442 = vunpack.c.l.b16 %v545
    %v1443 = vunpack.c.h.b16 %v545
    %v1444 = vunpack.c.l.b16 %v546
    %v1445 = vunpack.c.h.b16 %v546
    %v1446 = vunpack.c.l.b16 %v547
    %v1447 = vunpack.c.l.b16 %v548
    %v1448 = vunpack.c.h.b16 %v548
    %v1449 = vunpack.c.l.b16 %v549
    %v1450 = vunpack.c.h.b16 %v549
    %v1451 = vunpack.c.l.b16 %v550
    %v1452 = vunpack.c.l.b16 %v551
    %v1453 = vunpack.c.h.b16 %v551
    %v1454 = vunpack.c.l.b16 %v552
    %v1455 = vunpack.c.h.b16 %v552
    %v1456 = vunpack.c.l.b16 %v553
    %v1457 = vunpack.c.l.b16 %v554
    %v1458 = vunpack.c.h.b16 %v554
    %v1459 = vunpack.c.l.b16 %v555
    %v1460 = vunpack.c.h.b16 %v555
    %v1461 = vunpack.c.l.b16 %v556
    %v1462 = vunpack.c.l.b16 %v557
    %v1463 = vunpack.c.h.b16 %v557
    %v1464 = vunpack.c.l.b16 %v558
    %v1465 = vunpack.c.h.b16 %v558
    %v1466 = vunpack.c.l.b16 %v559
    %v1467 = vunpack.c.l.b16 %v560
    %v1468 = vunpack.c.h.b16 %v560
    %v1469 = vunpack.c.l.b16 %v561
    %v1470 = vunpack.c.h.b16 %v561
    %v1471 = vunpack.c.l.b16 %v562
    %v1472 = vunpack.c.l.b16 %v563
    %v1473 = vunpack.c.h.b16 %v563
    %v1474 = vunpack.c.l.b16 %v564
    %v1475 = vunpack.c.h.b16 %v564
    %v1476 = vunpack.c.l.b16 %v565
    %v1477 = vunpack.c.l.b16 %v566
    %v1478 = vunpack.c.h.b16 %v566
    %v1479 = vunpack.c.l.b16 %v567
    %v1480 = vunpack.c.h.b16 %v567
    %v1481 = vunpack.c.l.b16 %v568
    %v1482 = vunpack.c.l.b16 %v569
    %v1483 = vunpack.c.h.b16 %v569
    %v1484 = vunpack.c.l.b16 %v570
    %v1485 = vunpack.c.h.b16 %v570
    %v1486 = vunpack.c.l.b16 %v571
    %v1487 = vunpack.c.l.b16 %v572
    %v1488 = vunpack.c.h.b16 %v572
    %v1489 = vunpack.c.l.b16 %v573
    %v1490 = vunpack.c.h.b16 %v573
    %v1491 = vunpack.c.l.b16 %v574
    %v1492 = vunpack.c.l.b16 %v575
    %v1493 = vunpack.c.h.b16 %v575
    %v1494 = vunpack.c.l.b16 %v576
    %v1495 = vunpack.c.h.b16 %v576
    %v1496 = vunpack.c.l.b16 %v577
    %v1497 = vunpack.c.l.b16 %v578
    %v1498 = vunpack.c.h.b16 %v578
    %v1499 = vunpack.c.l.b16 %v579
    %v1500 = vunpack.c.h.b16 %v579
    %v1501 = vunpack.c.l.b16 %v580
    %v1502 = vunpack.c.l.b16 %v581
    %v1503 = vunpack.c.h.b16 %v581
    %v1504 = vunpack.c.l.b16 %v582
    %v1505 = vunpack.c.h.b16 %v582
    %v1506 = vunpack.c.l.b16 %v583
    %v1507 = vpack.c.b16 %v952, %v947
    %v1508 = vpack.c.b16 %v953, %v948
    %v1509 = vpack.c.b16 %v954, %v949
    %v1510 = vpack.c.b16 %v955, %v950
    %v1511 = vpack.c.b16 %v956, %v951
    %v1512 = vpack.c.b16 %v962, %v957
    %v1513 = vpack.c.b16 %v963, %v958
    %v1514 = vpack.c.b16 %v964, %v959
    %v1515 = vpack.c.b16 %v965, %v960
    %v1516 = vpack.c.b16 %v966, %v961
    %v1517 = vpack.c.b16 %v972, %v967
    %v1518 = vpack.c.b16 %v973, %v968
    %v1519 = vpack.c.b16 %v974, %v969
    %v1520 = vpack.c.b16 %v975, %v970
    %v1521 = vpack.c.b16 %v976, %v971
    %v1522 = vpack.c.b16 %v982, %v977
    %v1523 = vpack.c.b16 %v983, %v978
    %v1524 = vpack.c.b16 %v984, %v979
    %v1525 = vpack.c.b16 %v985, %v980
    %v1526 = vpack.c.b16 %v986, %v981
    %v1527 = vpack.c.b16 %v992, %v987
    %v1528 = vpack.c.b16 %v993, %v988
    %v1529 = vpack.c.b16 %v994, %v989
    %v1530 = vpack.c.b16 %v995, %v990
    %v1531 = vpack.c.b16 %v996, %v991
    %v1532 = vpack.c.b16 %v1002, %v997
    %v1533 = vpack.c.b16 %v1003, %v998
    %v1534 = vpack.c.b16 %v1004, %v999
    %v1535 = vpack.c.b16 %v1005, %v1000
    %v1536 = vpack.c.b16 %v1006, %v1001
    %v1537 = vpack.c.b16 %v1012, %v1007
    %v1538 = vpack.c.b16 %v1013, %v1008
    %v1539 = vpack.c.b16 %v1014, %v1009
    %v1540 = vpack.c.b16 %v1015, %v1010
    %v1541 = vpack.c.b16 %v1016, %v1011
    %v1542 = vpack.c.b16 %v1022, %v1017
    %v1543 = vpack.c.b16 %v1023, %v1018
    %v1544 = vpack.c.b16 %v1024, %v1019
    %v1545 = vpack.c.b16 %v1025, %v1020
    %v1546 = vpack.c.b16 %v1026, %v1021
    %v1547 = vpack.c.b16 %v1032, %v1027
    %v1548 = vpack.c.b16 %v1033, %v1028
    %v1549 = vpack.c.b16 %v1034, %v1029
    %v1550 = vpack.c.b16 %v1035, %v1030
    %v1551 = vpack.c.b16 %v1036, %v1031
    %v1552 = vpack.c.b16 %v1042, %v1037
    %v1553 = vpack.c.b16 %v1043, %v1038
    %v1554 = vpack.c.b16 %v1044, %v1039
    %v1555 = vpack.c.b16 %v1045, %v1040
    %v1556 = vpack.c.b16 %v1046, %v1041
    %v1557 = vpack.c.b16 %v1052, %v1047
    %v1558 = vpack.c.b16 %v1053, %v1048
    %v1559 = vpack.c.b16 %v1054, %v1049
    %v1560 = vpack.c.b16 %v1055, %v1050
    %v1561 = vpack.c.b16 %v1056, %v1051
    %v1562 = vpack.c.b16 %v1062, %v1057
    %v1563 = vpack.c.b16 %v1063, %v1058
    %v1564 = vpack.c.b16 %v1064, %v1059
    %v1565 = vpack.c.b16 %v1065, %v1060
    %v1566 = vpack.c.b16 %v1066, %v1061
    %v1567 = vpack.c.b16 %v1072, %v1067
    %v1568 = vpack.c.b16 %v1073, %v1068
    %v1569 = vpack.c.b16 %v1074, %v1069
    %v1570 = vpack.c.b16 %v1075, %v1070
    %v1571 = vpack.c.b16 %v1076, %v1071
    %v1572 = vpack.c.b16 %v1082, %v1077
    %v1573 = vpack.c.b16 %v1083, %v1078
    %v1574 = vpack.c.b16 %v1084, %v1079
    %v1575 = vpack.c.b16 %v1085, %v1080
    %v1576 = vpack.c.b16 %v1086, %v1081
    %v1577 = vpack.c.b16 %v1092, %v1087
    %v1578 = vpack.c.b16 %v1093, %v1088
    %v1579 = vpack.c.b16 %v1094, %v1089
    %v1580 = vpack.c.b16 %v1095, %v1090
    %v1581 = vpack.c.b16 %v1096, %v1091
    %v1582 = vpack.c.b16 %v1102, %v1097
    %v1583 = vpack.c.b16 %v1103, %v1098
    %v1584 = vpack.c.b16 %v1104, %v1099
    %v1585 = vpack.c.b16 %v1105, %v1100
    %v1586 = vpack.c.b16 %v1106, %v1101
    %v1587 = vpack.c.b16 %v1112, %v1107
    %v1588 = vpack.c.b16 %v1113, %v1108
    %v1589 = vpack.c.b16 %v1114, %v1109
    %v1590 = vpack.c.b16 %v1115, %v1110
    %v1591 = vpack.c.b16 %v1116, %v1111
    %v1592 = vpack.c.b16 %v1122, %v1117
    %v1593 = vpack.c.b16 %v1123, %v1118
    %v1594 = vpack.c.b16 %v1124, %v1119
    %v1595 = vpack.c.b16 %v1125, %v1120
    %v1596 = vpack.c.b16 %v1126, %v1121
    %v1597 = vpack.c.b16 %v1132, %v1127
    %v1598 = vpack.c.b16 %v1133, %v1128
    %v1599 = vpack.c.b16 %v1134, %v1129
    %v1600 = vpack.c.b16 %v1135, %v1130
    %v1601 = vpack.c.b16 %v1136, %v1131
    %v1602 = vpack.c.b16 %v1142, %v1137
    %v1603 = vpack.c.b16 %v1143, %v1138
    %v1604 = vpack.c.b16 %v1144, %v1139
    %v1605 = vpack.c.b16 %v1145, %v1140
    %v1606 = vpack.c.b16 %v1146, %v1141
    %v1607 = vpack.c.b16 %v1152, %v1147
    %v1608 = vpack.c.b16 %v1153, %v1148
    %v1609 = vpack.c.b16 %v1154, %v1149
    %v1610 = vpack.c.b16 %v1155, %v1150
    %v1611 = vpack.c.b16 %v1156, %v1151
    %v1612 = vpack.c.b16 %v1162, %v1157
    %v1613 = vpack.c.b16 %v1163, %v1158
    %v1614 = vpack.c.b16 %v1164, %v1159
    %v1615 = vpack.c.b16 %v1165, %v1160
    %v1616 = vpack.c.b16 %v1166, %v1161
    %v1617 = vpack.c.b16 %v1172, %v1167
    %v1618 = vpack.c.b16 %v1173, %v1168
    %v1619 = vpack.c.b16 %v1174, %v1169
    %v1620 = vpack.c.b16 %v1175, %v1170
    %v1621 = vpack.c.b16 %v1176, %v1171
    %v1622 = vpack.c.b16 %v1182, %v1177
    %v1623 = vpack.c.b16 %v1183, %v1178
    %v1624 = vpack.c.b16 %v1184, %v1179
    %v1625 = vpack.c.b16 %v1185, %v1180
    %v1626 = vpack.c.b16 %v1186, %v1181
    %v1627 = vpack.c.b16 %v1192, %v1187
    %v1628 = vpack.c.b16 %v1193, %v1188
    %v1629 = vpack.c.b16 %v1194, %v1189
    %v1630 = vpack.c.b16 %v1195, %v1190
    %v1631 = vpack.c.b16 %v1196, %v1191
    %v1632 = vpack.c.b16 %v1202, %v1197
    %v1633 = vpack.c.b16 %v1203, %v1198
    %v1634 = vpack.c.b16 %v1204, %v1199
    %v1635 = vpack.c.b16 %v1205, %v1200
    %v1636 = vpack.c.b16 %v1206, %v1201
    %v1637 = vpack.c.b16 %v1212, %v1207
    %v1638 = vpack.c.b16 %v1213, %v1208
    %v1639 = vpack.c.b16 %v1214, %v1209
    %v1640 = vpack.c.b16 %v1215, %v1210
    %v1641 = vpack.c.b16 %v1216, %v1211
    %v1642 = vpack.c.b16 %v1222, %v1217
    %v1643 = vpack.c.b16 %v1223, %v1218
    %v1644 = vpack.c.b16 %v1224, %v1219
    %v1645 = vpack.c.b16 %v1225, %v1220
    %v1646 = vpack.c.b16 %v1226, %v1221
    %v1647 = vpack.c.b16 %v1232, %v1227
    %v1648 = vpack.c.b16 %v1233, %v1228
    %v1649 = vpack.c.b16 %v1234, %v1229
    %v1650 = vpack.c.b16 %v1235, %v1230
    %v1651 = vpack.c.b16 %v1236, %v1231
    %v1652 = vpack.c.b16 %v1242, %v1237
    %v1653 = vpack.c.b16 %v1243, %v1238
    %v1654 = vpack.c.b16 %v1244, %v1239
    %v1655 = vpack.c.b16 %v1245, %v1240
    %v1656 = vpack.c.b16 %v1246, %v1241
    %v1657 = vpack.c.b16 %v1252, %v1247
    %v1658 = vpack.c.b16 %v1253, %v1248
    %v1659 = vpack.c.b16 %v1254, %v1249
    %v1660 = vpack.c.b16 %v1255, %v1250
    %v1661 = vpack.c.b16 %v1256, %v1251
    %v1662 = vpack.c.b16 %v1262, %v1257
    %v1663 = vpack.c.b16 %v1263, %v1258
    %v1664 = vpack.c.b16 %v1264, %v1259
    %v1665 = vpack.c.b16 %v1265, %v1260
    %v1666 = vpack.c.b16 %v1266, %v1261
    %v1667 = vpack.c.b16 %v1272, %v1267
    %v1668 = vpack.c.b16 %v1273, %v1268
    %v1669 = vpack.c.b16 %v1274, %v1269
    %v1670 = vpack.c.b16 %v1275, %v1270
    %v1671 = vpack.c.b16 %v1276, %v1271
    %v1672 = vpack.c.b16 %v1282, %v1277
    %v1673 = vpack.c.b16 %v1283, %v1278
    %v1674 = vpack.c.b16 %v1284, %v1279
    %v1675 = vpack.c.b16 %v1285, %v1280
    %v1676 = vpack.c.b16 %v1286, %v1281
    %v1677 = vpack.c.b16 %v1292, %v1287
    %v1678 = vpack.c.b16 %v1293, %v1288
    %v1679 = vpack.c.b16 %v1294, %v1289
    %v1680 = vpack.c.b16 %v1295, %v1290
    %v1681 = vpack.c.b16 %v1296, %v1291
    %v1682 = vpack.c.b16 %v1302, %v1297
    %v1683 = vpack.c.b16 %v1303, %v1298
    %v1684 = vpack.c.b16 %v1304, %v1299
    %v1685 = vpack.c.b16 %v1305, %v1300
    %v1686 = vpack.c.b16 %v1306, %v1301
    %v1687 = vpack.c.b16 %v1312, %v1307
    %v1688 = vpack.c.b16 %v1313, %v1308
    %v1689 = vpack.c.b16 %v1314, %v1309
    %v1690 = vpack.c.b16 %v1315, %v1310
    %v1691 = vpack.c.b16 %v1316, %v1311
    %v1692 = vpack.c.b16 %v1322, %v1317
    %v1693 = vpack.c.b16 %v1323, %v1318
    %v1694 = vpack.c.b16 %v1324, %v1319
    %v1695 = vpack.c.b16 %v1325, %v1320
    %v1696 = vpack.c.b16 %v1326, %v1321
    %v1697 = vpack.c.b16 %v1332, %v1327
    %v1698 = vpack.c.b16 %v1333, %v1328
    %v1699 = vpack.c.b16 %v1334, %v1329
    %v1700 = vpack.c.b16 %v1335, %v1330
    %v1701 = vpack.c.b16 %v1336, %v1331
    %v1702 = vpack.c.b16 %v1342, %v1337
    %v1703 = vpack.c.b16 %v1343, %v1338
    %v1704 = vpack.c.b16 %v1344, %v1339
    %v1705 = vpack.c.b16 %v1345, %v1340
    %v1706 = vpack.c.b16 %v1346, %v1341
    %v1707 = vpack.c.b16 %v1352, %v1347
    %v1708 = vpack.c.b16 %v1353, %v1348
    %v1709 = vpack.c.b16 %v1354, %v1349
    %v1710 = vpack.c.b16 %v1355, %v1350
    %v1711 = vpack.c.b16 %v1356, %v1351
    %v1712 = vpack.c.b16 %v1362, %v1357
    %v1713 = vpack.c.b16 %v1363, %v1358
    %v1714 = vpack.c.b16 %v1364, %v1359
    %v1715 = vpack.c.b16 %v1365, %v1360
    %v1716 = vpack.c.b16 %v1366, %v1361
    %v1717 = vpack.c.b16 %v1372, %v1367
    %v1718 = vpack.c.b16 %v1373, %v1368
    %v1719 = vpack.c.b16 %v1374, %v1369
    %v1720 = vpack.c.b16 %v1375, %v1370
    %v1721 = vpack.c.b16 %v1376, %v1371
    %v1722 = vpack.c.b16 %v1382, %v1377
    %v1723 = vpack.c.b16 %v1383, %v1378
    %v1724 = vpack.c.b16 %v1384, %v1379
    %v1725 = vpack.c.b16 %v1385, %v1380
    %v1726 = vpack.c.b16 %v1386, %v1381
    %v1727 = vpack.c.b16 %v1392, %v1387
    %v1728 = vpack.c.b16 %v1393, %v1388
    %v1729 = vpack.c.b16 %v1394, %v1389
    %v1730 = vpack.c.b16 %v1395, %v1390
    %v1731 = vpack.c.b16 %v1396, %v1391
    %v1732 = vpack.c.b16 %v1402, %v1397
    %v1733 = vpack.c.b16 %v1403, %v1398
    %v1734 = vpack.c.b16 %v1404, %v1399
    %v1735 = vpack.c.b16 %v1405, %v1400
    %v1736 = vpack.c.b16 %v1406, %v1401
    %v1737 = vpack.c.b16 %v1412, %v1407
    %v1738 = vpack.c.b16 %v1413, %v1408
    %v1739 = vpack.c.b16 %v1414, %v1409
    %v1740 = vpack.c.b16 %v1415, %v1410
    %v1741 = vpack.c.b16 %v1416, %v1411
    %v1742 = vpack.c.b16 %v1422, %v1417
    %v1743 = vpack.c.b16 %v1423, %v1418
    %v1744 = vpack.c.b16 %v1424, %v1419
    %v1745 = vpack.c.b16 %v1425, %v1420
    %v1746 = vpack.c.b16 %v1426, %v1421
    %v1747 = vpack.c.b16 %v1432, %v1427
    %v1748 = vpack.c.b16 %v1433, %v1428
    %v1749 = vpack.c.b16 %v1434, %v1429
    %v1750 = vpack.c.b16 %v1435, %v1430
    %v1751 = vpack.c.b16 %v1436, %v1431
    %v1752 = vpack.c.b16 %v1442, %v1437
    %v1753 = vpack.c.b16 %v1443, %v1438
    %v1754 = vpack.c.b16 %v1444, %v1439
    %v1755 = vpack.c.b16 %v1445, %v1440
    %v1756 = vpack.c.b16 %v1446, %v1441
    %v1757 = vpack.c.b16 %v1452, %v1447
    %v1758 = vpack.c.b16 %v1453, %v1448
    %v1759 = vpack.c.b16 %v1454, %v1449
    %v1760 = vpack.c.b16 %v1455, %v1450
    %v1761 = vpack.c.b16 %v1456, %v1451
    %v1762 = vpack.c.b16 %v1462, %v1457
    %v1763 = vpack.c.b16 %v1463, %v1458
    %v1764 = vpack.c.b16 %v1464, %v1459
    %v1765 = vpack.c.b16 %v1465, %v1460
    %v1766 = vpack.c.b16 %v1466, %v1461
    %v1767 = vpack.c.b16 %v1472, %v1467
    %v1768 = vpack.c.b16 %v1473, %v1468
    %v1769 = vpack.c.b16 %v1474, %v1469
    %v1770 = vpack.c.b16 %v1475, %v1470
    %v1771 = vpack.c.b16 %v1476, %v1471
    %v1772 = vpack.c.b16 %v1482, %v1477
    %v1773 = vpack.c.b16 %v1483, %v1478
    %v1774 = vpack.c.b16 %v1484, %v1479
    %v1775 = vpack.c.b16 %v1485, %v1480
    %v1776 = vpack.c.b16 %v1486, %v1481
    %v1777 = vpack.c.b16 %v1492, %v1487
    %v1778 = vpack.c.b16 %v1493, %v1488
    %v1779 = vpack.c.b16 %v1494, %v1489
    %v1780 = vpack.c.b16 %v1495, %v1490
    %v1781 = vpack.c.b16 %v1496, %v1491
    %v1782 = vpack.c.b16 %v1502, %v1497
    %v1783 = vpack.c.b16 %v1503, %v1498
    %v1784 = vpack.c.b16 %v1504, %v1499
    %v1785 = vpack.c.b16 %v1505, %v1500
    %v1786 = vpack.c.b16 %v1506, %v1501
    %2067 = vmatprep.subr.bf16.mxu0 %v1543
    %2068 = vmatpush1.bf16.msra.mxu0 %v1542
    %2069 = vmatprep.subr.bf16.mxu0 %v1538
    %2070 = vmatpush1.bf16.msra.mxu0 %v1537
    %2071 = vmatprep.subr.bf16.mxu0 %v1533
    %2072 = vmatpush1.bf16.msra.mxu0 %v1532
    %2073 = vmatprep.subr.bf16.mxu0 %v1528
    %2074 = vmatpush1.bf16.msra.mxu0 %v1527
    %2075 = vmatprep.subr.bf16.mxu0 %v1523
    %2076 = vmatpush1.bf16.msra.mxu0 %v1522
    %2077 = vmatprep.subr.bf16.mxu0 %v1518
    %2078 = vmatpush1.bf16.msra.mxu0 %v1517
    %2079 = vmatprep.subr.bf16.mxu0 %v1513
    %2080 = vmatpush1.bf16.msra.mxu0 %v1512
    %2081 = vmatprep.subr.bf16.mxu0 %v1508
    %2082 = vmatpush1.bf16.msra.mxu0 %v1507
    %2083 = vmatprep.subr.bf16.mxu0 %v1583
    %2084 = vmatpush2.bf16.msra.mxu0 %v1582
    %2085 = vmatprep.subr.bf16.mxu0 %v1578
    %2086 = vmatpush2.bf16.msra.mxu0 %v1577
    %2087 = vmatprep.subr.bf16.mxu0 %v1573
    %2088 = vmatpush2.bf16.msra.mxu0 %v1572
    %2089 = vmatprep.subr.bf16.mxu0 %v1568
    %2090 = vmatpush2.bf16.msra.mxu0 %v1567
    %2091 = vmatprep.subr.bf16.mxu0 %v1563
    %2092 = vmatpush2.bf16.msra.mxu0 %v1562
    %2093 = vmatprep.subr.bf16.mxu0 %v1558
    %2094 = vmatpush2.bf16.msra.mxu0 %v1557
    %2095 = vmatprep.subr.bf16.mxu0 %v1553
    %2096 = vmatpush2.bf16.msra.mxu0 %v1552
    %2097 = vmatprep.subr.bf16.mxu0 %v1548
    %2098 = vmatpush2.bf16.msra.mxu0 %v1547
    %2099 = vmatprep.mubr.bf16.mxu0 %v242
    %2100 = vmatmul.mubr.bf16.gmra.mxu0 %v241
    %v2101 = vpop.f32.mrf.mxu0
    %v2102 = vadd.f32 %v589, %v2101
    %v2103 = vpop.f32.mrf.mxu0
    %v2104 = vadd.f32 %v593, %v2103
    %v2105 = vpop.f32.mrf.mxu0
    %v2106 = vpop.f32.mrf.mxu0
    %2107 = vdwg.mxu0
    %2108 = vmatprep.subr.bf16.mxu0 %v1623
    %2109 = vmatpush1.bf16.msra.mxu0 %v1622
    %2110 = vmatprep.subr.bf16.mxu0 %v1618
    %2111 = vmatpush1.bf16.msra.mxu0 %v1617
    %2112 = vmatprep.subr.bf16.mxu0 %v1613
    %2113 = vmatpush1.bf16.msra.mxu0 %v1612
    %2114 = vmatprep.subr.bf16.mxu0 %v1608
    %2115 = vmatpush1.bf16.msra.mxu0 %v1607
    %2116 = vmatprep.subr.bf16.mxu0 %v1603
    %2117 = vmatpush1.bf16.msra.mxu0 %v1602
    %2118 = vmatprep.subr.bf16.mxu0 %v1598
    %2119 = vmatpush1.bf16.msra.mxu0 %v1597
    %2120 = vmatprep.subr.bf16.mxu0 %v1593
    %2121 = vmatpush1.bf16.msra.mxu0 %v1592
    %2122 = vmatprep.subr.bf16.mxu0 %v1588
    %2123 = vmatpush1.bf16.msra.mxu0 %v1587
    %2124 = vmatprep.subr.bf16.mxu0 %v1663
    %2125 = vmatpush2.bf16.msra.mxu0 %v1662
    %2126 = vmatprep.subr.bf16.mxu0 %v1658
    %2127 = vmatpush2.bf16.msra.mxu0 %v1657
    %2128 = vmatprep.subr.bf16.mxu0 %v1653
    %2129 = vmatpush2.bf16.msra.mxu0 %v1652
    %2130 = vmatprep.subr.bf16.mxu0 %v1648
    %2131 = vmatpush2.bf16.msra.mxu0 %v1647
    %2132 = vmatprep.subr.bf16.mxu0 %v1643
    %2133 = vmatpush2.bf16.msra.mxu0 %v1642
    %2134 = vmatprep.subr.bf16.mxu0 %v1638
    %2135 = vmatpush2.bf16.msra.mxu0 %v1637
    %2136 = vmatprep.subr.bf16.mxu0 %v1633
    %2137 = vmatpush2.bf16.msra.mxu0 %v1632
    %2138 = vmatprep.subr.bf16.mxu0 %v1628
    %2139 = vmatpush2.bf16.msra.mxu0 %v1627
    %2140 = vmatprep.mubr.bf16.mxu0 %v244
    %2141 = vmatmul.mubr.bf16.gmra.mxu0 %v243
    %v2142 = vpop.f32.mrf.mxu0
    %v2143 = vadd.f32 %v2102, %v2142
    %v2144 = vpop.f32.mrf.mxu0
    %v2145 = vadd.f32 %v2104, %v2144
    %v2146 = vpop.f32.mrf.mxu0
    %v2147 = vpop.f32.mrf.mxu0
    %2148 = vdwg.mxu0
    %2149 = vmatprep.subr.bf16.mxu0 %v1703
    %2150 = vmatpush1.bf16.msra.mxu0 %v1702
    %2151 = vmatprep.subr.bf16.mxu0 %v1698
    %2152 = vmatpush1.bf16.msra.mxu0 %v1697
    %2153 = vmatprep.subr.bf16.mxu0 %v1693
    %2154 = vmatpush1.bf16.msra.mxu0 %v1692
    %2155 = vmatprep.subr.bf16.mxu0 %v1688
    %2156 = vmatpush1.bf16.msra.mxu0 %v1687
    %2157 = vmatprep.subr.bf16.mxu0 %v1683
    %2158 = vmatpush1.bf16.msra.mxu0 %v1682
    %2159 = vmatprep.subr.bf16.mxu0 %v1678
    %2160 = vmatpush1.bf16.msra.mxu0 %v1677
    %2161 = vmatprep.subr.bf16.mxu0 %v1673
    %2162 = vmatpush1.bf16.msra.mxu0 %v1672
    %2163 = vmatprep.subr.bf16.mxu0 %v1668
    %2164 = vmatpush1.bf16.msra.mxu0 %v1667
    %2165 = vmatprep.subr.bf16.mxu0 %v1743
    %2166 = vmatpush2.bf16.msra.mxu0 %v1742
    %2167 = vmatprep.subr.bf16.mxu0 %v1738
    %2168 = vmatpush2.bf16.msra.mxu0 %v1737
    %2169 = vmatprep.subr.bf16.mxu0 %v1733
    %2170 = vmatpush2.bf16.msra.mxu0 %v1732
    %2171 = vmatprep.subr.bf16.mxu0 %v1728
    %2172 = vmatpush2.bf16.msra.mxu0 %v1727
    %2173 = vmatprep.subr.bf16.mxu0 %v1723
    %2174 = vmatpush2.bf16.msra.mxu0 %v1722
    %2175 = vmatprep.subr.bf16.mxu0 %v1718
    %2176 = vmatpush2.bf16.msra.mxu0 %v1717
    %2177 = vmatprep.subr.bf16.mxu0 %v1713
    %2178 = vmatpush2.bf16.msra.mxu0 %v1712
    %2179 = vmatprep.subr.bf16.mxu0 %v1708
    %2180 = vmatpush2.bf16.msra.mxu0 %v1707
    %2181 = vmatprep.mubr.bf16.mxu0 %v246
    %2182 = vmatmul.mubr.bf16.gmra.mxu0 %v245
    %v2183 = vpop.f32.mrf.mxu0
    %v2184 = vadd.f32 %v2143, %v2183
    %v2185 = vpop.f32.mrf.mxu0
    %v2186 = vadd.f32 %v2145, %v2185
    %v2187 = vpop.f32.mrf.mxu0
    %v2188 = vpop.f32.mrf.mxu0
    %2189 = vdwg.mxu0
    %2190 = vmatprep.subr.bf16.mxu0 %v1783
    %2191 = vmatpush1.bf16.msra.mxu0 %v1782
    %2192 = vmatprep.subr.bf16.mxu0 %v1778
    %2193 = vmatpush1.bf16.msra.mxu0 %v1777
    %2194 = vmatprep.subr.bf16.mxu0 %v1773
    %2195 = vmatpush1.bf16.msra.mxu0 %v1772
    %2196 = vmatprep.subr.bf16.mxu0 %v1768
    %2197 = vmatpush1.bf16.msra.mxu0 %v1767
    %2198 = vmatprep.subr.bf16.mxu0 %v1763
    %2199 = vmatpush1.bf16.msra.mxu0 %v1762
    %2200 = vmatprep.subr.bf16.mxu0 %v1758
    %2201 = vmatpush1.bf16.msra.mxu0 %v1757
    %2202 = vmatprep.subr.bf16.mxu0 %v1753
    %2203 = vmatpush1.bf16.msra.mxu0 %v1752
    %2204 = vmatprep.subr.bf16.mxu0 %v1748
    %2205 = vmatpush1.bf16.msra.mxu0 %v1747
    %2206 = vmatprep.subr.bf16.mxu0 0
    %2207 = vmatpush2.bf16.msra.mxu0 0
    %2208 = vmatprep.subr.bf16.mxu0 0
    %2209 = vmatpush2.bf16.msra.mxu0 0
    %2210 = vmatprep.subr.bf16.mxu0 0
    %2211 = vmatpush2.bf16.msra.mxu0 0
    %2212 = vmatprep.subr.bf16.mxu0 0
    %2213 = vmatpush2.bf16.msra.mxu0 0
    %2214 = vmatprep.subr.bf16.mxu0 0
    %2215 = vmatpush2.bf16.msra.mxu0 0
    %2216 = vmatprep.subr.bf16.mxu0 0
    %2217 = vmatpush2.bf16.msra.mxu0 0
    %2218 = vmatprep.subr.bf16.mxu0 0
    %2219 = vmatpush2.bf16.msra.mxu0 0
    %2220 = vmatprep.subr.bf16.mxu0 0
    %2221 = vmatpush2.bf16.msra.mxu0 0
    %2222 = vmatprep.mubr.bf16.mxu0 0
    %2223 = vmatmul.mubr.bf16.gmra.mxu0 %v247
    %v2224 = vpop.f32.mrf.mxu0
    %v2225 = vadd.f32 %v2184, %v2224
    %v2226 = vpop.f32.mrf.mxu0
    %v2227 = vadd.f32 %v2186, %v2226
    %v2228 = vpop.f32.mrf.mxu0
    %v2229 = vpop.f32.mrf.mxu0
    %2230 = vdwg.mxu0
    %2231 = vmatprep.subr.bf16.mxu0 %v1545
    %2232 = vmatpush1.bf16.msra.mxu0 %v1544
    %2233 = vmatprep.subr.bf16.mxu0 %v1540
    %2234 = vmatpush1.bf16.msra.mxu0 %v1539
    %2235 = vmatprep.subr.bf16.mxu0 %v1535
    %2236 = vmatpush1.bf16.msra.mxu0 %v1534
    %2237 = vmatprep.subr.bf16.mxu0 %v1530
    %2238 = vmatpush1.bf16.msra.mxu0 %v1529
    %2239 = vmatprep.subr.bf16.mxu0 %v1525
    %2240 = vmatpush1.bf16.msra.mxu0 %v1524
    %2241 = vmatprep.subr.bf16.mxu0 %v1520
    %2242 = vmatpush1.bf16.msra.mxu0 %v1519
    %2243 = vmatprep.subr.bf16.mxu0 %v1515
    %2244 = vmatpush1.bf16.msra.mxu0 %v1514
    %2245 = vmatprep.subr.bf16.mxu0 %v1510
    %2246 = vmatpush1.bf16.msra.mxu0 %v1509
    %2247 = vmatprep.subr.bf16.mxu0 %v1585
    %2248 = vmatpush2.bf16.msra.mxu0 %v1584
    %2249 = vmatprep.subr.bf16.mxu0 %v1580
    %2250 = vmatpush2.bf16.msra.mxu0 %v1579
    %2251 = vmatprep.subr.bf16.mxu0 %v1575
    %2252 = vmatpush2.bf16.msra.mxu0 %v1574
    %2253 = vmatprep.subr.bf16.mxu0 %v1570
    %2254 = vmatpush2.bf16.msra.mxu0 %v1569
    %2255 = vmatprep.subr.bf16.mxu0 %v1565
    %2256 = vmatpush2.bf16.msra.mxu0 %v1564
    %2257 = vmatprep.subr.bf16.mxu0 %v1560
    %2258 = vmatpush2.bf16.msra.mxu0 %v1559
    %2259 = vmatprep.subr.bf16.mxu0 %v1555
    %2260 = vmatpush2.bf16.msra.mxu0 %v1554
    %2261 = vmatprep.subr.bf16.mxu0 %v1550
    %2262 = vmatpush2.bf16.msra.mxu0 %v1549
    %2263 = vmatprep.mubr.bf16.mxu0 %v242
    %2264 = vmatmul.mubr.bf16.gmra.mxu0 %v241
    %v2265 = vpop.f32.mrf.mxu0
    %v2266 = vadd.f32 %v597, %v2265
    %v2267 = vpop.f32.mrf.mxu0
    %v2268 = vadd.f32 %v601, %v2267
    %v2269 = vpop.f32.mrf.mxu0
    %v2270 = vpop.f32.mrf.mxu0
    %2271 = vdwg.mxu0
    %2272 = vmatprep.subr.bf16.mxu0 %v1625
    %2273 = vmatpush1.bf16.msra.mxu0 %v1624
    %2274 = vmatprep.subr.bf16.mxu0 %v1620
    %2275 = vmatpush1.bf16.msra.mxu0 %v1619
    %2276 = vmatprep.subr.bf16.mxu0 %v1615
    %2277 = vmatpush1.bf16.msra.mxu0 %v1614
    %2278 = vmatprep.subr.bf16.mxu0 %v1610
    %2279 = vmatpush1.bf16.msra.mxu0 %v1609
    %2280 = vmatprep.subr.bf16.mxu0 %v1605
    %2281 = vmatpush1.bf16.msra.mxu0 %v1604
    %2282 = vmatprep.subr.bf16.mxu0 %v1600
    %2283 = vmatpush1.bf16.msra.mxu0 %v1599
    %2284 = vmatprep.subr.bf16.mxu0 %v1595
    %2285 = vmatpush1.bf16.msra.mxu0 %v1594
    %2286 = vmatprep.subr.bf16.mxu0 %v1590
    %2287 = vmatpush1.bf16.msra.mxu0 %v1589
    %2288 = vmatprep.subr.bf16.mxu0 %v1665
    %2289 = vmatpush2.bf16.msra.mxu0 %v1664
    %2290 = vmatprep.subr.bf16.mxu0 %v1660
    %2291 = vmatpush2.bf16.msra.mxu0 %v1659
    %2292 = vmatprep.subr.bf16.mxu0 %v1655
    %2293 = vmatpush2.bf16.msra.mxu0 %v1654
    %2294 = vmatprep.subr.bf16.mxu0 %v1650
    %2295 = vmatpush2.bf16.msra.mxu0 %v1649
    %2296 = vmatprep.subr.bf16.mxu0 %v1645
    %2297 = vmatpush2.bf16.msra.mxu0 %v1644
    %2298 = vmatprep.subr.bf16.mxu0 %v1640
    %2299 = vmatpush2.bf16.msra.mxu0 %v1639
    %2300 = vmatprep.subr.bf16.mxu0 %v1635
    %2301 = vmatpush2.bf16.msra.mxu0 %v1634
    %2302 = vmatprep.subr.bf16.mxu0 %v1630
    %2303 = vmatpush2.bf16.msra.mxu0 %v1629
    %2304 = vmatprep.mubr.bf16.mxu0 %v244
    %2305 = vmatmul.mubr.bf16.gmra.mxu0 %v243
    %v2306 = vpop.f32.mrf.mxu0
    %v2307 = vadd.f32 %v2266, %v2306
    %v2308 = vpop.f32.mrf.mxu0
    %v2309 = vadd.f32 %v2268, %v2308
    %v2310 = vpop.f32.mrf.mxu0
    %v2311 = vpop.f32.mrf.mxu0
    %2312 = vdwg.mxu0
    %2313 = vmatprep.subr.bf16.mxu0 %v1705
    %2314 = vmatpush1.bf16.msra.mxu0 %v1704
    %2315 = vmatprep.subr.bf16.mxu0 %v1700
    %2316 = vmatpush1.bf16.msra.mxu0 %v1699
    %2317 = vmatprep.subr.bf16.mxu0 %v1695
    %2318 = vmatpush1.bf16.msra.mxu0 %v1694
    %2319 = vmatprep.subr.bf16.mxu0 %v1690
    %2320 = vmatpush1.bf16.msra.mxu0 %v1689
    %2321 = vmatprep.subr.bf16.mxu0 %v1685
    %2322 = vmatpush1.bf16.msra.mxu0 %v1684
    %2323 = vmatprep.subr.bf16.mxu0 %v1680
    %2324 = vmatpush1.bf16.msra.mxu0 %v1679
    %2325 = vmatprep.subr.bf16.mxu0 %v1675
    %2326 = vmatpush1.bf16.msra.mxu0 %v1674
    %2327 = vmatprep.subr.bf16.mxu0 %v1670
    %2328 = vmatpush1.bf16.msra.mxu0 %v1669
    %2329 = vmatprep.subr.bf16.mxu0 %v1745
    %2330 = vmatpush2.bf16.msra.mxu0 %v1744
    %2331 = vmatprep.subr.bf16.mxu0 %v1740
    %2332 = vmatpush2.bf16.msra.mxu0 %v1739
    %2333 = vmatprep.subr.bf16.mxu0 %v1735
    %2334 = vmatpush2.bf16.msra.mxu0 %v1734
    %2335 = vmatprep.subr.bf16.mxu0 %v1730
    %2336 = vmatpush2.bf16.msra.mxu0 %v1729
    %2337 = vmatprep.subr.bf16.mxu0 %v1725
    %2338 = vmatpush2.bf16.msra.mxu0 %v1724
    %2339 = vmatprep.subr.bf16.mxu0 %v1720
    %2340 = vmatpush2.bf16.msra.mxu0 %v1719
    %2341 = vmatprep.subr.bf16.mxu0 %v1715
    %2342 = vmatpush2.bf16.msra.mxu0 %v1714
    %2343 = vmatprep.subr.bf16.mxu0 %v1710
    %2344 = vmatpush2.bf16.msra.mxu0 %v1709
    %2345 = vmatprep.mubr.bf16.mxu0 %v246
    %2346 = vmatmul.mubr.bf16.gmra.mxu0 %v245
    %v2347 = vpop.f32.mrf.mxu0
    %v2348 = vadd.f32 %v2307, %v2347
    %v2349 = vpop.f32.mrf.mxu0
    %v2350 = vadd.f32 %v2309, %v2349
    %v2351 = vpop.f32.mrf.mxu0
    %v2352 = vpop.f32.mrf.mxu0
    %2353 = vdwg.mxu0
    %2354 = vmatprep.subr.bf16.mxu0 %v1785
    %2355 = vmatpush1.bf16.msra.mxu0 %v1784
    %2356 = vmatprep.subr.bf16.mxu0 %v1780
    %2357 = vmatpush1.bf16.msra.mxu0 %v1779
    %2358 = vmatprep.subr.bf16.mxu0 %v1775
    %2359 = vmatpush1.bf16.msra.mxu0 %v1774
    %2360 = vmatprep.subr.bf16.mxu0 %v1770
    %2361 = vmatpush1.bf16.msra.mxu0 %v1769
    %2362 = vmatprep.subr.bf16.mxu0 %v1765
    %2363 = vmatpush1.bf16.msra.mxu0 %v1764
    %2364 = vmatprep.subr.bf16.mxu0 %v1760
    %2365 = vmatpush1.bf16.msra.mxu0 %v1759
    %2366 = vmatprep.subr.bf16.mxu0 %v1755
    %2367 = vmatpush1.bf16.msra.mxu0 %v1754
    %2368 = vmatprep.subr.bf16.mxu0 %v1750
    %2369 = vmatpush1.bf16.msra.mxu0 %v1749
    %2370 = vmatprep.subr.bf16.mxu0 0
    %2371 = vmatpush2.bf16.msra.mxu0 0
    %2372 = vmatprep.subr.bf16.mxu0 0
    %2373 = vmatpush2.bf16.msra.mxu0 0
    %2374 = vmatprep.subr.bf16.mxu0 0
    %2375 = vmatpush2.bf16.msra.mxu0 0
    %2376 = vmatprep.subr.bf16.mxu0 0
    %2377 = vmatpush2.bf16.msra.mxu0 0
    %2378 = vmatprep.subr.bf16.mxu0 0
    %2379 = vmatpush2.bf16.msra.mxu0 0
    %2380 = vmatprep.subr.bf16.mxu0 0
    %2381 = vmatpush2.bf16.msra.mxu0 0
    %2382 = vmatprep.subr.bf16.mxu0 0
    %2383 = vmatpush2.bf16.msra.mxu0 0
    %2384 = vmatprep.subr.bf16.mxu0 0
    %2385 = vmatpush2.bf16.msra.mxu0 0
    %2386 = vmatprep.mubr.bf16.mxu0 0
    %2387 = vmatmul.mubr.bf16.gmra.mxu0 %v247
    %v2388 = vpop.f32.mrf.mxu0
    %v2389 = vadd.f32 %v2348, %v2388
    %v2390 = vpop.f32.mrf.mxu0
    %v2391 = vadd.f32 %v2350, %v2390
    %v2392 = vpop.f32.mrf.mxu0
    %v2393 = vpop.f32.mrf.mxu0
    %2394 = vdwg.mxu0
    %2395 = vmatprep.subr.bf16.mxu0 0
    %2396 = vmatpush1.bf16.msra.mxu0 %v1546
    %2397 = vmatprep.subr.bf16.mxu0 0
    %2398 = vmatpush1.bf16.msra.mxu0 %v1541
    %2399 = vmatprep.subr.bf16.mxu0 0
    %2400 = vmatpush1.bf16.msra.mxu0 %v1536
    %2401 = vmatprep.subr.bf16.mxu0 0
    %2402 = vmatpush1.bf16.msra.mxu0 %v1531
    %2403 = vmatprep.subr.bf16.mxu0 0
    %2404 = vmatpush1.bf16.msra.mxu0 %v1526
    %2405 = vmatprep.subr.bf16.mxu0 0
    %2406 = vmatpush1.bf16.msra.mxu0 %v1521
    %2407 = vmatprep.subr.bf16.mxu0 0
    %2408 = vmatpush1.bf16.msra.mxu0 %v1516
    %2409 = vmatprep.subr.bf16.mxu0 0
    %2410 = vmatpush1.bf16.msra.mxu0 %v1511
    %2411 = vmatprep.subr.bf16.mxu0 0
    %2412 = vmatpush2.bf16.msra.mxu0 %v1586
    %2413 = vmatprep.subr.bf16.mxu0 0
    %2414 = vmatpush2.bf16.msra.mxu0 %v1581
    %2415 = vmatprep.subr.bf16.mxu0 0
    %2416 = vmatpush2.bf16.msra.mxu0 %v1576
    %2417 = vmatprep.subr.bf16.mxu0 0
    %2418 = vmatpush2.bf16.msra.mxu0 %v1571
    %2419 = vmatprep.subr.bf16.mxu0 0
    %2420 = vmatpush2.bf16.msra.mxu0 %v1566
    %2421 = vmatprep.subr.bf16.mxu0 0
    %2422 = vmatpush2.bf16.msra.mxu0 %v1561
    %2423 = vmatprep.subr.bf16.mxu0 0
    %2424 = vmatpush2.bf16.msra.mxu0 %v1556
    %2425 = vmatprep.subr.bf16.mxu0 0
    %2426 = vmatpush2.bf16.msra.mxu0 %v1551
    %2427 = vmatprep.mubr.bf16.mxu0 %v242
    %2428 = vmatmul.mubr.bf16.gmra.mxu0 %v241
    %v2429 = vpop.f32.mrf.mxu0
    %v2430 = vadd.f32 %v605, %v2429
    %v2431 = vpop.f32.mrf.mxu0
    %v2432 = vpop.f32.mrf.mxu0
    %v2433 = vpop.f32.mrf.mxu0
    %2434 = vdwg.mxu0
    %2435 = vmatprep.subr.bf16.mxu0 0
    %2436 = vmatpush1.bf16.msra.mxu0 %v1626
    %2437 = vmatprep.subr.bf16.mxu0 0
    %2438 = vmatpush1.bf16.msra.mxu0 %v1621
    %2439 = vmatprep.subr.bf16.mxu0 0
    %2440 = vmatpush1.bf16.msra.mxu0 %v1616
    %2441 = vmatprep.subr.bf16.mxu0 0
    %2442 = vmatpush1.bf16.msra.mxu0 %v1611
    %2443 = vmatprep.subr.bf16.mxu0 0
    %2444 = vmatpush1.bf16.msra.mxu0 %v1606
    %2445 = vmatprep.subr.bf16.mxu0 0
    %2446 = vmatpush1.bf16.msra.mxu0 %v1601
    %2447 = vmatprep.subr.bf16.mxu0 0
    %2448 = vmatpush1.bf16.msra.mxu0 %v1596
    %2449 = vmatprep.subr.bf16.mxu0 0
    %2450 = vmatpush1.bf16.msra.mxu0 %v1591
    %2451 = vmatprep.subr.bf16.mxu0 0
    %2452 = vmatpush2.bf16.msra.mxu0 %v1666
    %2453 = vmatprep.subr.bf16.mxu0 0
    %2454 = vmatpush2.bf16.msra.mxu0 %v1661
    %2455 = vmatprep.subr.bf16.mxu0 0
    %2456 = vmatpush2.bf16.msra.mxu0 %v1656
    %2457 = vmatprep.subr.bf16.mxu0 0
    %2458 = vmatpush2.bf16.msra.mxu0 %v1651
    %2459 = vmatprep.subr.bf16.mxu0 0
    %2460 = vmatpush2.bf16.msra.mxu0 %v1646
    %2461 = vmatprep.subr.bf16.mxu0 0
    %2462 = vmatpush2.bf16.msra.mxu0 %v1641
    %2463 = vmatprep.subr.bf16.mxu0 0
    %2464 = vmatpush2.bf16.msra.mxu0 %v1636
    %2465 = vmatprep.subr.bf16.mxu0 0
    %2466 = vmatpush2.bf16.msra.mxu0 %v1631
    %2467 = vmatprep.mubr.bf16.mxu0 %v244
    %2468 = vmatmul.mubr.bf16.gmra.mxu0 %v243
    %v2469 = vpop.f32.mrf.mxu0
    %v2470 = vadd.f32 %v2430, %v2469
    %v2471 = vpop.f32.mrf.mxu0
    %v2472 = vpop.f32.mrf.mxu0
    %v2473 = vpop.f32.mrf.mxu0
    %2474 = vdwg.mxu0
    %2475 = vmatprep.subr.bf16.mxu0 0
    %2476 = vmatpush1.bf16.msra.mxu0 %v1706
    %2477 = vmatprep.subr.bf16.mxu0 0
    %2478 = vmatpush1.bf16.msra.mxu0 %v1701
    %2479 = vmatprep.subr.bf16.mxu0 0
    %2480 = vmatpush1.bf16.msra.mxu0 %v1696
    %2481 = vmatprep.subr.bf16.mxu0 0
    %2482 = vmatpush1.bf16.msra.mxu0 %v1691
    %2483 = vmatprep.subr.bf16.mxu0 0
    %2484 = vmatpush1.bf16.msra.mxu0 %v1686
    %2485 = vmatprep.subr.bf16.mxu0 0
    %2486 = vmatpush1.bf16.msra.mxu0 %v1681
    %2487 = vmatprep.subr.bf16.mxu0 0
    %2488 = vmatpush1.bf16.msra.mxu0 %v1676
    %2489 = vmatprep.subr.bf16.mxu0 0
    %2490 = vmatpush1.bf16.msra.mxu0 %v1671
    %2491 = vmatprep.subr.bf16.mxu0 0
    %2492 = vmatpush2.bf16.msra.mxu0 %v1746
    %2493 = vmatprep.subr.bf16.mxu0 0
    %2494 = vmatpush2.bf16.msra.mxu0 %v1741
    %2495 = vmatprep.subr.bf16.mxu0 0
    %2496 = vmatpush2.bf16.msra.mxu0 %v1736
    %2497 = vmatprep.subr.bf16.mxu0 0
    %2498 = vmatpush2.bf16.msra.mxu0 %v1731
    %2499 = vmatprep.subr.bf16.mxu0 0
    %2500 = vmatpush2.bf16.msra.mxu0 %v1726
    %2501 = vmatprep.subr.bf16.mxu0 0
    %2502 = vmatpush2.bf16.msra.mxu0 %v1721
    %2503 = vmatprep.subr.bf16.mxu0 0
    %2504 = vmatpush2.bf16.msra.mxu0 %v1716
    %2505 = vmatprep.subr.bf16.mxu0 0
    %2506 = vmatpush2.bf16.msra.mxu0 %v1711
    %2507 = vmatprep.mubr.bf16.mxu0 %v246
    %2508 = vmatmul.mubr.bf16.gmra.mxu0 %v245
    %v2509 = vpop.f32.mrf.mxu0
    %v2510 = vadd.f32 %v2470, %v2509
    %v2511 = vpop.f32.mrf.mxu0
    %v2512 = vpop.f32.mrf.mxu0
    %v2513 = vpop.f32.mrf.mxu0
    %2514 = vdwg.mxu0
    %2515 = vmatprep.subr.bf16.mxu0 0
    %2516 = vmatpush1.bf16.msra.mxu0 %v1786
    %2517 = vmatprep.subr.bf16.mxu0 0
    %2518 = vmatpush1.bf16.msra.mxu0 %v1781
    %2519 = vmatprep.subr.bf16.mxu0 0
    %2520 = vmatpush1.bf16.msra.mxu0 %v1776
    %2521 = vmatprep.subr.bf16.mxu0 0
    %2522 = vmatpush1.bf16.msra.mxu0 %v1771
    %2523 = vmatprep.subr.bf16.mxu0 0
    %2524 = vmatpush1.bf16.msra.mxu0 %v1766
    %2525 = vmatprep.subr.bf16.mxu0 0
    %2526 = vmatpush1.bf16.msra.mxu0 %v1761
    %2527 = vmatprep.subr.bf16.mxu0 0
    %2528 = vmatpush1.bf16.msra.mxu0 %v1756
    %2529 = vmatprep.subr.bf16.mxu0 0
    %2530 = vmatpush1.bf16.msra.mxu0 %v1751
    %2531 = vmatprep.subr.bf16.mxu0 0
    %2532 = vmatpush2.bf16.msra.mxu0 0
    %2533 = vmatprep.subr.bf16.mxu0 0
    %2534 = vmatpush2.bf16.msra.mxu0 0
    %2535 = vmatprep.subr.bf16.mxu0 0
    %2536 = vmatpush2.bf16.msra.mxu0 0
    %2537 = vmatprep.subr.bf16.mxu0 0
    %2538 = vmatpush2.bf16.msra.mxu0 0
    %2539 = vmatprep.subr.bf16.mxu0 0
    %2540 = vmatpush2.bf16.msra.mxu0 0
    %2541 = vmatprep.subr.bf16.mxu0 0
    %2542 = vmatpush2.bf16.msra.mxu0 0
    %2543 = vmatprep.subr.bf16.mxu0 0
    %2544 = vmatpush2.bf16.msra.mxu0 0
    %2545 = vmatprep.subr.bf16.mxu0 0
    %2546 = vmatpush2.bf16.msra.mxu0 0
    %2547 = vmatprep.mubr.bf16.mxu0 0
    %2548 = vmatmul.mubr.bf16.gmra.mxu0 %v247
    %v2549 = vpop.f32.mrf.mxu0
    %v2550 = vadd.f32 %v2510, %v2549
    %v2551 = vpop.f32.mrf.mxu0
    %v2552 = vpop.f32.mrf.mxu0
    %v2553 = vpop.f32.mrf.mxu0
    %2554 = vdwg.mxu0
    %v2555 = vmax.f32 %v2225, 0.0
    %v2556 = vmax.f32 %v2227, 0.0
    %v2557 = vmax.f32 %v2389, 0.0
    %v2558 = vmax.f32 %v2391, 0.0
    %v2559 = vmax.f32 %v2550, 0.0
    %v2560 = vand.u32 2147483647, %v2225
    %v2561 = vand.u32 2147483647, %v2227
    %v2562 = vand.u32 2147483647, %v2389
    %v2563 = vand.u32 2147483647, %v2391
    %v2564 = vand.u32 2147483647, %v2550
    %v2565 = vsub.f32 0.0, %v2560
    %v2566 = vsub.f32 0.0, %v2561
    %v2567 = vsub.f32 0.0, %v2562
    %v2568 = vsub.f32 0.0, %v2563
    %v2569 = vsub.f32 0.0, %v2564
    %v2570 = vmul.f32 %v2565, 1.442695
    %v2571 = vpow.pop %v2570
    %v2572 = vmul.f32 %v2566, 1.442695
    %v2573 = vpow.pop %v2572
    %v2574 = vmul.f32 %v2567, 1.442695
    %v2575 = vpow.pop %v2574
    %v2576 = vmul.f32 %v2568, 1.442695
    %v2577 = vpow.pop %v2576
    %v2578 = vmul.f32 %v2569, 1.442695
    %v2579 = vpow.pop %v2578
    %v2580 = vadd.f32 %v2571, 1.0
    %v2581 = vlog2.pop %v2580
    %v2582 = vmul.f32 %v2581, 0.6931472
    %v2583 = vmul.f32 -0.5, %v2571
    %v2584 = vadd.f32 %v2583, 1.0
    %v2585 = vmul.f32 %v2584, %v2571
    %v2586 = vand.u32 2147483647, %v2571
    %vm2587 = vcmp.lt.f32.partialorder %v2586, 0.0004427343
    %v2588 = vsel %vm2587, %v2585, %v2582
    %v2589 = vadd.f32 %v2573, 1.0
    %v2590 = vlog2.pop %v2589
    %v2591 = vmul.f32 %v2590, 0.6931472
    %v2592 = vmul.f32 -0.5, %v2573
    %v2593 = vadd.f32 %v2592, 1.0
    %v2594 = vmul.f32 %v2593, %v2573
    %v2595 = vand.u32 2147483647, %v2573
    %vm2596 = vcmp.lt.f32.partialorder %v2595, 0.0004427343
    %v2597 = vsel %vm2596, %v2594, %v2591
    %v2598 = vadd.f32 %v2575, 1.0
    %v2599 = vlog2.pop %v2598
    %v2600 = vmul.f32 %v2599, 0.6931472
    %v2601 = vmul.f32 -0.5, %v2575
    %v2602 = vadd.f32 %v2601, 1.0
    %v2603 = vmul.f32 %v2602, %v2575
    %v2604 = vand.u32 2147483647, %v2575
    %vm2605 = vcmp.lt.f32.partialorder %v2604, 0.0004427343
    %v2606 = vsel %vm2605, %v2603, %v2600
    %v2607 = vadd.f32 %v2577, 1.0
    %v2608 = vlog2.pop %v2607
    %v2609 = vmul.f32 %v2608, 0.6931472
    %v2610 = vmul.f32 -0.5, %v2577
    %v2611 = vadd.f32 %v2610, 1.0
    %v2612 = vmul.f32 %v2611, %v2577
    %v2613 = vand.u32 2147483647, %v2577
    %vm2614 = vcmp.lt.f32.partialorder %v2613, 0.0004427343
    %v2615 = vsel %vm2614, %v2612, %v2609
    %v2616 = vadd.f32 %v2579, 1.0
    %v2617 = vlog2.pop %v2616
    %v2618 = vmul.f32 %v2617, 0.6931472
    %v2619 = vmul.f32 -0.5, %v2579
    %v2620 = vadd.f32 %v2619, 1.0
    %v2621 = vmul.f32 %v2620, %v2579
    %v2622 = vand.u32 2147483647, %v2579
    %vm2623 = vcmp.lt.f32.partialorder %v2622, 0.0004427343
    %v2624 = vsel %vm2623, %v2621, %v2618
    %v2625 = vadd.f32 %v2555, %v2588
    %v2626 = vadd.f32 %v2556, %v2597
    %v2627 = vadd.f32 %v2557, %v2606
    %v2628 = vadd.f32 %v2558, %v2615
    %v2629 = vadd.f32 %v2559, %v2624
    %v2630 = vpack.c.bf16 %v2625, %v2625
    %v2631 = vpack.c.bf16 %v2626, %v2626
    %v2632 = vpack.c.bf16 %v2627, %v2627
    %v2633 = vpack.c.bf16 %v2628, %v2628
    %v2634 = vpack.c.bf16 %v2629, %v2629
    %v2635 = vld [vmem:[#allocation6] sm:$0xff]
    %v2636 = vld [vmem:[#allocation6 + $0x8] sm:$0xff]
    %v2637 = vld [vmem:[#allocation6 + $0x10] sm:$0xf]
    %v2638 = vld [vmem:[#allocation6 + $0x14] sm:$0xff]
    %v2639 = vld [vmem:[#allocation6 + $0x1c] sm:$0xff]
    %v2640 = vld [vmem:[#allocation6 + $0x24] sm:$0xf]
    %v2641 = vld [vmem:[#allocation6 + $0x28] sm:$0xff]
    %v2642 = vld [vmem:[#allocation6 + $0x30] sm:$0xff]
    %v2643 = vld [vmem:[#allocation6 + $0x38] sm:$0xf]
    %v2644 = vld [vmem:[#allocation6 + $0x3c] sm:$0xff]
    %v2645 = vld [vmem:[#allocation6 + $0x44] sm:$0xff]
    %v2646 = vld [vmem:[#allocation6 + $0x4c] sm:$0xf]
    %v2647 = vld [vmem:[#allocation6 + $0x50] sm:$0xff]
    %v2648 = vld [vmem:[#allocation6 + $0x58] sm:$0xff]
    %v2649 = vld [vmem:[#allocation6 + $0x60] sm:$0xf]
    %v2650 = vld [vmem:[#allocation6 + $0x64] sm:$0xff]
    %v2651 = vld [vmem:[#allocation6 + $0x6c] sm:$0xff]
    %v2652 = vld [vmem:[#allocation6 + $0x74] sm:$0xf]
    %v2653 = vld [vmem:[#allocation6 + $0x78] sm:$0xff]
    %v2654 = vld [vmem:[#allocation6 + $0x80] sm:$0xff]
    %v2655 = vld [vmem:[#allocation6 + $0x88] sm:$0xf]
    %v2656 = vld [vmem:[#allocation6 + $0x8c] sm:$0xff]
    %v2657 = vld [vmem:[#allocation6 + $0x94] sm:$0xff]
    %v2658 = vld [vmem:[#allocation6 + $0x9c] sm:$0xf]
    %v2659 = vld [vmem:[#allocation6 + $0xa0] sm:$0xff]
    %v2660 = vld [vmem:[#allocation6 + $0xa8] sm:$0xff]
    %v2661 = vld [vmem:[#allocation6 + $0xb0] sm:$0xf]
    %v2662 = vld [vmem:[#allocation6 + $0xb4] sm:$0xff]
    %v2663 = vld [vmem:[#allocation6 + $0xbc] sm:$0xff]
    %v2664 = vld [vmem:[#allocation6 + $0xc4] sm:$0xf]
    %v2665 = vld [vmem:[#allocation6 + $0xc8] sm:$0xff]
    %v2666 = vld [vmem:[#allocation6 + $0xd0] sm:$0xff]
    %v2667 = vld [vmem:[#allocation6 + $0xd8] sm:$0xf]
    %v2668 = vld [vmem:[#allocation6 + $0xdc] sm:$0xff]
    %v2669 = vld [vmem:[#allocation6 + $0xe4] sm:$0xff]
    %v2670 = vld [vmem:[#allocation6 + $0xec] sm:$0xf]
    %v2671 = vld [vmem:[#allocation6 + $0xf0] sm:$0xff]
    %v2672 = vld [vmem:[#allocation6 + $0xf8] sm:$0xff]
    %v2673 = vld [vmem:[#allocation6 + $0x100] sm:$0xf]
    %v2674 = vld [vmem:[#allocation6 + $0x104] sm:$0xff]
    %v2675 = vld [vmem:[#allocation6 + $0x10c] sm:$0xff]
    %v2676 = vld [vmem:[#allocation6 + $0x114] sm:$0xf]
    %v2677 = vld [vmem:[#allocation6 + $0x118] sm:$0xff]
    %v2678 = vld [vmem:[#allocation6 + $0x120] sm:$0xff]
    %v2679 = vld [vmem:[#allocation6 + $0x128] sm:$0xf]
    %v2680 = vld [vmem:[#allocation6 + $0x12c] sm:$0xff]
    %v2681 = vld [vmem:[#allocation6 + $0x134] sm:$0xff]
    %v2682 = vld [vmem:[#allocation6 + $0x13c] sm:$0xf]
    %v2683 = vld [vmem:[#allocation6 + $0x140] sm:$0xff]
    %v2684 = vld [vmem:[#allocation6 + $0x148] sm:$0xff]
    %v2685 = vld [vmem:[#allocation6 + $0x150] sm:$0xf]
    %v2686 = vld [vmem:[#allocation6 + $0x154] sm:$0xff]
    %v2687 = vld [vmem:[#allocation6 + $0x15c] sm:$0xff]
    %v2688 = vld [vmem:[#allocation6 + $0x164] sm:$0xf]
    %v2689 = vld [vmem:[#allocation6 + $0x168] sm:$0xff]
    %v2690 = vld [vmem:[#allocation6 + $0x170] sm:$0xff]
    %v2691 = vld [vmem:[#allocation6 + $0x178] sm:$0xf]
    %v2692 = vld [vmem:[#allocation6 + $0x17c] sm:$0xff]
    %v2693 = vld [vmem:[#allocation6 + $0x184] sm:$0xff]
    %v2694 = vld [vmem:[#allocation6 + $0x18c] sm:$0xf]
    %v2695 = vld [vmem:[#allocation6 + $0x190] sm:$0xff]
    %v2696 = vld [vmem:[#allocation6 + $0x198] sm:$0xff]
    %v2697 = vld [vmem:[#allocation6 + $0x1a0] sm:$0xf]
    %v2698 = vld [vmem:[#allocation6 + $0x1a4] sm:$0xff]
    %v2699 = vld [vmem:[#allocation6 + $0x1ac] sm:$0xff]
    %v2700 = vld [vmem:[#allocation6 + $0x1b4] sm:$0xf]
    %v2701 = vld [vmem:[#allocation6 + $0x1b8] sm:$0xff]
    %v2702 = vld [vmem:[#allocation6 + $0x1c0] sm:$0xff]
    %v2703 = vld [vmem:[#allocation6 + $0x1c8] sm:$0xf]
    %v2704 = vld [vmem:[#allocation6 + $0x1cc] sm:$0xff]
    %v2705 = vld [vmem:[#allocation6 + $0x1d4] sm:$0xff]
    %v2706 = vld [vmem:[#allocation6 + $0x1dc] sm:$0xf]
    %v2707 = vld [vmem:[#allocation6 + $0x1e0] sm:$0xff]
    %v2708 = vld [vmem:[#allocation6 + $0x1e8] sm:$0xff]
    %v2709 = vld [vmem:[#allocation6 + $0x1f0] sm:$0xf]
    %v2710 = vld [vmem:[#allocation6 + $0x1f4] sm:$0xff]
    %v2711 = vld [vmem:[#allocation6 + $0x1fc] sm:$0xff]
    %v2712 = vld [vmem:[#allocation6 + $0x204] sm:$0xf]
    %v2713 = vld [vmem:[#allocation6 + $0x208] sm:$0xff]
    %v2714 = vld [vmem:[#allocation6 + $0x210] sm:$0xff]
    %v2715 = vld [vmem:[#allocation6 + $0x218] sm:$0xf]
    %v2716 = vld [vmem:[#allocation6 + $0x21c] sm:$0xff]
    %v2717 = vld [vmem:[#allocation6 + $0x224] sm:$0xff]
    %v2718 = vld [vmem:[#allocation6 + $0x22c] sm:$0xf]
    %v2719 = vld [vmem:[#allocation6 + $0x230] sm:$0xff]
    %v2720 = vld [vmem:[#allocation6 + $0x238] sm:$0xff]
    %v2721 = vld [vmem:[#allocation6 + $0x240] sm:$0xf]
    %v2722 = vld [vmem:[#allocation6 + $0x244] sm:$0xff]
    %v2723 = vld [vmem:[#allocation6 + $0x24c] sm:$0xff]
    %v2724 = vld [vmem:[#allocation6 + $0x254] sm:$0xf]
    %v2725 = vld [vmem:[#allocation6 + $0x258] sm:$0xff]
    %v2726 = vld [vmem:[#allocation6 + $0x260] sm:$0xff]
    %v2727 = vld [vmem:[#allocation6 + $0x268] sm:$0xf]
    %v2728 = vld [vmem:[#allocation6 + $0x26c] sm:$0xff]
    %v2729 = vld [vmem:[#allocation6 + $0x274] sm:$0xff]
    %v2730 = vld [vmem:[#allocation6 + $0x27c] sm:$0xf]
    %v2731 = vld [vmem:[#allocation6 + $0x280] sm:$0xff]
    %v2732 = vld [vmem:[#allocation6 + $0x288] sm:$0xff]
    %v2733 = vld [vmem:[#allocation6 + $0x290] sm:$0xf]
    %v2734 = vld [vmem:[#allocation6 + $0x294] sm:$0xff]
    %v2735 = vld [vmem:[#allocation6 + $0x29c] sm:$0xff]
    %v2736 = vld [vmem:[#allocation6 + $0x2a4] sm:$0xf]
    %v2737 = vld [vmem:[#allocation6 + $0x2a8] sm:$0xff]
    %v2738 = vld [vmem:[#allocation6 + $0x2b0] sm:$0xff]
    %v2739 = vld [vmem:[#allocation6 + $0x2b8] sm:$0xf]
    %v2740 = vld [vmem:[#allocation6 + $0x2bc] sm:$0xff]
    %v2741 = vld [vmem:[#allocation6 + $0x2c4] sm:$0xff]
    %v2742 = vld [vmem:[#allocation6 + $0x2cc] sm:$0xf]
    %v2743 = vld [vmem:[#allocation6 + $0x2d0] sm:$0xff]
    %v2744 = vld [vmem:[#allocation6 + $0x2d8] sm:$0xff]
    %v2745 = vld [vmem:[#allocation6 + $0x2e0] sm:$0xf]
    %v2746 = vld [vmem:[#allocation6 + $0x2e4] sm:$0xff]
    %v2747 = vld [vmem:[#allocation6 + $0x2ec] sm:$0xff]
    %v2748 = vld [vmem:[#allocation6 + $0x2f4] sm:$0xf]
    %v2749 = vld [vmem:[#allocation6 + $0x2f8] sm:$0xff]
    %v2750 = vld [vmem:[#allocation6 + $0x300] sm:$0xff]
    %v2751 = vld [vmem:[#allocation6 + $0x308] sm:$0xf]
    %v2752 = vld [vmem:[#allocation6 + $0x30c] sm:$0xff]
    %v2753 = vld [vmem:[#allocation6 + $0x314] sm:$0xff]
    %v2754 = vld [vmem:[#allocation6 + $0x31c] sm:$0xf]
    %v2755 = vld [vmem:[#allocation6 + $0x320] sm:$0xff]
    %v2756 = vld [vmem:[#allocation6 + $0x328] sm:$0xff]
    %v2757 = vld [vmem:[#allocation6 + $0x330] sm:$0xf]
    %v2758 = vld [vmem:[#allocation6 + $0x334] sm:$0xff]
    %v2759 = vld [vmem:[#allocation6 + $0x33c] sm:$0xff]
    %v2760 = vld [vmem:[#allocation6 + $0x344] sm:$0xf]
    %v2761 = vld [vmem:[#allocation6 + $0x348] sm:$0xff]
    %v2762 = vld [vmem:[#allocation6 + $0x350] sm:$0xff]
    %v2763 = vld [vmem:[#allocation6 + $0x358] sm:$0xf]
    %v2764 = vld [vmem:[#allocation6 + $0x35c] sm:$0xff]
    %v2765 = vld [vmem:[#allocation6 + $0x364] sm:$0xff]
    %v2766 = vld [vmem:[#allocation6 + $0x36c] sm:$0xf]
    %v2767 = vld [vmem:[#allocation6 + $0x370] sm:$0xff]
    %v2768 = vld [vmem:[#allocation6 + $0x378] sm:$0xff]
    %v2769 = vld [vmem:[#allocation6 + $0x380] sm:$0xf]
    %v2770 = vld [vmem:[#allocation6 + $0x384] sm:$0xff]
    %v2771 = vld [vmem:[#allocation6 + $0x38c] sm:$0xff]
    %v2772 = vld [vmem:[#allocation6 + $0x394] sm:$0xf]
    %v2773 = vld [vmem:[#allocation6 + $0x398] sm:$0xff]
    %v2774 = vld [vmem:[#allocation6 + $0x3a0] sm:$0xff]
    %v2775 = vld [vmem:[#allocation6 + $0x3a8] sm:$0xf]
    %v2776 = vld [vmem:[#allocation6 + $0x3ac] sm:$0xff]
    %v2777 = vld [vmem:[#allocation6 + $0x3b4] sm:$0xff]
    %v2778 = vld [vmem:[#allocation6 + $0x3bc] sm:$0xf]
    %v2779 = vld [vmem:[#allocation6 + $0x3c0] sm:$0xff]
    %v2780 = vld [vmem:[#allocation6 + $0x3c8] sm:$0xff]
    %v2781 = vld [vmem:[#allocation6 + $0x3d0] sm:$0xf]
    %v2782 = vld [vmem:[#allocation6 + $0x3d4] sm:$0xff]
    %v2783 = vld [vmem:[#allocation6 + $0x3dc] sm:$0xff]
    %v2784 = vld [vmem:[#allocation6 + $0x3e4] sm:$0xf]
    %v2785 = vld [vmem:[#allocation6 + $0x3e8] sm:$0xff]
    %v2786 = vld [vmem:[#allocation6 + $0x3f0] sm:$0xff]
    %v2787 = vld [vmem:[#allocation6 + $0x3f8] sm:$0xf]
    %v2788 = vld [vmem:[#allocation6 + $0x3fc] sm:$0xff]
    %v2789 = vld [vmem:[#allocation6 + $0x404] sm:$0xff]
    %v2790 = vld [vmem:[#allocation6 + $0x40c] sm:$0xf]
    %v2791 = vld [vmem:[#allocation6 + $0x410] sm:$0xff]
    %v2792 = vld [vmem:[#allocation6 + $0x418] sm:$0xff]
    %v2793 = vld [vmem:[#allocation6 + $0x420] sm:$0xf]
    %v2794 = vld [vmem:[#allocation6 + $0x424] sm:$0xff]
    %v2795 = vld [vmem:[#allocation6 + $0x42c] sm:$0xff]
    %v2796 = vld [vmem:[#allocation6 + $0x434] sm:$0xf]
    %v2797 = vld [vmem:[#allocation6 + $0x438] sm:$0xff]
    %v2798 = vld [vmem:[#allocation6 + $0x440] sm:$0xff]
    %v2799 = vld [vmem:[#allocation6 + $0x448] sm:$0xf]
    %v2800 = vld [vmem:[#allocation6 + $0x44c] sm:$0xff]
    %v2801 = vld [vmem:[#allocation6 + $0x454] sm:$0xff]
    %v2802 = vld [vmem:[#allocation6 + $0x45c] sm:$0xf]
    %v2803 = vld [vmem:[#allocation6 + $0x460] sm:$0xff]
    %v2804 = vld [vmem:[#allocation6 + $0x468] sm:$0xff]
    %v2805 = vld [vmem:[#allocation6 + $0x470] sm:$0xf]
    %v2806 = vld [vmem:[#allocation6 + $0x474] sm:$0xff]
    %v2807 = vld [vmem:[#allocation6 + $0x47c] sm:$0xff]
    %v2808 = vld [vmem:[#allocation6 + $0x484] sm:$0xf]
    %v2809 = vld [vmem:[#allocation6 + $0x488] sm:$0xff]
    %v2810 = vld [vmem:[#allocation6 + $0x490] sm:$0xff]
    %v2811 = vld [vmem:[#allocation6 + $0x498] sm:$0xf]
    %v2812 = vld [vmem:[#allocation6 + $0x49c] sm:$0xff]
    %v2813 = vld [vmem:[#allocation6 + $0x4a4] sm:$0xff]
    %v2814 = vld [vmem:[#allocation6 + $0x4ac] sm:$0xf]
    %v2815 = vld [vmem:[#allocation6 + $0x4b0] sm:$0xff]
    %v2816 = vld [vmem:[#allocation6 + $0x4b8] sm:$0xff]
    %v2817 = vld [vmem:[#allocation6 + $0x4c0] sm:$0xf]
    %v2818 = vld [vmem:[#allocation6 + $0x4c4] sm:$0xff]
    %v2819 = vld [vmem:[#allocation6 + $0x4cc] sm:$0xff]
    %v2820 = vld [vmem:[#allocation6 + $0x4d4] sm:$0xf]
    %v2821 = vld [vmem:[#allocation6 + $0x4d8] sm:$0xff]
    %v2822 = vld [vmem:[#allocation6 + $0x4e0] sm:$0xff]
    %v2823 = vld [vmem:[#allocation6 + $0x4e8] sm:$0xf]
    %v2824 = vld [vmem:[#allocation6 + $0x4ec] sm:$0xff]
    %v2825 = vld [vmem:[#allocation6 + $0x4f4] sm:$0xff]
    %v2826 = vld [vmem:[#allocation6 + $0x4fc] sm:$0xf]
    %v2827 = vld [vmem:[#allocation6 + $0x500] sm:$0xff]
    %v2828 = vld [vmem:[#allocation6 + $0x508] sm:$0xff]
    %v2829 = vld [vmem:[#allocation6 + $0x510] sm:$0xf]
    %v2830 = vld [vmem:[#allocation6 + $0x514] sm:$0xff]
    %v2831 = vld [vmem:[#allocation6 + $0x51c] sm:$0xff]
    %v2832 = vld [vmem:[#allocation6 + $0x524] sm:$0xf]
    %v2833 = vld [vmem:[#allocation6 + $0x528] sm:$0xff]
    %v2834 = vld [vmem:[#allocation6 + $0x530] sm:$0xff]
    %v2835 = vld [vmem:[#allocation6 + $0x538] sm:$0xf]
    %v2836 = vld [vmem:[#allocation6 + $0x53c] sm:$0xff]
    %v2837 = vld [vmem:[#allocation6 + $0x544] sm:$0xff]
    %v2838 = vld [vmem:[#allocation6 + $0x54c] sm:$0xf]
    %v2839 = vld [vmem:[#allocation6 + $0x550] sm:$0xff]
    %v2840 = vld [vmem:[#allocation6 + $0x558] sm:$0xff]
    %v2841 = vld [vmem:[#allocation6 + $0x560] sm:$0xf]
    %v2842 = vld [vmem:[#allocation6 + $0x564] sm:$0xff]
    %v2843 = vld [vmem:[#allocation6 + $0x56c] sm:$0xff]
    %v2844 = vld [vmem:[#allocation6 + $0x574] sm:$0xf]
    %v2845 = vld [vmem:[#allocation6 + $0x578] sm:$0xff]
    %v2846 = vld [vmem:[#allocation6 + $0x580] sm:$0xff]
    %v2847 = vld [vmem:[#allocation6 + $0x588] sm:$0xf]
    %v2848 = vld [vmem:[#allocation6 + $0x58c] sm:$0xff]
    %v2849 = vld [vmem:[#allocation6 + $0x594] sm:$0xff]
    %v2850 = vld [vmem:[#allocation6 + $0x59c] sm:$0xf]
    %v2851 = vld [vmem:[#allocation6 + $0x5a0] sm:$0xff]
    %v2852 = vld [vmem:[#allocation6 + $0x5a8] sm:$0xff]
    %v2853 = vld [vmem:[#allocation6 + $0x5b0] sm:$0xf]
    %v2854 = vld [vmem:[#allocation6 + $0x5b4] sm:$0xff]
    %v2855 = vld [vmem:[#allocation6 + $0x5bc] sm:$0xff]
    %v2856 = vld [vmem:[#allocation6 + $0x5c4] sm:$0xf]
    %v2857 = vld [vmem:[#allocation6 + $0x5c8] sm:$0xff]
    %v2858 = vld [vmem:[#allocation6 + $0x5d0] sm:$0xff]
    %v2859 = vld [vmem:[#allocation6 + $0x5d8] sm:$0xf]
    %v2860 = vld [vmem:[#allocation6 + $0x5dc] sm:$0xff]
    %v2861 = vld [vmem:[#allocation6 + $0x5e4] sm:$0xff]
    %v2862 = vld [vmem:[#allocation6 + $0x5ec] sm:$0xf]
    %v2863 = vld [vmem:[#allocation6 + $0x5f0] sm:$0xff]
    %v2864 = vld [vmem:[#allocation6 + $0x5f8] sm:$0xff]
    %v2865 = vld [vmem:[#allocation6 + $0x600] sm:$0xf]
    %v2866 = vld [vmem:[#allocation6 + $0x604] sm:$0xff]
    %v2867 = vld [vmem:[#allocation6 + $0x60c] sm:$0xff]
    %v2868 = vld [vmem:[#allocation6 + $0x614] sm:$0xf]
    %v2869 = vld [vmem:[#allocation6 + $0x618] sm:$0xff]
    %v2870 = vld [vmem:[#allocation6 + $0x620] sm:$0xff]
    %v2871 = vld [vmem:[#allocation6 + $0x628] sm:$0xf]
    %v2872 = vld [vmem:[#allocation6 + $0x62c] sm:$0xff]
    %v2873 = vld [vmem:[#allocation6 + $0x634] sm:$0xff]
    %v2874 = vld [vmem:[#allocation6 + $0x63c] sm:$0xf]
    %v2875 = vld [vmem:[#allocation7] sm:$0x1f]
    %v2877 = vlaneseq
    %v2878 = vshrl.u32 %v2877, 7
    %v2879 = vsub.s32 0, %v2878
    %v2880 = vrot.slane %v2875, %v2879
    %v2881 = vlaneseq
    %v2882 = vshrl.u32 %v2881, 7
    %v2883 = vsub.s32 1, %v2882
    %v2884 = vrot.slane %v2875, %v2883
    %v2885 = vlaneseq
    %v2886 = vshrl.u32 %v2885, 7
    %v2887 = vsub.s32 2, %v2886
    %v2888 = vrot.slane %v2875, %v2887
    %v2889 = vlaneseq
    %v2890 = vshrl.u32 %v2889, 7
    %v2891 = vsub.s32 3, %v2890
    %v2892 = vrot.slane %v2875, %v2891
    %v2893 = vlaneseq
    %v2894 = vshrl.u32 %v2893, 7
    %v2895 = vsub.s32 4, %v2894
    %v2896 = vrot.slane %v2875, %v2895
    %v3142 = vunpack.c.l.b16 %v2635
    %v3143 = vunpack.c.h.b16 %v2635
    %v3144 = vunpack.c.l.b16 %v2636
    %v3145 = vunpack.c.h.b16 %v2636
    %v3146 = vunpack.c.l.b16 %v2637
    %v3147 = vunpack.c.l.b16 %v2638
    %v3148 = vunpack.c.h.b16 %v2638
    %v3149 = vunpack.c.l.b16 %v2639
    %v3150 = vunpack.c.h.b16 %v2639
    %v3151 = vunpack.c.l.b16 %v2640
    %v3152 = vunpack.c.l.b16 %v2641
    %v3153 = vunpack.c.h.b16 %v2641
    %v3154 = vunpack.c.l.b16 %v2642
    %v3155 = vunpack.c.h.b16 %v2642
    %v3156 = vunpack.c.l.b16 %v2643
    %v3157 = vunpack.c.l.b16 %v2644
    %v3158 = vunpack.c.h.b16 %v2644
    %v3159 = vunpack.c.l.b16 %v2645
    %v3160 = vunpack.c.h.b16 %v2645
    %v3161 = vunpack.c.l.b16 %v2646
    %v3162 = vunpack.c.l.b16 %v2647
    %v3163 = vunpack.c.h.b16 %v2647
    %v3164 = vunpack.c.l.b16 %v2648
    %v3165 = vunpack.c.h.b16 %v2648
    %v3166 = vunpack.c.l.b16 %v2649
    %v3167 = vunpack.c.l.b16 %v2650
    %v3168 = vunpack.c.h.b16 %v2650
    %v3169 = vunpack.c.l.b16 %v2651
    %v3170 = vunpack.c.h.b16 %v2651
    %v3171 = vunpack.c.l.b16 %v2652
    %v3172 = vunpack.c.l.b16 %v2653
    %v3173 = vunpack.c.h.b16 %v2653
    %v3174 = vunpack.c.l.b16 %v2654
    %v3175 = vunpack.c.h.b16 %v2654
    %v3176 = vunpack.c.l.b16 %v2655
    %v3177 = vunpack.c.l.b16 %v2656
    %v3178 = vunpack.c.h.b16 %v2656
    %v3179 = vunpack.c.l.b16 %v2657
    %v3180 = vunpack.c.h.b16 %v2657
    %v3181 = vunpack.c.l.b16 %v2658
    %v3182 = vunpack.c.l.b16 %v2659
    %v3183 = vunpack.c.h.b16 %v2659
    %v3184 = vunpack.c.l.b16 %v2660
    %v3185 = vunpack.c.h.b16 %v2660
    %v3186 = vunpack.c.l.b16 %v2661
    %v3187 = vunpack.c.l.b16 %v2662
    %v3188 = vunpack.c.h.b16 %v2662
    %v3189 = vunpack.c.l.b16 %v2663
    %v3190 = vunpack.c.h.b16 %v2663
    %v3191 = vunpack.c.l.b16 %v2664
    %v3192 = vunpack.c.l.b16 %v2665
    %v3193 = vunpack.c.h.b16 %v2665
    %v3194 = vunpack.c.l.b16 %v2666
    %v3195 = vunpack.c.h.b16 %v2666
    %v3196 = vunpack.c.l.b16 %v2667
    %v3197 = vunpack.c.l.b16 %v2668
    %v3198 = vunpack.c.h.b16 %v2668
    %v3199 = vunpack.c.l.b16 %v2669
    %v3200 = vunpack.c.h.b16 %v2669
    %v3201 = vunpack.c.l.b16 %v2670
    %v3202 = vunpack.c.l.b16 %v2671
    %v3203 = vunpack.c.h.b16 %v2671
    %v3204 = vunpack.c.l.b16 %v2672
    %v3205 = vunpack.c.h.b16 %v2672
    %v3206 = vunpack.c.l.b16 %v2673
    %v3207 = vunpack.c.l.b16 %v2674
    %v3208 = vunpack.c.h.b16 %v2674
    %v3209 = vunpack.c.l.b16 %v2675
    %v3210 = vunpack.c.h.b16 %v2675
    %v3211 = vunpack.c.l.b16 %v2676
    %v3212 = vunpack.c.l.b16 %v2677
    %v3213 = vunpack.c.h.b16 %v2677
    %v3214 = vunpack.c.l.b16 %v2678
    %v3215 = vunpack.c.h.b16 %v2678
    %v3216 = vunpack.c.l.b16 %v2679
    %v3217 = vunpack.c.l.b16 %v2680
    %v3218 = vunpack.c.h.b16 %v2680
    %v3219 = vunpack.c.l.b16 %v2681
    %v3220 = vunpack.c.h.b16 %v2681
    %v3221 = vunpack.c.l.b16 %v2682
    %v3222 = vunpack.c.l.b16 %v2683
    %v3223 = vunpack.c.h.b16 %v2683
    %v3224 = vunpack.c.l.b16 %v2684
    %v3225 = vunpack.c.h.b16 %v2684
    %v3226 = vunpack.c.l.b16 %v2685
    %v3227 = vunpack.c.l.b16 %v2686
    %v3228 = vunpack.c.h.b16 %v2686
    %v3229 = vunpack.c.l.b16 %v2687
    %v3230 = vunpack.c.h.b16 %v2687
    %v3231 = vunpack.c.l.b16 %v2688
    %v3232 = vunpack.c.l.b16 %v2689
    %v3233 = vunpack.c.h.b16 %v2689
    %v3234 = vunpack.c.l.b16 %v2690
    %v3235 = vunpack.c.h.b16 %v2690
    %v3236 = vunpack.c.l.b16 %v2691
    %v3237 = vunpack.c.l.b16 %v2692
    %v3238 = vunpack.c.h.b16 %v2692
    %v3239 = vunpack.c.l.b16 %v2693
    %v3240 = vunpack.c.h.b16 %v2693
    %v3241 = vunpack.c.l.b16 %v2694
    %v3242 = vunpack.c.l.b16 %v2695
    %v3243 = vunpack.c.h.b16 %v2695
    %v3244 = vunpack.c.l.b16 %v2696
    %v3245 = vunpack.c.h.b16 %v2696
    %v3246 = vunpack.c.l.b16 %v2697
    %v3247 = vunpack.c.l.b16 %v2698
    %v3248 = vunpack.c.h.b16 %v2698
    %v3249 = vunpack.c.l.b16 %v2699
    %v3250 = vunpack.c.h.b16 %v2699
    %v3251 = vunpack.c.l.b16 %v2700
    %v3252 = vunpack.c.l.b16 %v2701
    %v3253 = vunpack.c.h.b16 %v2701
    %v3254 = vunpack.c.l.b16 %v2702
    %v3255 = vunpack.c.h.b16 %v2702
    %v3256 = vunpack.c.l.b16 %v2703
    %v3257 = vunpack.c.l.b16 %v2704
    %v3258 = vunpack.c.h.b16 %v2704
    %v3259 = vunpack.c.l.b16 %v2705
    %v3260 = vunpack.c.h.b16 %v2705
    %v3261 = vunpack.c.l.b16 %v2706
    %v3262 = vunpack.c.l.b16 %v2707
    %v3263 = vunpack.c.h.b16 %v2707
    %v3264 = vunpack.c.l.b16 %v2708
    %v3265 = vunpack.c.h.b16 %v2708
    %v3266 = vunpack.c.l.b16 %v2709
    %v3267 = vunpack.c.l.b16 %v2710
    %v3268 = vunpack.c.h.b16 %v2710
    %v3269 = vunpack.c.l.b16 %v2711
    %v3270 = vunpack.c.h.b16 %v2711
    %v3271 = vunpack.c.l.b16 %v2712
    %v3272 = vunpack.c.l.b16 %v2713
    %v3273 = vunpack.c.h.b16 %v2713
    %v3274 = vunpack.c.l.b16 %v2714
    %v3275 = vunpack.c.h.b16 %v2714
    %v3276 = vunpack.c.l.b16 %v2715
    %v3277 = vunpack.c.l.b16 %v2716
    %v3278 = vunpack.c.h.b16 %v2716
    %v3279 = vunpack.c.l.b16 %v2717
    %v3280 = vunpack.c.h.b16 %v2717
    %v3281 = vunpack.c.l.b16 %v2718
    %v3282 = vunpack.c.l.b16 %v2719
    %v3283 = vunpack.c.h.b16 %v2719
    %v3284 = vunpack.c.l.b16 %v2720
    %v3285 = vunpack.c.h.b16 %v2720
    %v3286 = vunpack.c.l.b16 %v2721
    %v3287 = vunpack.c.l.b16 %v2722
    %v3288 = vunpack.c.h.b16 %v2722
    %v3289 = vunpack.c.l.b16 %v2723
    %v3290 = vunpack.c.h.b16 %v2723
    %v3291 = vunpack.c.l.b16 %v2724
    %v3292 = vunpack.c.l.b16 %v2725
    %v3293 = vunpack.c.h.b16 %v2725
    %v3294 = vunpack.c.l.b16 %v2726
    %v3295 = vunpack.c.h.b16 %v2726
    %v3296 = vunpack.c.l.b16 %v2727
    %v3297 = vunpack.c.l.b16 %v2728
    %v3298 = vunpack.c.h.b16 %v2728
    %v3299 = vunpack.c.l.b16 %v2729
    %v3300 = vunpack.c.h.b16 %v2729
    %v3301 = vunpack.c.l.b16 %v2730
    %v3302 = vunpack.c.l.b16 %v2731
    %v3303 = vunpack.c.h.b16 %v2731
    %v3304 = vunpack.c.l.b16 %v2732
    %v3305 = vunpack.c.h.b16 %v2732
    %v3306 = vunpack.c.l.b16 %v2733
    %v3307 = vunpack.c.l.b16 %v2734
    %v3308 = vunpack.c.h.b16 %v2734
    %v3309 = vunpack.c.l.b16 %v2735
    %v3310 = vunpack.c.h.b16 %v2735
    %v3311 = vunpack.c.l.b16 %v2736
    %v3312 = vunpack.c.l.b16 %v2737
    %v3313 = vunpack.c.h.b16 %v2737
    %v3314 = vunpack.c.l.b16 %v2738
    %v3315 = vunpack.c.h.b16 %v2738
    %v3316 = vunpack.c.l.b16 %v2739
    %v3317 = vunpack.c.l.b16 %v2740
    %v3318 = vunpack.c.h.b16 %v2740
    %v3319 = vunpack.c.l.b16 %v2741
    %v3320 = vunpack.c.h.b16 %v2741
    %v3321 = vunpack.c.l.b16 %v2742
    %v3322 = vunpack.c.l.b16 %v2743
    %v3323 = vunpack.c.h.b16 %v2743
    %v3324 = vunpack.c.l.b16 %v2744
    %v3325 = vunpack.c.h.b16 %v2744
    %v3326 = vunpack.c.l.b16 %v2745
    %v3327 = vunpack.c.l.b16 %v2746
    %v3328 = vunpack.c.h.b16 %v2746
    %v3329 = vunpack.c.l.b16 %v2747
    %v3330 = vunpack.c.h.b16 %v2747
    %v3331 = vunpack.c.l.b16 %v2748
    %v3332 = vunpack.c.l.b16 %v2749
    %v3333 = vunpack.c.h.b16 %v2749
    %v3334 = vunpack.c.l.b16 %v2750
    %v3335 = vunpack.c.h.b16 %v2750
    %v3336 = vunpack.c.l.b16 %v2751
    %v3337 = vunpack.c.l.b16 %v2752
    %v3338 = vunpack.c.h.b16 %v2752
    %v3339 = vunpack.c.l.b16 %v2753
    %v3340 = vunpack.c.h.b16 %v2753
    %v3341 = vunpack.c.l.b16 %v2754
    %v3342 = vunpack.c.l.b16 %v2755
    %v3343 = vunpack.c.h.b16 %v2755
    %v3344 = vunpack.c.l.b16 %v2756
    %v3345 = vunpack.c.h.b16 %v2756
    %v3346 = vunpack.c.l.b16 %v2757
    %v3347 = vunpack.c.l.b16 %v2758
    %v3348 = vunpack.c.h.b16 %v2758
    %v3349 = vunpack.c.l.b16 %v2759
    %v3350 = vunpack.c.h.b16 %v2759
    %v3351 = vunpack.c.l.b16 %v2760
    %v3352 = vunpack.c.l.b16 %v2761
    %v3353 = vunpack.c.h.b16 %v2761
    %v3354 = vunpack.c.l.b16 %v2762
    %v3355 = vunpack.c.h.b16 %v2762
    %v3356 = vunpack.c.l.b16 %v2763
    %v3357 = vunpack.c.l.b16 %v2764
    %v3358 = vunpack.c.h.b16 %v2764
    %v3359 = vunpack.c.l.b16 %v2765
    %v3360 = vunpack.c.h.b16 %v2765
    %v3361 = vunpack.c.l.b16 %v2766
    %v3362 = vunpack.c.l.b16 %v2767
    %v3363 = vunpack.c.h.b16 %v2767
    %v3364 = vunpack.c.l.b16 %v2768
    %v3365 = vunpack.c.h.b16 %v2768
    %v3366 = vunpack.c.l.b16 %v2769
    %v3367 = vunpack.c.l.b16 %v2770
    %v3368 = vunpack.c.h.b16 %v2770
    %v3369 = vunpack.c.l.b16 %v2771
    %v3370 = vunpack.c.h.b16 %v2771
    %v3371 = vunpack.c.l.b16 %v2772
    %v3372 = vunpack.c.l.b16 %v2773
    %v3373 = vunpack.c.h.b16 %v2773
    %v3374 = vunpack.c.l.b16 %v2774
    %v3375 = vunpack.c.h.b16 %v2774
    %v3376 = vunpack.c.l.b16 %v2775
    %v3377 = vunpack.c.l.b16 %v2776
    %v3378 = vunpack.c.h.b16 %v2776
    %v3379 = vunpack.c.l.b16 %v2777
    %v3380 = vunpack.c.h.b16 %v2777
    %v3381 = vunpack.c.l.b16 %v2778
    %v3382 = vunpack.c.l.b16 %v2779
    %v3383 = vunpack.c.h.b16 %v2779
    %v3384 = vunpack.c.l.b16 %v2780
    %v3385 = vunpack.c.h.b16 %v2780
    %v3386 = vunpack.c.l.b16 %v2781
    %v3387 = vunpack.c.l.b16 %v2782
    %v3388 = vunpack.c.h.b16 %v2782
    %v3389 = vunpack.c.l.b16 %v2783
    %v3390 = vunpack.c.h.b16 %v2783
    %v3391 = vunpack.c.l.b16 %v2784
    %v3392 = vunpack.c.l.b16 %v2785
    %v3393 = vunpack.c.h.b16 %v2785
    %v3394 = vunpack.c.l.b16 %v2786
    %v3395 = vunpack.c.h.b16 %v2786
    %v3396 = vunpack.c.l.b16 %v2787
    %v3397 = vunpack.c.l.b16 %v2788
    %v3398 = vunpack.c.h.b16 %v2788
    %v3399 = vunpack.c.l.b16 %v2789
    %v3400 = vunpack.c.h.b16 %v2789
    %v3401 = vunpack.c.l.b16 %v2790
    %v3402 = vunpack.c.l.b16 %v2791
    %v3403 = vunpack.c.h.b16 %v2791
    %v3404 = vunpack.c.l.b16 %v2792
    %v3405 = vunpack.c.h.b16 %v2792
    %v3406 = vunpack.c.l.b16 %v2793
    %v3407 = vunpack.c.l.b16 %v2794
    %v3408 = vunpack.c.h.b16 %v2794
    %v3409 = vunpack.c.l.b16 %v2795
    %v3410 = vunpack.c.h.b16 %v2795
    %v3411 = vunpack.c.l.b16 %v2796
    %v3412 = vunpack.c.l.b16 %v2797
    %v3413 = vunpack.c.h.b16 %v2797
    %v3414 = vunpack.c.l.b16 %v2798
    %v3415 = vunpack.c.h.b16 %v2798
    %v3416 = vunpack.c.l.b16 %v2799
    %v3417 = vunpack.c.l.b16 %v2800
    %v3418 = vunpack.c.h.b16 %v2800
    %v3419 = vunpack.c.l.b16 %v2801
    %v3420 = vunpack.c.h.b16 %v2801
    %v3421 = vunpack.c.l.b16 %v2802
    %v3422 = vunpack.c.l.b16 %v2803
    %v3423 = vunpack.c.h.b16 %v2803
    %v3424 = vunpack.c.l.b16 %v2804
    %v3425 = vunpack.c.h.b16 %v2804
    %v3426 = vunpack.c.l.b16 %v2805
    %v3427 = vunpack.c.l.b16 %v2806
    %v3428 = vunpack.c.h.b16 %v2806
    %v3429 = vunpack.c.l.b16 %v2807
    %v3430 = vunpack.c.h.b16 %v2807
    %v3431 = vunpack.c.l.b16 %v2808
    %v3432 = vunpack.c.l.b16 %v2809
    %v3433 = vunpack.c.h.b16 %v2809
    %v3434 = vunpack.c.l.b16 %v2810
    %v3435 = vunpack.c.h.b16 %v2810
    %v3436 = vunpack.c.l.b16 %v2811
    %v3437 = vunpack.c.l.b16 %v2812
    %v3438 = vunpack.c.h.b16 %v2812
    %v3439 = vunpack.c.l.b16 %v2813
    %v3440 = vunpack.c.h.b16 %v2813
    %v3441 = vunpack.c.l.b16 %v2814
    %v3442 = vunpack.c.l.b16 %v2815
    %v3443 = vunpack.c.h.b16 %v2815
    %v3444 = vunpack.c.l.b16 %v2816
    %v3445 = vunpack.c.h.b16 %v2816
    %v3446 = vunpack.c.l.b16 %v2817
    %v3447 = vunpack.c.l.b16 %v2818
    %v3448 = vunpack.c.h.b16 %v2818
    %v3449 = vunpack.c.l.b16 %v2819
    %v3450 = vunpack.c.h.b16 %v2819
    %v3451 = vunpack.c.l.b16 %v2820
    %v3452 = vunpack.c.l.b16 %v2821
    %v3453 = vunpack.c.h.b16 %v2821
    %v3454 = vunpack.c.l.b16 %v2822
    %v3455 = vunpack.c.h.b16 %v2822
    %v3456 = vunpack.c.l.b16 %v2823
    %v3457 = vunpack.c.l.b16 %v2824
    %v3458 = vunpack.c.h.b16 %v2824
    %v3459 = vunpack.c.l.b16 %v2825
    %v3460 = vunpack.c.h.b16 %v2825
    %v3461 = vunpack.c.l.b16 %v2826
    %v3462 = vunpack.c.l.b16 %v2827
    %v3463 = vunpack.c.h.b16 %v2827
    %v3464 = vunpack.c.l.b16 %v2828
    %v3465 = vunpack.c.h.b16 %v2828
    %v3466 = vunpack.c.l.b16 %v2829
    %v3467 = vunpack.c.l.b16 %v2830
    %v3468 = vunpack.c.h.b16 %v2830
    %v3469 = vunpack.c.l.b16 %v2831
    %v3470 = vunpack.c.h.b16 %v2831
    %v3471 = vunpack.c.l.b16 %v2832
    %v3472 = vunpack.c.l.b16 %v2833
    %v3473 = vunpack.c.h.b16 %v2833
    %v3474 = vunpack.c.l.b16 %v2834
    %v3475 = vunpack.c.h.b16 %v2834
    %v3476 = vunpack.c.l.b16 %v2835
    %v3477 = vunpack.c.l.b16 %v2836
    %v3478 = vunpack.c.h.b16 %v2836
    %v3479 = vunpack.c.l.b16 %v2837
    %v3480 = vunpack.c.h.b16 %v2837
    %v3481 = vunpack.c.l.b16 %v2838
    %v3482 = vunpack.c.l.b16 %v2839
    %v3483 = vunpack.c.h.b16 %v2839
    %v3484 = vunpack.c.l.b16 %v2840
    %v3485 = vunpack.c.h.b16 %v2840
    %v3486 = vunpack.c.l.b16 %v2841
    %v3487 = vunpack.c.l.b16 %v2842
    %v3488 = vunpack.c.h.b16 %v2842
    %v3489 = vunpack.c.l.b16 %v2843
    %v3490 = vunpack.c.h.b16 %v2843
    %v3491 = vunpack.c.l.b16 %v2844
    %v3492 = vunpack.c.l.b16 %v2845
    %v3493 = vunpack.c.h.b16 %v2845
    %v3494 = vunpack.c.l.b16 %v2846
    %v3495 = vunpack.c.h.b16 %v2846
    %v3496 = vunpack.c.l.b16 %v2847
    %v3497 = vunpack.c.l.b16 %v2848
    %v3498 = vunpack.c.h.b16 %v2848
    %v3499 = vunpack.c.l.b16 %v2849
    %v3500 = vunpack.c.h.b16 %v2849
    %v3501 = vunpack.c.l.b16 %v2850
    %v3502 = vunpack.c.l.b16 %v2851
    %v3503 = vunpack.c.h.b16 %v2851
    %v3504 = vunpack.c.l.b16 %v2852
    %v3505 = vunpack.c.h.b16 %v2852
    %v3506 = vunpack.c.l.b16 %v2853
    %v3507 = vunpack.c.l.b16 %v2854
    %v3508 = vunpack.c.h.b16 %v2854
    %v3509 = vunpack.c.l.b16 %v2855
    %v3510 = vunpack.c.h.b16 %v2855
    %v3511 = vunpack.c.l.b16 %v2856
    %v3512 = vunpack.c.l.b16 %v2857
    %v3513 = vunpack.c.h.b16 %v2857
    %v3514 = vunpack.c.l.b16 %v2858
    %v3515 = vunpack.c.h.b16 %v2858
    %v3516 = vunpack.c.l.b16 %v2859
    %v3517 = vunpack.c.l.b16 %v2860
    %v3518 = vunpack.c.h.b16 %v2860
    %v3519 = vunpack.c.l.b16 %v2861
    %v3520 = vunpack.c.h.b16 %v2861
    %v3521 = vunpack.c.l.b16 %v2862
    %v3522 = vunpack.c.l.b16 %v2863
    %v3523 = vunpack.c.h.b16 %v2863
    %v3524 = vunpack.c.l.b16 %v2864
    %v3525 = vunpack.c.h.b16 %v2864
    %v3526 = vunpack.c.l.b16 %v2865
    %v3527 = vunpack.c.l.b16 %v2866
    %v3528 = vunpack.c.h.b16 %v2866
    %v3529 = vunpack.c.l.b16 %v2867
    %v3530 = vunpack.c.h.b16 %v2867
    %v3531 = vunpack.c.l.b16 %v2868
    %v3532 = vunpack.c.l.b16 %v2869
    %v3533 = vunpack.c.h.b16 %v2869
    %v3534 = vunpack.c.l.b16 %v2870
    %v3535 = vunpack.c.h.b16 %v2870
    %v3536 = vunpack.c.l.b16 %v2871
    %v3537 = vunpack.c.l.b16 %v2872
    %v3538 = vunpack.c.h.b16 %v2872
    %v3539 = vunpack.c.l.b16 %v2873
    %v3540 = vunpack.c.h.b16 %v2873
    %v3541 = vunpack.c.l.b16 %v2874
    %v3542 = vpack.c.b16 %v3147, %v3142
    %v3543 = vpack.c.b16 %v3148, %v3143
    %v3544 = vpack.c.b16 %v3149, %v3144
    %v3545 = vpack.c.b16 %v3150, %v3145
    %v3546 = vpack.c.b16 %v3151, %v3146
    %v3547 = vpack.c.b16 %v3157, %v3152
    %v3548 = vpack.c.b16 %v3158, %v3153
    %v3549 = vpack.c.b16 %v3159, %v3154
    %v3550 = vpack.c.b16 %v3160, %v3155
    %v3551 = vpack.c.b16 %v3161, %v3156
    %v3552 = vpack.c.b16 %v3167, %v3162
    %v3553 = vpack.c.b16 %v3168, %v3163
    %v3554 = vpack.c.b16 %v3169, %v3164
    %v3555 = vpack.c.b16 %v3170, %v3165
    %v3556 = vpack.c.b16 %v3171, %v3166
    %v3557 = vpack.c.b16 %v3177, %v3172
    %v3558 = vpack.c.b16 %v3178, %v3173
    %v3559 = vpack.c.b16 %v3179, %v3174
    %v3560 = vpack.c.b16 %v3180, %v3175
    %v3561 = vpack.c.b16 %v3181, %v3176
    %v3562 = vpack.c.b16 %v3187, %v3182
    %v3563 = vpack.c.b16 %v3188, %v3183
    %v3564 = vpack.c.b16 %v3189, %v3184
    %v3565 = vpack.c.b16 %v3190, %v3185
    %v3566 = vpack.c.b16 %v3191, %v3186
    %v3567 = vpack.c.b16 %v3197, %v3192
    %v3568 = vpack.c.b16 %v3198, %v3193
    %v3569 = vpack.c.b16 %v3199, %v3194
    %v3570 = vpack.c.b16 %v3200, %v3195
    %v3571 = vpack.c.b16 %v3201, %v3196
    %v3572 = vpack.c.b16 %v3207, %v3202
    %v3573 = vpack.c.b16 %v3208, %v3203
    %v3574 = vpack.c.b16 %v3209, %v3204
    %v3575 = vpack.c.b16 %v3210, %v3205
    %v3576 = vpack.c.b16 %v3211, %v3206
    %v3577 = vpack.c.b16 %v3217, %v3212
    %v3578 = vpack.c.b16 %v3218, %v3213
    %v3579 = vpack.c.b16 %v3219, %v3214
    %v3580 = vpack.c.b16 %v3220, %v3215
    %v3581 = vpack.c.b16 %v3221, %v3216
    %v3582 = vpack.c.b16 %v3227, %v3222
    %v3583 = vpack.c.b16 %v3228, %v3223
    %v3584 = vpack.c.b16 %v3229, %v3224
    %v3585 = vpack.c.b16 %v3230, %v3225
    %v3586 = vpack.c.b16 %v3231, %v3226
    %v3587 = vpack.c.b16 %v3237, %v3232
    %v3588 = vpack.c.b16 %v3238, %v3233
    %v3589 = vpack.c.b16 %v3239, %v3234
    %v3590 = vpack.c.b16 %v3240, %v3235
    %v3591 = vpack.c.b16 %v3241, %v3236
    %v3592 = vpack.c.b16 %v3247, %v3242
    %v3593 = vpack.c.b16 %v3248, %v3243
    %v3594 = vpack.c.b16 %v3249, %v3244
    %v3595 = vpack.c.b16 %v3250, %v3245
    %v3596 = vpack.c.b16 %v3251, %v3246
    %v3597 = vpack.c.b16 %v3257, %v3252
    %v3598 = vpack.c.b16 %v3258, %v3253
    %v3599 = vpack.c.b16 %v3259, %v3254
    %v3600 = vpack.c.b16 %v3260, %v3255
    %v3601 = vpack.c.b16 %v3261, %v3256
    %v3602 = vpack.c.b16 %v3267, %v3262
    %v3603 = vpack.c.b16 %v3268, %v3263
    %v3604 = vpack.c.b16 %v3269, %v3264
    %v3605 = vpack.c.b16 %v3270, %v3265
    %v3606 = vpack.c.b16 %v3271, %v3266
    %v3607 = vpack.c.b16 %v3277, %v3272
    %v3608 = vpack.c.b16 %v3278, %v3273
    %v3609 = vpack.c.b16 %v3279, %v3274
    %v3610 = vpack.c.b16 %v3280, %v3275
    %v3611 = vpack.c.b16 %v3281, %v3276
    %v3612 = vpack.c.b16 %v3287, %v3282
    %v3613 = vpack.c.b16 %v3288, %v3283
    %v3614 = vpack.c.b16 %v3289, %v3284
    %v3615 = vpack.c.b16 %v3290, %v3285
    %v3616 = vpack.c.b16 %v3291, %v3286
    %v3617 = vpack.c.b16 %v3297, %v3292
    %v3618 = vpack.c.b16 %v3298, %v3293
    %v3619 = vpack.c.b16 %v3299, %v3294
    %v3620 = vpack.c.b16 %v3300, %v3295
    %v3621 = vpack.c.b16 %v3301, %v3296
    %v3622 = vpack.c.b16 %v3307, %v3302
    %v3623 = vpack.c.b16 %v3308, %v3303
    %v3624 = vpack.c.b16 %v3309, %v3304
    %v3625 = vpack.c.b16 %v3310, %v3305
    %v3626 = vpack.c.b16 %v3311, %v3306
    %v3627 = vpack.c.b16 %v3317, %v3312
    %v3628 = vpack.c.b16 %v3318, %v3313
    %v3629 = vpack.c.b16 %v3319, %v3314
    %v3630 = vpack.c.b16 %v3320, %v3315
    %v3631 = vpack.c.b16 %v3321, %v3316
    %v3632 = vpack.c.b16 %v3327, %v3322
    %v3633 = vpack.c.b16 %v3328, %v3323
    %v3634 = vpack.c.b16 %v3329, %v3324
    %v3635 = vpack.c.b16 %v3330, %v3325
    %v3636 = vpack.c.b16 %v3331, %v3326
    %v3637 = vpack.c.b16 %v3337, %v3332
    %v3638 = vpack.c.b16 %v3338, %v3333
    %v3639 = vpack.c.b16 %v3339, %v3334
    %v3640 = vpack.c.b16 %v3340, %v3335
    %v3641 = vpack.c.b16 %v3341, %v3336
    %v3642 = vpack.c.b16 %v3347, %v3342
    %v3643 = vpack.c.b16 %v3348, %v3343
    %v3644 = vpack.c.b16 %v3349, %v3344
    %v3645 = vpack.c.b16 %v3350, %v3345
    %v3646 = vpack.c.b16 %v3351, %v3346
    %v3647 = vpack.c.b16 %v3357, %v3352
    %v3648 = vpack.c.b16 %v3358, %v3353
    %v3649 = vpack.c.b16 %v3359, %v3354
    %v3650 = vpack.c.b16 %v3360, %v3355
    %v3651 = vpack.c.b16 %v3361, %v3356
    %v3652 = vpack.c.b16 %v3367, %v3362
    %v3653 = vpack.c.b16 %v3368, %v3363
    %v3654 = vpack.c.b16 %v3369, %v3364
    %v3655 = vpack.c.b16 %v3370, %v3365
    %v3656 = vpack.c.b16 %v3371, %v3366
    %v3657 = vpack.c.b16 %v3377, %v3372
    %v3658 = vpack.c.b16 %v3378, %v3373
    %v3659 = vpack.c.b16 %v3379, %v3374
    %v3660 = vpack.c.b16 %v3380, %v3375
    %v3661 = vpack.c.b16 %v3381, %v3376
    %v3662 = vpack.c.b16 %v3387, %v3382
    %v3663 = vpack.c.b16 %v3388, %v3383
    %v3664 = vpack.c.b16 %v3389, %v3384
    %v3665 = vpack.c.b16 %v3390, %v3385
    %v3666 = vpack.c.b16 %v3391, %v3386
    %v3667 = vpack.c.b16 %v3397, %v3392
    %v3668 = vpack.c.b16 %v3398, %v3393
    %v3669 = vpack.c.b16 %v3399, %v3394
    %v3670 = vpack.c.b16 %v3400, %v3395
    %v3671 = vpack.c.b16 %v3401, %v3396
    %v3672 = vpack.c.b16 %v3407, %v3402
    %v3673 = vpack.c.b16 %v3408, %v3403
    %v3674 = vpack.c.b16 %v3409, %v3404
    %v3675 = vpack.c.b16 %v3410, %v3405
    %v3676 = vpack.c.b16 %v3411, %v3406
    %v3677 = vpack.c.b16 %v3417, %v3412
    %v3678 = vpack.c.b16 %v3418, %v3413
    %v3679 = vpack.c.b16 %v3419, %v3414
    %v3680 = vpack.c.b16 %v3420, %v3415
    %v3681 = vpack.c.b16 %v3421, %v3416
    %v3682 = vpack.c.b16 %v3427, %v3422
    %v3683 = vpack.c.b16 %v3428, %v3423
    %v3684 = vpack.c.b16 %v3429, %v3424
    %v3685 = vpack.c.b16 %v3430, %v3425
    %v3686 = vpack.c.b16 %v3431, %v3426
    %v3687 = vpack.c.b16 %v3437, %v3432
    %v3688 = vpack.c.b16 %v3438, %v3433
    %v3689 = vpack.c.b16 %v3439, %v3434
    %v3690 = vpack.c.b16 %v3440, %v3435
    %v3691 = vpack.c.b16 %v3441, %v3436
    %v3692 = vpack.c.b16 %v3447, %v3442
    %v3693 = vpack.c.b16 %v3448, %v3443
    %v3694 = vpack.c.b16 %v3449, %v3444
    %v3695 = vpack.c.b16 %v3450, %v3445
    %v3696 = vpack.c.b16 %v3451, %v3446
    %v3697 = vpack.c.b16 %v3457, %v3452
    %v3698 = vpack.c.b16 %v3458, %v3453
    %v3699 = vpack.c.b16 %v3459, %v3454
    %v3700 = vpack.c.b16 %v3460, %v3455
    %v3701 = vpack.c.b16 %v3461, %v3456
    %v3702 = vpack.c.b16 %v3467, %v3462
    %v3703 = vpack.c.b16 %v3468, %v3463
    %v3704 = vpack.c.b16 %v3469, %v3464
    %v3705 = vpack.c.b16 %v3470, %v3465
    %v3706 = vpack.c.b16 %v3471, %v3466
    %v3707 = vpack.c.b16 %v3477, %v3472
    %v3708 = vpack.c.b16 %v3478, %v3473
    %v3709 = vpack.c.b16 %v3479, %v3474
    %v3710 = vpack.c.b16 %v3480, %v3475
    %v3711 = vpack.c.b16 %v3481, %v3476
    %v3712 = vpack.c.b16 %v3487, %v3482
    %v3713 = vpack.c.b16 %v3488, %v3483
    %v3714 = vpack.c.b16 %v3489, %v3484
    %v3715 = vpack.c.b16 %v3490, %v3485
    %v3716 = vpack.c.b16 %v3491, %v3486
    %v3717 = vpack.c.b16 %v3497, %v3492
    %v3718 = vpack.c.b16 %v3498, %v3493
    %v3719 = vpack.c.b16 %v3499, %v3494
    %v3720 = vpack.c.b16 %v3500, %v3495
    %v3721 = vpack.c.b16 %v3501, %v3496
    %v3722 = vpack.c.b16 %v3507, %v3502
    %v3723 = vpack.c.b16 %v3508, %v3503
    %v3724 = vpack.c.b16 %v3509, %v3504
    %v3725 = vpack.c.b16 %v3510, %v3505
    %v3726 = vpack.c.b16 %v3511, %v3506
    %v3727 = vpack.c.b16 %v3517, %v3512
    %v3728 = vpack.c.b16 %v3518, %v3513
    %v3729 = vpack.c.b16 %v3519, %v3514
    %v3730 = vpack.c.b16 %v3520, %v3515
    %v3731 = vpack.c.b16 %v3521, %v3516
    %v3732 = vpack.c.b16 %v3527, %v3522
    %v3733 = vpack.c.b16 %v3528, %v3523
    %v3734 = vpack.c.b16 %v3529, %v3524
    %v3735 = vpack.c.b16 %v3530, %v3525
    %v3736 = vpack.c.b16 %v3531, %v3526
    %v3737 = vpack.c.b16 %v3537, %v3532
    %v3738 = vpack.c.b16 %v3538, %v3533
    %v3739 = vpack.c.b16 %v3539, %v3534
    %v3740 = vpack.c.b16 %v3540, %v3535
    %v3741 = vpack.c.b16 %v3541, %v3536
    %3942 = vmatprep.subr.bf16.mxu0 %v3578
    %3943 = vmatpush1.bf16.msra.mxu0 %v3577
    %3944 = vmatprep.subr.bf16.mxu0 %v3573
    %3945 = vmatpush1.bf16.msra.mxu0 %v3572
    %3946 = vmatprep.subr.bf16.mxu0 %v3568
    %3947 = vmatpush1.bf16.msra.mxu0 %v3567
    %3948 = vmatprep.subr.bf16.mxu0 %v3563
    %3949 = vmatpush1.bf16.msra.mxu0 %v3562
    %3950 = vmatprep.subr.bf16.mxu0 %v3558
    %3951 = vmatpush1.bf16.msra.mxu0 %v3557
    %3952 = vmatprep.subr.bf16.mxu0 %v3553
    %3953 = vmatpush1.bf16.msra.mxu0 %v3552
    %3954 = vmatprep.subr.bf16.mxu0 %v3548
    %3955 = vmatpush1.bf16.msra.mxu0 %v3547
    %3956 = vmatprep.subr.bf16.mxu0 %v3543
    %3957 = vmatpush1.bf16.msra.mxu0 %v3542
    %3958 = vmatprep.subr.bf16.mxu0 %v3618
    %3959 = vmatpush2.bf16.msra.mxu0 %v3617
    %3960 = vmatprep.subr.bf16.mxu0 %v3613
    %3961 = vmatpush2.bf16.msra.mxu0 %v3612
    %3962 = vmatprep.subr.bf16.mxu0 %v3608
    %3963 = vmatpush2.bf16.msra.mxu0 %v3607
    %3964 = vmatprep.subr.bf16.mxu0 %v3603
    %3965 = vmatpush2.bf16.msra.mxu0 %v3602
    %3966 = vmatprep.subr.bf16.mxu0 %v3598
    %3967 = vmatpush2.bf16.msra.mxu0 %v3597
    %3968 = vmatprep.subr.bf16.mxu0 %v3593
    %3969 = vmatpush2.bf16.msra.mxu0 %v3592
    %3970 = vmatprep.subr.bf16.mxu0 %v3588
    %3971 = vmatpush2.bf16.msra.mxu0 %v3587
    %3972 = vmatprep.subr.bf16.mxu0 %v3583
    %3973 = vmatpush2.bf16.msra.mxu0 %v3582
    %3974 = vmatprep.mubr.bf16.mxu0 %v2631
    %3975 = vmatmul.mubr.bf16.gmra.mxu0 %v2630
    %v3976 = vpop.f32.mrf.mxu0
    %v3977 = vadd.f32 %v2880, %v3976
    %v3978 = vpop.f32.mrf.mxu0
    %v3979 = vadd.f32 %v2884, %v3978
    %v3980 = vpop.f32.mrf.mxu0
    %v3981 = vpop.f32.mrf.mxu0
    %3982 = vdwg.mxu0
    %3983 = vmatprep.subr.bf16.mxu0 %v3658
    %3984 = vmatpush1.bf16.msra.mxu0 %v3657
    %3985 = vmatprep.subr.bf16.mxu0 %v3653
    %3986 = vmatpush1.bf16.msra.mxu0 %v3652
    %3987 = vmatprep.subr.bf16.mxu0 %v3648
    %3988 = vmatpush1.bf16.msra.mxu0 %v3647
    %3989 = vmatprep.subr.bf16.mxu0 %v3643
    %3990 = vmatpush1.bf16.msra.mxu0 %v3642
    %3991 = vmatprep.subr.bf16.mxu0 %v3638
    %3992 = vmatpush1.bf16.msra.mxu0 %v3637
    %3993 = vmatprep.subr.bf16.mxu0 %v3633
    %3994 = vmatpush1.bf16.msra.mxu0 %v3632
    %3995 = vmatprep.subr.bf16.mxu0 %v3628
    %3996 = vmatpush1.bf16.msra.mxu0 %v3627
    %3997 = vmatprep.subr.bf16.mxu0 %v3623
    %3998 = vmatpush1.bf16.msra.mxu0 %v3622
    %3999 = vmatprep.subr.bf16.mxu0 %v3698
    %4000 = vmatpush2.bf16.msra.mxu0 %v3697
    %4001 = vmatprep.subr.bf16.mxu0 %v3693
    %4002 = vmatpush2.bf16.msra.mxu0 %v3692
    %4003 = vmatprep.subr.bf16.mxu0 %v3688
    %4004 = vmatpush2.bf16.msra.mxu0 %v3687
    %4005 = vmatprep.subr.bf16.mxu0 %v3683
    %4006 = vmatpush2.bf16.msra.mxu0 %v3682
    %4007 = vmatprep.subr.bf16.mxu0 %v3678
    %4008 = vmatpush2.bf16.msra.mxu0 %v3677
    %4009 = vmatprep.subr.bf16.mxu0 %v3673
    %4010 = vmatpush2.bf16.msra.mxu0 %v3672
    %4011 = vmatprep.subr.bf16.mxu0 %v3668
    %4012 = vmatpush2.bf16.msra.mxu0 %v3667
    %4013 = vmatprep.subr.bf16.mxu0 %v3663
    %4014 = vmatpush2.bf16.msra.mxu0 %v3662
    %4015 = vmatprep.mubr.bf16.mxu0 %v2633
    %4016 = vmatmul.mubr.bf16.gmra.mxu0 %v2632
    %v4017 = vpop.f32.mrf.mxu0
    %v4018 = vadd.f32 %v3977, %v4017
    %v4019 = vpop.f32.mrf.mxu0
    %v4020 = vadd.f32 %v3979, %v4019
    %v4021 = vpop.f32.mrf.mxu0
    %v4022 = vpop.f32.mrf.mxu0
    %4023 = vdwg.mxu0
    %4024 = vmatprep.subr.bf16.mxu0 %v3738
    %4025 = vmatpush1.bf16.msra.mxu0 %v3737
    %4026 = vmatprep.subr.bf16.mxu0 %v3733
    %4027 = vmatpush1.bf16.msra.mxu0 %v3732
    %4028 = vmatprep.subr.bf16.mxu0 %v3728
    %4029 = vmatpush1.bf16.msra.mxu0 %v3727
    %4030 = vmatprep.subr.bf16.mxu0 %v3723
    %4031 = vmatpush1.bf16.msra.mxu0 %v3722
    %4032 = vmatprep.subr.bf16.mxu0 %v3718
    %4033 = vmatpush1.bf16.msra.mxu0 %v3717
    %4034 = vmatprep.subr.bf16.mxu0 %v3713
    %4035 = vmatpush1.bf16.msra.mxu0 %v3712
    %4036 = vmatprep.subr.bf16.mxu0 %v3708
    %4037 = vmatpush1.bf16.msra.mxu0 %v3707
    %4038 = vmatprep.subr.bf16.mxu0 %v3703
    %4039 = vmatpush1.bf16.msra.mxu0 %v3702
    %4040 = vmatprep.subr.bf16.mxu0 0
    %4041 = vmatpush2.bf16.msra.mxu0 0
    %4042 = vmatprep.subr.bf16.mxu0 0
    %4043 = vmatpush2.bf16.msra.mxu0 0
    %4044 = vmatprep.subr.bf16.mxu0 0
    %4045 = vmatpush2.bf16.msra.mxu0 0
    %4046 = vmatprep.subr.bf16.mxu0 0
    %4047 = vmatpush2.bf16.msra.mxu0 0
    %4048 = vmatprep.subr.bf16.mxu0 0
    %4049 = vmatpush2.bf16.msra.mxu0 0
    %4050 = vmatprep.subr.bf16.mxu0 0
    %4051 = vmatpush2.bf16.msra.mxu0 0
    %4052 = vmatprep.subr.bf16.mxu0 0
    %4053 = vmatpush2.bf16.msra.mxu0 0
    %4054 = vmatprep.subr.bf16.mxu0 0
    %4055 = vmatpush2.bf16.msra.mxu0 0
    %4056 = vmatprep.mubr.bf16.mxu0 0
    %4057 = vmatmul.mubr.bf16.gmra.mxu0 %v2634
    %v4058 = vpop.f32.mrf.mxu0
    %v4059 = vadd.f32 %v4018, %v4058
    %v4060 = vpop.f32.mrf.mxu0
    %v4061 = vadd.f32 %v4020, %v4060
    %v4062 = vpop.f32.mrf.mxu0
    %v4063 = vpop.f32.mrf.mxu0
    %4064 = vdwg.mxu0
    %4065 = vmatprep.subr.bf16.mxu0 %v3580
    %4066 = vmatpush1.bf16.msra.mxu0 %v3579
    %4067 = vmatprep.subr.bf16.mxu0 %v3575
    %4068 = vmatpush1.bf16.msra.mxu0 %v3574
    %4069 = vmatprep.subr.bf16.mxu0 %v3570
    %4070 = vmatpush1.bf16.msra.mxu0 %v3569
    %4071 = vmatprep.subr.bf16.mxu0 %v3565
    %4072 = vmatpush1.bf16.msra.mxu0 %v3564
    %4073 = vmatprep.subr.bf16.mxu0 %v3560
    %4074 = vmatpush1.bf16.msra.mxu0 %v3559
    %4075 = vmatprep.subr.bf16.mxu0 %v3555
    %4076 = vmatpush1.bf16.msra.mxu0 %v3554
    %4077 = vmatprep.subr.bf16.mxu0 %v3550
    %4078 = vmatpush1.bf16.msra.mxu0 %v3549
    %4079 = vmatprep.subr.bf16.mxu0 %v3545
    %4080 = vmatpush1.bf16.msra.mxu0 %v3544
    %4081 = vmatprep.subr.bf16.mxu0 %v3620
    %4082 = vmatpush2.bf16.msra.mxu0 %v3619
    %4083 = vmatprep.subr.bf16.mxu0 %v3615
    %4084 = vmatpush2.bf16.msra.mxu0 %v3614
    %4085 = vmatprep.subr.bf16.mxu0 %v3610
    %4086 = vmatpush2.bf16.msra.mxu0 %v3609
    %4087 = vmatprep.subr.bf16.mxu0 %v3605
    %4088 = vmatpush2.bf16.msra.mxu0 %v3604
    %4089 = vmatprep.subr.bf16.mxu0 %v3600
    %4090 = vmatpush2.bf16.msra.mxu0 %v3599
    %4091 = vmatprep.subr.bf16.mxu0 %v3595
    %4092 = vmatpush2.bf16.msra.mxu0 %v3594
    %4093 = vmatprep.subr.bf16.mxu0 %v3590
    %4094 = vmatpush2.bf16.msra.mxu0 %v3589
    %4095 = vmatprep.subr.bf16.mxu0 %v3585
    %4096 = vmatpush2.bf16.msra.mxu0 %v3584
    %4097 = vmatprep.mubr.bf16.mxu0 %v2631
    %4098 = vmatmul.mubr.bf16.gmra.mxu0 %v2630
    %v4099 = vpop.f32.mrf.mxu0
    %v4100 = vadd.f32 %v2888, %v4099
    %v4101 = vpop.f32.mrf.mxu0
    %v4102 = vadd.f32 %v2892, %v4101
    %v4103 = vpop.f32.mrf.mxu0
    %v4104 = vpop.f32.mrf.mxu0
    %4105 = vdwg.mxu0
    %4106 = vmatprep.subr.bf16.mxu0 %v3660
    %4107 = vmatpush1.bf16.msra.mxu0 %v3659
    %4108 = vmatprep.subr.bf16.mxu0 %v3655
    %4109 = vmatpush1.bf16.msra.mxu0 %v3654
    %4110 = vmatprep.subr.bf16.mxu0 %v3650
    %4111 = vmatpush1.bf16.msra.mxu0 %v3649
    %4112 = vmatprep.subr.bf16.mxu0 %v3645
    %4113 = vmatpush1.bf16.msra.mxu0 %v3644
    %4114 = vmatprep.subr.bf16.mxu0 %v3640
    %4115 = vmatpush1.bf16.msra.mxu0 %v3639
    %4116 = vmatprep.subr.bf16.mxu0 %v3635
    %4117 = vmatpush1.bf16.msra.mxu0 %v3634
    %4118 = vmatprep.subr.bf16.mxu0 %v3630
    %4119 = vmatpush1.bf16.msra.mxu0 %v3629
    %4120 = vmatprep.subr.bf16.mxu0 %v3625
    %4121 = vmatpush1.bf16.msra.mxu0 %v3624
    %4122 = vmatprep.subr.bf16.mxu0 %v3700
    %4123 = vmatpush2.bf16.msra.mxu0 %v3699
    %4124 = vmatprep.subr.bf16.mxu0 %v3695
    %4125 = vmatpush2.bf16.msra.mxu0 %v3694
    %4126 = vmatprep.subr.bf16.mxu0 %v3690
    %4127 = vmatpush2.bf16.msra.mxu0 %v3689
    %4128 = vmatprep.subr.bf16.mxu0 %v3685
    %4129 = vmatpush2.bf16.msra.mxu0 %v3684
    %4130 = vmatprep.subr.bf16.mxu0 %v3680
    %4131 = vmatpush2.bf16.msra.mxu0 %v3679
    %4132 = vmatprep.subr.bf16.mxu0 %v3675
    %4133 = vmatpush2.bf16.msra.mxu0 %v3674
    %4134 = vmatprep.subr.bf16.mxu0 %v3670
    %4135 = vmatpush2.bf16.msra.mxu0 %v3669
    %4136 = vmatprep.subr.bf16.mxu0 %v3665
    %4137 = vmatpush2.bf16.msra.mxu0 %v3664
    %4138 = vmatprep.mubr.bf16.mxu0 %v2633
    %4139 = vmatmul.mubr.bf16.gmra.mxu0 %v2632
    %v4140 = vpop.f32.mrf.mxu0
    %v4141 = vadd.f32 %v4100, %v4140
    %v4142 = vpop.f32.mrf.mxu0
    %v4143 = vadd.f32 %v4102, %v4142
    %v4144 = vpop.f32.mrf.mxu0
    %v4145 = vpop.f32.mrf.mxu0
    %4146 = vdwg.mxu0
    %4147 = vmatprep.subr.bf16.mxu0 %v3740
    %4148 = vmatpush1.bf16.msra.mxu0 %v3739
    %4149 = vmatprep.subr.bf16.mxu0 %v3735
    %4150 = vmatpush1.bf16.msra.mxu0 %v3734
    %4151 = vmatprep.subr.bf16.mxu0 %v3730
    %4152 = vmatpush1.bf16.msra.mxu0 %v3729
    %4153 = vmatprep.subr.bf16.mxu0 %v3725
    %4154 = vmatpush1.bf16.msra.mxu0 %v3724
    %4155 = vmatprep.subr.bf16.mxu0 %v3720
    %4156 = vmatpush1.bf16.msra.mxu0 %v3719
    %4157 = vmatprep.subr.bf16.mxu0 %v3715
    %4158 = vmatpush1.bf16.msra.mxu0 %v3714
    %4159 = vmatprep.subr.bf16.mxu0 %v3710
    %4160 = vmatpush1.bf16.msra.mxu0 %v3709
    %4161 = vmatprep.subr.bf16.mxu0 %v3705
    %4162 = vmatpush1.bf16.msra.mxu0 %v3704
    %4163 = vmatprep.subr.bf16.mxu0 0
    %4164 = vmatpush2.bf16.msra.mxu0 0
    %4165 = vmatprep.subr.bf16.mxu0 0
    %4166 = vmatpush2.bf16.msra.mxu0 0
    %4167 = vmatprep.subr.bf16.mxu0 0
    %4168 = vmatpush2.bf16.msra.mxu0 0
    %4169 = vmatprep.subr.bf16.mxu0 0
    %4170 = vmatpush2.bf16.msra.mxu0 0
    %4171 = vmatprep.subr.bf16.mxu0 0
    %4172 = vmatpush2.bf16.msra.mxu0 0
    %4173 = vmatprep.subr.bf16.mxu0 0
    %4174 = vmatpush2.bf16.msra.mxu0 0
    %4175 = vmatprep.subr.bf16.mxu0 0
    %4176 = vmatpush2.bf16.msra.mxu0 0
    %4177 = vmatprep.subr.bf16.mxu0 0
    %4178 = vmatpush2.bf16.msra.mxu0 0
    %4179 = vmatprep.mubr.bf16.mxu0 0
    %4180 = vmatmul.mubr.bf16.gmra.mxu0 %v2634
    %v4181 = vpop.f32.mrf.mxu0
    %v4182 = vadd.f32 %v4141, %v4181
    %v4183 = vpop.f32.mrf.mxu0
    %v4184 = vadd.f32 %v4143, %v4183
    %v4185 = vpop.f32.mrf.mxu0
    %v4186 = vpop.f32.mrf.mxu0
    %4187 = vdwg.mxu0
    %4188 = vmatprep.subr.bf16.mxu0 0
    %4189 = vmatpush1.bf16.msra.mxu0 %v3581
    %4190 = vmatprep.subr.bf16.mxu0 0
    %4191 = vmatpush1.bf16.msra.mxu0 %v3576
    %4192 = vmatprep.subr.bf16.mxu0 0
    %4193 = vmatpush1.bf16.msra.mxu0 %v3571
    %4194 = vmatprep.subr.bf16.mxu0 0
    %4195 = vmatpush1.bf16.msra.mxu0 %v3566
    %4196 = vmatprep.subr.bf16.mxu0 0
    %4197 = vmatpush1.bf16.msra.mxu0 %v3561
    %4198 = vmatprep.subr.bf16.mxu0 0
    %4199 = vmatpush1.bf16.msra.mxu0 %v3556
    %4200 = vmatprep.subr.bf16.mxu0 0
    %4201 = vmatpush1.bf16.msra.mxu0 %v3551
    %4202 = vmatprep.subr.bf16.mxu0 0
    %4203 = vmatpush1.bf16.msra.mxu0 %v3546
    %4204 = vmatprep.subr.bf16.mxu0 0
    %4205 = vmatpush2.bf16.msra.mxu0 %v3621
    %4206 = vmatprep.subr.bf16.mxu0 0
    %4207 = vmatpush2.bf16.msra.mxu0 %v3616
    %4208 = vmatprep.subr.bf16.mxu0 0
    %4209 = vmatpush2.bf16.msra.mxu0 %v3611
    %4210 = vmatprep.subr.bf16.mxu0 0
    %4211 = vmatpush2.bf16.msra.mxu0 %v3606
    %4212 = vmatprep.subr.bf16.mxu0 0
    %4213 = vmatpush2.bf16.msra.mxu0 %v3601
    %4214 = vmatprep.subr.bf16.mxu0 0
    %4215 = vmatpush2.bf16.msra.mxu0 %v3596
    %4216 = vmatprep.subr.bf16.mxu0 0
    %4217 = vmatpush2.bf16.msra.mxu0 %v3591
    %4218 = vmatprep.subr.bf16.mxu0 0
    %4219 = vmatpush2.bf16.msra.mxu0 %v3586
    %4220 = vmatprep.mubr.bf16.mxu0 %v2631
    %4221 = vmatmul.mubr.bf16.gmra.mxu0 %v2630
    %v4222 = vpop.f32.mrf.mxu0
    %v4223 = vadd.f32 %v2896, %v4222
    %v4224 = vpop.f32.mrf.mxu0
    %v4225 = vpop.f32.mrf.mxu0
    %v4226 = vpop.f32.mrf.mxu0
    %4227 = vdwg.mxu0
    %4228 = vmatprep.subr.bf16.mxu0 0
    %4229 = vmatpush1.bf16.msra.mxu0 %v3661
    %4230 = vmatprep.subr.bf16.mxu0 0
    %4231 = vmatpush1.bf16.msra.mxu0 %v3656
    %4232 = vmatprep.subr.bf16.mxu0 0
    %4233 = vmatpush1.bf16.msra.mxu0 %v3651
    %4234 = vmatprep.subr.bf16.mxu0 0
    %4235 = vmatpush1.bf16.msra.mxu0 %v3646
    %4236 = vmatprep.subr.bf16.mxu0 0
    %4237 = vmatpush1.bf16.msra.mxu0 %v3641
    %4238 = vmatprep.subr.bf16.mxu0 0
    %4239 = vmatpush1.bf16.msra.mxu0 %v3636
    %4240 = vmatprep.subr.bf16.mxu0 0
    %4241 = vmatpush1.bf16.msra.mxu0 %v3631
    %4242 = vmatprep.subr.bf16.mxu0 0
    %4243 = vmatpush1.bf16.msra.mxu0 %v3626
    %4244 = vmatprep.subr.bf16.mxu0 0
    %4245 = vmatpush2.bf16.msra.mxu0 %v3701
    %4246 = vmatprep.subr.bf16.mxu0 0
    %4247 = vmatpush2.bf16.msra.mxu0 %v3696
    %4248 = vmatprep.subr.bf16.mxu0 0
    %4249 = vmatpush2.bf16.msra.mxu0 %v3691
    %4250 = vmatprep.subr.bf16.mxu0 0
    %4251 = vmatpush2.bf16.msra.mxu0 %v3686
    %4252 = vmatprep.subr.bf16.mxu0 0
    %4253 = vmatpush2.bf16.msra.mxu0 %v3681
    %4254 = vmatprep.subr.bf16.mxu0 0
    %4255 = vmatpush2.bf16.msra.mxu0 %v3676
    %4256 = vmatprep.subr.bf16.mxu0 0
    %4257 = vmatpush2.bf16.msra.mxu0 %v3671
    %4258 = vmatprep.subr.bf16.mxu0 0
    %4259 = vmatpush2.bf16.msra.mxu0 %v3666
    %4260 = vmatprep.mubr.bf16.mxu0 %v2633
    %4261 = vmatmul.mubr.bf16.gmra.mxu0 %v2632
    %v4262 = vpop.f32.mrf.mxu0
    %v4263 = vadd.f32 %v4223, %v4262
    %v4264 = vpop.f32.mrf.mxu0
    %v4265 = vpop.f32.mrf.mxu0
    %v4266 = vpop.f32.mrf.mxu0
    %4267 = vdwg.mxu0
    %4268 = vmatprep.subr.bf16.mxu0 0
    %4269 = vmatpush1.bf16.msra.mxu0 %v3741
    %4270 = vmatprep.subr.bf16.mxu0 0
    %4271 = vmatpush1.bf16.msra.mxu0 %v3736
    %4272 = vmatprep.subr.bf16.mxu0 0
    %4273 = vmatpush1.bf16.msra.mxu0 %v3731
    %4274 = vmatprep.subr.bf16.mxu0 0
    %4275 = vmatpush1.bf16.msra.mxu0 %v3726
    %4276 = vmatprep.subr.bf16.mxu0 0
    %4277 = vmatpush1.bf16.msra.mxu0 %v3721
    %4278 = vmatprep.subr.bf16.mxu0 0
    %4279 = vmatpush1.bf16.msra.mxu0 %v3716
    %4280 = vmatprep.subr.bf16.mxu0 0
    %4281 = vmatpush1.bf16.msra.mxu0 %v3711
    %4282 = vmatprep.subr.bf16.mxu0 0
    %4283 = vmatpush1.bf16.msra.mxu0 %v3706
    %4284 = vmatprep.subr.bf16.mxu0 0
    %4285 = vmatpush2.bf16.msra.mxu0 0
    %4286 = vmatprep.subr.bf16.mxu0 0
    %4287 = vmatpush2.bf16.msra.mxu0 0
    %4288 = vmatprep.subr.bf16.mxu0 0
    %4289 = vmatpush2.bf16.msra.mxu0 0
    %4290 = vmatprep.subr.bf16.mxu0 0
    %4291 = vmatpush2.bf16.msra.mxu0 0
    %4292 = vmatprep.subr.bf16.mxu0 0
    %4293 = vmatpush2.bf16.msra.mxu0 0
    %4294 = vmatprep.subr.bf16.mxu0 0
    %4295 = vmatpush2.bf16.msra.mxu0 0
    %4296 = vmatprep.subr.bf16.mxu0 0
    %4297 = vmatpush2.bf16.msra.mxu0 0
    %4298 = vmatprep.subr.bf16.mxu0 0
    %4299 = vmatpush2.bf16.msra.mxu0 0
    %4300 = vmatprep.mubr.bf16.mxu0 0
    %4301 = vmatmul.mubr.bf16.gmra.mxu0 %v2634
    %v4302 = vpop.f32.mrf.mxu0
    %v4303 = vadd.f32 %v4263, %v4302
    %v4304 = vpop.f32.mrf.mxu0
    %v4305 = vpop.f32.mrf.mxu0
    %v4306 = vpop.f32.mrf.mxu0
    %4307 = vdwg.mxu0
    %v4308 = vmax.f32 %v4059, 0.0
    %v4309 = vmax.f32 %v4061, 0.0
    %v4310 = vmax.f32 %v4182, 0.0
    %v4311 = vmax.f32 %v4184, 0.0
    %v4312 = vmax.f32 %v4303, 0.0
    %v4313 = vand.u32 2147483647, %v4059
    %v4314 = vand.u32 2147483647, %v4061
    %v4315 = vand.u32 2147483647, %v4182
    %v4316 = vand.u32 2147483647, %v4184
    %v4317 = vand.u32 2147483647, %v4303
    %v4318 = vsub.f32 0.0, %v4313
    %v4319 = vsub.f32 0.0, %v4314
    %v4320 = vsub.f32 0.0, %v4315
    %v4321 = vsub.f32 0.0, %v4316
    %v4322 = vsub.f32 0.0, %v4317
    %v4323 = vmul.f32 %v4318, 1.442695
    %v4324 = vpow.pop %v4323
    %v4325 = vmul.f32 %v4319, 1.442695
    %v4326 = vpow.pop %v4325
    %v4327 = vmul.f32 %v4320, 1.442695
    %v4328 = vpow.pop %v4327
    %v4329 = vmul.f32 %v4321, 1.442695
    %v4330 = vpow.pop %v4329
    %v4331 = vmul.f32 %v4322, 1.442695
    %v4332 = vpow.pop %v4331
    %v4333 = vadd.f32 %v4324, 1.0
    %v4334 = vlog2.pop %v4333
    %v4335 = vmul.f32 %v4334, 0.6931472
    %v4336 = vmul.f32 -0.5, %v4324
    %v4337 = vadd.f32 %v4336, 1.0
    %v4338 = vmul.f32 %v4337, %v4324
    %v4339 = vand.u32 2147483647, %v4324
    %vm4340 = vcmp.lt.f32.partialorder %v4339, 0.0004427343
    %v4341 = vsel %vm4340, %v4338, %v4335
    %v4342 = vadd.f32 %v4326, 1.0
    %v4343 = vlog2.pop %v4342
    %v4344 = vmul.f32 %v4343, 0.6931472
    %v4345 = vmul.f32 -0.5, %v4326
    %v4346 = vadd.f32 %v4345, 1.0
    %v4347 = vmul.f32 %v4346, %v4326
    %v4348 = vand.u32 2147483647, %v4326
    %vm4349 = vcmp.lt.f32.partialorder %v4348, 0.0004427343
    %v4350 = vsel %vm4349, %v4347, %v4344
    %v4351 = vadd.f32 %v4328, 1.0
    %v4352 = vlog2.pop %v4351
    %v4353 = vmul.f32 %v4352, 0.6931472
    %v4354 = vmul.f32 -0.5, %v4328
    %v4355 = vadd.f32 %v4354, 1.0
    %v4356 = vmul.f32 %v4355, %v4328
    %v4357 = vand.u32 2147483647, %v4328
    %vm4358 = vcmp.lt.f32.partialorder %v4357, 0.0004427343
    %v4359 = vsel %vm4358, %v4356, %v4353
    %v4360 = vadd.f32 %v4330, 1.0
    %v4361 = vlog2.pop %v4360
    %v4362 = vmul.f32 %v4361, 0.6931472
    %v4363 = vmul.f32 -0.5, %v4330
    %v4364 = vadd.f32 %v4363, 1.0
    %v4365 = vmul.f32 %v4364, %v4330
    %v4366 = vand.u32 2147483647, %v4330
    %vm4367 = vcmp.lt.f32.partialorder %v4366, 0.0004427343
    %v4368 = vsel %vm4367, %v4365, %v4362
    %v4369 = vadd.f32 %v4332, 1.0
    %v4370 = vlog2.pop %v4369
    %v4371 = vmul.f32 %v4370, 0.6931472
    %v4372 = vmul.f32 -0.5, %v4332
    %v4373 = vadd.f32 %v4372, 1.0
    %v4374 = vmul.f32 %v4373, %v4332
    %v4375 = vand.u32 2147483647, %v4332
    %vm4376 = vcmp.lt.f32.partialorder %v4375, 0.0004427343
    %v4377 = vsel %vm4376, %v4374, %v4371
    %v4378 = vadd.f32 %v4308, %v4341
    %v4379 = vadd.f32 %v4309, %v4350
    %v4380 = vadd.f32 %v4310, %v4359
    %v4381 = vadd.f32 %v4311, %v4368
    %v4382 = vadd.f32 %v4312, %v4377
    %v4383 = vpack.c.bf16 %v4378, %v4378
    %v4384 = vpack.c.bf16 %v4379, %v4379
    %v4385 = vpack.c.bf16 %v4380, %v4380
    %v4386 = vpack.c.bf16 %v4381, %v4381
    %v4387 = vpack.c.bf16 %v4382, %v4382
    %v4388 = vld [vmem:[#allocation9] sm:$0xf]
    %v4389 = vld [vmem:[#allocation9 + $0x4] sm:$0xf]
    %v4390 = vld [vmem:[#allocation9 + $0x8] sm:$0xf]
    %v4391 = vld [vmem:[#allocation9 + $0xc] sm:$0xf]
    %v4392 = vld [vmem:[#allocation9 + $0x10] sm:$0xf]
    %v4393 = vld [vmem:[#allocation9 + $0x14] sm:$0xf]
    %v4394 = vld [vmem:[#allocation9 + $0x18] sm:$0xf]
    %v4395 = vld [vmem:[#allocation9 + $0x1c] sm:$0xf]
    %v4396 = vld [vmem:[#allocation9 + $0x20] sm:$0xf]
    %v4397 = vld [vmem:[#allocation9 + $0x24] sm:$0xf]
    %v4398 = vld [vmem:[#allocation9 + $0x28] sm:$0xf]
    %v4399 = vld [vmem:[#allocation9 + $0x2c] sm:$0xf]
    %v4400 = vld [vmem:[#allocation9 + $0x30] sm:$0xf]
    %v4401 = vld [vmem:[#allocation9 + $0x34] sm:$0xf]
    %v4402 = vld [vmem:[#allocation9 + $0x38] sm:$0xf]
    %v4403 = vld [vmem:[#allocation9 + $0x3c] sm:$0xf]
    %v4404 = vld [vmem:[#allocation9 + $0x40] sm:$0xf]
    %v4405 = vld [vmem:[#allocation9 + $0x44] sm:$0xf]
    %v4406 = vld [vmem:[#allocation9 + $0x48] sm:$0xf]
    %v4407 = vld [vmem:[#allocation9 + $0x4c] sm:$0xf]
    %v4408 = vld [vmem:[#allocation9 + $0x50] sm:$0xf]
    %v4409 = vld [vmem:[#allocation9 + $0x54] sm:$0xf]
    %v4410 = vld [vmem:[#allocation9 + $0x58] sm:$0xf]
    %v4411 = vld [vmem:[#allocation9 + $0x5c] sm:$0xf]
    %v4412 = vld [vmem:[#allocation9 + $0x60] sm:$0xf]
    %v4413 = vld [vmem:[#allocation9 + $0x64] sm:$0xf]
    %v4414 = vld [vmem:[#allocation9 + $0x68] sm:$0xf]
    %v4415 = vld [vmem:[#allocation9 + $0x6c] sm:$0xf]
    %v4416 = vld [vmem:[#allocation9 + $0x70] sm:$0xf]
    %v4417 = vld [vmem:[#allocation9 + $0x74] sm:$0xf]
    %v4418 = vld [vmem:[#allocation9 + $0x78] sm:$0xf]
    %v4419 = vld [vmem:[#allocation9 + $0x7c] sm:$0xf]
    %v4420 = vld [vmem:[#allocation9 + $0x80] sm:$0xf]
    %v4421 = vld [vmem:[#allocation9 + $0x84] sm:$0xf]
    %v4422 = vld [vmem:[#allocation9 + $0x88] sm:$0xf]
    %v4423 = vld [vmem:[#allocation9 + $0x8c] sm:$0xf]
    %v4424 = vld [vmem:[#allocation9 + $0x90] sm:$0xf]
    %v4425 = vld [vmem:[#allocation9 + $0x94] sm:$0xf]
    %v4426 = vld [vmem:[#allocation9 + $0x98] sm:$0xf]
    %v4427 = vld [vmem:[#allocation9 + $0x9c] sm:$0xf]
    %v4428 = vld [vmem:[#allocation9 + $0xa0] sm:$0xf]
    %v4429 = vld [vmem:[#allocation9 + $0xa4] sm:$0xf]
    %v4430 = vld [vmem:[#allocation9 + $0xa8] sm:$0xf]
    %v4431 = vld [vmem:[#allocation9 + $0xac] sm:$0xf]
    %v4432 = vld [vmem:[#allocation9 + $0xb0] sm:$0xf]
    %v4433 = vld [vmem:[#allocation9 + $0xb4] sm:$0xf]
    %v4434 = vld [vmem:[#allocation9 + $0xb8] sm:$0xf]
    %v4435 = vld [vmem:[#allocation9 + $0xbc] sm:$0xf]
    %v4436 = vld [vmem:[#allocation9 + $0xc0] sm:$0xf]
    %v4437 = vld [vmem:[#allocation9 + $0xc4] sm:$0xf]
    %v4438 = vld [vmem:[#allocation9 + $0xc8] sm:$0xf]
    %v4439 = vld [vmem:[#allocation9 + $0xcc] sm:$0xf]
    %v4440 = vld [vmem:[#allocation9 + $0xd0] sm:$0xf]
    %v4441 = vld [vmem:[#allocation9 + $0xd4] sm:$0xf]
    %v4442 = vld [vmem:[#allocation9 + $0xd8] sm:$0xf]
    %v4443 = vld [vmem:[#allocation9 + $0xdc] sm:$0xf]
    %v4444 = vld [vmem:[#allocation9 + $0xe0] sm:$0xf]
    %v4445 = vld [vmem:[#allocation9 + $0xe4] sm:$0xf]
    %v4446 = vld [vmem:[#allocation9 + $0xe8] sm:$0xf]
    %v4447 = vld [vmem:[#allocation9 + $0xec] sm:$0xf]
    %v4448 = vld [vmem:[#allocation9 + $0xf0] sm:$0xf]
    %v4449 = vld [vmem:[#allocation9 + $0xf4] sm:$0xf]
    %v4450 = vld [vmem:[#allocation9 + $0xf8] sm:$0xf]
    %v4451 = vld [vmem:[#allocation9 + $0xfc] sm:$0xf]
    %v4452 = vld [vmem:[#allocation9 + $0x100] sm:$0xf]
    %v4453 = vld [vmem:[#allocation9 + $0x104] sm:$0xf]
    %v4454 = vld [vmem:[#allocation9 + $0x108] sm:$0xf]
    %v4455 = vld [vmem:[#allocation9 + $0x10c] sm:$0xf]
    %v4456 = vld [vmem:[#allocation9 + $0x110] sm:$0xf]
    %v4457 = vld [vmem:[#allocation9 + $0x114] sm:$0xf]
    %v4458 = vld [vmem:[#allocation9 + $0x118] sm:$0xf]
    %v4459 = vld [vmem:[#allocation9 + $0x11c] sm:$0xf]
    %v4460 = vld [vmem:[#allocation9 + $0x120] sm:$0xf]
    %v4461 = vld [vmem:[#allocation9 + $0x124] sm:$0xf]
    %v4462 = vld [vmem:[#allocation9 + $0x128] sm:$0xf]
    %v4463 = vld [vmem:[#allocation9 + $0x12c] sm:$0xf]
    %v4464 = vld [vmem:[#allocation9 + $0x130] sm:$0xf]
    %v4465 = vld [vmem:[#allocation9 + $0x134] sm:$0xf]
    %v4466 = vld [vmem:[#allocation9 + $0x138] sm:$0xf]
    %v4467 = vld [vmem:[#allocation9 + $0x13c] sm:$0xf]
    %v4468 = vld [vmem:[#allocation10] sm:$0x1]
    %v4470 = vlaneseq
    %v4471 = vshrl.u32 %v4470, 7
    %v4472 = vsub.s32 0, %v4471
    %v4473 = vrot.slane %v4468, %v4472
    %v4555 = vunpack.c.l.b16 %v4388
    %v4556 = vunpack.c.l.b16 %v4389
    %v4557 = vunpack.c.l.b16 %v4390
    %v4558 = vunpack.c.l.b16 %v4391
    %v4559 = vunpack.c.l.b16 %v4392
    %v4560 = vunpack.c.l.b16 %v4393
    %v4561 = vunpack.c.l.b16 %v4394
    %v4562 = vunpack.c.l.b16 %v4395
    %v4563 = vunpack.c.l.b16 %v4396
    %v4564 = vunpack.c.l.b16 %v4397
    %v4565 = vunpack.c.l.b16 %v4398
    %v4566 = vunpack.c.l.b16 %v4399
    %v4567 = vunpack.c.l.b16 %v4400
    %v4568 = vunpack.c.l.b16 %v4401
    %v4569 = vunpack.c.l.b16 %v4402
    %v4570 = vunpack.c.l.b16 %v4403
    %v4571 = vunpack.c.l.b16 %v4404
    %v4572 = vunpack.c.l.b16 %v4405
    %v4573 = vunpack.c.l.b16 %v4406
    %v4574 = vunpack.c.l.b16 %v4407
    %v4575 = vunpack.c.l.b16 %v4408
    %v4576 = vunpack.c.l.b16 %v4409
    %v4577 = vunpack.c.l.b16 %v4410
    %v4578 = vunpack.c.l.b16 %v4411
    %v4579 = vunpack.c.l.b16 %v4412
    %v4580 = vunpack.c.l.b16 %v4413
    %v4581 = vunpack.c.l.b16 %v4414
    %v4582 = vunpack.c.l.b16 %v4415
    %v4583 = vunpack.c.l.b16 %v4416
    %v4584 = vunpack.c.l.b16 %v4417
    %v4585 = vunpack.c.l.b16 %v4418
    %v4586 = vunpack.c.l.b16 %v4419
    %v4587 = vunpack.c.l.b16 %v4420
    %v4588 = vunpack.c.l.b16 %v4421
    %v4589 = vunpack.c.l.b16 %v4422
    %v4590 = vunpack.c.l.b16 %v4423
    %v4591 = vunpack.c.l.b16 %v4424
    %v4592 = vunpack.c.l.b16 %v4425
    %v4593 = vunpack.c.l.b16 %v4426
    %v4594 = vunpack.c.l.b16 %v4427
    %v4595 = vunpack.c.l.b16 %v4428
    %v4596 = vunpack.c.l.b16 %v4429
    %v4597 = vunpack.c.l.b16 %v4430
    %v4598 = vunpack.c.l.b16 %v4431
    %v4599 = vunpack.c.l.b16 %v4432
    %v4600 = vunpack.c.l.b16 %v4433
    %v4601 = vunpack.c.l.b16 %v4434
    %v4602 = vunpack.c.l.b16 %v4435
    %v4603 = vunpack.c.l.b16 %v4436
    %v4604 = vunpack.c.l.b16 %v4437
    %v4605 = vunpack.c.l.b16 %v4438
    %v4606 = vunpack.c.l.b16 %v4439
    %v4607 = vunpack.c.l.b16 %v4440
    %v4608 = vunpack.c.l.b16 %v4441
    %v4609 = vunpack.c.l.b16 %v4442
    %v4610 = vunpack.c.l.b16 %v4443
    %v4611 = vunpack.c.l.b16 %v4444
    %v4612 = vunpack.c.l.b16 %v4445
    %v4613 = vunpack.c.l.b16 %v4446
    %v4614 = vunpack.c.l.b16 %v4447
    %v4615 = vunpack.c.l.b16 %v4448
    %v4616 = vunpack.c.l.b16 %v4449
    %v4617 = vunpack.c.l.b16 %v4450
    %v4618 = vunpack.c.l.b16 %v4451
    %v4619 = vunpack.c.l.b16 %v4452
    %v4620 = vunpack.c.l.b16 %v4453
    %v4621 = vunpack.c.l.b16 %v4454
    %v4622 = vunpack.c.l.b16 %v4455
    %v4623 = vunpack.c.l.b16 %v4456
    %v4624 = vunpack.c.l.b16 %v4457
    %v4625 = vunpack.c.l.b16 %v4458
    %v4626 = vunpack.c.l.b16 %v4459
    %v4627 = vunpack.c.l.b16 %v4460
    %v4628 = vunpack.c.l.b16 %v4461
    %v4629 = vunpack.c.l.b16 %v4462
    %v4630 = vunpack.c.l.b16 %v4463
    %v4631 = vunpack.c.l.b16 %v4464
    %v4632 = vunpack.c.l.b16 %v4465
    %v4633 = vunpack.c.l.b16 %v4466
    %v4634 = vunpack.c.l.b16 %v4467
    %v4635 = vpack.c.b16 %v4556, %v4555
    %v4636 = vpack.c.b16 %v4558, %v4557
    %v4637 = vpack.c.b16 %v4560, %v4559
    %v4638 = vpack.c.b16 %v4562, %v4561
    %v4639 = vpack.c.b16 %v4564, %v4563
    %v4640 = vpack.c.b16 %v4566, %v4565
    %v4641 = vpack.c.b16 %v4568, %v4567
    %v4642 = vpack.c.b16 %v4570, %v4569
    %v4643 = vpack.c.b16 %v4572, %v4571
    %v4644 = vpack.c.b16 %v4574, %v4573
    %v4645 = vpack.c.b16 %v4576, %v4575
    %v4646 = vpack.c.b16 %v4578, %v4577
    %v4647 = vpack.c.b16 %v4580, %v4579
    %v4648 = vpack.c.b16 %v4582, %v4581
    %v4649 = vpack.c.b16 %v4584, %v4583
    %v4650 = vpack.c.b16 %v4586, %v4585
    %v4651 = vpack.c.b16 %v4588, %v4587
    %v4652 = vpack.c.b16 %v4590, %v4589
    %v4653 = vpack.c.b16 %v4592, %v4591
    %v4654 = vpack.c.b16 %v4594, %v4593
    %v4655 = vpack.c.b16 %v4596, %v4595
    %v4656 = vpack.c.b16 %v4598, %v4597
    %v4657 = vpack.c.b16 %v4600, %v4599
    %v4658 = vpack.c.b16 %v4602, %v4601
    %v4659 = vpack.c.b16 %v4604, %v4603
    %v4660 = vpack.c.b16 %v4606, %v4605
    %v4661 = vpack.c.b16 %v4608, %v4607
    %v4662 = vpack.c.b16 %v4610, %v4609
    %v4663 = vpack.c.b16 %v4612, %v4611
    %v4664 = vpack.c.b16 %v4614, %v4613
    %v4665 = vpack.c.b16 %v4616, %v4615
    %v4666 = vpack.c.b16 %v4618, %v4617
    %v4667 = vpack.c.b16 %v4620, %v4619
    %v4668 = vpack.c.b16 %v4622, %v4621
    %v4669 = vpack.c.b16 %v4624, %v4623
    %v4670 = vpack.c.b16 %v4626, %v4625
    %v4671 = vpack.c.b16 %v4628, %v4627
    %v4672 = vpack.c.b16 %v4630, %v4629
    %v4673 = vpack.c.b16 %v4632, %v4631
    %v4674 = vpack.c.b16 %v4634, %v4633
    %4715 = vmatprep.subr.bf16.mxu0 0
    %4716 = vmatpush1.bf16.msra.mxu0 %v4642
    %4717 = vmatprep.subr.bf16.mxu0 0
    %4718 = vmatpush1.bf16.msra.mxu0 %v4641
    %4719 = vmatprep.subr.bf16.mxu0 0
    %4720 = vmatpush1.bf16.msra.mxu0 %v4640
    %4721 = vmatprep.subr.bf16.mxu0 0
    %4722 = vmatpush1.bf16.msra.mxu0 %v4639
    %4723 = vmatprep.subr.bf16.mxu0 0
    %4724 = vmatpush1.bf16.msra.mxu0 %v4638
    %4725 = vmatprep.subr.bf16.mxu0 0
    %4726 = vmatpush1.bf16.msra.mxu0 %v4637
    %4727 = vmatprep.subr.bf16.mxu0 0
    %4728 = vmatpush1.bf16.msra.mxu0 %v4636
    %4729 = vmatprep.subr.bf16.mxu0 0
    %4730 = vmatpush1.bf16.msra.mxu0 %v4635
    %4731 = vmatprep.subr.bf16.mxu0 0
    %4732 = vmatpush2.bf16.msra.mxu0 %v4650
    %4733 = vmatprep.subr.bf16.mxu0 0
    %4734 = vmatpush2.bf16.msra.mxu0 %v4649
    %4735 = vmatprep.subr.bf16.mxu0 0
    %4736 = vmatpush2.bf16.msra.mxu0 %v4648
    %4737 = vmatprep.subr.bf16.mxu0 0
    %4738 = vmatpush2.bf16.msra.mxu0 %v4647
    %4739 = vmatprep.subr.bf16.mxu0 0
    %4740 = vmatpush2.bf16.msra.mxu0 %v4646
    %4741 = vmatprep.subr.bf16.mxu0 0
    %4742 = vmatpush2.bf16.msra.mxu0 %v4645
    %4743 = vmatprep.subr.bf16.mxu0 0
    %4744 = vmatpush2.bf16.msra.mxu0 %v4644
    %4745 = vmatprep.subr.bf16.mxu0 0
    %4746 = vmatpush2.bf16.msra.mxu0 %v4643
    %4747 = vmatprep.mubr.bf16.mxu0 %v4384
    %4748 = vmatmul.mubr.bf16.gmra.mxu0 %v4383
    %v4749 = vpop.f32.mrf.mxu0
    %v4750 = vadd.f32 %v4473, %v4749
    %v4751 = vpop.f32.mrf.mxu0
    %v4752 = vpop.f32.mrf.mxu0
    %v4753 = vpop.f32.mrf.mxu0
    %4754 = vdwg.mxu0
    %4755 = vmatprep.subr.bf16.mxu0 0
    %4756 = vmatpush1.bf16.msra.mxu0 %v4658
    %4757 = vmatprep.subr.bf16.mxu0 0
    %4758 = vmatpush1.bf16.msra.mxu0 %v4657
    %4759 = vmatprep.subr.bf16.mxu0 0
    %4760 = vmatpush1.bf16.msra.mxu0 %v4656
    %4761 = vmatprep.subr.bf16.mxu0 0
    %4762 = vmatpush1.bf16.msra.mxu0 %v4655
    %4763 = vmatprep.subr.bf16.mxu0 0
    %4764 = vmatpush1.bf16.msra.mxu0 %v4654
    %4765 = vmatprep.subr.bf16.mxu0 0
    %4766 = vmatpush1.bf16.msra.mxu0 %v4653
    %4767 = vmatprep.subr.bf16.mxu0 0
    %4768 = vmatpush1.bf16.msra.mxu0 %v4652
    %4769 = vmatprep.subr.bf16.mxu0 0
    %4770 = vmatpush1.bf16.msra.mxu0 %v4651
    %4771 = vmatprep.subr.bf16.mxu0 0
    %4772 = vmatpush2.bf16.msra.mxu0 %v4666
    %4773 = vmatprep.subr.bf16.mxu0 0
    %4774 = vmatpush2.bf16.msra.mxu0 %v4665
    %4775 = vmatprep.subr.bf16.mxu0 0
    %4776 = vmatpush2.bf16.msra.mxu0 %v4664
    %4777 = vmatprep.subr.bf16.mxu0 0
    %4778 = vmatpush2.bf16.msra.mxu0 %v4663
    %4779 = vmatprep.subr.bf16.mxu0 0
    %4780 = vmatpush2.bf16.msra.mxu0 %v4662
    %4781 = vmatprep.subr.bf16.mxu0 0
    %4782 = vmatpush2.bf16.msra.mxu0 %v4661
    %4783 = vmatprep.subr.bf16.mxu0 0
    %4784 = vmatpush2.bf16.msra.mxu0 %v4660
    %4785 = vmatprep.subr.bf16.mxu0 0
    %4786 = vmatpush2.bf16.msra.mxu0 %v4659
    %4787 = vmatprep.mubr.bf16.mxu0 %v4386
    %4788 = vmatmul.mubr.bf16.gmra.mxu0 %v4385
    %v4789 = vpop.f32.mrf.mxu0
    %v4790 = vadd.f32 %v4750, %v4789
    %v4791 = vpop.f32.mrf.mxu0
    %v4792 = vpop.f32.mrf.mxu0
    %v4793 = vpop.f32.mrf.mxu0
    %4794 = vdwg.mxu0
    %4795 = vmatprep.subr.bf16.mxu0 0
    %4796 = vmatpush1.bf16.msra.mxu0 %v4674
    %4797 = vmatprep.subr.bf16.mxu0 0
    %4798 = vmatpush1.bf16.msra.mxu0 %v4673
    %4799 = vmatprep.subr.bf16.mxu0 0
    %4800 = vmatpush1.bf16.msra.mxu0 %v4672
    %4801 = vmatprep.subr.bf16.mxu0 0
    %4802 = vmatpush1.bf16.msra.mxu0 %v4671
    %4803 = vmatprep.subr.bf16.mxu0 0
    %4804 = vmatpush1.bf16.msra.mxu0 %v4670
    %4805 = vmatprep.subr.bf16.mxu0 0
    %4806 = vmatpush1.bf16.msra.mxu0 %v4669
    %4807 = vmatprep.subr.bf16.mxu0 0
    %4808 = vmatpush1.bf16.msra.mxu0 %v4668
    %4809 = vmatprep.subr.bf16.mxu0 0
    %4810 = vmatpush1.bf16.msra.mxu0 %v4667
    %4811 = vmatprep.subr.bf16.mxu0 0
    %4812 = vmatpush2.bf16.msra.mxu0 0
    %4813 = vmatprep.subr.bf16.mxu0 0
    %4814 = vmatpush2.bf16.msra.mxu0 0
    %4815 = vmatprep.subr.bf16.mxu0 0
    %4816 = vmatpush2.bf16.msra.mxu0 0
    %4817 = vmatprep.subr.bf16.mxu0 0
    %4818 = vmatpush2.bf16.msra.mxu0 0
    %4819 = vmatprep.subr.bf16.mxu0 0
    %4820 = vmatpush2.bf16.msra.mxu0 0
    %4821 = vmatprep.subr.bf16.mxu0 0
    %4822 = vmatpush2.bf16.msra.mxu0 0
    %4823 = vmatprep.subr.bf16.mxu0 0
    %4824 = vmatpush2.bf16.msra.mxu0 0
    %4825 = vmatprep.subr.bf16.mxu0 0
    %4826 = vmatpush2.bf16.msra.mxu0 0
    %4827 = vmatprep.mubr.bf16.mxu0 0
    %4828 = vmatmul.mubr.bf16.gmra.mxu0 %v4387
    %v4829 = vpop.f32.mrf.mxu0
    %v4830 = vadd.f32 %v4790, %v4829
    %v4831 = vpop.f32.mrf.mxu0
    %v4832 = vpop.f32.mrf.mxu0
    %v4833 = vpop.f32.mrf.mxu0
    %4834 = vdwg.mxu0
    %v4835 = vld [vmem:[#allocation12] sm:$0xf]
    %v4836 = vld [vmem:[#allocation12 + $0x4] sm:$0xf]
    %v4837 = vld [vmem:[#allocation12 + $0x8] sm:$0xf]
    %v4838 = vld [vmem:[#allocation12 + $0xc] sm:$0xf]
    %v4839 = vld [vmem:[#allocation12 + $0x10] sm:$0xf]
    %v4840 = vld [vmem:[#allocation12 + $0x14] sm:$0xf]
    %v4841 = vld [vmem:[#allocation12 + $0x18] sm:$0xf]
    %v4842 = vld [vmem:[#allocation12 + $0x1c] sm:$0xf]
    %v4843 = vld [vmem:[#allocation12 + $0x20] sm:$0xf]
    %v4844 = vld [vmem:[#allocation12 + $0x24] sm:$0xf]
    %v4845 = vld [vmem:[#allocation12 + $0x28] sm:$0xf]
    %v4846 = vld [vmem:[#allocation12 + $0x2c] sm:$0xf]
    %v4847 = vld [vmem:[#allocation12 + $0x30] sm:$0xf]
    %v4848 = vld [vmem:[#allocation12 + $0x34] sm:$0xf]
    %v4849 = vld [vmem:[#allocation12 + $0x38] sm:$0xf]
    %v4850 = vld [vmem:[#allocation12 + $0x3c] sm:$0xf]
    %v4851 = vld [vmem:[#allocation12 + $0x40] sm:$0xf]
    %v4852 = vld [vmem:[#allocation12 + $0x44] sm:$0xf]
    %v4853 = vld [vmem:[#allocation12 + $0x48] sm:$0xf]
    %v4854 = vld [vmem:[#allocation12 + $0x4c] sm:$0xf]
    %v4855 = vld [vmem:[#allocation12 + $0x50] sm:$0xf]
    %v4856 = vld [vmem:[#allocation12 + $0x54] sm:$0xf]
    %v4857 = vld [vmem:[#allocation12 + $0x58] sm:$0xf]
    %v4858 = vld [vmem:[#allocation12 + $0x5c] sm:$0xf]
    %v4859 = vld [vmem:[#allocation12 + $0x60] sm:$0xf]
    %v4860 = vld [vmem:[#allocation12 + $0x64] sm:$0xf]
    %v4861 = vld [vmem:[#allocation12 + $0x68] sm:$0xf]
    %v4862 = vld [vmem:[#allocation12 + $0x6c] sm:$0xf]
    %v4863 = vld [vmem:[#allocation12 + $0x70] sm:$0xf]
    %v4864 = vld [vmem:[#allocation12 + $0x74] sm:$0xf]
    %v4865 = vld [vmem:[#allocation12 + $0x78] sm:$0xf]
    %v4866 = vld [vmem:[#allocation12 + $0x7c] sm:$0xf]
    %v4867 = vld [vmem:[#allocation12 + $0x80] sm:$0xf]
    %v4868 = vld [vmem:[#allocation12 + $0x84] sm:$0xf]
    %v4869 = vld [vmem:[#allocation12 + $0x88] sm:$0xf]
    %v4870 = vld [vmem:[#allocation12 + $0x8c] sm:$0xf]
    %v4871 = vld [vmem:[#allocation12 + $0x90] sm:$0xf]
    %v4872 = vld [vmem:[#allocation12 + $0x94] sm:$0xf]
    %v4873 = vld [vmem:[#allocation12 + $0x98] sm:$0xf]
    %v4874 = vld [vmem:[#allocation12 + $0x9c] sm:$0xf]
    %v4875 = vld [vmem:[#allocation12 + $0xa0] sm:$0xf]
    %v4876 = vld [vmem:[#allocation12 + $0xa4] sm:$0xf]
    %v4877 = vld [vmem:[#allocation12 + $0xa8] sm:$0xf]
    %v4878 = vld [vmem:[#allocation12 + $0xac] sm:$0xf]
    %v4879 = vld [vmem:[#allocation12 + $0xb0] sm:$0xf]
    %v4880 = vld [vmem:[#allocation12 + $0xb4] sm:$0xf]
    %v4881 = vld [vmem:[#allocation12 + $0xb8] sm:$0xf]
    %v4882 = vld [vmem:[#allocation12 + $0xbc] sm:$0xf]
    %v4883 = vld [vmem:[#allocation12 + $0xc0] sm:$0xf]
    %v4884 = vld [vmem:[#allocation12 + $0xc4] sm:$0xf]
    %v4885 = vld [vmem:[#allocation12 + $0xc8] sm:$0xf]
    %v4886 = vld [vmem:[#allocation12 + $0xcc] sm:$0xf]
    %v4887 = vld [vmem:[#allocation12 + $0xd0] sm:$0xf]
    %v4888 = vld [vmem:[#allocation12 + $0xd4] sm:$0xf]
    %v4889 = vld [vmem:[#allocation12 + $0xd8] sm:$0xf]
    %v4890 = vld [vmem:[#allocation12 + $0xdc] sm:$0xf]
    %v4891 = vld [vmem:[#allocation12 + $0xe0] sm:$0xf]
    %v4892 = vld [vmem:[#allocation12 + $0xe4] sm:$0xf]
    %v4893 = vld [vmem:[#allocation12 + $0xe8] sm:$0xf]
    %v4894 = vld [vmem:[#allocation12 + $0xec] sm:$0xf]
    %v4895 = vld [vmem:[#allocation12 + $0xf0] sm:$0xf]
    %v4896 = vld [vmem:[#allocation12 + $0xf4] sm:$0xf]
    %v4897 = vld [vmem:[#allocation12 + $0xf8] sm:$0xf]
    %v4898 = vld [vmem:[#allocation12 + $0xfc] sm:$0xf]
    %v4899 = vld [vmem:[#allocation12 + $0x100] sm:$0xf]
    %v4900 = vld [vmem:[#allocation12 + $0x104] sm:$0xf]
    %v4901 = vld [vmem:[#allocation12 + $0x108] sm:$0xf]
    %v4902 = vld [vmem:[#allocation12 + $0x10c] sm:$0xf]
    %v4903 = vld [vmem:[#allocation12 + $0x110] sm:$0xf]
    %v4904 = vld [vmem:[#allocation12 + $0x114] sm:$0xf]
    %v4905 = vld [vmem:[#allocation12 + $0x118] sm:$0xf]
    %v4906 = vld [vmem:[#allocation12 + $0x11c] sm:$0xf]
    %v4907 = vld [vmem:[#allocation12 + $0x120] sm:$0xf]
    %v4908 = vld [vmem:[#allocation12 + $0x124] sm:$0xf]
    %v4909 = vld [vmem:[#allocation12 + $0x128] sm:$0xf]
    %v4910 = vld [vmem:[#allocation12 + $0x12c] sm:$0xf]
    %v4911 = vld [vmem:[#allocation12 + $0x130] sm:$0xf]
    %v4912 = vld [vmem:[#allocation12 + $0x134] sm:$0xf]
    %v4913 = vld [vmem:[#allocation12 + $0x138] sm:$0xf]
    %v4914 = vld [vmem:[#allocation12 + $0x13c] sm:$0xf]
    %v4915 = vld [vmem:[#allocation13] sm:$0x1]
    %v4917 = vlaneseq
    %v4918 = vshrl.u32 %v4917, 7
    %v4919 = vsub.s32 0, %v4918
    %v4920 = vrot.slane %v4915, %v4919
    %v5002 = vunpack.c.l.b16 %v4835
    %v5003 = vunpack.c.l.b16 %v4836
    %v5004 = vunpack.c.l.b16 %v4837
    %v5005 = vunpack.c.l.b16 %v4838
    %v5006 = vunpack.c.l.b16 %v4839
    %v5007 = vunpack.c.l.b16 %v4840
    %v5008 = vunpack.c.l.b16 %v4841
    %v5009 = vunpack.c.l.b16 %v4842
    %v5010 = vunpack.c.l.b16 %v4843
    %v5011 = vunpack.c.l.b16 %v4844
    %v5012 = vunpack.c.l.b16 %v4845
    %v5013 = vunpack.c.l.b16 %v4846
    %v5014 = vunpack.c.l.b16 %v4847
    %v5015 = vunpack.c.l.b16 %v4848
    %v5016 = vunpack.c.l.b16 %v4849
    %v5017 = vunpack.c.l.b16 %v4850
    %v5018 = vunpack.c.l.b16 %v4851
    %v5019 = vunpack.c.l.b16 %v4852
    %v5020 = vunpack.c.l.b16 %v4853
    %v5021 = vunpack.c.l.b16 %v4854
    %v5022 = vunpack.c.l.b16 %v4855
    %v5023 = vunpack.c.l.b16 %v4856
    %v5024 = vunpack.c.l.b16 %v4857
    %v5025 = vunpack.c.l.b16 %v4858
    %v5026 = vunpack.c.l.b16 %v4859
    %v5027 = vunpack.c.l.b16 %v4860
    %v5028 = vunpack.c.l.b16 %v4861
    %v5029 = vunpack.c.l.b16 %v4862
    %v5030 = vunpack.c.l.b16 %v4863
    %v5031 = vunpack.c.l.b16 %v4864
    %v5032 = vunpack.c.l.b16 %v4865
    %v5033 = vunpack.c.l.b16 %v4866
    %v5034 = vunpack.c.l.b16 %v4867
    %v5035 = vunpack.c.l.b16 %v4868
    %v5036 = vunpack.c.l.b16 %v4869
    %v5037 = vunpack.c.l.b16 %v4870
    %v5038 = vunpack.c.l.b16 %v4871
    %v5039 = vunpack.c.l.b16 %v4872
    %v5040 = vunpack.c.l.b16 %v4873
    %v5041 = vunpack.c.l.b16 %v4874
    %v5042 = vunpack.c.l.b16 %v4875
    %v5043 = vunpack.c.l.b16 %v4876
    %v5044 = vunpack.c.l.b16 %v4877
    %v5045 = vunpack.c.l.b16 %v4878
    %v5046 = vunpack.c.l.b16 %v4879
    %v5047 = vunpack.c.l.b16 %v4880
    %v5048 = vunpack.c.l.b16 %v4881
    %v5049 = vunpack.c.l.b16 %v4882
    %v5050 = vunpack.c.l.b16 %v4883
    %v5051 = vunpack.c.l.b16 %v4884
    %v5052 = vunpack.c.l.b16 %v4885
    %v5053 = vunpack.c.l.b16 %v4886
    %v5054 = vunpack.c.l.b16 %v4887
    %v5055 = vunpack.c.l.b16 %v4888
    %v5056 = vunpack.c.l.b16 %v4889
    %v5057 = vunpack.c.l.b16 %v4890
    %v5058 = vunpack.c.l.b16 %v4891
    %v5059 = vunpack.c.l.b16 %v4892
    %v5060 = vunpack.c.l.b16 %v4893
    %v5061 = vunpack.c.l.b16 %v4894
    %v5062 = vunpack.c.l.b16 %v4895
    %v5063 = vunpack.c.l.b16 %v4896
    %v5064 = vunpack.c.l.b16 %v4897
    %v5065 = vunpack.c.l.b16 %v4898
    %v5066 = vunpack.c.l.b16 %v4899
    %v5067 = vunpack.c.l.b16 %v4900
    %v5068 = vunpack.c.l.b16 %v4901
    %v5069 = vunpack.c.l.b16 %v4902
    %v5070 = vunpack.c.l.b16 %v4903
    %v5071 = vunpack.c.l.b16 %v4904
    %v5072 = vunpack.c.l.b16 %v4905
    %v5073 = vunpack.c.l.b16 %v4906
    %v5074 = vunpack.c.l.b16 %v4907
    %v5075 = vunpack.c.l.b16 %v4908
    %v5076 = vunpack.c.l.b16 %v4909
    %v5077 = vunpack.c.l.b16 %v4910
    %v5078 = vunpack.c.l.b16 %v4911
    %v5079 = vunpack.c.l.b16 %v4912
    %v5080 = vunpack.c.l.b16 %v4913
    %v5081 = vunpack.c.l.b16 %v4914
    %v5082 = vpack.c.b16 %v5003, %v5002
    %v5083 = vpack.c.b16 %v5005, %v5004
    %v5084 = vpack.c.b16 %v5007, %v5006
    %v5085 = vpack.c.b16 %v5009, %v5008
    %v5086 = vpack.c.b16 %v5011, %v5010
    %v5087 = vpack.c.b16 %v5013, %v5012
    %v5088 = vpack.c.b16 %v5015, %v5014
    %v5089 = vpack.c.b16 %v5017, %v5016
    %v5090 = vpack.c.b16 %v5019, %v5018
    %v5091 = vpack.c.b16 %v5021, %v5020
    %v5092 = vpack.c.b16 %v5023, %v5022
    %v5093 = vpack.c.b16 %v5025, %v5024
    %v5094 = vpack.c.b16 %v5027, %v5026
    %v5095 = vpack.c.b16 %v5029, %v5028
    %v5096 = vpack.c.b16 %v5031, %v5030
    %v5097 = vpack.c.b16 %v5033, %v5032
    %v5098 = vpack.c.b16 %v5035, %v5034
    %v5099 = vpack.c.b16 %v5037, %v5036
    %v5100 = vpack.c.b16 %v5039, %v5038
    %v5101 = vpack.c.b16 %v5041, %v5040
    %v5102 = vpack.c.b16 %v5043, %v5042
    %v5103 = vpack.c.b16 %v5045, %v5044
    %v5104 = vpack.c.b16 %v5047, %v5046
    %v5105 = vpack.c.b16 %v5049, %v5048
    %v5106 = vpack.c.b16 %v5051, %v5050
    %v5107 = vpack.c.b16 %v5053, %v5052
    %v5108 = vpack.c.b16 %v5055, %v5054
    %v5109 = vpack.c.b16 %v5057, %v5056
    %v5110 = vpack.c.b16 %v5059, %v5058
    %v5111 = vpack.c.b16 %v5061, %v5060
    %v5112 = vpack.c.b16 %v5063, %v5062
    %v5113 = vpack.c.b16 %v5065, %v5064
    %v5114 = vpack.c.b16 %v5067, %v5066
    %v5115 = vpack.c.b16 %v5069, %v5068
    %v5116 = vpack.c.b16 %v5071, %v5070
    %v5117 = vpack.c.b16 %v5073, %v5072
    %v5118 = vpack.c.b16 %v5075, %v5074
    %v5119 = vpack.c.b16 %v5077, %v5076
    %v5120 = vpack.c.b16 %v5079, %v5078
    %v5121 = vpack.c.b16 %v5081, %v5080
    %5162 = vmatprep.subr.bf16.mxu0 0
    %5163 = vmatpush1.bf16.msra.mxu0 %v5089
    %5164 = vmatprep.subr.bf16.mxu0 0
    %5165 = vmatpush1.bf16.msra.mxu0 %v5088
    %5166 = vmatprep.subr.bf16.mxu0 0
    %5167 = vmatpush1.bf16.msra.mxu0 %v5087
    %5168 = vmatprep.subr.bf16.mxu0 0
    %5169 = vmatpush1.bf16.msra.mxu0 %v5086
    %5170 = vmatprep.subr.bf16.mxu0 0
    %5171 = vmatpush1.bf16.msra.mxu0 %v5085
    %5172 = vmatprep.subr.bf16.mxu0 0
    %5173 = vmatpush1.bf16.msra.mxu0 %v5084
    %5174 = vmatprep.subr.bf16.mxu0 0
    %5175 = vmatpush1.bf16.msra.mxu0 %v5083
    %5176 = vmatprep.subr.bf16.mxu0 0
    %5177 = vmatpush1.bf16.msra.mxu0 %v5082
    %5178 = vmatprep.subr.bf16.mxu0 0
    %5179 = vmatpush2.bf16.msra.mxu0 %v5097
    %5180 = vmatprep.subr.bf16.mxu0 0
    %5181 = vmatpush2.bf16.msra.mxu0 %v5096
    %5182 = vmatprep.subr.bf16.mxu0 0
    %5183 = vmatpush2.bf16.msra.mxu0 %v5095
    %5184 = vmatprep.subr.bf16.mxu0 0
    %5185 = vmatpush2.bf16.msra.mxu0 %v5094
    %5186 = vmatprep.subr.bf16.mxu0 0
    %5187 = vmatpush2.bf16.msra.mxu0 %v5093
    %5188 = vmatprep.subr.bf16.mxu0 0
    %5189 = vmatpush2.bf16.msra.mxu0 %v5092
    %5190 = vmatprep.subr.bf16.mxu0 0
    %5191 = vmatpush2.bf16.msra.mxu0 %v5091
    %5192 = vmatprep.subr.bf16.mxu0 0
    %5193 = vmatpush2.bf16.msra.mxu0 %v5090
    %5194 = vmatprep.mubr.bf16.mxu0 %v4384
    %5195 = vmatmul.mubr.bf16.gmra.mxu0 %v4383
    %v5196 = vpop.f32.mrf.mxu0
    %v5197 = vadd.f32 %v4920, %v5196
    %v5198 = vpop.f32.mrf.mxu0
    %v5199 = vpop.f32.mrf.mxu0
    %v5200 = vpop.f32.mrf.mxu0
    %5201 = vdwg.mxu0
    %5202 = vmatprep.subr.bf16.mxu0 0
    %5203 = vmatpush1.bf16.msra.mxu0 %v5105
    %5204 = vmatprep.subr.bf16.mxu0 0
    %5205 = vmatpush1.bf16.msra.mxu0 %v5104
    %5206 = vmatprep.subr.bf16.mxu0 0
    %5207 = vmatpush1.bf16.msra.mxu0 %v5103
    %5208 = vmatprep.subr.bf16.mxu0 0
    %5209 = vmatpush1.bf16.msra.mxu0 %v5102
    %5210 = vmatprep.subr.bf16.mxu0 0
    %5211 = vmatpush1.bf16.msra.mxu0 %v5101
    %5212 = vmatprep.subr.bf16.mxu0 0
    %5213 = vmatpush1.bf16.msra.mxu0 %v5100
    %5214 = vmatprep.subr.bf16.mxu0 0
    %5215 = vmatpush1.bf16.msra.mxu0 %v5099
    %5216 = vmatprep.subr.bf16.mxu0 0
    %5217 = vmatpush1.bf16.msra.mxu0 %v5098
    %5218 = vmatprep.subr.bf16.mxu0 0
    %5219 = vmatpush2.bf16.msra.mxu0 %v5113
    %5220 = vmatprep.subr.bf16.mxu0 0
    %5221 = vmatpush2.bf16.msra.mxu0 %v5112
    %5222 = vmatprep.subr.bf16.mxu0 0
    %5223 = vmatpush2.bf16.msra.mxu0 %v5111
    %5224 = vmatprep.subr.bf16.mxu0 0
    %5225 = vmatpush2.bf16.msra.mxu0 %v5110
    %5226 = vmatprep.subr.bf16.mxu0 0
    %5227 = vmatpush2.bf16.msra.mxu0 %v5109
    %5228 = vmatprep.subr.bf16.mxu0 0
    %5229 = vmatpush2.bf16.msra.mxu0 %v5108
    %5230 = vmatprep.subr.bf16.mxu0 0
    %5231 = vmatpush2.bf16.msra.mxu0 %v5107
    %5232 = vmatprep.subr.bf16.mxu0 0
    %5233 = vmatpush2.bf16.msra.mxu0 %v5106
    %5234 = vmatprep.mubr.bf16.mxu0 %v4386
    %5235 = vmatmul.mubr.bf16.gmra.mxu0 %v4385
    %v5236 = vpop.f32.mrf.mxu0
    %v5237 = vadd.f32 %v5197, %v5236
    %v5238 = vpop.f32.mrf.mxu0
    %v5239 = vpop.f32.mrf.mxu0
    %v5240 = vpop.f32.mrf.mxu0
    %5241 = vdwg.mxu0
    %5242 = vmatprep.subr.bf16.mxu0 0
    %5243 = vmatpush1.bf16.msra.mxu0 %v5121
    %5244 = vmatprep.subr.bf16.mxu0 0
    %5245 = vmatpush1.bf16.msra.mxu0 %v5120
    %5246 = vmatprep.subr.bf16.mxu0 0
    %5247 = vmatpush1.bf16.msra.mxu0 %v5119
    %5248 = vmatprep.subr.bf16.mxu0 0
    %5249 = vmatpush1.bf16.msra.mxu0 %v5118
    %5250 = vmatprep.subr.bf16.mxu0 0
    %5251 = vmatpush1.bf16.msra.mxu0 %v5117
    %5252 = vmatprep.subr.bf16.mxu0 0
    %5253 = vmatpush1.bf16.msra.mxu0 %v5116
    %5254 = vmatprep.subr.bf16.mxu0 0
    %5255 = vmatpush1.bf16.msra.mxu0 %v5115
    %5256 = vmatprep.subr.bf16.mxu0 0
    %5257 = vmatpush1.bf16.msra.mxu0 %v5114
    %5258 = vmatprep.subr.bf16.mxu0 0
    %5259 = vmatpush2.bf16.msra.mxu0 0
    %5260 = vmatprep.subr.bf16.mxu0 0
    %5261 = vmatpush2.bf16.msra.mxu0 0
    %5262 = vmatprep.subr.bf16.mxu0 0
    %5263 = vmatpush2.bf16.msra.mxu0 0
    %5264 = vmatprep.subr.bf16.mxu0 0
    %5265 = vmatpush2.bf16.msra.mxu0 0
    %5266 = vmatprep.subr.bf16.mxu0 0
    %5267 = vmatpush2.bf16.msra.mxu0 0
    %5268 = vmatprep.subr.bf16.mxu0 0
    %5269 = vmatpush2.bf16.msra.mxu0 0
    %5270 = vmatprep.subr.bf16.mxu0 0
    %5271 = vmatpush2.bf16.msra.mxu0 0
    %5272 = vmatprep.subr.bf16.mxu0 0
    %5273 = vmatpush2.bf16.msra.mxu0 0
    %5274 = vmatprep.mubr.bf16.mxu0 0
    %5275 = vmatmul.mubr.bf16.gmra.mxu0 %v4387
    %v5276 = vpop.f32.mrf.mxu0
    %v5277 = vadd.f32 %v5237, %v5276
    %v5278 = vpop.f32.mrf.mxu0
    %v5279 = vpop.f32.mrf.mxu0
    %v5280 = vpop.f32.mrf.mxu0
    %5281 = vdwg.mxu0
    %v5282 = vld [vmem:[%s1] sm:$0xff]
    %v5283 = vmul.f32 %v5277, 0.5
    %v5284 = vmul.f32 %v5283, 1.442695
    %v5285 = vpow.pop %v5284
    %v5286 = vmul.f32 %v5282, %v5285
    %v5287 = vadd.f32 %v4830, %v5286
    %v5288 = vpack.c.bf16 %v5287, %v5287
    %v5289 = vld [vmem:[#allocation15] sm:$0xff]
    %v5290 = vld [vmem:[#allocation15 + $0x8] sm:$0xff]
    %v5291 = vld [vmem:[#allocation15 + $0x10] sm:$0xf]
    %v5292 = vld [vmem:[#allocation15 + $0x14] sm:$0xff]
    %v5293 = vld [vmem:[#allocation15 + $0x1c] sm:$0xff]
    %v5294 = vld [vmem:[#allocation15 + $0x24] sm:$0xf]
    %v5295 = vld [vmem:[#allocation15 + $0x28] sm:$0xff]
    %v5296 = vld [vmem:[#allocation15 + $0x30] sm:$0xff]
    %v5297 = vld [vmem:[#allocation15 + $0x38] sm:$0xf]
    %v5298 = vld [vmem:[#allocation15 + $0x3c] sm:$0xff]
    %v5299 = vld [vmem:[#allocation15 + $0x44] sm:$0xff]
    %v5300 = vld [vmem:[#allocation15 + $0x4c] sm:$0xf]
    %v5301 = vld [vmem:[#allocation15 + $0x50] sm:$0xff]
    %v5302 = vld [vmem:[#allocation15 + $0x58] sm:$0xff]
    %v5303 = vld [vmem:[#allocation15 + $0x60] sm:$0xf]
    %v5304 = vld [vmem:[#allocation15 + $0x64] sm:$0xff]
    %v5305 = vld [vmem:[#allocation15 + $0x6c] sm:$0xff]
    %v5306 = vld [vmem:[#allocation15 + $0x74] sm:$0xf]
    %v5307 = vld [vmem:[#allocation15 + $0x78] sm:$0xff]
    %v5308 = vld [vmem:[#allocation15 + $0x80] sm:$0xff]
    %v5309 = vld [vmem:[#allocation15 + $0x88] sm:$0xf]
    %v5310 = vld [vmem:[#allocation15 + $0x8c] sm:$0xff]
    %v5311 = vld [vmem:[#allocation15 + $0x94] sm:$0xff]
    %v5312 = vld [vmem:[#allocation15 + $0x9c] sm:$0xf]
    %v5313 = vld [vmem:[#allocation15 + $0xa0] sm:$0xff]
    %v5314 = vld [vmem:[#allocation15 + $0xa8] sm:$0xff]
    %v5315 = vld [vmem:[#allocation15 + $0xb0] sm:$0xf]
    %v5316 = vld [vmem:[#allocation15 + $0xb4] sm:$0xff]
    %v5317 = vld [vmem:[#allocation15 + $0xbc] sm:$0xff]
    %v5318 = vld [vmem:[#allocation15 + $0xc4] sm:$0xf]
    %v5319 = vld [vmem:[#allocation15 + $0xc8] sm:$0xff]
    %v5320 = vld [vmem:[#allocation15 + $0xd0] sm:$0xff]
    %v5321 = vld [vmem:[#allocation15 + $0xd8] sm:$0xf]
    %v5322 = vld [vmem:[#allocation15 + $0xdc] sm:$0xff]
    %v5323 = vld [vmem:[#allocation15 + $0xe4] sm:$0xff]
    %v5324 = vld [vmem:[#allocation15 + $0xec] sm:$0xf]
    %v5325 = vld [vmem:[#allocation15 + $0xf0] sm:$0xff]
    %v5326 = vld [vmem:[#allocation15 + $0xf8] sm:$0xff]
    %v5327 = vld [vmem:[#allocation15 + $0x100] sm:$0xf]
    %v5328 = vld [vmem:[#allocation15 + $0x104] sm:$0xff]
    %v5329 = vld [vmem:[#allocation15 + $0x10c] sm:$0xff]
    %v5330 = vld [vmem:[#allocation15 + $0x114] sm:$0xf]
    %v5331 = vld [vmem:[#allocation15 + $0x118] sm:$0xff]
    %v5332 = vld [vmem:[#allocation15 + $0x120] sm:$0xff]
    %v5333 = vld [vmem:[#allocation15 + $0x128] sm:$0xf]
    %v5334 = vld [vmem:[#allocation15 + $0x12c] sm:$0xff]
    %v5335 = vld [vmem:[#allocation15 + $0x134] sm:$0xff]
    %v5336 = vld [vmem:[#allocation15 + $0x13c] sm:$0xf]
    %v5337 = vld [vmem:[#allocation16] sm:$0x1f]
    %v5339 = vlaneseq
    %v5340 = vshrl.u32 %v5339, 7
    %v5341 = vsub.s32 0, %v5340
    %v5342 = vrot.slane %v5337, %v5341
    %v5343 = vlaneseq
    %v5344 = vshrl.u32 %v5343, 7
    %v5345 = vsub.s32 1, %v5344
    %v5346 = vrot.slane %v5337, %v5345
    %v5347 = vlaneseq
    %v5348 = vshrl.u32 %v5347, 7
    %v5349 = vsub.s32 2, %v5348
    %v5350 = vrot.slane %v5337, %v5349
    %v5351 = vlaneseq
    %v5352 = vshrl.u32 %v5351, 7
    %v5353 = vsub.s32 3, %v5352
    %v5354 = vrot.slane %v5337, %v5353
    %v5355 = vlaneseq
    %v5356 = vshrl.u32 %v5355, 7
    %v5357 = vsub.s32 4, %v5356
    %v5358 = vrot.slane %v5337, %v5357
    %v5412 = vunpack.c.l.b16 %v5289
    %v5413 = vunpack.c.h.b16 %v5289
    %v5414 = vunpack.c.l.b16 %v5290
    %v5415 = vunpack.c.h.b16 %v5290
    %v5416 = vunpack.c.l.b16 %v5291
    %v5417 = vunpack.c.l.b16 %v5292
    %v5418 = vunpack.c.h.b16 %v5292
    %v5419 = vunpack.c.l.b16 %v5293
    %v5420 = vunpack.c.h.b16 %v5293
    %v5421 = vunpack.c.l.b16 %v5294
    %v5422 = vunpack.c.l.b16 %v5295
    %v5423 = vunpack.c.h.b16 %v5295
    %v5424 = vunpack.c.l.b16 %v5296
    %v5425 = vunpack.c.h.b16 %v5296
    %v5426 = vunpack.c.l.b16 %v5297
    %v5427 = vunpack.c.l.b16 %v5298
    %v5428 = vunpack.c.h.b16 %v5298
    %v5429 = vunpack.c.l.b16 %v5299
    %v5430 = vunpack.c.h.b16 %v5299
    %v5431 = vunpack.c.l.b16 %v5300
    %v5432 = vunpack.c.l.b16 %v5301
    %v5433 = vunpack.c.h.b16 %v5301
    %v5434 = vunpack.c.l.b16 %v5302
    %v5435 = vunpack.c.h.b16 %v5302
    %v5436 = vunpack.c.l.b16 %v5303
    %v5437 = vunpack.c.l.b16 %v5304
    %v5438 = vunpack.c.h.b16 %v5304
    %v5439 = vunpack.c.l.b16 %v5305
    %v5440 = vunpack.c.h.b16 %v5305
    %v5441 = vunpack.c.l.b16 %v5306
    %v5442 = vunpack.c.l.b16 %v5307
    %v5443 = vunpack.c.h.b16 %v5307
    %v5444 = vunpack.c.l.b16 %v5308
    %v5445 = vunpack.c.h.b16 %v5308
    %v5446 = vunpack.c.l.b16 %v5309
    %v5447 = vunpack.c.l.b16 %v5310
    %v5448 = vunpack.c.h.b16 %v5310
    %v5449 = vunpack.c.l.b16 %v5311
    %v5450 = vunpack.c.h.b16 %v5311
    %v5451 = vunpack.c.l.b16 %v5312
    %v5452 = vunpack.c.l.b16 %v5313
    %v5453 = vunpack.c.h.b16 %v5313
    %v5454 = vunpack.c.l.b16 %v5314
    %v5455 = vunpack.c.h.b16 %v5314
    %v5456 = vunpack.c.l.b16 %v5315
    %v5457 = vunpack.c.l.b16 %v5316
    %v5458 = vunpack.c.h.b16 %v5316
    %v5459 = vunpack.c.l.b16 %v5317
    %v5460 = vunpack.c.h.b16 %v5317
    %v5461 = vunpack.c.l.b16 %v5318
    %v5462 = vunpack.c.l.b16 %v5319
    %v5463 = vunpack.c.h.b16 %v5319
    %v5464 = vunpack.c.l.b16 %v5320
    %v5465 = vunpack.c.h.b16 %v5320
    %v5466 = vunpack.c.l.b16 %v5321
    %v5467 = vunpack.c.l.b16 %v5322
    %v5468 = vunpack.c.h.b16 %v5322
    %v5469 = vunpack.c.l.b16 %v5323
    %v5470 = vunpack.c.h.b16 %v5323
    %v5471 = vunpack.c.l.b16 %v5324
    %v5472 = vunpack.c.l.b16 %v5325
    %v5473 = vunpack.c.h.b16 %v5325
    %v5474 = vunpack.c.l.b16 %v5326
    %v5475 = vunpack.c.h.b16 %v5326
    %v5476 = vunpack.c.l.b16 %v5327
    %v5477 = vunpack.c.l.b16 %v5328
    %v5478 = vunpack.c.h.b16 %v5328
    %v5479 = vunpack.c.l.b16 %v5329
    %v5480 = vunpack.c.h.b16 %v5329
    %v5481 = vunpack.c.l.b16 %v5330
    %v5482 = vunpack.c.l.b16 %v5331
    %v5483 = vunpack.c.h.b16 %v5331
    %v5484 = vunpack.c.l.b16 %v5332
    %v5485 = vunpack.c.h.b16 %v5332
    %v5486 = vunpack.c.l.b16 %v5333
    %v5487 = vunpack.c.l.b16 %v5334
    %v5488 = vunpack.c.h.b16 %v5334
    %v5489 = vunpack.c.l.b16 %v5335
    %v5490 = vunpack.c.h.b16 %v5335
    %v5491 = vunpack.c.l.b16 %v5336
    %v5492 = vpack.c.b16 %v5417, %v5412
    %v5493 = vpack.c.b16 %v5418, %v5413
    %v5494 = vpack.c.b16 %v5419, %v5414
    %v5495 = vpack.c.b16 %v5420, %v5415
    %v5496 = vpack.c.b16 %v5421, %v5416
    %v5497 = vpack.c.b16 %v5427, %v5422
    %v5498 = vpack.c.b16 %v5428, %v5423
    %v5499 = vpack.c.b16 %v5429, %v5424
    %v5500 = vpack.c.b16 %v5430, %v5425
    %v5501 = vpack.c.b16 %v5431, %v5426
    %v5502 = vpack.c.b16 %v5437, %v5432
    %v5503 = vpack.c.b16 %v5438, %v5433
    %v5504 = vpack.c.b16 %v5439, %v5434
    %v5505 = vpack.c.b16 %v5440, %v5435
    %v5506 = vpack.c.b16 %v5441, %v5436
    %v5507 = vpack.c.b16 %v5447, %v5442
    %v5508 = vpack.c.b16 %v5448, %v5443
    %v5509 = vpack.c.b16 %v5449, %v5444
    %v5510 = vpack.c.b16 %v5450, %v5445
    %v5511 = vpack.c.b16 %v5451, %v5446
    %v5512 = vpack.c.b16 %v5457, %v5452
    %v5513 = vpack.c.b16 %v5458, %v5453
    %v5514 = vpack.c.b16 %v5459, %v5454
    %v5515 = vpack.c.b16 %v5460, %v5455
    %v5516 = vpack.c.b16 %v5461, %v5456
    %v5517 = vpack.c.b16 %v5467, %v5462
    %v5518 = vpack.c.b16 %v5468, %v5463
    %v5519 = vpack.c.b16 %v5469, %v5464
    %v5520 = vpack.c.b16 %v5470, %v5465
    %v5521 = vpack.c.b16 %v5471, %v5466
    %v5522 = vpack.c.b16 %v5477, %v5472
    %v5523 = vpack.c.b16 %v5478, %v5473
    %v5524 = vpack.c.b16 %v5479, %v5474
    %v5525 = vpack.c.b16 %v5480, %v5475
    %v5526 = vpack.c.b16 %v5481, %v5476
    %v5527 = vpack.c.b16 %v5487, %v5482
    %v5528 = vpack.c.b16 %v5488, %v5483
    %v5529 = vpack.c.b16 %v5489, %v5484
    %v5530 = vpack.c.b16 %v5490, %v5485
    %v5531 = vpack.c.b16 %v5491, %v5486
    %5572 = vmatprep.subr.bf16.mxu0 %v5528
    %5573 = vmatpush1.bf16.msra.mxu0 %v5527
    %5574 = vmatprep.subr.bf16.mxu0 %v5523
    %5575 = vmatpush1.bf16.msra.mxu0 %v5522
    %5576 = vmatprep.subr.bf16.mxu0 %v5518
    %5577 = vmatpush1.bf16.msra.mxu0 %v5517
    %5578 = vmatprep.subr.bf16.mxu0 %v5513
    %5579 = vmatpush1.bf16.msra.mxu0 %v5512
    %5580 = vmatprep.subr.bf16.mxu0 %v5508
    %5581 = vmatpush1.bf16.msra.mxu0 %v5507
    %5582 = vmatprep.subr.bf16.mxu0 %v5503
    %5583 = vmatpush1.bf16.msra.mxu0 %v5502
    %5584 = vmatprep.subr.bf16.mxu0 %v5498
    %5585 = vmatpush1.bf16.msra.mxu0 %v5497
    %5586 = vmatprep.subr.bf16.mxu0 %v5493
    %5587 = vmatpush1.bf16.msra.mxu0 %v5492
    %5588 = vmatprep.subr.bf16.mxu0 0
    %5589 = vmatpush2.bf16.msra.mxu0 0
    %5590 = vmatprep.subr.bf16.mxu0 0
    %5591 = vmatpush2.bf16.msra.mxu0 0
    %5592 = vmatprep.subr.bf16.mxu0 0
    %5593 = vmatpush2.bf16.msra.mxu0 0
    %5594 = vmatprep.subr.bf16.mxu0 0
    %5595 = vmatpush2.bf16.msra.mxu0 0
    %5596 = vmatprep.subr.bf16.mxu0 0
    %5597 = vmatpush2.bf16.msra.mxu0 0
    %5598 = vmatprep.subr.bf16.mxu0 0
    %5599 = vmatpush2.bf16.msra.mxu0 0
    %5600 = vmatprep.subr.bf16.mxu0 0
    %5601 = vmatpush2.bf16.msra.mxu0 0
    %5602 = vmatprep.subr.bf16.mxu0 0
    %5603 = vmatpush2.bf16.msra.mxu0 0
    %5604 = vmatprep.mubr.bf16.mxu0 0
    %5605 = vmatmul.mubr.bf16.gmra.mxu0 %v5288
    %v5606 = vpop.f32.mrf.mxu0
    %v5607 = vadd.f32 %v5342, %v5606
    %v5608 = vpop.f32.mrf.mxu0
    %v5609 = vadd.f32 %v5346, %v5608
    %v5610 = vpop.f32.mrf.mxu0
    %v5611 = vpop.f32.mrf.mxu0
    %5612 = vdwg.mxu0
    %5613 = vmatprep.subr.bf16.mxu0 %v5530
    %5614 = vmatpush1.bf16.msra.mxu0 %v5529
    %5615 = vmatprep.subr.bf16.mxu0 %v5525
    %5616 = vmatpush1.bf16.msra.mxu0 %v5524
    %5617 = vmatprep.subr.bf16.mxu0 %v5520
    %5618 = vmatpush1.bf16.msra.mxu0 %v5519
    %5619 = vmatprep.subr.bf16.mxu0 %v5515
    %5620 = vmatpush1.bf16.msra.mxu0 %v5514
    %5621 = vmatprep.subr.bf16.mxu0 %v5510
    %5622 = vmatpush1.bf16.msra.mxu0 %v5509
    %5623 = vmatprep.subr.bf16.mxu0 %v5505
    %5624 = vmatpush1.bf16.msra.mxu0 %v5504
    %5625 = vmatprep.subr.bf16.mxu0 %v5500
    %5626 = vmatpush1.bf16.msra.mxu0 %v5499
    %5627 = vmatprep.subr.bf16.mxu0 %v5495
    %5628 = vmatpush1.bf16.msra.mxu0 %v5494
    %5629 = vmatprep.subr.bf16.mxu0 0
    %5630 = vmatpush2.bf16.msra.mxu0 0
    %5631 = vmatprep.subr.bf16.mxu0 0
    %5632 = vmatpush2.bf16.msra.mxu0 0
    %5633 = vmatprep.subr.bf16.mxu0 0
    %5634 = vmatpush2.bf16.msra.mxu0 0
    %5635 = vmatprep.subr.bf16.mxu0 0
    %5636 = vmatpush2.bf16.msra.mxu0 0
    %5637 = vmatprep.subr.bf16.mxu0 0
    %5638 = vmatpush2.bf16.msra.mxu0 0
    %5639 = vmatprep.subr.bf16.mxu0 0
    %5640 = vmatpush2.bf16.msra.mxu0 0
    %5641 = vmatprep.subr.bf16.mxu0 0
    %5642 = vmatpush2.bf16.msra.mxu0 0
    %5643 = vmatprep.subr.bf16.mxu0 0
    %5644 = vmatpush2.bf16.msra.mxu0 0
    %5645 = vmatprep.mubr.bf16.mxu0 0
    %5646 = vmatmul.mubr.bf16.gmra.mxu0 %v5288
    %v5647 = vpop.f32.mrf.mxu0
    %v5648 = vadd.f32 %v5350, %v5647
    %v5649 = vpop.f32.mrf.mxu0
    %v5650 = vadd.f32 %v5354, %v5649
    %v5651 = vpop.f32.mrf.mxu0
    %v5652 = vpop.f32.mrf.mxu0
    %5653 = vdwg.mxu0
    %5654 = vmatprep.subr.bf16.mxu0 0
    %5655 = vmatpush1.bf16.msra.mxu0 %v5531
    %5656 = vmatprep.subr.bf16.mxu0 0
    %5657 = vmatpush1.bf16.msra.mxu0 %v5526
    %5658 = vmatprep.subr.bf16.mxu0 0
    %5659 = vmatpush1.bf16.msra.mxu0 %v5521
    %5660 = vmatprep.subr.bf16.mxu0 0
    %5661 = vmatpush1.bf16.msra.mxu0 %v5516
    %5662 = vmatprep.subr.bf16.mxu0 0
    %5663 = vmatpush1.bf16.msra.mxu0 %v5511
    %5664 = vmatprep.subr.bf16.mxu0 0
    %5665 = vmatpush1.bf16.msra.mxu0 %v5506
    %5666 = vmatprep.subr.bf16.mxu0 0
    %5667 = vmatpush1.bf16.msra.mxu0 %v5501
    %5668 = vmatprep.subr.bf16.mxu0 0
    %5669 = vmatpush1.bf16.msra.mxu0 %v5496
    %5670 = vmatprep.subr.bf16.mxu0 0
    %5671 = vmatpush2.bf16.msra.mxu0 0
    %5672 = vmatprep.subr.bf16.mxu0 0
    %5673 = vmatpush2.bf16.msra.mxu0 0
    %5674 = vmatprep.subr.bf16.mxu0 0
    %5675 = vmatpush2.bf16.msra.mxu0 0
    %5676 = vmatprep.subr.bf16.mxu0 0
    %5677 = vmatpush2.bf16.msra.mxu0 0
    %5678 = vmatprep.subr.bf16.mxu0 0
    %5679 = vmatpush2.bf16.msra.mxu0 0
    %5680 = vmatprep.subr.bf16.mxu0 0
    %5681 = vmatpush2.bf16.msra.mxu0 0
    %5682 = vmatprep.subr.bf16.mxu0 0
    %5683 = vmatpush2.bf16.msra.mxu0 0
    %5684 = vmatprep.subr.bf16.mxu0 0
    %5685 = vmatpush2.bf16.msra.mxu0 0
    %5686 = vmatprep.mubr.bf16.mxu0 0
    %5687 = vmatmul.mubr.bf16.gmra.mxu0 %v5288
    %v5688 = vpop.f32.mrf.mxu0
    %v5689 = vadd.f32 %v5358, %v5688
    %v5690 = vpop.f32.mrf.mxu0
    %v5691 = vpop.f32.mrf.mxu0
    %v5692 = vpop.f32.mrf.mxu0
    %5693 = vdwg.mxu0
    %v5694 = vmax.f32 %v5607, 0.0
    %v5695 = vmax.f32 %v5609, 0.0
    %v5696 = vmax.f32 %v5648, 0.0
    %v5697 = vmax.f32 %v5650, 0.0
    %v5698 = vmax.f32 %v5689, 0.0
    %v5699 = vand.u32 2147483647, %v5607
    %v5700 = vand.u32 2147483647, %v5609
    %v5701 = vand.u32 2147483647, %v5648
    %v5702 = vand.u32 2147483647, %v5650
    %v5703 = vand.u32 2147483647, %v5689
    %v5704 = vsub.f32 0.0, %v5699
    %v5705 = vsub.f32 0.0, %v5700
    %v5706 = vsub.f32 0.0, %v5701
    %v5707 = vsub.f32 0.0, %v5702
    %v5708 = vsub.f32 0.0, %v5703
    %v5709 = vmul.f32 %v5704, 1.442695
    %v5710 = vpow.pop %v5709
    %v5711 = vmul.f32 %v5705, 1.442695
    %v5712 = vpow.pop %v5711
    %v5713 = vmul.f32 %v5706, 1.442695
    %v5714 = vpow.pop %v5713
    %v5715 = vmul.f32 %v5707, 1.442695
    %v5716 = vpow.pop %v5715
    %v5717 = vmul.f32 %v5708, 1.442695
    %v5718 = vpow.pop %v5717
    %v5719 = vadd.f32 %v5710, 1.0
    %v5720 = vlog2.pop %v5719
    %v5721 = vmul.f32 %v5720, 0.6931472
    %v5722 = vmul.f32 -0.5, %v5710
    %v5723 = vadd.f32 %v5722, 1.0
    %v5724 = vmul.f32 %v5723, %v5710
    %v5725 = vand.u32 2147483647, %v5710
    %vm5726 = vcmp.lt.f32.partialorder %v5725, 0.0004427343
    %v5727 = vsel %vm5726, %v5724, %v5721
    %v5728 = vadd.f32 %v5712, 1.0
    %v5729 = vlog2.pop %v5728
    %v5730 = vmul.f32 %v5729, 0.6931472
    %v5731 = vmul.f32 -0.5, %v5712
    %v5732 = vadd.f32 %v5731, 1.0
    %v5733 = vmul.f32 %v5732, %v5712
    %v5734 = vand.u32 2147483647, %v5712
    %vm5735 = vcmp.lt.f32.partialorder %v5734, 0.0004427343
    %v5736 = vsel %vm5735, %v5733, %v5730
    %v5737 = vadd.f32 %v5714, 1.0
    %v5738 = vlog2.pop %v5737
    %v5739 = vmul.f32 %v5738, 0.6931472
    %v5740 = vmul.f32 -0.5, %v5714
    %v5741 = vadd.f32 %v5740, 1.0
    %v5742 = vmul.f32 %v5741, %v5714
    %v5743 = vand.u32 2147483647, %v5714
    %vm5744 = vcmp.lt.f32.partialorder %v5743, 0.0004427343
    %v5745 = vsel %vm5744, %v5742, %v5739
    %v5746 = vadd.f32 %v5716, 1.0
    %v5747 = vlog2.pop %v5746
    %v5748 = vmul.f32 %v5747, 0.6931472
    %v5749 = vmul.f32 -0.5, %v5716
    %v5750 = vadd.f32 %v5749, 1.0
    %v5751 = vmul.f32 %v5750, %v5716
    %v5752 = vand.u32 2147483647, %v5716
    %vm5753 = vcmp.lt.f32.partialorder %v5752, 0.0004427343
    %v5754 = vsel %vm5753, %v5751, %v5748
    %v5755 = vadd.f32 %v5718, 1.0
    %v5756 = vlog2.pop %v5755
    %v5757 = vmul.f32 %v5756, 0.6931472
    %v5758 = vmul.f32 -0.5, %v5718
    %v5759 = vadd.f32 %v5758, 1.0
    %v5760 = vmul.f32 %v5759, %v5718
    %v5761 = vand.u32 2147483647, %v5718
    %vm5762 = vcmp.lt.f32.partialorder %v5761, 0.0004427343
    %v5763 = vsel %vm5762, %v5760, %v5757
    %v5764 = vadd.f32 %v5694, %v5727
    %v5765 = vadd.f32 %v5695, %v5736
    %v5766 = vadd.f32 %v5696, %v5745
    %v5767 = vadd.f32 %v5697, %v5754
    %v5768 = vadd.f32 %v5698, %v5763
    %v5769 = vpack.c.bf16 %v5764, %v5764
    %v5770 = vpack.c.bf16 %v5765, %v5765
    %v5771 = vpack.c.bf16 %v5766, %v5766
    %v5772 = vpack.c.bf16 %v5767, %v5767
    %v5773 = vpack.c.bf16 %v5768, %v5768
    %v5774 = vld [vmem:[#allocation18] sm:$0xff]
    %v5775 = vld [vmem:[#allocation18 + $0x8] sm:$0xff]
    %v5776 = vld [vmem:[#allocation18 + $0x10] sm:$0xf]
    %v5777 = vld [vmem:[#allocation18 + $0x14] sm:$0xff]
    %v5778 = vld [vmem:[#allocation18 + $0x1c] sm:$0xff]
    %v5779 = vld [vmem:[#allocation18 + $0x24] sm:$0xf]
    %v5780 = vld [vmem:[#allocation18 + $0x28] sm:$0xff]
    %v5781 = vld [vmem:[#allocation18 + $0x30] sm:$0xff]
    %v5782 = vld [vmem:[#allocation18 + $0x38] sm:$0xf]
    %v5783 = vld [vmem:[#allocation18 + $0x3c] sm:$0xff]
    %v5784 = vld [vmem:[#allocation18 + $0x44] sm:$0xff]
    %v5785 = vld [vmem:[#allocation18 + $0x4c] sm:$0xf]
    %v5786 = vld [vmem:[#allocation18 + $0x50] sm:$0xff]
    %v5787 = vld [vmem:[#allocation18 + $0x58] sm:$0xff]
    %v5788 = vld [vmem:[#allocation18 + $0x60] sm:$0xf]
    %v5789 = vld [vmem:[#allocation18 + $0x64] sm:$0xff]
    %v5790 = vld [vmem:[#allocation18 + $0x6c] sm:$0xff]
    %v5791 = vld [vmem:[#allocation18 + $0x74] sm:$0xf]
    %v5792 = vld [vmem:[#allocation18 + $0x78] sm:$0xff]
    %v5793 = vld [vmem:[#allocation18 + $0x80] sm:$0xff]
    %v5794 = vld [vmem:[#allocation18 + $0x88] sm:$0xf]
    %v5795 = vld [vmem:[#allocation18 + $0x8c] sm:$0xff]
    %v5796 = vld [vmem:[#allocation18 + $0x94] sm:$0xff]
    %v5797 = vld [vmem:[#allocation18 + $0x9c] sm:$0xf]
    %v5798 = vld [vmem:[#allocation18 + $0xa0] sm:$0xff]
    %v5799 = vld [vmem:[#allocation18 + $0xa8] sm:$0xff]
    %v5800 = vld [vmem:[#allocation18 + $0xb0] sm:$0xf]
    %v5801 = vld [vmem:[#allocation18 + $0xb4] sm:$0xff]
    %v5802 = vld [vmem:[#allocation18 + $0xbc] sm:$0xff]
    %v5803 = vld [vmem:[#allocation18 + $0xc4] sm:$0xf]
    %v5804 = vld [vmem:[#allocation18 + $0xc8] sm:$0xff]
    %v5805 = vld [vmem:[#allocation18 + $0xd0] sm:$0xff]
    %v5806 = vld [vmem:[#allocation18 + $0xd8] sm:$0xf]
    %v5807 = vld [vmem:[#allocation18 + $0xdc] sm:$0xff]
    %v5808 = vld [vmem:[#allocation18 + $0xe4] sm:$0xff]
    %v5809 = vld [vmem:[#allocation18 + $0xec] sm:$0xf]
    %v5810 = vld [vmem:[#allocation18 + $0xf0] sm:$0xff]
    %v5811 = vld [vmem:[#allocation18 + $0xf8] sm:$0xff]
    %v5812 = vld [vmem:[#allocation18 + $0x100] sm:$0xf]
    %v5813 = vld [vmem:[#allocation18 + $0x104] sm:$0xff]
    %v5814 = vld [vmem:[#allocation18 + $0x10c] sm:$0xff]
    %v5815 = vld [vmem:[#allocation18 + $0x114] sm:$0xf]
    %v5816 = vld [vmem:[#allocation18 + $0x118] sm:$0xff]
    %v5817 = vld [vmem:[#allocation18 + $0x120] sm:$0xff]
    %v5818 = vld [vmem:[#allocation18 + $0x128] sm:$0xf]
    %v5819 = vld [vmem:[#allocation18 + $0x12c] sm:$0xff]
    %v5820 = vld [vmem:[#allocation18 + $0x134] sm:$0xff]
    %v5821 = vld [vmem:[#allocation18 + $0x13c] sm:$0xf]
    %v5822 = vld [vmem:[#allocation18 + $0x140] sm:$0xff]
    %v5823 = vld [vmem:[#allocation18 + $0x148] sm:$0xff]
    %v5824 = vld [vmem:[#allocation18 + $0x150] sm:$0xf]
    %v5825 = vld [vmem:[#allocation18 + $0x154] sm:$0xff]
    %v5826 = vld [vmem:[#allocation18 + $0x15c] sm:$0xff]
    %v5827 = vld [vmem:[#allocation18 + $0x164] sm:$0xf]
    %v5828 = vld [vmem:[#allocation18 + $0x168] sm:$0xff]
    %v5829 = vld [vmem:[#allocation18 + $0x170] sm:$0xff]
    %v5830 = vld [vmem:[#allocation18 + $0x178] sm:$0xf]
    %v5831 = vld [vmem:[#allocation18 + $0x17c] sm:$0xff]
    %v5832 = vld [vmem:[#allocation18 + $0x184] sm:$0xff]
    %v5833 = vld [vmem:[#allocation18 + $0x18c] sm:$0xf]
    %v5834 = vld [vmem:[#allocation18 + $0x190] sm:$0xff]
    %v5835 = vld [vmem:[#allocation18 + $0x198] sm:$0xff]
    %v5836 = vld [vmem:[#allocation18 + $0x1a0] sm:$0xf]
    %v5837 = vld [vmem:[#allocation18 + $0x1a4] sm:$0xff]
    %v5838 = vld [vmem:[#allocation18 + $0x1ac] sm:$0xff]
    %v5839 = vld [vmem:[#allocation18 + $0x1b4] sm:$0xf]
    %v5840 = vld [vmem:[#allocation18 + $0x1b8] sm:$0xff]
    %v5841 = vld [vmem:[#allocation18 + $0x1c0] sm:$0xff]
    %v5842 = vld [vmem:[#allocation18 + $0x1c8] sm:$0xf]
    %v5843 = vld [vmem:[#allocation18 + $0x1cc] sm:$0xff]
    %v5844 = vld [vmem:[#allocation18 + $0x1d4] sm:$0xff]
    %v5845 = vld [vmem:[#allocation18 + $0x1dc] sm:$0xf]
    %v5846 = vld [vmem:[#allocation18 + $0x1e0] sm:$0xff]
    %v5847 = vld [vmem:[#allocation18 + $0x1e8] sm:$0xff]
    %v5848 = vld [vmem:[#allocation18 + $0x1f0] sm:$0xf]
    %v5849 = vld [vmem:[#allocation18 + $0x1f4] sm:$0xff]
    %v5850 = vld [vmem:[#allocation18 + $0x1fc] sm:$0xff]
    %v5851 = vld [vmem:[#allocation18 + $0x204] sm:$0xf]
    %v5852 = vld [vmem:[#allocation18 + $0x208] sm:$0xff]
    %v5853 = vld [vmem:[#allocation18 + $0x210] sm:$0xff]
    %v5854 = vld [vmem:[#allocation18 + $0x218] sm:$0xf]
    %v5855 = vld [vmem:[#allocation18 + $0x21c] sm:$0xff]
    %v5856 = vld [vmem:[#allocation18 + $0x224] sm:$0xff]
    %v5857 = vld [vmem:[#allocation18 + $0x22c] sm:$0xf]
    %v5858 = vld [vmem:[#allocation18 + $0x230] sm:$0xff]
    %v5859 = vld [vmem:[#allocation18 + $0x238] sm:$0xff]
    %v5860 = vld [vmem:[#allocation18 + $0x240] sm:$0xf]
    %v5861 = vld [vmem:[#allocation18 + $0x244] sm:$0xff]
    %v5862 = vld [vmem:[#allocation18 + $0x24c] sm:$0xff]
    %v5863 = vld [vmem:[#allocation18 + $0x254] sm:$0xf]
    %v5864 = vld [vmem:[#allocation18 + $0x258] sm:$0xff]
    %v5865 = vld [vmem:[#allocation18 + $0x260] sm:$0xff]
    %v5866 = vld [vmem:[#allocation18 + $0x268] sm:$0xf]
    %v5867 = vld [vmem:[#allocation18 + $0x26c] sm:$0xff]
    %v5868 = vld [vmem:[#allocation18 + $0x274] sm:$0xff]
    %v5869 = vld [vmem:[#allocation18 + $0x27c] sm:$0xf]
    %v5870 = vld [vmem:[#allocation18 + $0x280] sm:$0xff]
    %v5871 = vld [vmem:[#allocation18 + $0x288] sm:$0xff]
    %v5872 = vld [vmem:[#allocation18 + $0x290] sm:$0xf]
    %v5873 = vld [vmem:[#allocation18 + $0x294] sm:$0xff]
    %v5874 = vld [vmem:[#allocation18 + $0x29c] sm:$0xff]
    %v5875 = vld [vmem:[#allocation18 + $0x2a4] sm:$0xf]
    %v5876 = vld [vmem:[#allocation18 + $0x2a8] sm:$0xff]
    %v5877 = vld [vmem:[#allocation18 + $0x2b0] sm:$0xff]
    %v5878 = vld [vmem:[#allocation18 + $0x2b8] sm:$0xf]
    %v5879 = vld [vmem:[#allocation18 + $0x2bc] sm:$0xff]
    %v5880 = vld [vmem:[#allocation18 + $0x2c4] sm:$0xff]
    %v5881 = vld [vmem:[#allocation18 + $0x2cc] sm:$0xf]
    %v5882 = vld [vmem:[#allocation18 + $0x2d0] sm:$0xff]
    %v5883 = vld [vmem:[#allocation18 + $0x2d8] sm:$0xff]
    %v5884 = vld [vmem:[#allocation18 + $0x2e0] sm:$0xf]
    %v5885 = vld [vmem:[#allocation18 + $0x2e4] sm:$0xff]
    %v5886 = vld [vmem:[#allocation18 + $0x2ec] sm:$0xff]
    %v5887 = vld [vmem:[#allocation18 + $0x2f4] sm:$0xf]
    %v5888 = vld [vmem:[#allocation18 + $0x2f8] sm:$0xff]
    %v5889 = vld [vmem:[#allocation18 + $0x300] sm:$0xff]
    %v5890 = vld [vmem:[#allocation18 + $0x308] sm:$0xf]
    %v5891 = vld [vmem:[#allocation18 + $0x30c] sm:$0xff]
    %v5892 = vld [vmem:[#allocation18 + $0x314] sm:$0xff]
    %v5893 = vld [vmem:[#allocation18 + $0x31c] sm:$0xf]
    %v5894 = vld [vmem:[#allocation18 + $0x320] sm:$0xff]
    %v5895 = vld [vmem:[#allocation18 + $0x328] sm:$0xff]
    %v5896 = vld [vmem:[#allocation18 + $0x330] sm:$0xf]
    %v5897 = vld [vmem:[#allocation18 + $0x334] sm:$0xff]
    %v5898 = vld [vmem:[#allocation18 + $0x33c] sm:$0xff]
    %v5899 = vld [vmem:[#allocation18 + $0x344] sm:$0xf]
    %v5900 = vld [vmem:[#allocation18 + $0x348] sm:$0xff]
    %v5901 = vld [vmem:[#allocation18 + $0x350] sm:$0xff]
    %v5902 = vld [vmem:[#allocation18 + $0x358] sm:$0xf]
    %v5903 = vld [vmem:[#allocation18 + $0x35c] sm:$0xff]
    %v5904 = vld [vmem:[#allocation18 + $0x364] sm:$0xff]
    %v5905 = vld [vmem:[#allocation18 + $0x36c] sm:$0xf]
    %v5906 = vld [vmem:[#allocation18 + $0x370] sm:$0xff]
    %v5907 = vld [vmem:[#allocation18 + $0x378] sm:$0xff]
    %v5908 = vld [vmem:[#allocation18 + $0x380] sm:$0xf]
    %v5909 = vld [vmem:[#allocation18 + $0x384] sm:$0xff]
    %v5910 = vld [vmem:[#allocation18 + $0x38c] sm:$0xff]
    %v5911 = vld [vmem:[#allocation18 + $0x394] sm:$0xf]
    %v5912 = vld [vmem:[#allocation18 + $0x398] sm:$0xff]
    %v5913 = vld [vmem:[#allocation18 + $0x3a0] sm:$0xff]
    %v5914 = vld [vmem:[#allocation18 + $0x3a8] sm:$0xf]
    %v5915 = vld [vmem:[#allocation18 + $0x3ac] sm:$0xff]
    %v5916 = vld [vmem:[#allocation18 + $0x3b4] sm:$0xff]
    %v5917 = vld [vmem:[#allocation18 + $0x3bc] sm:$0xf]
    %v5918 = vld [vmem:[#allocation18 + $0x3c0] sm:$0xff]
    %v5919 = vld [vmem:[#allocation18 + $0x3c8] sm:$0xff]
    %v5920 = vld [vmem:[#allocation18 + $0x3d0] sm:$0xf]
    %v5921 = vld [vmem:[#allocation18 + $0x3d4] sm:$0xff]
    %v5922 = vld [vmem:[#allocation18 + $0x3dc] sm:$0xff]
    %v5923 = vld [vmem:[#allocation18 + $0x3e4] sm:$0xf]
    %v5924 = vld [vmem:[#allocation18 + $0x3e8] sm:$0xff]
    %v5925 = vld [vmem:[#allocation18 + $0x3f0] sm:$0xff]
    %v5926 = vld [vmem:[#allocation18 + $0x3f8] sm:$0xf]
    %v5927 = vld [vmem:[#allocation18 + $0x3fc] sm:$0xff]
    %v5928 = vld [vmem:[#allocation18 + $0x404] sm:$0xff]
    %v5929 = vld [vmem:[#allocation18 + $0x40c] sm:$0xf]
    %v5930 = vld [vmem:[#allocation18 + $0x410] sm:$0xff]
    %v5931 = vld [vmem:[#allocation18 + $0x418] sm:$0xff]
    %v5932 = vld [vmem:[#allocation18 + $0x420] sm:$0xf]
    %v5933 = vld [vmem:[#allocation18 + $0x424] sm:$0xff]
    %v5934 = vld [vmem:[#allocation18 + $0x42c] sm:$0xff]
    %v5935 = vld [vmem:[#allocation18 + $0x434] sm:$0xf]
    %v5936 = vld [vmem:[#allocation18 + $0x438] sm:$0xff]
    %v5937 = vld [vmem:[#allocation18 + $0x440] sm:$0xff]
    %v5938 = vld [vmem:[#allocation18 + $0x448] sm:$0xf]
    %v5939 = vld [vmem:[#allocation18 + $0x44c] sm:$0xff]
    %v5940 = vld [vmem:[#allocation18 + $0x454] sm:$0xff]
    %v5941 = vld [vmem:[#allocation18 + $0x45c] sm:$0xf]
    %v5942 = vld [vmem:[#allocation18 + $0x460] sm:$0xff]
    %v5943 = vld [vmem:[#allocation18 + $0x468] sm:$0xff]
    %v5944 = vld [vmem:[#allocation18 + $0x470] sm:$0xf]
    %v5945 = vld [vmem:[#allocation18 + $0x474] sm:$0xff]
    %v5946 = vld [vmem:[#allocation18 + $0x47c] sm:$0xff]
    %v5947 = vld [vmem:[#allocation18 + $0x484] sm:$0xf]
    %v5948 = vld [vmem:[#allocation18 + $0x488] sm:$0xff]
    %v5949 = vld [vmem:[#allocation18 + $0x490] sm:$0xff]
    %v5950 = vld [vmem:[#allocation18 + $0x498] sm:$0xf]
    %v5951 = vld [vmem:[#allocation18 + $0x49c] sm:$0xff]
    %v5952 = vld [vmem:[#allocation18 + $0x4a4] sm:$0xff]
    %v5953 = vld [vmem:[#allocation18 + $0x4ac] sm:$0xf]
    %v5954 = vld [vmem:[#allocation18 + $0x4b0] sm:$0xff]
    %v5955 = vld [vmem:[#allocation18 + $0x4b8] sm:$0xff]
    %v5956 = vld [vmem:[#allocation18 + $0x4c0] sm:$0xf]
    %v5957 = vld [vmem:[#allocation18 + $0x4c4] sm:$0xff]
    %v5958 = vld [vmem:[#allocation18 + $0x4cc] sm:$0xff]
    %v5959 = vld [vmem:[#allocation18 + $0x4d4] sm:$0xf]
    %v5960 = vld [vmem:[#allocation18 + $0x4d8] sm:$0xff]
    %v5961 = vld [vmem:[#allocation18 + $0x4e0] sm:$0xff]
    %v5962 = vld [vmem:[#allocation18 + $0x4e8] sm:$0xf]
    %v5963 = vld [vmem:[#allocation18 + $0x4ec] sm:$0xff]
    %v5964 = vld [vmem:[#allocation18 + $0x4f4] sm:$0xff]
    %v5965 = vld [vmem:[#allocation18 + $0x4fc] sm:$0xf]
    %v5966 = vld [vmem:[#allocation18 + $0x500] sm:$0xff]
    %v5967 = vld [vmem:[#allocation18 + $0x508] sm:$0xff]
    %v5968 = vld [vmem:[#allocation18 + $0x510] sm:$0xf]
    %v5969 = vld [vmem:[#allocation18 + $0x514] sm:$0xff]
    %v5970 = vld [vmem:[#allocation18 + $0x51c] sm:$0xff]
    %v5971 = vld [vmem:[#allocation18 + $0x524] sm:$0xf]
    %v5972 = vld [vmem:[#allocation18 + $0x528] sm:$0xff]
    %v5973 = vld [vmem:[#allocation18 + $0x530] sm:$0xff]
    %v5974 = vld [vmem:[#allocation18 + $0x538] sm:$0xf]
    %v5975 = vld [vmem:[#allocation18 + $0x53c] sm:$0xff]
    %v5976 = vld [vmem:[#allocation18 + $0x544] sm:$0xff]
    %v5977 = vld [vmem:[#allocation18 + $0x54c] sm:$0xf]
    %v5978 = vld [vmem:[#allocation18 + $0x550] sm:$0xff]
    %v5979 = vld [vmem:[#allocation18 + $0x558] sm:$0xff]
    %v5980 = vld [vmem:[#allocation18 + $0x560] sm:$0xf]
    %v5981 = vld [vmem:[#allocation18 + $0x564] sm:$0xff]
    %v5982 = vld [vmem:[#allocation18 + $0x56c] sm:$0xff]
    %v5983 = vld [vmem:[#allocation18 + $0x574] sm:$0xf]
    %v5984 = vld [vmem:[#allocation18 + $0x578] sm:$0xff]
    %v5985 = vld [vmem:[#allocation18 + $0x580] sm:$0xff]
    %v5986 = vld [vmem:[#allocation18 + $0x588] sm:$0xf]
    %v5987 = vld [vmem:[#allocation18 + $0x58c] sm:$0xff]
    %v5988 = vld [vmem:[#allocation18 + $0x594] sm:$0xff]
    %v5989 = vld [vmem:[#allocation18 + $0x59c] sm:$0xf]
    %v5990 = vld [vmem:[#allocation18 + $0x5a0] sm:$0xff]
    %v5991 = vld [vmem:[#allocation18 + $0x5a8] sm:$0xff]
    %v5992 = vld [vmem:[#allocation18 + $0x5b0] sm:$0xf]
    %v5993 = vld [vmem:[#allocation18 + $0x5b4] sm:$0xff]
    %v5994 = vld [vmem:[#allocation18 + $0x5bc] sm:$0xff]
    %v5995 = vld [vmem:[#allocation18 + $0x5c4] sm:$0xf]
    %v5996 = vld [vmem:[#allocation18 + $0x5c8] sm:$0xff]
    %v5997 = vld [vmem:[#allocation18 + $0x5d0] sm:$0xff]
    %v5998 = vld [vmem:[#allocation18 + $0x5d8] sm:$0xf]
    %v5999 = vld [vmem:[#allocation18 + $0x5dc] sm:$0xff]
    %v6000 = vld [vmem:[#allocation18 + $0x5e4] sm:$0xff]
    %v6001 = vld [vmem:[#allocation18 + $0x5ec] sm:$0xf]
    %v6002 = vld [vmem:[#allocation18 + $0x5f0] sm:$0xff]
    %v6003 = vld [vmem:[#allocation18 + $0x5f8] sm:$0xff]
    %v6004 = vld [vmem:[#allocation18 + $0x600] sm:$0xf]
    %v6005 = vld [vmem:[#allocation18 + $0x604] sm:$0xff]
    %v6006 = vld [vmem:[#allocation18 + $0x60c] sm:$0xff]
    %v6007 = vld [vmem:[#allocation18 + $0x614] sm:$0xf]
    %v6008 = vld [vmem:[#allocation18 + $0x618] sm:$0xff]
    %v6009 = vld [vmem:[#allocation18 + $0x620] sm:$0xff]
    %v6010 = vld [vmem:[#allocation18 + $0x628] sm:$0xf]
    %v6011 = vld [vmem:[#allocation18 + $0x62c] sm:$0xff]
    %v6012 = vld [vmem:[#allocation18 + $0x634] sm:$0xff]
    %v6013 = vld [vmem:[#allocation18 + $0x63c] sm:$0xf]
    %v6014 = vld [vmem:[#allocation19] sm:$0x1f]
    %v6016 = vlaneseq
    %v6017 = vshrl.u32 %v6016, 7
    %v6018 = vsub.s32 0, %v6017
    %v6019 = vrot.slane %v6014, %v6018
    %v6020 = vlaneseq
    %v6021 = vshrl.u32 %v6020, 7
    %v6022 = vsub.s32 1, %v6021
    %v6023 = vrot.slane %v6014, %v6022
    %v6024 = vlaneseq
    %v6025 = vshrl.u32 %v6024, 7
    %v6026 = vsub.s32 2, %v6025
    %v6027 = vrot.slane %v6014, %v6026
    %v6028 = vlaneseq
    %v6029 = vshrl.u32 %v6028, 7
    %v6030 = vsub.s32 3, %v6029
    %v6031 = vrot.slane %v6014, %v6030
    %v6032 = vlaneseq
    %v6033 = vshrl.u32 %v6032, 7
    %v6034 = vsub.s32 4, %v6033
    %v6035 = vrot.slane %v6014, %v6034
    %v6281 = vunpack.c.l.b16 %v5774
    %v6282 = vunpack.c.h.b16 %v5774
    %v6283 = vunpack.c.l.b16 %v5775
    %v6284 = vunpack.c.h.b16 %v5775
    %v6285 = vunpack.c.l.b16 %v5776
    %v6286 = vunpack.c.l.b16 %v5777
    %v6287 = vunpack.c.h.b16 %v5777
    %v6288 = vunpack.c.l.b16 %v5778
    %v6289 = vunpack.c.h.b16 %v5778
    %v6290 = vunpack.c.l.b16 %v5779
    %v6291 = vunpack.c.l.b16 %v5780
    %v6292 = vunpack.c.h.b16 %v5780
    %v6293 = vunpack.c.l.b16 %v5781
    %v6294 = vunpack.c.h.b16 %v5781
    %v6295 = vunpack.c.l.b16 %v5782
    %v6296 = vunpack.c.l.b16 %v5783
    %v6297 = vunpack.c.h.b16 %v5783
    %v6298 = vunpack.c.l.b16 %v5784
    %v6299 = vunpack.c.h.b16 %v5784
    %v6300 = vunpack.c.l.b16 %v5785
    %v6301 = vunpack.c.l.b16 %v5786
    %v6302 = vunpack.c.h.b16 %v5786
    %v6303 = vunpack.c.l.b16 %v5787
    %v6304 = vunpack.c.h.b16 %v5787
    %v6305 = vunpack.c.l.b16 %v5788
    %v6306 = vunpack.c.l.b16 %v5789
    %v6307 = vunpack.c.h.b16 %v5789
    %v6308 = vunpack.c.l.b16 %v5790
    %v6309 = vunpack.c.h.b16 %v5790
    %v6310 = vunpack.c.l.b16 %v5791
    %v6311 = vunpack.c.l.b16 %v5792
    %v6312 = vunpack.c.h.b16 %v5792
    %v6313 = vunpack.c.l.b16 %v5793
    %v6314 = vunpack.c.h.b16 %v5793
    %v6315 = vunpack.c.l.b16 %v5794
    %v6316 = vunpack.c.l.b16 %v5795
    %v6317 = vunpack.c.h.b16 %v5795
    %v6318 = vunpack.c.l.b16 %v5796
    %v6319 = vunpack.c.h.b16 %v5796
    %v6320 = vunpack.c.l.b16 %v5797
    %v6321 = vunpack.c.l.b16 %v5798
    %v6322 = vunpack.c.h.b16 %v5798
    %v6323 = vunpack.c.l.b16 %v5799
    %v6324 = vunpack.c.h.b16 %v5799
    %v6325 = vunpack.c.l.b16 %v5800
    %v6326 = vunpack.c.l.b16 %v5801
    %v6327 = vunpack.c.h.b16 %v5801
    %v6328 = vunpack.c.l.b16 %v5802
    %v6329 = vunpack.c.h.b16 %v5802
    %v6330 = vunpack.c.l.b16 %v5803
    %v6331 = vunpack.c.l.b16 %v5804
    %v6332 = vunpack.c.h.b16 %v5804
    %v6333 = vunpack.c.l.b16 %v5805
    %v6334 = vunpack.c.h.b16 %v5805
    %v6335 = vunpack.c.l.b16 %v5806
    %v6336 = vunpack.c.l.b16 %v5807
    %v6337 = vunpack.c.h.b16 %v5807
    %v6338 = vunpack.c.l.b16 %v5808
    %v6339 = vunpack.c.h.b16 %v5808
    %v6340 = vunpack.c.l.b16 %v5809
    %v6341 = vunpack.c.l.b16 %v5810
    %v6342 = vunpack.c.h.b16 %v5810
    %v6343 = vunpack.c.l.b16 %v5811
    %v6344 = vunpack.c.h.b16 %v5811
    %v6345 = vunpack.c.l.b16 %v5812
    %v6346 = vunpack.c.l.b16 %v5813
    %v6347 = vunpack.c.h.b16 %v5813
    %v6348 = vunpack.c.l.b16 %v5814
    %v6349 = vunpack.c.h.b16 %v5814
    %v6350 = vunpack.c.l.b16 %v5815
    %v6351 = vunpack.c.l.b16 %v5816
    %v6352 = vunpack.c.h.b16 %v5816
    %v6353 = vunpack.c.l.b16 %v5817
    %v6354 = vunpack.c.h.b16 %v5817
    %v6355 = vunpack.c.l.b16 %v5818
    %v6356 = vunpack.c.l.b16 %v5819
    %v6357 = vunpack.c.h.b16 %v5819
    %v6358 = vunpack.c.l.b16 %v5820
    %v6359 = vunpack.c.h.b16 %v5820
    %v6360 = vunpack.c.l.b16 %v5821
    %v6361 = vunpack.c.l.b16 %v5822
    %v6362 = vunpack.c.h.b16 %v5822
    %v6363 = vunpack.c.l.b16 %v5823
    %v6364 = vunpack.c.h.b16 %v5823
    %v6365 = vunpack.c.l.b16 %v5824
    %v6366 = vunpack.c.l.b16 %v5825
    %v6367 = vunpack.c.h.b16 %v5825
    %v6368 = vunpack.c.l.b16 %v5826
    %v6369 = vunpack.c.h.b16 %v5826
    %v6370 = vunpack.c.l.b16 %v5827
    %v6371 = vunpack.c.l.b16 %v5828
    %v6372 = vunpack.c.h.b16 %v5828
    %v6373 = vunpack.c.l.b16 %v5829
    %v6374 = vunpack.c.h.b16 %v5829
    %v6375 = vunpack.c.l.b16 %v5830
    %v6376 = vunpack.c.l.b16 %v5831
    %v6377 = vunpack.c.h.b16 %v5831
    %v6378 = vunpack.c.l.b16 %v5832
    %v6379 = vunpack.c.h.b16 %v5832
    %v6380 = vunpack.c.l.b16 %v5833
    %v6381 = vunpack.c.l.b16 %v5834
    %v6382 = vunpack.c.h.b16 %v5834
    %v6383 = vunpack.c.l.b16 %v5835
    %v6384 = vunpack.c.h.b16 %v5835
    %v6385 = vunpack.c.l.b16 %v5836
    %v6386 = vunpack.c.l.b16 %v5837
    %v6387 = vunpack.c.h.b16 %v5837
    %v6388 = vunpack.c.l.b16 %v5838
    %v6389 = vunpack.c.h.b16 %v5838
    %v6390 = vunpack.c.l.b16 %v5839
    %v6391 = vunpack.c.l.b16 %v5840
    %v6392 = vunpack.c.h.b16 %v5840
    %v6393 = vunpack.c.l.b16 %v5841
    %v6394 = vunpack.c.h.b16 %v5841
    %v6395 = vunpack.c.l.b16 %v5842
    %v6396 = vunpack.c.l.b16 %v5843
    %v6397 = vunpack.c.h.b16 %v5843
    %v6398 = vunpack.c.l.b16 %v5844
    %v6399 = vunpack.c.h.b16 %v5844
    %v6400 = vunpack.c.l.b16 %v5845
    %v6401 = vunpack.c.l.b16 %v5846
    %v6402 = vunpack.c.h.b16 %v5846
    %v6403 = vunpack.c.l.b16 %v5847
    %v6404 = vunpack.c.h.b16 %v5847
    %v6405 = vunpack.c.l.b16 %v5848
    %v6406 = vunpack.c.l.b16 %v5849
    %v6407 = vunpack.c.h.b16 %v5849
    %v6408 = vunpack.c.l.b16 %v5850
    %v6409 = vunpack.c.h.b16 %v5850
    %v6410 = vunpack.c.l.b16 %v5851
    %v6411 = vunpack.c.l.b16 %v5852
    %v6412 = vunpack.c.h.b16 %v5852
    %v6413 = vunpack.c.l.b16 %v5853
    %v6414 = vunpack.c.h.b16 %v5853
    %v6415 = vunpack.c.l.b16 %v5854
    %v6416 = vunpack.c.l.b16 %v5855
    %v6417 = vunpack.c.h.b16 %v5855
    %v6418 = vunpack.c.l.b16 %v5856
    %v6419 = vunpack.c.h.b16 %v5856
    %v6420 = vunpack.c.l.b16 %v5857
    %v6421 = vunpack.c.l.b16 %v5858
    %v6422 = vunpack.c.h.b16 %v5858
    %v6423 = vunpack.c.l.b16 %v5859
    %v6424 = vunpack.c.h.b16 %v5859
    %v6425 = vunpack.c.l.b16 %v5860
    %v6426 = vunpack.c.l.b16 %v5861
    %v6427 = vunpack.c.h.b16 %v5861
    %v6428 = vunpack.c.l.b16 %v5862
    %v6429 = vunpack.c.h.b16 %v5862
    %v6430 = vunpack.c.l.b16 %v5863
    %v6431 = vunpack.c.l.b16 %v5864
    %v6432 = vunpack.c.h.b16 %v5864
    %v6433 = vunpack.c.l.b16 %v5865
    %v6434 = vunpack.c.h.b16 %v5865
    %v6435 = vunpack.c.l.b16 %v5866
    %v6436 = vunpack.c.l.b16 %v5867
    %v6437 = vunpack.c.h.b16 %v5867
    %v6438 = vunpack.c.l.b16 %v5868
    %v6439 = vunpack.c.h.b16 %v5868
    %v6440 = vunpack.c.l.b16 %v5869
    %v6441 = vunpack.c.l.b16 %v5870
    %v6442 = vunpack.c.h.b16 %v5870
    %v6443 = vunpack.c.l.b16 %v5871
    %v6444 = vunpack.c.h.b16 %v5871
    %v6445 = vunpack.c.l.b16 %v5872
    %v6446 = vunpack.c.l.b16 %v5873
    %v6447 = vunpack.c.h.b16 %v5873
    %v6448 = vunpack.c.l.b16 %v5874
    %v6449 = vunpack.c.h.b16 %v5874
    %v6450 = vunpack.c.l.b16 %v5875
    %v6451 = vunpack.c.l.b16 %v5876
    %v6452 = vunpack.c.h.b16 %v5876
    %v6453 = vunpack.c.l.b16 %v5877
    %v6454 = vunpack.c.h.b16 %v5877
    %v6455 = vunpack.c.l.b16 %v5878
    %v6456 = vunpack.c.l.b16 %v5879
    %v6457 = vunpack.c.h.b16 %v5879
    %v6458 = vunpack.c.l.b16 %v5880
    %v6459 = vunpack.c.h.b16 %v5880
    %v6460 = vunpack.c.l.b16 %v5881
    %v6461 = vunpack.c.l.b16 %v5882
    %v6462 = vunpack.c.h.b16 %v5882
    %v6463 = vunpack.c.l.b16 %v5883
    %v6464 = vunpack.c.h.b16 %v5883
    %v6465 = vunpack.c.l.b16 %v5884
    %v6466 = vunpack.c.l.b16 %v5885
    %v6467 = vunpack.c.h.b16 %v5885
    %v6468 = vunpack.c.l.b16 %v5886
    %v6469 = vunpack.c.h.b16 %v5886
    %v6470 = vunpack.c.l.b16 %v5887
    %v6471 = vunpack.c.l.b16 %v5888
    %v6472 = vunpack.c.h.b16 %v5888
    %v6473 = vunpack.c.l.b16 %v5889
    %v6474 = vunpack.c.h.b16 %v5889
    %v6475 = vunpack.c.l.b16 %v5890
    %v6476 = vunpack.c.l.b16 %v5891
    %v6477 = vunpack.c.h.b16 %v5891
    %v6478 = vunpack.c.l.b16 %v5892
    %v6479 = vunpack.c.h.b16 %v5892
    %v6480 = vunpack.c.l.b16 %v5893
    %v6481 = vunpack.c.l.b16 %v5894
    %v6482 = vunpack.c.h.b16 %v5894
    %v6483 = vunpack.c.l.b16 %v5895
    %v6484 = vunpack.c.h.b16 %v5895
    %v6485 = vunpack.c.l.b16 %v5896
    %v6486 = vunpack.c.l.b16 %v5897
    %v6487 = vunpack.c.h.b16 %v5897
    %v6488 = vunpack.c.l.b16 %v5898
    %v6489 = vunpack.c.h.b16 %v5898
    %v6490 = vunpack.c.l.b16 %v5899
    %v6491 = vunpack.c.l.b16 %v5900
    %v6492 = vunpack.c.h.b16 %v5900
    %v6493 = vunpack.c.l.b16 %v5901
    %v6494 = vunpack.c.h.b16 %v5901
    %v6495 = vunpack.c.l.b16 %v5902
    %v6496 = vunpack.c.l.b16 %v5903
    %v6497 = vunpack.c.h.b16 %v5903
    %v6498 = vunpack.c.l.b16 %v5904
    %v6499 = vunpack.c.h.b16 %v5904
    %v6500 = vunpack.c.l.b16 %v5905
    %v6501 = vunpack.c.l.b16 %v5906
    %v6502 = vunpack.c.h.b16 %v5906
    %v6503 = vunpack.c.l.b16 %v5907
    %v6504 = vunpack.c.h.b16 %v5907
    %v6505 = vunpack.c.l.b16 %v5908
    %v6506 = vunpack.c.l.b16 %v5909
    %v6507 = vunpack.c.h.b16 %v5909
    %v6508 = vunpack.c.l.b16 %v5910
    %v6509 = vunpack.c.h.b16 %v5910
    %v6510 = vunpack.c.l.b16 %v5911
    %v6511 = vunpack.c.l.b16 %v5912
    %v6512 = vunpack.c.h.b16 %v5912
    %v6513 = vunpack.c.l.b16 %v5913
    %v6514 = vunpack.c.h.b16 %v5913
    %v6515 = vunpack.c.l.b16 %v5914
    %v6516 = vunpack.c.l.b16 %v5915
    %v6517 = vunpack.c.h.b16 %v5915
    %v6518 = vunpack.c.l.b16 %v5916
    %v6519 = vunpack.c.h.b16 %v5916
    %v6520 = vunpack.c.l.b16 %v5917
    %v6521 = vunpack.c.l.b16 %v5918
    %v6522 = vunpack.c.h.b16 %v5918
    %v6523 = vunpack.c.l.b16 %v5919
    %v6524 = vunpack.c.h.b16 %v5919
    %v6525 = vunpack.c.l.b16 %v5920
    %v6526 = vunpack.c.l.b16 %v5921
    %v6527 = vunpack.c.h.b16 %v5921
    %v6528 = vunpack.c.l.b16 %v5922
    %v6529 = vunpack.c.h.b16 %v5922
    %v6530 = vunpack.c.l.b16 %v5923
    %v6531 = vunpack.c.l.b16 %v5924
    %v6532 = vunpack.c.h.b16 %v5924
    %v6533 = vunpack.c.l.b16 %v5925
    %v6534 = vunpack.c.h.b16 %v5925
    %v6535 = vunpack.c.l.b16 %v5926
    %v6536 = vunpack.c.l.b16 %v5927
    %v6537 = vunpack.c.h.b16 %v5927
    %v6538 = vunpack.c.l.b16 %v5928
    %v6539 = vunpack.c.h.b16 %v5928
    %v6540 = vunpack.c.l.b16 %v5929
    %v6541 = vunpack.c.l.b16 %v5930
    %v6542 = vunpack.c.h.b16 %v5930
    %v6543 = vunpack.c.l.b16 %v5931
    %v6544 = vunpack.c.h.b16 %v5931
    %v6545 = vunpack.c.l.b16 %v5932
    %v6546 = vunpack.c.l.b16 %v5933
    %v6547 = vunpack.c.h.b16 %v5933
    %v6548 = vunpack.c.l.b16 %v5934
    %v6549 = vunpack.c.h.b16 %v5934
    %v6550 = vunpack.c.l.b16 %v5935
    %v6551 = vunpack.c.l.b16 %v5936
    %v6552 = vunpack.c.h.b16 %v5936
    %v6553 = vunpack.c.l.b16 %v5937
    %v6554 = vunpack.c.h.b16 %v5937
    %v6555 = vunpack.c.l.b16 %v5938
    %v6556 = vunpack.c.l.b16 %v5939
    %v6557 = vunpack.c.h.b16 %v5939
    %v6558 = vunpack.c.l.b16 %v5940
    %v6559 = vunpack.c.h.b16 %v5940
    %v6560 = vunpack.c.l.b16 %v5941
    %v6561 = vunpack.c.l.b16 %v5942
    %v6562 = vunpack.c.h.b16 %v5942
    %v6563 = vunpack.c.l.b16 %v5943
    %v6564 = vunpack.c.h.b16 %v5943
    %v6565 = vunpack.c.l.b16 %v5944
    %v6566 = vunpack.c.l.b16 %v5945
    %v6567 = vunpack.c.h.b16 %v5945
    %v6568 = vunpack.c.l.b16 %v5946
    %v6569 = vunpack.c.h.b16 %v5946
    %v6570 = vunpack.c.l.b16 %v5947
    %v6571 = vunpack.c.l.b16 %v5948
    %v6572 = vunpack.c.h.b16 %v5948
    %v6573 = vunpack.c.l.b16 %v5949
    %v6574 = vunpack.c.h.b16 %v5949
    %v6575 = vunpack.c.l.b16 %v5950
    %v6576 = vunpack.c.l.b16 %v5951
    %v6577 = vunpack.c.h.b16 %v5951
    %v6578 = vunpack.c.l.b16 %v5952
    %v6579 = vunpack.c.h.b16 %v5952
    %v6580 = vunpack.c.l.b16 %v5953
    %v6581 = vunpack.c.l.b16 %v5954
    %v6582 = vunpack.c.h.b16 %v5954
    %v6583 = vunpack.c.l.b16 %v5955
    %v6584 = vunpack.c.h.b16 %v5955
    %v6585 = vunpack.c.l.b16 %v5956
    %v6586 = vunpack.c.l.b16 %v5957
    %v6587 = vunpack.c.h.b16 %v5957
    %v6588 = vunpack.c.l.b16 %v5958
    %v6589 = vunpack.c.h.b16 %v5958
    %v6590 = vunpack.c.l.b16 %v5959
    %v6591 = vunpack.c.l.b16 %v5960
    %v6592 = vunpack.c.h.b16 %v5960
    %v6593 = vunpack.c.l.b16 %v5961
    %v6594 = vunpack.c.h.b16 %v5961
    %v6595 = vunpack.c.l.b16 %v5962
    %v6596 = vunpack.c.l.b16 %v5963
    %v6597 = vunpack.c.h.b16 %v5963
    %v6598 = vunpack.c.l.b16 %v5964
    %v6599 = vunpack.c.h.b16 %v5964
    %v6600 = vunpack.c.l.b16 %v5965
    %v6601 = vunpack.c.l.b16 %v5966
    %v6602 = vunpack.c.h.b16 %v5966
    %v6603 = vunpack.c.l.b16 %v5967
    %v6604 = vunpack.c.h.b16 %v5967
    %v6605 = vunpack.c.l.b16 %v5968
    %v6606 = vunpack.c.l.b16 %v5969
    %v6607 = vunpack.c.h.b16 %v5969
    %v6608 = vunpack.c.l.b16 %v5970
    %v6609 = vunpack.c.h.b16 %v5970
    %v6610 = vunpack.c.l.b16 %v5971
    %v6611 = vunpack.c.l.b16 %v5972
    %v6612 = vunpack.c.h.b16 %v5972
    %v6613 = vunpack.c.l.b16 %v5973
    %v6614 = vunpack.c.h.b16 %v5973
    %v6615 = vunpack.c.l.b16 %v5974
    %v6616 = vunpack.c.l.b16 %v5975
    %v6617 = vunpack.c.h.b16 %v5975
    %v6618 = vunpack.c.l.b16 %v5976
    %v6619 = vunpack.c.h.b16 %v5976
    %v6620 = vunpack.c.l.b16 %v5977
    %v6621 = vunpack.c.l.b16 %v5978
    %v6622 = vunpack.c.h.b16 %v5978
    %v6623 = vunpack.c.l.b16 %v5979
    %v6624 = vunpack.c.h.b16 %v5979
    %v6625 = vunpack.c.l.b16 %v5980
    %v6626 = vunpack.c.l.b16 %v5981
    %v6627 = vunpack.c.h.b16 %v5981
    %v6628 = vunpack.c.l.b16 %v5982
    %v6629 = vunpack.c.h.b16 %v5982
    %v6630 = vunpack.c.l.b16 %v5983
    %v6631 = vunpack.c.l.b16 %v5984
    %v6632 = vunpack.c.h.b16 %v5984
    %v6633 = vunpack.c.l.b16 %v5985
    %v6634 = vunpack.c.h.b16 %v5985
    %v6635 = vunpack.c.l.b16 %v5986
    %v6636 = vunpack.c.l.b16 %v5987
    %v6637 = vunpack.c.h.b16 %v5987
    %v6638 = vunpack.c.l.b16 %v5988
    %v6639 = vunpack.c.h.b16 %v5988
    %v6640 = vunpack.c.l.b16 %v5989
    %v6641 = vunpack.c.l.b16 %v5990
    %v6642 = vunpack.c.h.b16 %v5990
    %v6643 = vunpack.c.l.b16 %v5991
    %v6644 = vunpack.c.h.b16 %v5991
    %v6645 = vunpack.c.l.b16 %v5992
    %v6646 = vunpack.c.l.b16 %v5993
    %v6647 = vunpack.c.h.b16 %v5993
    %v6648 = vunpack.c.l.b16 %v5994
    %v6649 = vunpack.c.h.b16 %v5994
    %v6650 = vunpack.c.l.b16 %v5995
    %v6651 = vunpack.c.l.b16 %v5996
    %v6652 = vunpack.c.h.b16 %v5996
    %v6653 = vunpack.c.l.b16 %v5997
    %v6654 = vunpack.c.h.b16 %v5997
    %v6655 = vunpack.c.l.b16 %v5998
    %v6656 = vunpack.c.l.b16 %v5999
    %v6657 = vunpack.c.h.b16 %v5999
    %v6658 = vunpack.c.l.b16 %v6000
    %v6659 = vunpack.c.h.b16 %v6000
    %v6660 = vunpack.c.l.b16 %v6001
    %v6661 = vunpack.c.l.b16 %v6002
    %v6662 = vunpack.c.h.b16 %v6002
    %v6663 = vunpack.c.l.b16 %v6003
    %v6664 = vunpack.c.h.b16 %v6003
    %v6665 = vunpack.c.l.b16 %v6004
    %v6666 = vunpack.c.l.b16 %v6005
    %v6667 = vunpack.c.h.b16 %v6005
    %v6668 = vunpack.c.l.b16 %v6006
    %v6669 = vunpack.c.h.b16 %v6006
    %v6670 = vunpack.c.l.b16 %v6007
    %v6671 = vunpack.c.l.b16 %v6008
    %v6672 = vunpack.c.h.b16 %v6008
    %v6673 = vunpack.c.l.b16 %v6009
    %v6674 = vunpack.c.h.b16 %v6009
    %v6675 = vunpack.c.l.b16 %v6010
    %v6676 = vunpack.c.l.b16 %v6011
    %v6677 = vunpack.c.h.b16 %v6011
    %v6678 = vunpack.c.l.b16 %v6012
    %v6679 = vunpack.c.h.b16 %v6012
    %v6680 = vunpack.c.l.b16 %v6013
    %v6681 = vpack.c.b16 %v6286, %v6281
    %v6682 = vpack.c.b16 %v6287, %v6282
    %v6683 = vpack.c.b16 %v6288, %v6283
    %v6684 = vpack.c.b16 %v6289, %v6284
    %v6685 = vpack.c.b16 %v6290, %v6285
    %v6686 = vpack.c.b16 %v6296, %v6291
    %v6687 = vpack.c.b16 %v6297, %v6292
    %v6688 = vpack.c.b16 %v6298, %v6293
    %v6689 = vpack.c.b16 %v6299, %v6294
    %v6690 = vpack.c.b16 %v6300, %v6295
    %v6691 = vpack.c.b16 %v6306, %v6301
    %v6692 = vpack.c.b16 %v6307, %v6302
    %v6693 = vpack.c.b16 %v6308, %v6303
    %v6694 = vpack.c.b16 %v6309, %v6304
    %v6695 = vpack.c.b16 %v6310, %v6305
    %v6696 = vpack.c.b16 %v6316, %v6311
    %v6697 = vpack.c.b16 %v6317, %v6312
    %v6698 = vpack.c.b16 %v6318, %v6313
    %v6699 = vpack.c.b16 %v6319, %v6314
    %v6700 = vpack.c.b16 %v6320, %v6315
    %v6701 = vpack.c.b16 %v6326, %v6321
    %v6702 = vpack.c.b16 %v6327, %v6322
    %v6703 = vpack.c.b16 %v6328, %v6323
    %v6704 = vpack.c.b16 %v6329, %v6324
    %v6705 = vpack.c.b16 %v6330, %v6325
    %v6706 = vpack.c.b16 %v6336, %v6331
    %v6707 = vpack.c.b16 %v6337, %v6332
    %v6708 = vpack.c.b16 %v6338, %v6333
    %v6709 = vpack.c.b16 %v6339, %v6334
    %v6710 = vpack.c.b16 %v6340, %v6335
    %v6711 = vpack.c.b16 %v6346, %v6341
    %v6712 = vpack.c.b16 %v6347, %v6342
    %v6713 = vpack.c.b16 %v6348, %v6343
    %v6714 = vpack.c.b16 %v6349, %v6344
    %v6715 = vpack.c.b16 %v6350, %v6345
    %v6716 = vpack.c.b16 %v6356, %v6351
    %v6717 = vpack.c.b16 %v6357, %v6352
    %v6718 = vpack.c.b16 %v6358, %v6353
    %v6719 = vpack.c.b16 %v6359, %v6354
    %v6720 = vpack.c.b16 %v6360, %v6355
    %v6721 = vpack.c.b16 %v6366, %v6361
    %v6722 = vpack.c.b16 %v6367, %v6362
    %v6723 = vpack.c.b16 %v6368, %v6363
    %v6724 = vpack.c.b16 %v6369, %v6364
    %v6725 = vpack.c.b16 %v6370, %v6365
    %v6726 = vpack.c.b16 %v6376, %v6371
    %v6727 = vpack.c.b16 %v6377, %v6372
    %v6728 = vpack.c.b16 %v6378, %v6373
    %v6729 = vpack.c.b16 %v6379, %v6374
    %v6730 = vpack.c.b16 %v6380, %v6375
    %v6731 = vpack.c.b16 %v6386, %v6381
    %v6732 = vpack.c.b16 %v6387, %v6382
    %v6733 = vpack.c.b16 %v6388, %v6383
    %v6734 = vpack.c.b16 %v6389, %v6384
    %v6735 = vpack.c.b16 %v6390, %v6385
    %v6736 = vpack.c.b16 %v6396, %v6391
    %v6737 = vpack.c.b16 %v6397, %v6392
    %v6738 = vpack.c.b16 %v6398, %v6393
    %v6739 = vpack.c.b16 %v6399, %v6394
    %v6740 = vpack.c.b16 %v6400, %v6395
    %v6741 = vpack.c.b16 %v6406, %v6401
    %v6742 = vpack.c.b16 %v6407, %v6402
    %v6743 = vpack.c.b16 %v6408, %v6403
    %v6744 = vpack.c.b16 %v6409, %v6404
    %v6745 = vpack.c.b16 %v6410, %v6405
    %v6746 = vpack.c.b16 %v6416, %v6411
    %v6747 = vpack.c.b16 %v6417, %v6412
    %v6748 = vpack.c.b16 %v6418, %v6413
    %v6749 = vpack.c.b16 %v6419, %v6414
    %v6750 = vpack.c.b16 %v6420, %v6415
    %v6751 = vpack.c.b16 %v6426, %v6421
    %v6752 = vpack.c.b16 %v6427, %v6422
    %v6753 = vpack.c.b16 %v6428, %v6423
    %v6754 = vpack.c.b16 %v6429, %v6424
    %v6755 = vpack.c.b16 %v6430, %v6425
    %v6756 = vpack.c.b16 %v6436, %v6431
    %v6757 = vpack.c.b16 %v6437, %v6432
    %v6758 = vpack.c.b16 %v6438, %v6433
    %v6759 = vpack.c.b16 %v6439, %v6434
    %v6760 = vpack.c.b16 %v6440, %v6435
    %v6761 = vpack.c.b16 %v6446, %v6441
    %v6762 = vpack.c.b16 %v6447, %v6442
    %v6763 = vpack.c.b16 %v6448, %v6443
    %v6764 = vpack.c.b16 %v6449, %v6444
    %v6765 = vpack.c.b16 %v6450, %v6445
    %v6766 = vpack.c.b16 %v6456, %v6451
    %v6767 = vpack.c.b16 %v6457, %v6452
    %v6768 = vpack.c.b16 %v6458, %v6453
    %v6769 = vpack.c.b16 %v6459, %v6454
    %v6770 = vpack.c.b16 %v6460, %v6455
    %v6771 = vpack.c.b16 %v6466, %v6461
    %v6772 = vpack.c.b16 %v6467, %v6462
    %v6773 = vpack.c.b16 %v6468, %v6463
    %v6774 = vpack.c.b16 %v6469, %v6464
    %v6775 = vpack.c.b16 %v6470, %v6465
    %v6776 = vpack.c.b16 %v6476, %v6471
    %v6777 = vpack.c.b16 %v6477, %v6472
    %v6778 = vpack.c.b16 %v6478, %v6473
    %v6779 = vpack.c.b16 %v6479, %v6474
    %v6780 = vpack.c.b16 %v6480, %v6475
    %v6781 = vpack.c.b16 %v6486, %v6481
    %v6782 = vpack.c.b16 %v6487, %v6482
    %v6783 = vpack.c.b16 %v6488, %v6483
    %v6784 = vpack.c.b16 %v6489, %v6484
    %v6785 = vpack.c.b16 %v6490, %v6485
    %v6786 = vpack.c.b16 %v6496, %v6491
    %v6787 = vpack.c.b16 %v6497, %v6492
    %v6788 = vpack.c.b16 %v6498, %v6493
    %v6789 = vpack.c.b16 %v6499, %v6494
    %v6790 = vpack.c.b16 %v6500, %v6495
    %v6791 = vpack.c.b16 %v6506, %v6501
    %v6792 = vpack.c.b16 %v6507, %v6502
    %v6793 = vpack.c.b16 %v6508, %v6503
    %v6794 = vpack.c.b16 %v6509, %v6504
    %v6795 = vpack.c.b16 %v6510, %v6505
    %v6796 = vpack.c.b16 %v6516, %v6511
    %v6797 = vpack.c.b16 %v6517, %v6512
    %v6798 = vpack.c.b16 %v6518, %v6513
    %v6799 = vpack.c.b16 %v6519, %v6514
    %v6800 = vpack.c.b16 %v6520, %v6515
    %v6801 = vpack.c.b16 %v6526, %v6521
    %v6802 = vpack.c.b16 %v6527, %v6522
    %v6803 = vpack.c.b16 %v6528, %v6523
    %v6804 = vpack.c.b16 %v6529, %v6524
    %v6805 = vpack.c.b16 %v6530, %v6525
    %v6806 = vpack.c.b16 %v6536, %v6531
    %v6807 = vpack.c.b16 %v6537, %v6532
    %v6808 = vpack.c.b16 %v6538, %v6533
    %v6809 = vpack.c.b16 %v6539, %v6534
    %v6810 = vpack.c.b16 %v6540, %v6535
    %v6811 = vpack.c.b16 %v6546, %v6541
    %v6812 = vpack.c.b16 %v6547, %v6542
    %v6813 = vpack.c.b16 %v6548, %v6543
    %v6814 = vpack.c.b16 %v6549, %v6544
    %v6815 = vpack.c.b16 %v6550, %v6545
    %v6816 = vpack.c.b16 %v6556, %v6551
    %v6817 = vpack.c.b16 %v6557, %v6552
    %v6818 = vpack.c.b16 %v6558, %v6553
    %v6819 = vpack.c.b16 %v6559, %v6554
    %v6820 = vpack.c.b16 %v6560, %v6555
    %v6821 = vpack.c.b16 %v6566, %v6561
    %v6822 = vpack.c.b16 %v6567, %v6562
    %v6823 = vpack.c.b16 %v6568, %v6563
    %v6824 = vpack.c.b16 %v6569, %v6564
    %v6825 = vpack.c.b16 %v6570, %v6565
    %v6826 = vpack.c.b16 %v6576, %v6571
    %v6827 = vpack.c.b16 %v6577, %v6572
    %v6828 = vpack.c.b16 %v6578, %v6573
    %v6829 = vpack.c.b16 %v6579, %v6574
    %v6830 = vpack.c.b16 %v6580, %v6575
    %v6831 = vpack.c.b16 %v6586, %v6581
    %v6832 = vpack.c.b16 %v6587, %v6582
    %v6833 = vpack.c.b16 %v6588, %v6583
    %v6834 = vpack.c.b16 %v6589, %v6584
    %v6835 = vpack.c.b16 %v6590, %v6585
    %v6836 = vpack.c.b16 %v6596, %v6591
    %v6837 = vpack.c.b16 %v6597, %v6592
    %v6838 = vpack.c.b16 %v6598, %v6593
    %v6839 = vpack.c.b16 %v6599, %v6594
    %v6840 = vpack.c.b16 %v6600, %v6595
    %v6841 = vpack.c.b16 %v6606, %v6601
    %v6842 = vpack.c.b16 %v6607, %v6602
    %v6843 = vpack.c.b16 %v6608, %v6603
    %v6844 = vpack.c.b16 %v6609, %v6604
    %v6845 = vpack.c.b16 %v6610, %v6605
    %v6846 = vpack.c.b16 %v6616, %v6611
    %v6847 = vpack.c.b16 %v6617, %v6612
    %v6848 = vpack.c.b16 %v6618, %v6613
    %v6849 = vpack.c.b16 %v6619, %v6614
    %v6850 = vpack.c.b16 %v6620, %v6615
    %v6851 = vpack.c.b16 %v6626, %v6621
    %v6852 = vpack.c.b16 %v6627, %v6622
    %v6853 = vpack.c.b16 %v6628, %v6623
    %v6854 = vpack.c.b16 %v6629, %v6624
    %v6855 = vpack.c.b16 %v6630, %v6625
    %v6856 = vpack.c.b16 %v6636, %v6631
    %v6857 = vpack.c.b16 %v6637, %v6632
    %v6858 = vpack.c.b16 %v6638, %v6633
    %v6859 = vpack.c.b16 %v6639, %v6634
    %v6860 = vpack.c.b16 %v6640, %v6635
    %v6861 = vpack.c.b16 %v6646, %v6641
    %v6862 = vpack.c.b16 %v6647, %v6642
    %v6863 = vpack.c.b16 %v6648, %v6643
    %v6864 = vpack.c.b16 %v6649, %v6644
    %v6865 = vpack.c.b16 %v6650, %v6645
    %v6866 = vpack.c.b16 %v6656, %v6651
    %v6867 = vpack.c.b16 %v6657, %v6652
    %v6868 = vpack.c.b16 %v6658, %v6653
    %v6869 = vpack.c.b16 %v6659, %v6654
    %v6870 = vpack.c.b16 %v6660, %v6655
    %v6871 = vpack.c.b16 %v6666, %v6661
    %v6872 = vpack.c.b16 %v6667, %v6662
    %v6873 = vpack.c.b16 %v6668, %v6663
    %v6874 = vpack.c.b16 %v6669, %v6664
    %v6875 = vpack.c.b16 %v6670, %v6665
    %v6876 = vpack.c.b16 %v6676, %v6671
    %v6877 = vpack.c.b16 %v6677, %v6672
    %v6878 = vpack.c.b16 %v6678, %v6673
    %v6879 = vpack.c.b16 %v6679, %v6674
    %v6880 = vpack.c.b16 %v6680, %v6675
    %7081 = vmatprep.subr.bf16.mxu0 %v6717
    %7082 = vmatpush1.bf16.msra.mxu0 %v6716
    %7083 = vmatprep.subr.bf16.mxu0 %v6712
    %7084 = vmatpush1.bf16.msra.mxu0 %v6711
    %7085 = vmatprep.subr.bf16.mxu0 %v6707
    %7086 = vmatpush1.bf16.msra.mxu0 %v6706
    %7087 = vmatprep.subr.bf16.mxu0 %v6702
    %7088 = vmatpush1.bf16.msra.mxu0 %v6701
    %7089 = vmatprep.subr.bf16.mxu0 %v6697
    %7090 = vmatpush1.bf16.msra.mxu0 %v6696
    %7091 = vmatprep.subr.bf16.mxu0 %v6692
    %7092 = vmatpush1.bf16.msra.mxu0 %v6691
    %7093 = vmatprep.subr.bf16.mxu0 %v6687
    %7094 = vmatpush1.bf16.msra.mxu0 %v6686
    %7095 = vmatprep.subr.bf16.mxu0 %v6682
    %7096 = vmatpush1.bf16.msra.mxu0 %v6681
    %7097 = vmatprep.subr.bf16.mxu0 %v6757
    %7098 = vmatpush2.bf16.msra.mxu0 %v6756
    %7099 = vmatprep.subr.bf16.mxu0 %v6752
    %7100 = vmatpush2.bf16.msra.mxu0 %v6751
    %7101 = vmatprep.subr.bf16.mxu0 %v6747
    %7102 = vmatpush2.bf16.msra.mxu0 %v6746
    %7103 = vmatprep.subr.bf16.mxu0 %v6742
    %7104 = vmatpush2.bf16.msra.mxu0 %v6741
    %7105 = vmatprep.subr.bf16.mxu0 %v6737
    %7106 = vmatpush2.bf16.msra.mxu0 %v6736
    %7107 = vmatprep.subr.bf16.mxu0 %v6732
    %7108 = vmatpush2.bf16.msra.mxu0 %v6731
    %7109 = vmatprep.subr.bf16.mxu0 %v6727
    %7110 = vmatpush2.bf16.msra.mxu0 %v6726
    %7111 = vmatprep.subr.bf16.mxu0 %v6722
    %7112 = vmatpush2.bf16.msra.mxu0 %v6721
    %7113 = vmatprep.mubr.bf16.mxu0 %v5770
    %7114 = vmatmul.mubr.bf16.gmra.mxu0 %v5769
    %v7115 = vpop.f32.mrf.mxu0
    %v7116 = vadd.f32 %v6019, %v7115
    %v7117 = vpop.f32.mrf.mxu0
    %v7118 = vadd.f32 %v6023, %v7117
    %v7119 = vpop.f32.mrf.mxu0
    %v7120 = vpop.f32.mrf.mxu0
    %7121 = vdwg.mxu0
    %7122 = vmatprep.subr.bf16.mxu0 %v6797
    %7123 = vmatpush1.bf16.msra.mxu0 %v6796
    %7124 = vmatprep.subr.bf16.mxu0 %v6792
    %7125 = vmatpush1.bf16.msra.mxu0 %v6791
    %7126 = vmatprep.subr.bf16.mxu0 %v6787
    %7127 = vmatpush1.bf16.msra.mxu0 %v6786
    %7128 = vmatprep.subr.bf16.mxu0 %v6782
    %7129 = vmatpush1.bf16.msra.mxu0 %v6781
    %7130 = vmatprep.subr.bf16.mxu0 %v6777
    %7131 = vmatpush1.bf16.msra.mxu0 %v6776
    %7132 = vmatprep.subr.bf16.mxu0 %v6772
    %7133 = vmatpush1.bf16.msra.mxu0 %v6771
    %7134 = vmatprep.subr.bf16.mxu0 %v6767
    %7135 = vmatpush1.bf16.msra.mxu0 %v6766
    %7136 = vmatprep.subr.bf16.mxu0 %v6762
    %7137 = vmatpush1.bf16.msra.mxu0 %v6761
    %7138 = vmatprep.subr.bf16.mxu0 %v6837
    %7139 = vmatpush2.bf16.msra.mxu0 %v6836
    %7140 = vmatprep.subr.bf16.mxu0 %v6832
    %7141 = vmatpush2.bf16.msra.mxu0 %v6831
    %7142 = vmatprep.subr.bf16.mxu0 %v6827
    %7143 = vmatpush2.bf16.msra.mxu0 %v6826
    %7144 = vmatprep.subr.bf16.mxu0 %v6822
    %7145 = vmatpush2.bf16.msra.mxu0 %v6821
    %7146 = vmatprep.subr.bf16.mxu0 %v6817
    %7147 = vmatpush2.bf16.msra.mxu0 %v6816
    %7148 = vmatprep.subr.bf16.mxu0 %v6812
    %7149 = vmatpush2.bf16.msra.mxu0 %v6811
    %7150 = vmatprep.subr.bf16.mxu0 %v6807
    %7151 = vmatpush2.bf16.msra.mxu0 %v6806
    %7152 = vmatprep.subr.bf16.mxu0 %v6802
    %7153 = vmatpush2.bf16.msra.mxu0 %v6801
    %7154 = vmatprep.mubr.bf16.mxu0 %v5772
    %7155 = vmatmul.mubr.bf16.gmra.mxu0 %v5771
    %v7156 = vpop.f32.mrf.mxu0
    %v7157 = vadd.f32 %v7116, %v7156
    %v7158 = vpop.f32.mrf.mxu0
    %v7159 = vadd.f32 %v7118, %v7158
    %v7160 = vpop.f32.mrf.mxu0
    %v7161 = vpop.f32.mrf.mxu0
    %7162 = vdwg.mxu0
    %7163 = vmatprep.subr.bf16.mxu0 %v6877
    %7164 = vmatpush1.bf16.msra.mxu0 %v6876
    %7165 = vmatprep.subr.bf16.mxu0 %v6872
    %7166 = vmatpush1.bf16.msra.mxu0 %v6871
    %7167 = vmatprep.subr.bf16.mxu0 %v6867
    %7168 = vmatpush1.bf16.msra.mxu0 %v6866
    %7169 = vmatprep.subr.bf16.mxu0 %v6862
    %7170 = vmatpush1.bf16.msra.mxu0 %v6861
    %7171 = vmatprep.subr.bf16.mxu0 %v6857
    %7172 = vmatpush1.bf16.msra.mxu0 %v6856
    %7173 = vmatprep.subr.bf16.mxu0 %v6852
    %7174 = vmatpush1.bf16.msra.mxu0 %v6851
    %7175 = vmatprep.subr.bf16.mxu0 %v6847
    %7176 = vmatpush1.bf16.msra.mxu0 %v6846
    %7177 = vmatprep.subr.bf16.mxu0 %v6842
    %7178 = vmatpush1.bf16.msra.mxu0 %v6841
    %7179 = vmatprep.subr.bf16.mxu0 0
    %7180 = vmatpush2.bf16.msra.mxu0 0
    %7181 = vmatprep.subr.bf16.mxu0 0
    %7182 = vmatpush2.bf16.msra.mxu0 0
    %7183 = vmatprep.subr.bf16.mxu0 0
    %7184 = vmatpush2.bf16.msra.mxu0 0
    %7185 = vmatprep.subr.bf16.mxu0 0
    %7186 = vmatpush2.bf16.msra.mxu0 0
    %7187 = vmatprep.subr.bf16.mxu0 0
    %7188 = vmatpush2.bf16.msra.mxu0 0
    %7189 = vmatprep.subr.bf16.mxu0 0
    %7190 = vmatpush2.bf16.msra.mxu0 0
    %7191 = vmatprep.subr.bf16.mxu0 0
    %7192 = vmatpush2.bf16.msra.mxu0 0
    %7193 = vmatprep.subr.bf16.mxu0 0
    %7194 = vmatpush2.bf16.msra.mxu0 0
    %7195 = vmatprep.mubr.bf16.mxu0 0
    %7196 = vmatmul.mubr.bf16.gmra.mxu0 %v5773
    %v7197 = vpop.f32.mrf.mxu0
    %v7198 = vadd.f32 %v7157, %v7197
    %v7199 = vpop.f32.mrf.mxu0
    %v7200 = vadd.f32 %v7159, %v7199
    %v7201 = vpop.f32.mrf.mxu0
    %v7202 = vpop.f32.mrf.mxu0
    %7203 = vdwg.mxu0
    %7204 = vmatprep.subr.bf16.mxu0 %v6719
    %7205 = vmatpush1.bf16.msra.mxu0 %v6718
    %7206 = vmatprep.subr.bf16.mxu0 %v6714
    %7207 = vmatpush1.bf16.msra.mxu0 %v6713
    %7208 = vmatprep.subr.bf16.mxu0 %v6709
    %7209 = vmatpush1.bf16.msra.mxu0 %v6708
    %7210 = vmatprep.subr.bf16.mxu0 %v6704
    %7211 = vmatpush1.bf16.msra.mxu0 %v6703
    %7212 = vmatprep.subr.bf16.mxu0 %v6699
    %7213 = vmatpush1.bf16.msra.mxu0 %v6698
    %7214 = vmatprep.subr.bf16.mxu0 %v6694
    %7215 = vmatpush1.bf16.msra.mxu0 %v6693
    %7216 = vmatprep.subr.bf16.mxu0 %v6689
    %7217 = vmatpush1.bf16.msra.mxu0 %v6688
    %7218 = vmatprep.subr.bf16.mxu0 %v6684
    %7219 = vmatpush1.bf16.msra.mxu0 %v6683
    %7220 = vmatprep.subr.bf16.mxu0 %v6759
    %7221 = vmatpush2.bf16.msra.mxu0 %v6758
    %7222 = vmatprep.subr.bf16.mxu0 %v6754
    %7223 = vmatpush2.bf16.msra.mxu0 %v6753
    %7224 = vmatprep.subr.bf16.mxu0 %v6749
    %7225 = vmatpush2.bf16.msra.mxu0 %v6748
    %7226 = vmatprep.subr.bf16.mxu0 %v6744
    %7227 = vmatpush2.bf16.msra.mxu0 %v6743
    %7228 = vmatprep.subr.bf16.mxu0 %v6739
    %7229 = vmatpush2.bf16.msra.mxu0 %v6738
    %7230 = vmatprep.subr.bf16.mxu0 %v6734
    %7231 = vmatpush2.bf16.msra.mxu0 %v6733
    %7232 = vmatprep.subr.bf16.mxu0 %v6729
    %7233 = vmatpush2.bf16.msra.mxu0 %v6728
    %7234 = vmatprep.subr.bf16.mxu0 %v6724
    %7235 = vmatpush2.bf16.msra.mxu0 %v6723
    %7236 = vmatprep.mubr.bf16.mxu0 %v5770
    %7237 = vmatmul.mubr.bf16.gmra.mxu0 %v5769
    %v7238 = vpop.f32.mrf.mxu0
    %v7239 = vadd.f32 %v6027, %v7238
    %v7240 = vpop.f32.mrf.mxu0
    %v7241 = vadd.f32 %v6031, %v7240
    %v7242 = vpop.f32.mrf.mxu0
    %v7243 = vpop.f32.mrf.mxu0
    %7244 = vdwg.mxu0
    %7245 = vmatprep.subr.bf16.mxu0 %v6799
    %7246 = vmatpush1.bf16.msra.mxu0 %v6798
    %7247 = vmatprep.subr.bf16.mxu0 %v6794
    %7248 = vmatpush1.bf16.msra.mxu0 %v6793
    %7249 = vmatprep.subr.bf16.mxu0 %v6789
    %7250 = vmatpush1.bf16.msra.mxu0 %v6788
    %7251 = vmatprep.subr.bf16.mxu0 %v6784
    %7252 = vmatpush1.bf16.msra.mxu0 %v6783
    %7253 = vmatprep.subr.bf16.mxu0 %v6779
    %7254 = vmatpush1.bf16.msra.mxu0 %v6778
    %7255 = vmatprep.subr.bf16.mxu0 %v6774
    %7256 = vmatpush1.bf16.msra.mxu0 %v6773
    %7257 = vmatprep.subr.bf16.mxu0 %v6769
    %7258 = vmatpush1.bf16.msra.mxu0 %v6768
    %7259 = vmatprep.subr.bf16.mxu0 %v6764
    %7260 = vmatpush1.bf16.msra.mxu0 %v6763
    %7261 = vmatprep.subr.bf16.mxu0 %v6839
    %7262 = vmatpush2.bf16.msra.mxu0 %v6838
    %7263 = vmatprep.subr.bf16.mxu0 %v6834
    %7264 = vmatpush2.bf16.msra.mxu0 %v6833
    %7265 = vmatprep.subr.bf16.mxu0 %v6829
    %7266 = vmatpush2.bf16.msra.mxu0 %v6828
    %7267 = vmatprep.subr.bf16.mxu0 %v6824
    %7268 = vmatpush2.bf16.msra.mxu0 %v6823
    %7269 = vmatprep.subr.bf16.mxu0 %v6819
    %7270 = vmatpush2.bf16.msra.mxu0 %v6818
    %7271 = vmatprep.subr.bf16.mxu0 %v6814
    %7272 = vmatpush2.bf16.msra.mxu0 %v6813
    %7273 = vmatprep.subr.bf16.mxu0 %v6809
    %7274 = vmatpush2.bf16.msra.mxu0 %v6808
    %7275 = vmatprep.subr.bf16.mxu0 %v6804
    %7276 = vmatpush2.bf16.msra.mxu0 %v6803
    %7277 = vmatprep.mubr.bf16.mxu0 %v5772
    %7278 = vmatmul.mubr.bf16.gmra.mxu0 %v5771
    %v7279 = vpop.f32.mrf.mxu0
    %v7280 = vadd.f32 %v7239, %v7279
    %v7281 = vpop.f32.mrf.mxu0
    %v7282 = vadd.f32 %v7241, %v7281
    %v7283 = vpop.f32.mrf.mxu0
    %v7284 = vpop.f32.mrf.mxu0
    %7285 = vdwg.mxu0
    %7286 = vmatprep.subr.bf16.mxu0 %v6879
    %7287 = vmatpush1.bf16.msra.mxu0 %v6878
    %7288 = vmatprep.subr.bf16.mxu0 %v6874
    %7289 = vmatpush1.bf16.msra.mxu0 %v6873
    %7290 = vmatprep.subr.bf16.mxu0 %v6869
    %7291 = vmatpush1.bf16.msra.mxu0 %v6868
    %7292 = vmatprep.subr.bf16.mxu0 %v6864
    %7293 = vmatpush1.bf16.msra.mxu0 %v6863
    %7294 = vmatprep.subr.bf16.mxu0 %v6859
    %7295 = vmatpush1.bf16.msra.mxu0 %v6858
    %7296 = vmatprep.subr.bf16.mxu0 %v6854
    %7297 = vmatpush1.bf16.msra.mxu0 %v6853
    %7298 = vmatprep.subr.bf16.mxu0 %v6849
    %7299 = vmatpush1.bf16.msra.mxu0 %v6848
    %7300 = vmatprep.subr.bf16.mxu0 %v6844
    %7301 = vmatpush1.bf16.msra.mxu0 %v6843
    %7302 = vmatprep.subr.bf16.mxu0 0
    %7303 = vmatpush2.bf16.msra.mxu0 0
    %7304 = vmatprep.subr.bf16.mxu0 0
    %7305 = vmatpush2.bf16.msra.mxu0 0
    %7306 = vmatprep.subr.bf16.mxu0 0
    %7307 = vmatpush2.bf16.msra.mxu0 0
    %7308 = vmatprep.subr.bf16.mxu0 0
    %7309 = vmatpush2.bf16.msra.mxu0 0
    %7310 = vmatprep.subr.bf16.mxu0 0
    %7311 = vmatpush2.bf16.msra.mxu0 0
    %7312 = vmatprep.subr.bf16.mxu0 0
    %7313 = vmatpush2.bf16.msra.mxu0 0
    %7314 = vmatprep.subr.bf16.mxu0 0
    %7315 = vmatpush2.bf16.msra.mxu0 0
    %7316 = vmatprep.subr.bf16.mxu0 0
    %7317 = vmatpush2.bf16.msra.mxu0 0
    %7318 = vmatprep.mubr.bf16.mxu0 0
    %7319 = vmatmul.mubr.bf16.gmra.mxu0 %v5773
    %v7320 = vpop.f32.mrf.mxu0
    %v7321 = vadd.f32 %v7280, %v7320
    %v7322 = vpop.f32.mrf.mxu0
    %v7323 = vadd.f32 %v7282, %v7322
    %v7324 = vpop.f32.mrf.mxu0
    %v7325 = vpop.f32.mrf.mxu0
    %7326 = vdwg.mxu0
    %7327 = vmatprep.subr.bf16.mxu0 0
    %7328 = vmatpush1.bf16.msra.mxu0 %v6720
    %7329 = vmatprep.subr.bf16.mxu0 0
    %7330 = vmatpush1.bf16.msra.mxu0 %v6715
    %7331 = vmatprep.subr.bf16.mxu0 0
    %7332 = vmatpush1.bf16.msra.mxu0 %v6710
    %7333 = vmatprep.subr.bf16.mxu0 0
    %7334 = vmatpush1.bf16.msra.mxu0 %v6705
    %7335 = vmatprep.subr.bf16.mxu0 0
    %7336 = vmatpush1.bf16.msra.mxu0 %v6700
    %7337 = vmatprep.subr.bf16.mxu0 0
    %7338 = vmatpush1.bf16.msra.mxu0 %v6695
    %7339 = vmatprep.subr.bf16.mxu0 0
    %7340 = vmatpush1.bf16.msra.mxu0 %v6690
    %7341 = vmatprep.subr.bf16.mxu0 0
    %7342 = vmatpush1.bf16.msra.mxu0 %v6685
    %7343 = vmatprep.subr.bf16.mxu0 0
    %7344 = vmatpush2.bf16.msra.mxu0 %v6760
    %7345 = vmatprep.subr.bf16.mxu0 0
    %7346 = vmatpush2.bf16.msra.mxu0 %v6755
    %7347 = vmatprep.subr.bf16.mxu0 0
    %7348 = vmatpush2.bf16.msra.mxu0 %v6750
    %7349 = vmatprep.subr.bf16.mxu0 0
    %7350 = vmatpush2.bf16.msra.mxu0 %v6745
    %7351 = vmatprep.subr.bf16.mxu0 0
    %7352 = vmatpush2.bf16.msra.mxu0 %v6740
    %7353 = vmatprep.subr.bf16.mxu0 0
    %7354 = vmatpush2.bf16.msra.mxu0 %v6735
    %7355 = vmatprep.subr.bf16.mxu0 0
    %7356 = vmatpush2.bf16.msra.mxu0 %v6730
    %7357 = vmatprep.subr.bf16.mxu0 0
    %7358 = vmatpush2.bf16.msra.mxu0 %v6725
    %7359 = vmatprep.mubr.bf16.mxu0 %v5770
    %7360 = vmatmul.mubr.bf16.gmra.mxu0 %v5769
    %v7361 = vpop.f32.mrf.mxu0
    %v7362 = vadd.f32 %v6035, %v7361
    %v7363 = vpop.f32.mrf.mxu0
    %v7364 = vpop.f32.mrf.mxu0
    %v7365 = vpop.f32.mrf.mxu0
    %7366 = vdwg.mxu0
    %7367 = vmatprep.subr.bf16.mxu0 0
    %7368 = vmatpush1.bf16.msra.mxu0 %v6800
    %7369 = vmatprep.subr.bf16.mxu0 0
    %7370 = vmatpush1.bf16.msra.mxu0 %v6795
    %7371 = vmatprep.subr.bf16.mxu0 0
    %7372 = vmatpush1.bf16.msra.mxu0 %v6790
    %7373 = vmatprep.subr.bf16.mxu0 0
    %7374 = vmatpush1.bf16.msra.mxu0 %v6785
    %7375 = vmatprep.subr.bf16.mxu0 0
    %7376 = vmatpush1.bf16.msra.mxu0 %v6780
    %7377 = vmatprep.subr.bf16.mxu0 0
    %7378 = vmatpush1.bf16.msra.mxu0 %v6775
    %7379 = vmatprep.subr.bf16.mxu0 0
    %7380 = vmatpush1.bf16.msra.mxu0 %v6770
    %7381 = vmatprep.subr.bf16.mxu0 0
    %7382 = vmatpush1.bf16.msra.mxu0 %v6765
    %7383 = vmatprep.subr.bf16.mxu0 0
    %7384 = vmatpush2.bf16.msra.mxu0 %v6840
    %7385 = vmatprep.subr.bf16.mxu0 0
    %7386 = vmatpush2.bf16.msra.mxu0 %v6835
    %7387 = vmatprep.subr.bf16.mxu0 0
    %7388 = vmatpush2.bf16.msra.mxu0 %v6830
    %7389 = vmatprep.subr.bf16.mxu0 0
    %7390 = vmatpush2.bf16.msra.mxu0 %v6825
    %7391 = vmatprep.subr.bf16.mxu0 0
    %7392 = vmatpush2.bf16.msra.mxu0 %v6820
    %7393 = vmatprep.subr.bf16.mxu0 0
    %7394 = vmatpush2.bf16.msra.mxu0 %v6815
    %7395 = vmatprep.subr.bf16.mxu0 0
    %7396 = vmatpush2.bf16.msra.mxu0 %v6810
    %7397 = vmatprep.subr.bf16.mxu0 0
    %7398 = vmatpush2.bf16.msra.mxu0 %v6805
    %7399 = vmatprep.mubr.bf16.mxu0 %v5772
    %7400 = vmatmul.mubr.bf16.gmra.mxu0 %v5771
    %v7401 = vpop.f32.mrf.mxu0
    %v7402 = vadd.f32 %v7362, %v7401
    %v7403 = vpop.f32.mrf.mxu0
    %v7404 = vpop.f32.mrf.mxu0
    %v7405 = vpop.f32.mrf.mxu0
    %7406 = vdwg.mxu0
    %7407 = vmatprep.subr.bf16.mxu0 0
    %7408 = vmatpush1.bf16.msra.mxu0 %v6880
    %7409 = vmatprep.subr.bf16.mxu0 0
    %7410 = vmatpush1.bf16.msra.mxu0 %v6875
    %7411 = vmatprep.subr.bf16.mxu0 0
    %7412 = vmatpush1.bf16.msra.mxu0 %v6870
    %7413 = vmatprep.subr.bf16.mxu0 0
    %7414 = vmatpush1.bf16.msra.mxu0 %v6865
    %7415 = vmatprep.subr.bf16.mxu0 0
    %7416 = vmatpush1.bf16.msra.mxu0 %v6860
    %7417 = vmatprep.subr.bf16.mxu0 0
    %7418 = vmatpush1.bf16.msra.mxu0 %v6855
    %7419 = vmatprep.subr.bf16.mxu0 0
    %7420 = vmatpush1.bf16.msra.mxu0 %v6850
    %7421 = vmatprep.subr.bf16.mxu0 0
    %7422 = vmatpush1.bf16.msra.mxu0 %v6845
    %7423 = vmatprep.subr.bf16.mxu0 0
    %7424 = vmatpush2.bf16.msra.mxu0 0
    %7425 = vmatprep.subr.bf16.mxu0 0
    %7426 = vmatpush2.bf16.msra.mxu0 0
    %7427 = vmatprep.subr.bf16.mxu0 0
    %7428 = vmatpush2.bf16.msra.mxu0 0
    %7429 = vmatprep.subr.bf16.mxu0 0
    %7430 = vmatpush2.bf16.msra.mxu0 0
    %7431 = vmatprep.subr.bf16.mxu0 0
    %7432 = vmatpush2.bf16.msra.mxu0 0
    %7433 = vmatprep.subr.bf16.mxu0 0
    %7434 = vmatpush2.bf16.msra.mxu0 0
    %7435 = vmatprep.subr.bf16.mxu0 0
    %7436 = vmatpush2.bf16.msra.mxu0 0
    %7437 = vmatprep.subr.bf16.mxu0 0
    %7438 = vmatpush2.bf16.msra.mxu0 0
    %7439 = vmatprep.mubr.bf16.mxu0 0
    %7440 = vmatmul.mubr.bf16.gmra.mxu0 %v5773
    %v7441 = vpop.f32.mrf.mxu0
    %v7442 = vadd.f32 %v7402, %v7441
    %v7443 = vpop.f32.mrf.mxu0
    %v7444 = vpop.f32.mrf.mxu0
    %v7445 = vpop.f32.mrf.mxu0
    %7446 = vdwg.mxu0
    %v7447 = vmax.f32 %v7198, 0.0
    %v7448 = vmax.f32 %v7200, 0.0
    %v7449 = vmax.f32 %v7321, 0.0
    %v7450 = vmax.f32 %v7323, 0.0
    %v7451 = vmax.f32 %v7442, 0.0
    %v7452 = vand.u32 2147483647, %v7198
    %v7453 = vand.u32 2147483647, %v7200
    %v7454 = vand.u32 2147483647, %v7321
    %v7455 = vand.u32 2147483647, %v7323
    %v7456 = vand.u32 2147483647, %v7442
    %v7457 = vsub.f32 0.0, %v7452
    %v7458 = vsub.f32 0.0, %v7453
    %v7459 = vsub.f32 0.0, %v7454
    %v7460 = vsub.f32 0.0, %v7455
    %v7461 = vsub.f32 0.0, %v7456
    %v7462 = vmul.f32 %v7457, 1.442695
    %v7463 = vpow.pop %v7462
    %v7464 = vmul.f32 %v7458, 1.442695
    %v7465 = vpow.pop %v7464
    %v7466 = vmul.f32 %v7459, 1.442695
    %v7467 = vpow.pop %v7466
    %v7468 = vmul.f32 %v7460, 1.442695
    %v7469 = vpow.pop %v7468
    %v7470 = vmul.f32 %v7461, 1.442695
    %v7471 = vpow.pop %v7470
    %v7472 = vadd.f32 %v7463, 1.0
    %v7473 = vlog2.pop %v7472
    %v7474 = vmul.f32 %v7473, 0.6931472
    %v7475 = vmul.f32 -0.5, %v7463
    %v7476 = vadd.f32 %v7475, 1.0
    %v7477 = vmul.f32 %v7476, %v7463
    %v7478 = vand.u32 2147483647, %v7463
    %vm7479 = vcmp.lt.f32.partialorder %v7478, 0.0004427343
    %v7480 = vsel %vm7479, %v7477, %v7474
    %v7481 = vadd.f32 %v7465, 1.0
    %v7482 = vlog2.pop %v7481
    %v7483 = vmul.f32 %v7482, 0.6931472
    %v7484 = vmul.f32 -0.5, %v7465
    %v7485 = vadd.f32 %v7484, 1.0
    %v7486 = vmul.f32 %v7485, %v7465
    %v7487 = vand.u32 2147483647, %v7465
    %vm7488 = vcmp.lt.f32.partialorder %v7487, 0.0004427343
    %v7489 = vsel %vm7488, %v7486, %v7483
    %v7490 = vadd.f32 %v7467, 1.0
    %v7491 = vlog2.pop %v7490
    %v7492 = vmul.f32 %v7491, 0.6931472
    %v7493 = vmul.f32 -0.5, %v7467
    %v7494 = vadd.f32 %v7493, 1.0
    %v7495 = vmul.f32 %v7494, %v7467
    %v7496 = vand.u32 2147483647, %v7467
    %vm7497 = vcmp.lt.f32.partialorder %v7496, 0.0004427343
    %v7498 = vsel %vm7497, %v7495, %v7492
    %v7499 = vadd.f32 %v7469, 1.0
    %v7500 = vlog2.pop %v7499
    %v7501 = vmul.f32 %v7500, 0.6931472
    %v7502 = vmul.f32 -0.5, %v7469
    %v7503 = vadd.f32 %v7502, 1.0
    %v7504 = vmul.f32 %v7503, %v7469
    %v7505 = vand.u32 2147483647, %v7469
    %vm7506 = vcmp.lt.f32.partialorder %v7505, 0.0004427343
    %v7507 = vsel %vm7506, %v7504, %v7501
    %v7508 = vadd.f32 %v7471, 1.0
    %v7509 = vlog2.pop %v7508
    %v7510 = vmul.f32 %v7509, 0.6931472
    %v7511 = vmul.f32 -0.5, %v7471
    %v7512 = vadd.f32 %v7511, 1.0
    %v7513 = vmul.f32 %v7512, %v7471
    %v7514 = vand.u32 2147483647, %v7471
    %vm7515 = vcmp.lt.f32.partialorder %v7514, 0.0004427343
    %v7516 = vsel %vm7515, %v7513, %v7510
    %v7517 = vadd.f32 %v7447, %v7480
    %v7518 = vadd.f32 %v7448, %v7489
    %v7519 = vadd.f32 %v7449, %v7498
    %v7520 = vadd.f32 %v7450, %v7507
    %v7521 = vadd.f32 %v7451, %v7516
    %v7522 = vpack.c.bf16 %v7517, %v7517
    %v7523 = vpack.c.bf16 %v7518, %v7518
    %v7524 = vpack.c.bf16 %v7519, %v7519
    %v7525 = vpack.c.bf16 %v7520, %v7520
    %v7526 = vpack.c.bf16 %v7521, %v7521
    %v7527 = vld [vmem:[#allocation21] sm:$0xff]
    %v7528 = vld [vmem:[#allocation21 + $0x8] sm:$0xff]
    %v7529 = vld [vmem:[#allocation21 + $0x10] sm:$0xff]
    %v7530 = vld [vmem:[#allocation21 + $0x18] sm:$0xf]
    %v7531 = vld [vmem:[#allocation21 + $0x1c] sm:$0xff]
    %v7532 = vld [vmem:[#allocation21 + $0x24] sm:$0xff]
    %v7533 = vld [vmem:[#allocation21 + $0x2c] sm:$0xff]
    %v7534 = vld [vmem:[#allocation21 + $0x34] sm:$0xf]
    %v7535 = vld [vmem:[#allocation21 + $0x38] sm:$0xff]
    %v7536 = vld [vmem:[#allocation21 + $0x40] sm:$0xff]
    %v7537 = vld [vmem:[#allocation21 + $0x48] sm:$0xff]
    %v7538 = vld [vmem:[#allocation21 + $0x50] sm:$0xf]
    %v7539 = vld [vmem:[#allocation21 + $0x54] sm:$0xff]
    %v7540 = vld [vmem:[#allocation21 + $0x5c] sm:$0xff]
    %v7541 = vld [vmem:[#allocation21 + $0x64] sm:$0xff]
    %v7542 = vld [vmem:[#allocation21 + $0x6c] sm:$0xf]
    %v7543 = vld [vmem:[#allocation21 + $0x70] sm:$0xff]
    %v7544 = vld [vmem:[#allocation21 + $0x78] sm:$0xff]
    %v7545 = vld [vmem:[#allocation21 + $0x80] sm:$0xff]
    %v7546 = vld [vmem:[#allocation21 + $0x88] sm:$0xf]
    %v7547 = vld [vmem:[#allocation21 + $0x8c] sm:$0xff]
    %v7548 = vld [vmem:[#allocation21 + $0x94] sm:$0xff]
    %v7549 = vld [vmem:[#allocation21 + $0x9c] sm:$0xff]
    %v7550 = vld [vmem:[#allocation21 + $0xa4] sm:$0xf]
    %v7551 = vld [vmem:[#allocation21 + $0xa8] sm:$0xff]
    %v7552 = vld [vmem:[#allocation21 + $0xb0] sm:$0xff]
    %v7553 = vld [vmem:[#allocation21 + $0xb8] sm:$0xff]
    %v7554 = vld [vmem:[#allocation21 + $0xc0] sm:$0xf]
    %v7555 = vld [vmem:[#allocation21 + $0xc4] sm:$0xff]
    %v7556 = vld [vmem:[#allocation21 + $0xcc] sm:$0xff]
    %v7557 = vld [vmem:[#allocation21 + $0xd4] sm:$0xff]
    %v7558 = vld [vmem:[#allocation21 + $0xdc] sm:$0xf]
    %v7559 = vld [vmem:[#allocation21 + $0xe0] sm:$0xff]
    %v7560 = vld [vmem:[#allocation21 + $0xe8] sm:$0xff]
    %v7561 = vld [vmem:[#allocation21 + $0xf0] sm:$0xff]
    %v7562 = vld [vmem:[#allocation21 + $0xf8] sm:$0xf]
    %v7563 = vld [vmem:[#allocation21 + $0xfc] sm:$0xff]
    %v7564 = vld [vmem:[#allocation21 + $0x104] sm:$0xff]
    %v7565 = vld [vmem:[#allocation21 + $0x10c] sm:$0xff]
    %v7566 = vld [vmem:[#allocation21 + $0x114] sm:$0xf]
    %v7567 = vld [vmem:[#allocation21 + $0x118] sm:$0xff]
    %v7568 = vld [vmem:[#allocation21 + $0x120] sm:$0xff]
    %v7569 = vld [vmem:[#allocation21 + $0x128] sm:$0xff]
    %v7570 = vld [vmem:[#allocation21 + $0x130] sm:$0xf]
    %v7571 = vld [vmem:[#allocation21 + $0x134] sm:$0xff]
    %v7572 = vld [vmem:[#allocation21 + $0x13c] sm:$0xff]
    %v7573 = vld [vmem:[#allocation21 + $0x144] sm:$0xff]
    %v7574 = vld [vmem:[#allocation21 + $0x14c] sm:$0xf]
    %v7575 = vld [vmem:[#allocation21 + $0x150] sm:$0xff]
    %v7576 = vld [vmem:[#allocation21 + $0x158] sm:$0xff]
    %v7577 = vld [vmem:[#allocation21 + $0x160] sm:$0xff]
    %v7578 = vld [vmem:[#allocation21 + $0x168] sm:$0xf]
    %v7579 = vld [vmem:[#allocation21 + $0x16c] sm:$0xff]
    %v7580 = vld [vmem:[#allocation21 + $0x174] sm:$0xff]
    %v7581 = vld [vmem:[#allocation21 + $0x17c] sm:$0xff]
    %v7582 = vld [vmem:[#allocation21 + $0x184] sm:$0xf]
    %v7583 = vld [vmem:[#allocation21 + $0x188] sm:$0xff]
    %v7584 = vld [vmem:[#allocation21 + $0x190] sm:$0xff]
    %v7585 = vld [vmem:[#allocation21 + $0x198] sm:$0xff]
    %v7586 = vld [vmem:[#allocation21 + $0x1a0] sm:$0xf]
    %v7587 = vld [vmem:[#allocation21 + $0x1a4] sm:$0xff]
    %v7588 = vld [vmem:[#allocation21 + $0x1ac] sm:$0xff]
    %v7589 = vld [vmem:[#allocation21 + $0x1b4] sm:$0xff]
    %v7590 = vld [vmem:[#allocation21 + $0x1bc] sm:$0xf]
    %v7591 = vld [vmem:[#allocation21 + $0x1c0] sm:$0xff]
    %v7592 = vld [vmem:[#allocation21 + $0x1c8] sm:$0xff]
    %v7593 = vld [vmem:[#allocation21 + $0x1d0] sm:$0xff]
    %v7594 = vld [vmem:[#allocation21 + $0x1d8] sm:$0xf]
    %v7595 = vld [vmem:[#allocation21 + $0x1dc] sm:$0xff]
    %v7596 = vld [vmem:[#allocation21 + $0x1e4] sm:$0xff]
    %v7597 = vld [vmem:[#allocation21 + $0x1ec] sm:$0xff]
    %v7598 = vld [vmem:[#allocation21 + $0x1f4] sm:$0xf]
    %v7599 = vld [vmem:[#allocation21 + $0x1f8] sm:$0xff]
    %v7600 = vld [vmem:[#allocation21 + $0x200] sm:$0xff]
    %v7601 = vld [vmem:[#allocation21 + $0x208] sm:$0xff]
    %v7602 = vld [vmem:[#allocation21 + $0x210] sm:$0xf]
    %v7603 = vld [vmem:[#allocation21 + $0x214] sm:$0xff]
    %v7604 = vld [vmem:[#allocation21 + $0x21c] sm:$0xff]
    %v7605 = vld [vmem:[#allocation21 + $0x224] sm:$0xff]
    %v7606 = vld [vmem:[#allocation21 + $0x22c] sm:$0xf]
    %v7607 = vld [vmem:[#allocation21 + $0x230] sm:$0xff]
    %v7608 = vld [vmem:[#allocation21 + $0x238] sm:$0xff]
    %v7609 = vld [vmem:[#allocation21 + $0x240] sm:$0xff]
    %v7610 = vld [vmem:[#allocation21 + $0x248] sm:$0xf]
    %v7611 = vld [vmem:[#allocation21 + $0x24c] sm:$0xff]
    %v7612 = vld [vmem:[#allocation21 + $0x254] sm:$0xff]
    %v7613 = vld [vmem:[#allocation21 + $0x25c] sm:$0xff]
    %v7614 = vld [vmem:[#allocation21 + $0x264] sm:$0xf]
    %v7615 = vld [vmem:[#allocation21 + $0x268] sm:$0xff]
    %v7616 = vld [vmem:[#allocation21 + $0x270] sm:$0xff]
    %v7617 = vld [vmem:[#allocation21 + $0x278] sm:$0xff]
    %v7618 = vld [vmem:[#allocation21 + $0x280] sm:$0xf]
    %v7619 = vld [vmem:[#allocation21 + $0x284] sm:$0xff]
    %v7620 = vld [vmem:[#allocation21 + $0x28c] sm:$0xff]
    %v7621 = vld [vmem:[#allocation21 + $0x294] sm:$0xff]
    %v7622 = vld [vmem:[#allocation21 + $0x29c] sm:$0xf]
    %v7623 = vld [vmem:[#allocation21 + $0x2a0] sm:$0xff]
    %v7624 = vld [vmem:[#allocation21 + $0x2a8] sm:$0xff]
    %v7625 = vld [vmem:[#allocation21 + $0x2b0] sm:$0xff]
    %v7626 = vld [vmem:[#allocation21 + $0x2b8] sm:$0xf]
    %v7627 = vld [vmem:[#allocation21 + $0x2bc] sm:$0xff]
    %v7628 = vld [vmem:[#allocation21 + $0x2c4] sm:$0xff]
    %v7629 = vld [vmem:[#allocation21 + $0x2cc] sm:$0xff]
    %v7630 = vld [vmem:[#allocation21 + $0x2d4] sm:$0xf]
    %v7631 = vld [vmem:[#allocation21 + $0x2d8] sm:$0xff]
    %v7632 = vld [vmem:[#allocation21 + $0x2e0] sm:$0xff]
    %v7633 = vld [vmem:[#allocation21 + $0x2e8] sm:$0xff]
    %v7634 = vld [vmem:[#allocation21 + $0x2f0] sm:$0xf]
    %v7635 = vld [vmem:[#allocation21 + $0x2f4] sm:$0xff]
    %v7636 = vld [vmem:[#allocation21 + $0x2fc] sm:$0xff]
    %v7637 = vld [vmem:[#allocation21 + $0x304] sm:$0xff]
    %v7638 = vld [vmem:[#allocation21 + $0x30c] sm:$0xf]
    %v7639 = vld [vmem:[#allocation21 + $0x310] sm:$0xff]
    %v7640 = vld [vmem:[#allocation21 + $0x318] sm:$0xff]
    %v7641 = vld [vmem:[#allocation21 + $0x320] sm:$0xff]
    %v7642 = vld [vmem:[#allocation21 + $0x328] sm:$0xf]
    %v7643 = vld [vmem:[#allocation21 + $0x32c] sm:$0xff]
    %v7644 = vld [vmem:[#allocation21 + $0x334] sm:$0xff]
    %v7645 = vld [vmem:[#allocation21 + $0x33c] sm:$0xff]
    %v7646 = vld [vmem:[#allocation21 + $0x344] sm:$0xf]
    %v7647 = vld [vmem:[#allocation21 + $0x348] sm:$0xff]
    %v7648 = vld [vmem:[#allocation21 + $0x350] sm:$0xff]
    %v7649 = vld [vmem:[#allocation21 + $0x358] sm:$0xff]
    %v7650 = vld [vmem:[#allocation21 + $0x360] sm:$0xf]
    %v7651 = vld [vmem:[#allocation21 + $0x364] sm:$0xff]
    %v7652 = vld [vmem:[#allocation21 + $0x36c] sm:$0xff]
    %v7653 = vld [vmem:[#allocation21 + $0x374] sm:$0xff]
    %v7654 = vld [vmem:[#allocation21 + $0x37c] sm:$0xf]
    %v7655 = vld [vmem:[#allocation21 + $0x380] sm:$0xff]
    %v7656 = vld [vmem:[#allocation21 + $0x388] sm:$0xff]
    %v7657 = vld [vmem:[#allocation21 + $0x390] sm:$0xff]
    %v7658 = vld [vmem:[#allocation21 + $0x398] sm:$0xf]
    %v7659 = vld [vmem:[#allocation21 + $0x39c] sm:$0xff]
    %v7660 = vld [vmem:[#allocation21 + $0x3a4] sm:$0xff]
    %v7661 = vld [vmem:[#allocation21 + $0x3ac] sm:$0xff]
    %v7662 = vld [vmem:[#allocation21 + $0x3b4] sm:$0xf]
    %v7663 = vld [vmem:[#allocation21 + $0x3b8] sm:$0xff]
    %v7664 = vld [vmem:[#allocation21 + $0x3c0] sm:$0xff]
    %v7665 = vld [vmem:[#allocation21 + $0x3c8] sm:$0xff]
    %v7666 = vld [vmem:[#allocation21 + $0x3d0] sm:$0xf]
    %v7667 = vld [vmem:[#allocation21 + $0x3d4] sm:$0xff]
    %v7668 = vld [vmem:[#allocation21 + $0x3dc] sm:$0xff]
    %v7669 = vld [vmem:[#allocation21 + $0x3e4] sm:$0xff]
    %v7670 = vld [vmem:[#allocation21 + $0x3ec] sm:$0xf]
    %v7671 = vld [vmem:[#allocation21 + $0x3f0] sm:$0xff]
    %v7672 = vld [vmem:[#allocation21 + $0x3f8] sm:$0xff]
    %v7673 = vld [vmem:[#allocation21 + $0x400] sm:$0xff]
    %v7674 = vld [vmem:[#allocation21 + $0x408] sm:$0xf]
    %v7675 = vld [vmem:[#allocation21 + $0x40c] sm:$0xff]
    %v7676 = vld [vmem:[#allocation21 + $0x414] sm:$0xff]
    %v7677 = vld [vmem:[#allocation21 + $0x41c] sm:$0xff]
    %v7678 = vld [vmem:[#allocation21 + $0x424] sm:$0xf]
    %v7679 = vld [vmem:[#allocation21 + $0x428] sm:$0xff]
    %v7680 = vld [vmem:[#allocation21 + $0x430] sm:$0xff]
    %v7681 = vld [vmem:[#allocation21 + $0x438] sm:$0xff]
    %v7682 = vld [vmem:[#allocation21 + $0x440] sm:$0xf]
    %v7683 = vld [vmem:[#allocation21 + $0x444] sm:$0xff]
    %v7684 = vld [vmem:[#allocation21 + $0x44c] sm:$0xff]
    %v7685 = vld [vmem:[#allocation21 + $0x454] sm:$0xff]
    %v7686 = vld [vmem:[#allocation21 + $0x45c] sm:$0xf]
    %v7687 = vld [vmem:[#allocation21 + $0x460] sm:$0xff]
    %v7688 = vld [vmem:[#allocation21 + $0x468] sm:$0xff]
    %v7689 = vld [vmem:[#allocation21 + $0x470] sm:$0xff]
    %v7690 = vld [vmem:[#allocation21 + $0x478] sm:$0xf]
    %v7691 = vld [vmem:[#allocation21 + $0x47c] sm:$0xff]
    %v7692 = vld [vmem:[#allocation21 + $0x484] sm:$0xff]
    %v7693 = vld [vmem:[#allocation21 + $0x48c] sm:$0xff]
    %v7694 = vld [vmem:[#allocation21 + $0x494] sm:$0xf]
    %v7695 = vld [vmem:[#allocation21 + $0x498] sm:$0xff]
    %v7696 = vld [vmem:[#allocation21 + $0x4a0] sm:$0xff]
    %v7697 = vld [vmem:[#allocation21 + $0x4a8] sm:$0xff]
    %v7698 = vld [vmem:[#allocation21 + $0x4b0] sm:$0xf]
    %v7699 = vld [vmem:[#allocation21 + $0x4b4] sm:$0xff]
    %v7700 = vld [vmem:[#allocation21 + $0x4bc] sm:$0xff]
    %v7701 = vld [vmem:[#allocation21 + $0x4c4] sm:$0xff]
    %v7702 = vld [vmem:[#allocation21 + $0x4cc] sm:$0xf]
    %v7703 = vld [vmem:[#allocation21 + $0x4d0] sm:$0xff]
    %v7704 = vld [vmem:[#allocation21 + $0x4d8] sm:$0xff]
    %v7705 = vld [vmem:[#allocation21 + $0x4e0] sm:$0xff]
    %v7706 = vld [vmem:[#allocation21 + $0x4e8] sm:$0xf]
    %v7707 = vld [vmem:[#allocation21 + $0x4ec] sm:$0xff]
    %v7708 = vld [vmem:[#allocation21 + $0x4f4] sm:$0xff]
    %v7709 = vld [vmem:[#allocation21 + $0x4fc] sm:$0xff]
    %v7710 = vld [vmem:[#allocation21 + $0x504] sm:$0xf]
    %v7711 = vld [vmem:[#allocation21 + $0x508] sm:$0xff]
    %v7712 = vld [vmem:[#allocation21 + $0x510] sm:$0xff]
    %v7713 = vld [vmem:[#allocation21 + $0x518] sm:$0xff]
    %v7714 = vld [vmem:[#allocation21 + $0x520] sm:$0xf]
    %v7715 = vld [vmem:[#allocation21 + $0x524] sm:$0xff]
    %v7716 = vld [vmem:[#allocation21 + $0x52c] sm:$0xff]
    %v7717 = vld [vmem:[#allocation21 + $0x534] sm:$0xff]
    %v7718 = vld [vmem:[#allocation21 + $0x53c] sm:$0xf]
    %v7719 = vld [vmem:[#allocation21 + $0x540] sm:$0xff]
    %v7720 = vld [vmem:[#allocation21 + $0x548] sm:$0xff]
    %v7721 = vld [vmem:[#allocation21 + $0x550] sm:$0xff]
    %v7722 = vld [vmem:[#allocation21 + $0x558] sm:$0xf]
    %v7723 = vld [vmem:[#allocation21 + $0x55c] sm:$0xff]
    %v7724 = vld [vmem:[#allocation21 + $0x564] sm:$0xff]
    %v7725 = vld [vmem:[#allocation21 + $0x56c] sm:$0xff]
    %v7726 = vld [vmem:[#allocation21 + $0x574] sm:$0xf]
    %v7727 = vld [vmem:[#allocation21 + $0x578] sm:$0xff]
    %v7728 = vld [vmem:[#allocation21 + $0x580] sm:$0xff]
    %v7729 = vld [vmem:[#allocation21 + $0x588] sm:$0xff]
    %v7730 = vld [vmem:[#allocation21 + $0x590] sm:$0xf]
    %v7731 = vld [vmem:[#allocation21 + $0x594] sm:$0xff]
    %v7732 = vld [vmem:[#allocation21 + $0x59c] sm:$0xff]
    %v7733 = vld [vmem:[#allocation21 + $0x5a4] sm:$0xff]
    %v7734 = vld [vmem:[#allocation21 + $0x5ac] sm:$0xf]
    %v7735 = vld [vmem:[#allocation21 + $0x5b0] sm:$0xff]
    %v7736 = vld [vmem:[#allocation21 + $0x5b8] sm:$0xff]
    %v7737 = vld [vmem:[#allocation21 + $0x5c0] sm:$0xff]
    %v7738 = vld [vmem:[#allocation21 + $0x5c8] sm:$0xf]
    %v7739 = vld [vmem:[#allocation21 + $0x5cc] sm:$0xff]
    %v7740 = vld [vmem:[#allocation21 + $0x5d4] sm:$0xff]
    %v7741 = vld [vmem:[#allocation21 + $0x5dc] sm:$0xff]
    %v7742 = vld [vmem:[#allocation21 + $0x5e4] sm:$0xf]
    %v7743 = vld [vmem:[#allocation21 + $0x5e8] sm:$0xff]
    %v7744 = vld [vmem:[#allocation21 + $0x5f0] sm:$0xff]
    %v7745 = vld [vmem:[#allocation21 + $0x5f8] sm:$0xff]
    %v7746 = vld [vmem:[#allocation21 + $0x600] sm:$0xf]
    %v7747 = vld [vmem:[#allocation21 + $0x604] sm:$0xff]
    %v7748 = vld [vmem:[#allocation21 + $0x60c] sm:$0xff]
    %v7749 = vld [vmem:[#allocation21 + $0x614] sm:$0xff]
    %v7750 = vld [vmem:[#allocation21 + $0x61c] sm:$0xf]
    %v7751 = vld [vmem:[#allocation21 + $0x620] sm:$0xff]
    %v7752 = vld [vmem:[#allocation21 + $0x628] sm:$0xff]
    %v7753 = vld [vmem:[#allocation21 + $0x630] sm:$0xff]
    %v7754 = vld [vmem:[#allocation21 + $0x638] sm:$0xf]
    %v7755 = vld [vmem:[#allocation21 + $0x63c] sm:$0xff]
    %v7756 = vld [vmem:[#allocation21 + $0x644] sm:$0xff]
    %v7757 = vld [vmem:[#allocation21 + $0x64c] sm:$0xff]
    %v7758 = vld [vmem:[#allocation21 + $0x654] sm:$0xf]
    %v7759 = vld [vmem:[#allocation21 + $0x658] sm:$0xff]
    %v7760 = vld [vmem:[#allocation21 + $0x660] sm:$0xff]
    %v7761 = vld [vmem:[#allocation21 + $0x668] sm:$0xff]
    %v7762 = vld [vmem:[#allocation21 + $0x670] sm:$0xf]
    %v7763 = vld [vmem:[#allocation21 + $0x674] sm:$0xff]
    %v7764 = vld [vmem:[#allocation21 + $0x67c] sm:$0xff]
    %v7765 = vld [vmem:[#allocation21 + $0x684] sm:$0xff]
    %v7766 = vld [vmem:[#allocation21 + $0x68c] sm:$0xf]
    %v7767 = vld [vmem:[#allocation21 + $0x690] sm:$0xff]
    %v7768 = vld [vmem:[#allocation21 + $0x698] sm:$0xff]
    %v7769 = vld [vmem:[#allocation21 + $0x6a0] sm:$0xff]
    %v7770 = vld [vmem:[#allocation21 + $0x6a8] sm:$0xf]
    %v7771 = vld [vmem:[#allocation21 + $0x6ac] sm:$0xff]
    %v7772 = vld [vmem:[#allocation21 + $0x6b4] sm:$0xff]
    %v7773 = vld [vmem:[#allocation21 + $0x6bc] sm:$0xff]
    %v7774 = vld [vmem:[#allocation21 + $0x6c4] sm:$0xf]
    %v7775 = vld [vmem:[#allocation21 + $0x6c8] sm:$0xff]
    %v7776 = vld [vmem:[#allocation21 + $0x6d0] sm:$0xff]
    %v7777 = vld [vmem:[#allocation21 + $0x6d8] sm:$0xff]
    %v7778 = vld [vmem:[#allocation21 + $0x6e0] sm:$0xf]
    %v7779 = vld [vmem:[#allocation21 + $0x6e4] sm:$0xff]
    %v7780 = vld [vmem:[#allocation21 + $0x6ec] sm:$0xff]
    %v7781 = vld [vmem:[#allocation21 + $0x6f4] sm:$0xff]
    %v7782 = vld [vmem:[#allocation21 + $0x6fc] sm:$0xf]
    %v7783 = vld [vmem:[#allocation21 + $0x700] sm:$0xff]
    %v7784 = vld [vmem:[#allocation21 + $0x708] sm:$0xff]
    %v7785 = vld [vmem:[#allocation21 + $0x710] sm:$0xff]
    %v7786 = vld [vmem:[#allocation21 + $0x718] sm:$0xf]
    %v7787 = vld [vmem:[#allocation21 + $0x71c] sm:$0xff]
    %v7788 = vld [vmem:[#allocation21 + $0x724] sm:$0xff]
    %v7789 = vld [vmem:[#allocation21 + $0x72c] sm:$0xff]
    %v7790 = vld [vmem:[#allocation21 + $0x734] sm:$0xf]
    %v7791 = vld [vmem:[#allocation21 + $0x738] sm:$0xff]
    %v7792 = vld [vmem:[#allocation21 + $0x740] sm:$0xff]
    %v7793 = vld [vmem:[#allocation21 + $0x748] sm:$0xff]
    %v7794 = vld [vmem:[#allocation21 + $0x750] sm:$0xf]
    %v7795 = vld [vmem:[#allocation21 + $0x754] sm:$0xff]
    %v7796 = vld [vmem:[#allocation21 + $0x75c] sm:$0xff]
    %v7797 = vld [vmem:[#allocation21 + $0x764] sm:$0xff]
    %v7798 = vld [vmem:[#allocation21 + $0x76c] sm:$0xf]
    %v7799 = vld [vmem:[#allocation21 + $0x770] sm:$0xff]
    %v7800 = vld [vmem:[#allocation21 + $0x778] sm:$0xff]
    %v7801 = vld [vmem:[#allocation21 + $0x780] sm:$0xff]
    %v7802 = vld [vmem:[#allocation21 + $0x788] sm:$0xf]
    %v7803 = vld [vmem:[#allocation21 + $0x78c] sm:$0xff]
    %v7804 = vld [vmem:[#allocation21 + $0x794] sm:$0xff]
    %v7805 = vld [vmem:[#allocation21 + $0x79c] sm:$0xff]
    %v7806 = vld [vmem:[#allocation21 + $0x7a4] sm:$0xf]
    %v7807 = vld [vmem:[#allocation21 + $0x7a8] sm:$0xff]
    %v7808 = vld [vmem:[#allocation21 + $0x7b0] sm:$0xff]
    %v7809 = vld [vmem:[#allocation21 + $0x7b8] sm:$0xff]
    %v7810 = vld [vmem:[#allocation21 + $0x7c0] sm:$0xf]
    %v7811 = vld [vmem:[#allocation21 + $0x7c4] sm:$0xff]
    %v7812 = vld [vmem:[#allocation21 + $0x7cc] sm:$0xff]
    %v7813 = vld [vmem:[#allocation21 + $0x7d4] sm:$0xff]
    %v7814 = vld [vmem:[#allocation21 + $0x7dc] sm:$0xf]
    %v7815 = vld [vmem:[#allocation21 + $0x7e0] sm:$0xff]
    %v7816 = vld [vmem:[#allocation21 + $0x7e8] sm:$0xff]
    %v7817 = vld [vmem:[#allocation21 + $0x7f0] sm:$0xff]
    %v7818 = vld [vmem:[#allocation21 + $0x7f8] sm:$0xf]
    %v7819 = vld [vmem:[#allocation21 + $0x7fc] sm:$0xff]
    %v7820 = vld [vmem:[#allocation21 + $0x804] sm:$0xff]
    %v7821 = vld [vmem:[#allocation21 + $0x80c] sm:$0xff]
    %v7822 = vld [vmem:[#allocation21 + $0x814] sm:$0xf]
    %v7823 = vld [vmem:[#allocation21 + $0x818] sm:$0xff]
    %v7824 = vld [vmem:[#allocation21 + $0x820] sm:$0xff]
    %v7825 = vld [vmem:[#allocation21 + $0x828] sm:$0xff]
    %v7826 = vld [vmem:[#allocation21 + $0x830] sm:$0xf]
    %v7827 = vld [vmem:[#allocation21 + $0x834] sm:$0xff]
    %v7828 = vld [vmem:[#allocation21 + $0x83c] sm:$0xff]
    %v7829 = vld [vmem:[#allocation21 + $0x844] sm:$0xff]
    %v7830 = vld [vmem:[#allocation21 + $0x84c] sm:$0xf]
    %v7831 = vld [vmem:[#allocation21 + $0x850] sm:$0xff]
    %v7832 = vld [vmem:[#allocation21 + $0x858] sm:$0xff]
    %v7833 = vld [vmem:[#allocation21 + $0x860] sm:$0xff]
    %v7834 = vld [vmem:[#allocation21 + $0x868] sm:$0xf]
    %v7835 = vld [vmem:[#allocation21 + $0x86c] sm:$0xff]
    %v7836 = vld [vmem:[#allocation21 + $0x874] sm:$0xff]
    %v7837 = vld [vmem:[#allocation21 + $0x87c] sm:$0xff]
    %v7838 = vld [vmem:[#allocation21 + $0x884] sm:$0xf]
    %v7839 = vld [vmem:[#allocation21 + $0x888] sm:$0xff]
    %v7840 = vld [vmem:[#allocation21 + $0x890] sm:$0xff]
    %v7841 = vld [vmem:[#allocation21 + $0x898] sm:$0xff]
    %v7842 = vld [vmem:[#allocation21 + $0x8a0] sm:$0xf]
    %v7843 = vld [vmem:[#allocation21 + $0x8a4] sm:$0xff]
    %v7844 = vld [vmem:[#allocation21 + $0x8ac] sm:$0xff]
    %v7845 = vld [vmem:[#allocation21 + $0x8b4] sm:$0xff]
    %v7846 = vld [vmem:[#allocation21 + $0x8bc] sm:$0xf]
    %v7847 = vld [vmem:[#allocation22] sm:$0xff]
    %v7849 = vlaneseq
    %v7850 = vshrl.u32 %v7849, 7
    %v7851 = vsub.s32 0, %v7850
    %v7852 = vrot.slane %v7847, %v7851
    %v7853 = vlaneseq
    %v7854 = vshrl.u32 %v7853, 7
    %v7855 = vsub.s32 1, %v7854
    %v7856 = vrot.slane %v7847, %v7855
    %v7857 = vlaneseq
    %v7858 = vshrl.u32 %v7857, 7
    %v7859 = vsub.s32 2, %v7858
    %v7860 = vrot.slane %v7847, %v7859
    %v7861 = vlaneseq
    %v7862 = vshrl.u32 %v7861, 7
    %v7863 = vsub.s32 3, %v7862
    %v7864 = vrot.slane %v7847, %v7863
    %v7865 = vlaneseq
    %v7866 = vshrl.u32 %v7865, 7
    %v7867 = vsub.s32 4, %v7866
    %v7868 = vrot.slane %v7847, %v7867
    %v7869 = vlaneseq
    %v7870 = vshrl.u32 %v7869, 7
    %v7871 = vsub.s32 5, %v7870
    %v7872 = vrot.slane %v7847, %v7871
    %v7873 = vlaneseq
    %v7874 = vshrl.u32 %v7873, 7
    %v7875 = vsub.s32 6, %v7874
    %v7876 = vrot.slane %v7847, %v7875
    %v8204 = vunpack.c.l.b16 %v7527
    %v8205 = vunpack.c.h.b16 %v7527
    %v8206 = vunpack.c.l.b16 %v7528
    %v8207 = vunpack.c.h.b16 %v7528
    %v8208 = vunpack.c.l.b16 %v7529
    %v8209 = vunpack.c.h.b16 %v7529
    %v8210 = vunpack.c.l.b16 %v7530
    %v8211 = vunpack.c.l.b16 %v7531
    %v8212 = vunpack.c.h.b16 %v7531
    %v8213 = vunpack.c.l.b16 %v7532
    %v8214 = vunpack.c.h.b16 %v7532
    %v8215 = vunpack.c.l.b16 %v7533
    %v8216 = vunpack.c.h.b16 %v7533
    %v8217 = vunpack.c.l.b16 %v7534
    %v8218 = vunpack.c.l.b16 %v7535
    %v8219 = vunpack.c.h.b16 %v7535
    %v8220 = vunpack.c.l.b16 %v7536
    %v8221 = vunpack.c.h.b16 %v7536
    %v8222 = vunpack.c.l.b16 %v7537
    %v8223 = vunpack.c.h.b16 %v7537
    %v8224 = vunpack.c.l.b16 %v7538
    %v8225 = vunpack.c.l.b16 %v7539
    %v8226 = vunpack.c.h.b16 %v7539
    %v8227 = vunpack.c.l.b16 %v7540
    %v8228 = vunpack.c.h.b16 %v7540
    %v8229 = vunpack.c.l.b16 %v7541
    %v8230 = vunpack.c.h.b16 %v7541
    %v8231 = vunpack.c.l.b16 %v7542
    %v8232 = vunpack.c.l.b16 %v7543
    %v8233 = vunpack.c.h.b16 %v7543
    %v8234 = vunpack.c.l.b16 %v7544
    %v8235 = vunpack.c.h.b16 %v7544
    %v8236 = vunpack.c.l.b16 %v7545
    %v8237 = vunpack.c.h.b16 %v7545
    %v8238 = vunpack.c.l.b16 %v7546
    %v8239 = vunpack.c.l.b16 %v7547
    %v8240 = vunpack.c.h.b16 %v7547
    %v8241 = vunpack.c.l.b16 %v7548
    %v8242 = vunpack.c.h.b16 %v7548
    %v8243 = vunpack.c.l.b16 %v7549
    %v8244 = vunpack.c.h.b16 %v7549
    %v8245 = vunpack.c.l.b16 %v7550
    %v8246 = vunpack.c.l.b16 %v7551
    %v8247 = vunpack.c.h.b16 %v7551
    %v8248 = vunpack.c.l.b16 %v7552
    %v8249 = vunpack.c.h.b16 %v7552
    %v8250 = vunpack.c.l.b16 %v7553
    %v8251 = vunpack.c.h.b16 %v7553
    %v8252 = vunpack.c.l.b16 %v7554
    %v8253 = vunpack.c.l.b16 %v7555
    %v8254 = vunpack.c.h.b16 %v7555
    %v8255 = vunpack.c.l.b16 %v7556
    %v8256 = vunpack.c.h.b16 %v7556
    %v8257 = vunpack.c.l.b16 %v7557
    %v8258 = vunpack.c.h.b16 %v7557
    %v8259 = vunpack.c.l.b16 %v7558
    %v8260 = vunpack.c.l.b16 %v7559
    %v8261 = vunpack.c.h.b16 %v7559
    %v8262 = vunpack.c.l.b16 %v7560
    %v8263 = vunpack.c.h.b16 %v7560
    %v8264 = vunpack.c.l.b16 %v7561
    %v8265 = vunpack.c.h.b16 %v7561
    %v8266 = vunpack.c.l.b16 %v7562
    %v8267 = vunpack.c.l.b16 %v7563
    %v8268 = vunpack.c.h.b16 %v7563
    %v8269 = vunpack.c.l.b16 %v7564
    %v8270 = vunpack.c.h.b16 %v7564
    %v8271 = vunpack.c.l.b16 %v7565
    %v8272 = vunpack.c.h.b16 %v7565
    %v8273 = vunpack.c.l.b16 %v7566
    %v8274 = vunpack.c.l.b16 %v7567
    %v8275 = vunpack.c.h.b16 %v7567
    %v8276 = vunpack.c.l.b16 %v7568
    %v8277 = vunpack.c.h.b16 %v7568
    %v8278 = vunpack.c.l.b16 %v7569
    %v8279 = vunpack.c.h.b16 %v7569
    %v8280 = vunpack.c.l.b16 %v7570
    %v8281 = vunpack.c.l.b16 %v7571
    %v8282 = vunpack.c.h.b16 %v7571
    %v8283 = vunpack.c.l.b16 %v7572
    %v8284 = vunpack.c.h.b16 %v7572
    %v8285 = vunpack.c.l.b16 %v7573
    %v8286 = vunpack.c.h.b16 %v7573
    %v8287 = vunpack.c.l.b16 %v7574
    %v8288 = vunpack.c.l.b16 %v7575
    %v8289 = vunpack.c.h.b16 %v7575
    %v8290 = vunpack.c.l.b16 %v7576
    %v8291 = vunpack.c.h.b16 %v7576
    %v8292 = vunpack.c.l.b16 %v7577
    %v8293 = vunpack.c.h.b16 %v7577
    %v8294 = vunpack.c.l.b16 %v7578
    %v8295 = vunpack.c.l.b16 %v7579
    %v8296 = vunpack.c.h.b16 %v7579
    %v8297 = vunpack.c.l.b16 %v7580
    %v8298 = vunpack.c.h.b16 %v7580
    %v8299 = vunpack.c.l.b16 %v7581
    %v8300 = vunpack.c.h.b16 %v7581
    %v8301 = vunpack.c.l.b16 %v7582
    %v8302 = vunpack.c.l.b16 %v7583
    %v8303 = vunpack.c.h.b16 %v7583
    %v8304 = vunpack.c.l.b16 %v7584
    %v8305 = vunpack.c.h.b16 %v7584
    %v8306 = vunpack.c.l.b16 %v7585
    %v8307 = vunpack.c.h.b16 %v7585
    %v8308 = vunpack.c.l.b16 %v7586
    %v8309 = vunpack.c.l.b16 %v7587
    %v8310 = vunpack.c.h.b16 %v7587
    %v8311 = vunpack.c.l.b16 %v7588
    %v8312 = vunpack.c.h.b16 %v7588
    %v8313 = vunpack.c.l.b16 %v7589
    %v8314 = vunpack.c.h.b16 %v7589
    %v8315 = vunpack.c.l.b16 %v7590
    %v8316 = vunpack.c.l.b16 %v7591
    %v8317 = vunpack.c.h.b16 %v7591
    %v8318 = vunpack.c.l.b16 %v7592
    %v8319 = vunpack.c.h.b16 %v7592
    %v8320 = vunpack.c.l.b16 %v7593
    %v8321 = vunpack.c.h.b16 %v7593
    %v8322 = vunpack.c.l.b16 %v7594
    %v8323 = vunpack.c.l.b16 %v7595
    %v8324 = vunpack.c.h.b16 %v7595
    %v8325 = vunpack.c.l.b16 %v7596
    %v8326 = vunpack.c.h.b16 %v7596
    %v8327 = vunpack.c.l.b16 %v7597
    %v8328 = vunpack.c.h.b16 %v7597
    %v8329 = vunpack.c.l.b16 %v7598
    %v8330 = vunpack.c.l.b16 %v7599
    %v8331 = vunpack.c.h.b16 %v7599
    %v8332 = vunpack.c.l.b16 %v7600
    %v8333 = vunpack.c.h.b16 %v7600
    %v8334 = vunpack.c.l.b16 %v7601
    %v8335 = vunpack.c.h.b16 %v7601
    %v8336 = vunpack.c.l.b16 %v7602
    %v8337 = vunpack.c.l.b16 %v7603
    %v8338 = vunpack.c.h.b16 %v7603
    %v8339 = vunpack.c.l.b16 %v7604
    %v8340 = vunpack.c.h.b16 %v7604
    %v8341 = vunpack.c.l.b16 %v7605
    %v8342 = vunpack.c.h.b16 %v7605
    %v8343 = vunpack.c.l.b16 %v7606
    %v8344 = vunpack.c.l.b16 %v7607
    %v8345 = vunpack.c.h.b16 %v7607
    %v8346 = vunpack.c.l.b16 %v7608
    %v8347 = vunpack.c.h.b16 %v7608
    %v8348 = vunpack.c.l.b16 %v7609
    %v8349 = vunpack.c.h.b16 %v7609
    %v8350 = vunpack.c.l.b16 %v7610
    %v8351 = vunpack.c.l.b16 %v7611
    %v8352 = vunpack.c.h.b16 %v7611
    %v8353 = vunpack.c.l.b16 %v7612
    %v8354 = vunpack.c.h.b16 %v7612
    %v8355 = vunpack.c.l.b16 %v7613
    %v8356 = vunpack.c.h.b16 %v7613
    %v8357 = vunpack.c.l.b16 %v7614
    %v8358 = vunpack.c.l.b16 %v7615
    %v8359 = vunpack.c.h.b16 %v7615
    %v8360 = vunpack.c.l.b16 %v7616
    %v8361 = vunpack.c.h.b16 %v7616
    %v8362 = vunpack.c.l.b16 %v7617
    %v8363 = vunpack.c.h.b16 %v7617
    %v8364 = vunpack.c.l.b16 %v7618
    %v8365 = vunpack.c.l.b16 %v7619
    %v8366 = vunpack.c.h.b16 %v7619
    %v8367 = vunpack.c.l.b16 %v7620
    %v8368 = vunpack.c.h.b16 %v7620
    %v8369 = vunpack.c.l.b16 %v7621
    %v8370 = vunpack.c.h.b16 %v7621
    %v8371 = vunpack.c.l.b16 %v7622
    %v8372 = vunpack.c.l.b16 %v7623
    %v8373 = vunpack.c.h.b16 %v7623
    %v8374 = vunpack.c.l.b16 %v7624
    %v8375 = vunpack.c.h.b16 %v7624
    %v8376 = vunpack.c.l.b16 %v7625
    %v8377 = vunpack.c.h.b16 %v7625
    %v8378 = vunpack.c.l.b16 %v7626
    %v8379 = vunpack.c.l.b16 %v7627
    %v8380 = vunpack.c.h.b16 %v7627
    %v8381 = vunpack.c.l.b16 %v7628
    %v8382 = vunpack.c.h.b16 %v7628
    %v8383 = vunpack.c.l.b16 %v7629
    %v8384 = vunpack.c.h.b16 %v7629
    %v8385 = vunpack.c.l.b16 %v7630
    %v8386 = vunpack.c.l.b16 %v7631
    %v8387 = vunpack.c.h.b16 %v7631
    %v8388 = vunpack.c.l.b16 %v7632
    %v8389 = vunpack.c.h.b16 %v7632
    %v8390 = vunpack.c.l.b16 %v7633
    %v8391 = vunpack.c.h.b16 %v7633
    %v8392 = vunpack.c.l.b16 %v7634
    %v8393 = vunpack.c.l.b16 %v7635
    %v8394 = vunpack.c.h.b16 %v7635
    %v8395 = vunpack.c.l.b16 %v7636
    %v8396 = vunpack.c.h.b16 %v7636
    %v8397 = vunpack.c.l.b16 %v7637
    %v8398 = vunpack.c.h.b16 %v7637
    %v8399 = vunpack.c.l.b16 %v7638
    %v8400 = vunpack.c.l.b16 %v7639
    %v8401 = vunpack.c.h.b16 %v7639
    %v8402 = vunpack.c.l.b16 %v7640
    %v8403 = vunpack.c.h.b16 %v7640
    %v8404 = vunpack.c.l.b16 %v7641
    %v8405 = vunpack.c.h.b16 %v7641
    %v8406 = vunpack.c.l.b16 %v7642
    %v8407 = vunpack.c.l.b16 %v7643
    %v8408 = vunpack.c.h.b16 %v7643
    %v8409 = vunpack.c.l.b16 %v7644
    %v8410 = vunpack.c.h.b16 %v7644
    %v8411 = vunpack.c.l.b16 %v7645
    %v8412 = vunpack.c.h.b16 %v7645
    %v8413 = vunpack.c.l.b16 %v7646
    %v8414 = vunpack.c.l.b16 %v7647
    %v8415 = vunpack.c.h.b16 %v7647
    %v8416 = vunpack.c.l.b16 %v7648
    %v8417 = vunpack.c.h.b16 %v7648
    %v8418 = vunpack.c.l.b16 %v7649
    %v8419 = vunpack.c.h.b16 %v7649
    %v8420 = vunpack.c.l.b16 %v7650
    %v8421 = vunpack.c.l.b16 %v7651
    %v8422 = vunpack.c.h.b16 %v7651
    %v8423 = vunpack.c.l.b16 %v7652
    %v8424 = vunpack.c.h.b16 %v7652
    %v8425 = vunpack.c.l.b16 %v7653
    %v8426 = vunpack.c.h.b16 %v7653
    %v8427 = vunpack.c.l.b16 %v7654
    %v8428 = vunpack.c.l.b16 %v7655
    %v8429 = vunpack.c.h.b16 %v7655
    %v8430 = vunpack.c.l.b16 %v7656
    %v8431 = vunpack.c.h.b16 %v7656
    %v8432 = vunpack.c.l.b16 %v7657
    %v8433 = vunpack.c.h.b16 %v7657
    %v8434 = vunpack.c.l.b16 %v7658
    %v8435 = vunpack.c.l.b16 %v7659
    %v8436 = vunpack.c.h.b16 %v7659
    %v8437 = vunpack.c.l.b16 %v7660
    %v8438 = vunpack.c.h.b16 %v7660
    %v8439 = vunpack.c.l.b16 %v7661
    %v8440 = vunpack.c.h.b16 %v7661
    %v8441 = vunpack.c.l.b16 %v7662
    %v8442 = vunpack.c.l.b16 %v7663
    %v8443 = vunpack.c.h.b16 %v7663
    %v8444 = vunpack.c.l.b16 %v7664
    %v8445 = vunpack.c.h.b16 %v7664
    %v8446 = vunpack.c.l.b16 %v7665
    %v8447 = vunpack.c.h.b16 %v7665
    %v8448 = vunpack.c.l.b16 %v7666
    %v8449 = vunpack.c.l.b16 %v7667
    %v8450 = vunpack.c.h.b16 %v7667
    %v8451 = vunpack.c.l.b16 %v7668
    %v8452 = vunpack.c.h.b16 %v7668
    %v8453 = vunpack.c.l.b16 %v7669
    %v8454 = vunpack.c.h.b16 %v7669
    %v8455 = vunpack.c.l.b16 %v7670
    %v8456 = vunpack.c.l.b16 %v7671
    %v8457 = vunpack.c.h.b16 %v7671
    %v8458 = vunpack.c.l.b16 %v7672
    %v8459 = vunpack.c.h.b16 %v7672
    %v8460 = vunpack.c.l.b16 %v7673
    %v8461 = vunpack.c.h.b16 %v7673
    %v8462 = vunpack.c.l.b16 %v7674
    %v8463 = vunpack.c.l.b16 %v7675
    %v8464 = vunpack.c.h.b16 %v7675
    %v8465 = vunpack.c.l.b16 %v7676
    %v8466 = vunpack.c.h.b16 %v7676
    %v8467 = vunpack.c.l.b16 %v7677
    %v8468 = vunpack.c.h.b16 %v7677
    %v8469 = vunpack.c.l.b16 %v7678
    %v8470 = vunpack.c.l.b16 %v7679
    %v8471 = vunpack.c.h.b16 %v7679
    %v8472 = vunpack.c.l.b16 %v7680
    %v8473 = vunpack.c.h.b16 %v7680
    %v8474 = vunpack.c.l.b16 %v7681
    %v8475 = vunpack.c.h.b16 %v7681
    %v8476 = vunpack.c.l.b16 %v7682
    %v8477 = vunpack.c.l.b16 %v7683
    %v8478 = vunpack.c.h.b16 %v7683
    %v8479 = vunpack.c.l.b16 %v7684
    %v8480 = vunpack.c.h.b16 %v7684
    %v8481 = vunpack.c.l.b16 %v7685
    %v8482 = vunpack.c.h.b16 %v7685
    %v8483 = vunpack.c.l.b16 %v7686
    %v8484 = vunpack.c.l.b16 %v7687
    %v8485 = vunpack.c.h.b16 %v7687
    %v8486 = vunpack.c.l.b16 %v7688
    %v8487 = vunpack.c.h.b16 %v7688
    %v8488 = vunpack.c.l.b16 %v7689
    %v8489 = vunpack.c.h.b16 %v7689
    %v8490 = vunpack.c.l.b16 %v7690
    %v8491 = vunpack.c.l.b16 %v7691
    %v8492 = vunpack.c.h.b16 %v7691
    %v8493 = vunpack.c.l.b16 %v7692
    %v8494 = vunpack.c.h.b16 %v7692
    %v8495 = vunpack.c.l.b16 %v7693
    %v8496 = vunpack.c.h.b16 %v7693
    %v8497 = vunpack.c.l.b16 %v7694
    %v8498 = vunpack.c.l.b16 %v7695
    %v8499 = vunpack.c.h.b16 %v7695
    %v8500 = vunpack.c.l.b16 %v7696
    %v8501 = vunpack.c.h.b16 %v7696
    %v8502 = vunpack.c.l.b16 %v7697
    %v8503 = vunpack.c.h.b16 %v7697
    %v8504 = vunpack.c.l.b16 %v7698
    %v8505 = vunpack.c.l.b16 %v7699
    %v8506 = vunpack.c.h.b16 %v7699
    %v8507 = vunpack.c.l.b16 %v7700
    %v8508 = vunpack.c.h.b16 %v7700
    %v8509 = vunpack.c.l.b16 %v7701
    %v8510 = vunpack.c.h.b16 %v7701
    %v8511 = vunpack.c.l.b16 %v7702
    %v8512 = vunpack.c.l.b16 %v7703
    %v8513 = vunpack.c.h.b16 %v7703
    %v8514 = vunpack.c.l.b16 %v7704
    %v8515 = vunpack.c.h.b16 %v7704
    %v8516 = vunpack.c.l.b16 %v7705
    %v8517 = vunpack.c.h.b16 %v7705
    %v8518 = vunpack.c.l.b16 %v7706
    %v8519 = vunpack.c.l.b16 %v7707
    %v8520 = vunpack.c.h.b16 %v7707
    %v8521 = vunpack.c.l.b16 %v7708
    %v8522 = vunpack.c.h.b16 %v7708
    %v8523 = vunpack.c.l.b16 %v7709
    %v8524 = vunpack.c.h.b16 %v7709
    %v8525 = vunpack.c.l.b16 %v7710
    %v8526 = vunpack.c.l.b16 %v7711
    %v8527 = vunpack.c.h.b16 %v7711
    %v8528 = vunpack.c.l.b16 %v7712
    %v8529 = vunpack.c.h.b16 %v7712
    %v8530 = vunpack.c.l.b16 %v7713
    %v8531 = vunpack.c.h.b16 %v7713
    %v8532 = vunpack.c.l.b16 %v7714
    %v8533 = vunpack.c.l.b16 %v7715
    %v8534 = vunpack.c.h.b16 %v7715
    %v8535 = vunpack.c.l.b16 %v7716
    %v8536 = vunpack.c.h.b16 %v7716
    %v8537 = vunpack.c.l.b16 %v7717
    %v8538 = vunpack.c.h.b16 %v7717
    %v8539 = vunpack.c.l.b16 %v7718
    %v8540 = vunpack.c.l.b16 %v7719
    %v8541 = vunpack.c.h.b16 %v7719
    %v8542 = vunpack.c.l.b16 %v7720
    %v8543 = vunpack.c.h.b16 %v7720
    %v8544 = vunpack.c.l.b16 %v7721
    %v8545 = vunpack.c.h.b16 %v7721
    %v8546 = vunpack.c.l.b16 %v7722
    %v8547 = vunpack.c.l.b16 %v7723
    %v8548 = vunpack.c.h.b16 %v7723
    %v8549 = vunpack.c.l.b16 %v7724
    %v8550 = vunpack.c.h.b16 %v7724
    %v8551 = vunpack.c.l.b16 %v7725
    %v8552 = vunpack.c.h.b16 %v7725
    %v8553 = vunpack.c.l.b16 %v7726
    %v8554 = vunpack.c.l.b16 %v7727
    %v8555 = vunpack.c.h.b16 %v7727
    %v8556 = vunpack.c.l.b16 %v7728
    %v8557 = vunpack.c.h.b16 %v7728
    %v8558 = vunpack.c.l.b16 %v7729
    %v8559 = vunpack.c.h.b16 %v7729
    %v8560 = vunpack.c.l.b16 %v7730
    %v8561 = vunpack.c.l.b16 %v7731
    %v8562 = vunpack.c.h.b16 %v7731
    %v8563 = vunpack.c.l.b16 %v7732
    %v8564 = vunpack.c.h.b16 %v7732
    %v8565 = vunpack.c.l.b16 %v7733
    %v8566 = vunpack.c.h.b16 %v7733
    %v8567 = vunpack.c.l.b16 %v7734
    %v8568 = vunpack.c.l.b16 %v7735
    %v8569 = vunpack.c.h.b16 %v7735
    %v8570 = vunpack.c.l.b16 %v7736
    %v8571 = vunpack.c.h.b16 %v7736
    %v8572 = vunpack.c.l.b16 %v7737
    %v8573 = vunpack.c.h.b16 %v7737
    %v8574 = vunpack.c.l.b16 %v7738
    %v8575 = vunpack.c.l.b16 %v7739
    %v8576 = vunpack.c.h.b16 %v7739
    %v8577 = vunpack.c.l.b16 %v7740
    %v8578 = vunpack.c.h.b16 %v7740
    %v8579 = vunpack.c.l.b16 %v7741
    %v8580 = vunpack.c.h.b16 %v7741
    %v8581 = vunpack.c.l.b16 %v7742
    %v8582 = vunpack.c.l.b16 %v7743
    %v8583 = vunpack.c.h.b16 %v7743
    %v8584 = vunpack.c.l.b16 %v7744
    %v8585 = vunpack.c.h.b16 %v7744
    %v8586 = vunpack.c.l.b16 %v7745
    %v8587 = vunpack.c.h.b16 %v7745
    %v8588 = vunpack.c.l.b16 %v7746
    %v8589 = vunpack.c.l.b16 %v7747
    %v8590 = vunpack.c.h.b16 %v7747
    %v8591 = vunpack.c.l.b16 %v7748
    %v8592 = vunpack.c.h.b16 %v7748
    %v8593 = vunpack.c.l.b16 %v7749
    %v8594 = vunpack.c.h.b16 %v7749
    %v8595 = vunpack.c.l.b16 %v7750
    %v8596 = vunpack.c.l.b16 %v7751
    %v8597 = vunpack.c.h.b16 %v7751
    %v8598 = vunpack.c.l.b16 %v7752
    %v8599 = vunpack.c.h.b16 %v7752
    %v8600 = vunpack.c.l.b16 %v7753
    %v8601 = vunpack.c.h.b16 %v7753
    %v8602 = vunpack.c.l.b16 %v7754
    %v8603 = vunpack.c.l.b16 %v7755
    %v8604 = vunpack.c.h.b16 %v7755
    %v8605 = vunpack.c.l.b16 %v7756
    %v8606 = vunpack.c.h.b16 %v7756
    %v8607 = vunpack.c.l.b16 %v7757
    %v8608 = vunpack.c.h.b16 %v7757
    %v8609 = vunpack.c.l.b16 %v7758
    %v8610 = vunpack.c.l.b16 %v7759
    %v8611 = vunpack.c.h.b16 %v7759
    %v8612 = vunpack.c.l.b16 %v7760
    %v8613 = vunpack.c.h.b16 %v7760
    %v8614 = vunpack.c.l.b16 %v7761
    %v8615 = vunpack.c.h.b16 %v7761
    %v8616 = vunpack.c.l.b16 %v7762
    %v8617 = vunpack.c.l.b16 %v7763
    %v8618 = vunpack.c.h.b16 %v7763
    %v8619 = vunpack.c.l.b16 %v7764
    %v8620 = vunpack.c.h.b16 %v7764
    %v8621 = vunpack.c.l.b16 %v7765
    %v8622 = vunpack.c.h.b16 %v7765
    %v8623 = vunpack.c.l.b16 %v7766
    %v8624 = vunpack.c.l.b16 %v7767
    %v8625 = vunpack.c.h.b16 %v7767
    %v8626 = vunpack.c.l.b16 %v7768
    %v8627 = vunpack.c.h.b16 %v7768
    %v8628 = vunpack.c.l.b16 %v7769
    %v8629 = vunpack.c.h.b16 %v7769
    %v8630 = vunpack.c.l.b16 %v7770
    %v8631 = vunpack.c.l.b16 %v7771
    %v8632 = vunpack.c.h.b16 %v7771
    %v8633 = vunpack.c.l.b16 %v7772
    %v8634 = vunpack.c.h.b16 %v7772
    %v8635 = vunpack.c.l.b16 %v7773
    %v8636 = vunpack.c.h.b16 %v7773
    %v8637 = vunpack.c.l.b16 %v7774
    %v8638 = vunpack.c.l.b16 %v7775
    %v8639 = vunpack.c.h.b16 %v7775
    %v8640 = vunpack.c.l.b16 %v7776
    %v8641 = vunpack.c.h.b16 %v7776
    %v8642 = vunpack.c.l.b16 %v7777
    %v8643 = vunpack.c.h.b16 %v7777
    %v8644 = vunpack.c.l.b16 %v7778
    %v8645 = vunpack.c.l.b16 %v7779
    %v8646 = vunpack.c.h.b16 %v7779
    %v8647 = vunpack.c.l.b16 %v7780
    %v8648 = vunpack.c.h.b16 %v7780
    %v8649 = vunpack.c.l.b16 %v7781
    %v8650 = vunpack.c.h.b16 %v7781
    %v8651 = vunpack.c.l.b16 %v7782
    %v8652 = vunpack.c.l.b16 %v7783
    %v8653 = vunpack.c.h.b16 %v7783
    %v8654 = vunpack.c.l.b16 %v7784
    %v8655 = vunpack.c.h.b16 %v7784
    %v8656 = vunpack.c.l.b16 %v7785
    %v8657 = vunpack.c.h.b16 %v7785
    %v8658 = vunpack.c.l.b16 %v7786
    %v8659 = vunpack.c.l.b16 %v7787
    %v8660 = vunpack.c.h.b16 %v7787
    %v8661 = vunpack.c.l.b16 %v7788
    %v8662 = vunpack.c.h.b16 %v7788
    %v8663 = vunpack.c.l.b16 %v7789
    %v8664 = vunpack.c.h.b16 %v7789
    %v8665 = vunpack.c.l.b16 %v7790
    %v8666 = vunpack.c.l.b16 %v7791
    %v8667 = vunpack.c.h.b16 %v7791
    %v8668 = vunpack.c.l.b16 %v7792
    %v8669 = vunpack.c.h.b16 %v7792
    %v8670 = vunpack.c.l.b16 %v7793
    %v8671 = vunpack.c.h.b16 %v7793
    %v8672 = vunpack.c.l.b16 %v7794
    %v8673 = vunpack.c.l.b16 %v7795
    %v8674 = vunpack.c.h.b16 %v7795
    %v8675 = vunpack.c.l.b16 %v7796
    %v8676 = vunpack.c.h.b16 %v7796
    %v8677 = vunpack.c.l.b16 %v7797
    %v8678 = vunpack.c.h.b16 %v7797
    %v8679 = vunpack.c.l.b16 %v7798
    %v8680 = vunpack.c.l.b16 %v7799
    %v8681 = vunpack.c.h.b16 %v7799
    %v8682 = vunpack.c.l.b16 %v7800
    %v8683 = vunpack.c.h.b16 %v7800
    %v8684 = vunpack.c.l.b16 %v7801
    %v8685 = vunpack.c.h.b16 %v7801
    %v8686 = vunpack.c.l.b16 %v7802
    %v8687 = vunpack.c.l.b16 %v7803
    %v8688 = vunpack.c.h.b16 %v7803
    %v8689 = vunpack.c.l.b16 %v7804
    %v8690 = vunpack.c.h.b16 %v7804
    %v8691 = vunpack.c.l.b16 %v7805
    %v8692 = vunpack.c.h.b16 %v7805
    %v8693 = vunpack.c.l.b16 %v7806
    %v8694 = vunpack.c.l.b16 %v7807
    %v8695 = vunpack.c.h.b16 %v7807
    %v8696 = vunpack.c.l.b16 %v7808
    %v8697 = vunpack.c.h.b16 %v7808
    %v8698 = vunpack.c.l.b16 %v7809
    %v8699 = vunpack.c.h.b16 %v7809
    %v8700 = vunpack.c.l.b16 %v7810
    %v8701 = vunpack.c.l.b16 %v7811
    %v8702 = vunpack.c.h.b16 %v7811
    %v8703 = vunpack.c.l.b16 %v7812
    %v8704 = vunpack.c.h.b16 %v7812
    %v8705 = vunpack.c.l.b16 %v7813
    %v8706 = vunpack.c.h.b16 %v7813
    %v8707 = vunpack.c.l.b16 %v7814
    %v8708 = vunpack.c.l.b16 %v7815
    %v8709 = vunpack.c.h.b16 %v7815
    %v8710 = vunpack.c.l.b16 %v7816
    %v8711 = vunpack.c.h.b16 %v7816
    %v8712 = vunpack.c.l.b16 %v7817
    %v8713 = vunpack.c.h.b16 %v7817
    %v8714 = vunpack.c.l.b16 %v7818
    %v8715 = vunpack.c.l.b16 %v7819
    %v8716 = vunpack.c.h.b16 %v7819
    %v8717 = vunpack.c.l.b16 %v7820
    %v8718 = vunpack.c.h.b16 %v7820
    %v8719 = vunpack.c.l.b16 %v7821
    %v8720 = vunpack.c.h.b16 %v7821
    %v8721 = vunpack.c.l.b16 %v7822
    %v8722 = vunpack.c.l.b16 %v7823
    %v8723 = vunpack.c.h.b16 %v7823
    %v8724 = vunpack.c.l.b16 %v7824
    %v8725 = vunpack.c.h.b16 %v7824
    %v8726 = vunpack.c.l.b16 %v7825
    %v8727 = vunpack.c.h.b16 %v7825
    %v8728 = vunpack.c.l.b16 %v7826
    %v8729 = vunpack.c.l.b16 %v7827
    %v8730 = vunpack.c.h.b16 %v7827
    %v8731 = vunpack.c.l.b16 %v7828
    %v8732 = vunpack.c.h.b16 %v7828
    %v8733 = vunpack.c.l.b16 %v7829
    %v8734 = vunpack.c.h.b16 %v7829
    %v8735 = vunpack.c.l.b16 %v7830
    %v8736 = vunpack.c.l.b16 %v7831
    %v8737 = vunpack.c.h.b16 %v7831
    %v8738 = vunpack.c.l.b16 %v7832
    %v8739 = vunpack.c.h.b16 %v7832
    %v8740 = vunpack.c.l.b16 %v7833
    %v8741 = vunpack.c.h.b16 %v7833
    %v8742 = vunpack.c.l.b16 %v7834
    %v8743 = vunpack.c.l.b16 %v7835
    %v8744 = vunpack.c.h.b16 %v7835
    %v8745 = vunpack.c.l.b16 %v7836
    %v8746 = vunpack.c.h.b16 %v7836
    %v8747 = vunpack.c.l.b16 %v7837
    %v8748 = vunpack.c.h.b16 %v7837
    %v8749 = vunpack.c.l.b16 %v7838
    %v8750 = vunpack.c.l.b16 %v7839
    %v8751 = vunpack.c.h.b16 %v7839
    %v8752 = vunpack.c.l.b16 %v7840
    %v8753 = vunpack.c.h.b16 %v7840
    %v8754 = vunpack.c.l.b16 %v7841
    %v8755 = vunpack.c.h.b16 %v7841
    %v8756 = vunpack.c.l.b16 %v7842
    %v8757 = vunpack.c.l.b16 %v7843
    %v8758 = vunpack.c.h.b16 %v7843
    %v8759 = vunpack.c.l.b16 %v7844
    %v8760 = vunpack.c.h.b16 %v7844
    %v8761 = vunpack.c.l.b16 %v7845
    %v8762 = vunpack.c.h.b16 %v7845
    %v8763 = vunpack.c.l.b16 %v7846
    %v8764 = vpack.c.b16 %v8211, %v8204
    %v8765 = vpack.c.b16 %v8212, %v8205
    %v8766 = vpack.c.b16 %v8213, %v8206
    %v8767 = vpack.c.b16 %v8214, %v8207
    %v8768 = vpack.c.b16 %v8215, %v8208
    %v8769 = vpack.c.b16 %v8216, %v8209
    %v8770 = vpack.c.b16 %v8217, %v8210
    %v8771 = vpack.c.b16 %v8225, %v8218
    %v8772 = vpack.c.b16 %v8226, %v8219
    %v8773 = vpack.c.b16 %v8227, %v8220
    %v8774 = vpack.c.b16 %v8228, %v8221
    %v8775 = vpack.c.b16 %v8229, %v8222
    %v8776 = vpack.c.b16 %v8230, %v8223
    %v8777 = vpack.c.b16 %v8231, %v8224
    %v8778 = vpack.c.b16 %v8239, %v8232
    %v8779 = vpack.c.b16 %v8240, %v8233
    %v8780 = vpack.c.b16 %v8241, %v8234
    %v8781 = vpack.c.b16 %v8242, %v8235
    %v8782 = vpack.c.b16 %v8243, %v8236
    %v8783 = vpack.c.b16 %v8244, %v8237
    %v8784 = vpack.c.b16 %v8245, %v8238
    %v8785 = vpack.c.b16 %v8253, %v8246
    %v8786 = vpack.c.b16 %v8254, %v8247
    %v8787 = vpack.c.b16 %v8255, %v8248
    %v8788 = vpack.c.b16 %v8256, %v8249
    %v8789 = vpack.c.b16 %v8257, %v8250
    %v8790 = vpack.c.b16 %v8258, %v8251
    %v8791 = vpack.c.b16 %v8259, %v8252
    %v8792 = vpack.c.b16 %v8267, %v8260
    %v8793 = vpack.c.b16 %v8268, %v8261
    %v8794 = vpack.c.b16 %v8269, %v8262
    %v8795 = vpack.c.b16 %v8270, %v8263
    %v8796 = vpack.c.b16 %v8271, %v8264
    %v8797 = vpack.c.b16 %v8272, %v8265
    %v8798 = vpack.c.b16 %v8273, %v8266
    %v8799 = vpack.c.b16 %v8281, %v8274
    %v8800 = vpack.c.b16 %v8282, %v8275
    %v8801 = vpack.c.b16 %v8283, %v8276
    %v8802 = vpack.c.b16 %v8284, %v8277
    %v8803 = vpack.c.b16 %v8285, %v8278
    %v8804 = vpack.c.b16 %v8286, %v8279
    %v8805 = vpack.c.b16 %v8287, %v8280
    %v8806 = vpack.c.b16 %v8295, %v8288
    %v8807 = vpack.c.b16 %v8296, %v8289
    %v8808 = vpack.c.b16 %v8297, %v8290
    %v8809 = vpack.c.b16 %v8298, %v8291
    %v8810 = vpack.c.b16 %v8299, %v8292
    %v8811 = vpack.c.b16 %v8300, %v8293
    %v8812 = vpack.c.b16 %v8301, %v8294
    %v8813 = vpack.c.b16 %v8309, %v8302
    %v8814 = vpack.c.b16 %v8310, %v8303
    %v8815 = vpack.c.b16 %v8311, %v8304
    %v8816 = vpack.c.b16 %v8312, %v8305
    %v8817 = vpack.c.b16 %v8313, %v8306
    %v8818 = vpack.c.b16 %v8314, %v8307
    %v8819 = vpack.c.b16 %v8315, %v8308
    %v8820 = vpack.c.b16 %v8323, %v8316
    %v8821 = vpack.c.b16 %v8324, %v8317
    %v8822 = vpack.c.b16 %v8325, %v8318
    %v8823 = vpack.c.b16 %v8326, %v8319
    %v8824 = vpack.c.b16 %v8327, %v8320
    %v8825 = vpack.c.b16 %v8328, %v8321
    %v8826 = vpack.c.b16 %v8329, %v8322
    %v8827 = vpack.c.b16 %v8337, %v8330
    %v8828 = vpack.c.b16 %v8338, %v8331
    %v8829 = vpack.c.b16 %v8339, %v8332
    %v8830 = vpack.c.b16 %v8340, %v8333
    %v8831 = vpack.c.b16 %v8341, %v8334
    %v8832 = vpack.c.b16 %v8342, %v8335
    %v8833 = vpack.c.b16 %v8343, %v8336
    %v8834 = vpack.c.b16 %v8351, %v8344
    %v8835 = vpack.c.b16 %v8352, %v8345
    %v8836 = vpack.c.b16 %v8353, %v8346
    %v8837 = vpack.c.b16 %v8354, %v8347
    %v8838 = vpack.c.b16 %v8355, %v8348
    %v8839 = vpack.c.b16 %v8356, %v8349
    %v8840 = vpack.c.b16 %v8357, %v8350
    %v8841 = vpack.c.b16 %v8365, %v8358
    %v8842 = vpack.c.b16 %v8366, %v8359
    %v8843 = vpack.c.b16 %v8367, %v8360
    %v8844 = vpack.c.b16 %v8368, %v8361
    %v8845 = vpack.c.b16 %v8369, %v8362
    %v8846 = vpack.c.b16 %v8370, %v8363
    %v8847 = vpack.c.b16 %v8371, %v8364
    %v8848 = vpack.c.b16 %v8379, %v8372
    %v8849 = vpack.c.b16 %v8380, %v8373
    %v8850 = vpack.c.b16 %v8381, %v8374
    %v8851 = vpack.c.b16 %v8382, %v8375
    %v8852 = vpack.c.b16 %v8383, %v8376
    %v8853 = vpack.c.b16 %v8384, %v8377
    %v8854 = vpack.c.b16 %v8385, %v8378
    %v8855 = vpack.c.b16 %v8393, %v8386
    %v8856 = vpack.c.b16 %v8394, %v8387
    %v8857 = vpack.c.b16 %v8395, %v8388
    %v8858 = vpack.c.b16 %v8396, %v8389
    %v8859 = vpack.c.b16 %v8397, %v8390
    %v8860 = vpack.c.b16 %v8398, %v8391
    %v8861 = vpack.c.b16 %v8399, %v8392
    %v8862 = vpack.c.b16 %v8407, %v8400
    %v8863 = vpack.c.b16 %v8408, %v8401
    %v8864 = vpack.c.b16 %v8409, %v8402
    %v8865 = vpack.c.b16 %v8410, %v8403
    %v8866 = vpack.c.b16 %v8411, %v8404
    %v8867 = vpack.c.b16 %v8412, %v8405
    %v8868 = vpack.c.b16 %v8413, %v8406
    %v8869 = vpack.c.b16 %v8421, %v8414
    %v8870 = vpack.c.b16 %v8422, %v8415
    %v8871 = vpack.c.b16 %v8423, %v8416
    %v8872 = vpack.c.b16 %v8424, %v8417
    %v8873 = vpack.c.b16 %v8425, %v8418
    %v8874 = vpack.c.b16 %v8426, %v8419
    %v8875 = vpack.c.b16 %v8427, %v8420
    %v8876 = vpack.c.b16 %v8435, %v8428
    %v8877 = vpack.c.b16 %v8436, %v8429
    %v8878 = vpack.c.b16 %v8437, %v8430
    %v8879 = vpack.c.b16 %v8438, %v8431
    %v8880 = vpack.c.b16 %v8439, %v8432
    %v8881 = vpack.c.b16 %v8440, %v8433
    %v8882 = vpack.c.b16 %v8441, %v8434
    %v8883 = vpack.c.b16 %v8449, %v8442
    %v8884 = vpack.c.b16 %v8450, %v8443
    %v8885 = vpack.c.b16 %v8451, %v8444
    %v8886 = vpack.c.b16 %v8452, %v8445
    %v8887 = vpack.c.b16 %v8453, %v8446
    %v8888 = vpack.c.b16 %v8454, %v8447
    %v8889 = vpack.c.b16 %v8455, %v8448
    %v8890 = vpack.c.b16 %v8463, %v8456
    %v8891 = vpack.c.b16 %v8464, %v8457
    %v8892 = vpack.c.b16 %v8465, %v8458
    %v8893 = vpack.c.b16 %v8466, %v8459
    %v8894 = vpack.c.b16 %v8467, %v8460
    %v8895 = vpack.c.b16 %v8468, %v8461
    %v8896 = vpack.c.b16 %v8469, %v8462
    %v8897 = vpack.c.b16 %v8477, %v8470
    %v8898 = vpack.c.b16 %v8478, %v8471
    %v8899 = vpack.c.b16 %v8479, %v8472
    %v8900 = vpack.c.b16 %v8480, %v8473
    %v8901 = vpack.c.b16 %v8481, %v8474
    %v8902 = vpack.c.b16 %v8482, %v8475
    %v8903 = vpack.c.b16 %v8483, %v8476
    %v8904 = vpack.c.b16 %v8491, %v8484
    %v8905 = vpack.c.b16 %v8492, %v8485
    %v8906 = vpack.c.b16 %v8493, %v8486
    %v8907 = vpack.c.b16 %v8494, %v8487
    %v8908 = vpack.c.b16 %v8495, %v8488
    %v8909 = vpack.c.b16 %v8496, %v8489
    %v8910 = vpack.c.b16 %v8497, %v8490
    %v8911 = vpack.c.b16 %v8505, %v8498
    %v8912 = vpack.c.b16 %v8506, %v8499
    %v8913 = vpack.c.b16 %v8507, %v8500
    %v8914 = vpack.c.b16 %v8508, %v8501
    %v8915 = vpack.c.b16 %v8509, %v8502
    %v8916 = vpack.c.b16 %v8510, %v8503
    %v8917 = vpack.c.b16 %v8511, %v8504
    %v8918 = vpack.c.b16 %v8519, %v8512
    %v8919 = vpack.c.b16 %v8520, %v8513
    %v8920 = vpack.c.b16 %v8521, %v8514
    %v8921 = vpack.c.b16 %v8522, %v8515
    %v8922 = vpack.c.b16 %v8523, %v8516
    %v8923 = vpack.c.b16 %v8524, %v8517
    %v8924 = vpack.c.b16 %v8525, %v8518
    %v8925 = vpack.c.b16 %v8533, %v8526
    %v8926 = vpack.c.b16 %v8534, %v8527
    %v8927 = vpack.c.b16 %v8535, %v8528
    %v8928 = vpack.c.b16 %v8536, %v8529
    %v8929 = vpack.c.b16 %v8537, %v8530
    %v8930 = vpack.c.b16 %v8538, %v8531
    %v8931 = vpack.c.b16 %v8539, %v8532
    %v8932 = vpack.c.b16 %v8547, %v8540
    %v8933 = vpack.c.b16 %v8548, %v8541
    %v8934 = vpack.c.b16 %v8549, %v8542
    %v8935 = vpack.c.b16 %v8550, %v8543
    %v8936 = vpack.c.b16 %v8551, %v8544
    %v8937 = vpack.c.b16 %v8552, %v8545
    %v8938 = vpack.c.b16 %v8553, %v8546
    %v8939 = vpack.c.b16 %v8561, %v8554
    %v8940 = vpack.c.b16 %v8562, %v8555
    %v8941 = vpack.c.b16 %v8563, %v8556
    %v8942 = vpack.c.b16 %v8564, %v8557
    %v8943 = vpack.c.b16 %v8565, %v8558
    %v8944 = vpack.c.b16 %v8566, %v8559
    %v8945 = vpack.c.b16 %v8567, %v8560
    %v8946 = vpack.c.b16 %v8575, %v8568
    %v8947 = vpack.c.b16 %v8576, %v8569
    %v8948 = vpack.c.b16 %v8577, %v8570
    %v8949 = vpack.c.b16 %v8578, %v8571
    %v8950 = vpack.c.b16 %v8579, %v8572
    %v8951 = vpack.c.b16 %v8580, %v8573
    %v8952 = vpack.c.b16 %v8581, %v8574
    %v8953 = vpack.c.b16 %v8589, %v8582
    %v8954 = vpack.c.b16 %v8590, %v8583
    %v8955 = vpack.c.b16 %v8591, %v8584
    %v8956 = vpack.c.b16 %v8592, %v8585
    %v8957 = vpack.c.b16 %v8593, %v8586
    %v8958 = vpack.c.b16 %v8594, %v8587
    %v8959 = vpack.c.b16 %v8595, %v8588
    %v8960 = vpack.c.b16 %v8603, %v8596
    %v8961 = vpack.c.b16 %v8604, %v8597
    %v8962 = vpack.c.b16 %v8605, %v8598
    %v8963 = vpack.c.b16 %v8606, %v8599
    %v8964 = vpack.c.b16 %v8607, %v8600
    %v8965 = vpack.c.b16 %v8608, %v8601
    %v8966 = vpack.c.b16 %v8609, %v8602
    %v8967 = vpack.c.b16 %v8617, %v8610
    %v8968 = vpack.c.b16 %v8618, %v8611
    %v8969 = vpack.c.b16 %v8619, %v8612
    %v8970 = vpack.c.b16 %v8620, %v8613
    %v8971 = vpack.c.b16 %v8621, %v8614
    %v8972 = vpack.c.b16 %v8622, %v8615
    %v8973 = vpack.c.b16 %v8623, %v8616
    %v8974 = vpack.c.b16 %v8631, %v8624
    %v8975 = vpack.c.b16 %v8632, %v8625
    %v8976 = vpack.c.b16 %v8633, %v8626
    %v8977 = vpack.c.b16 %v8634, %v8627
    %v8978 = vpack.c.b16 %v8635, %v8628
    %v8979 = vpack.c.b16 %v8636, %v8629
    %v8980 = vpack.c.b16 %v8637, %v8630
    %v8981 = vpack.c.b16 %v8645, %v8638
    %v8982 = vpack.c.b16 %v8646, %v8639
    %v8983 = vpack.c.b16 %v8647, %v8640
    %v8984 = vpack.c.b16 %v8648, %v8641
    %v8985 = vpack.c.b16 %v8649, %v8642
    %v8986 = vpack.c.b16 %v8650, %v8643
    %v8987 = vpack.c.b16 %v8651, %v8644
    %v8988 = vpack.c.b16 %v8659, %v8652
    %v8989 = vpack.c.b16 %v8660, %v8653
    %v8990 = vpack.c.b16 %v8661, %v8654
    %v8991 = vpack.c.b16 %v8662, %v8655
    %v8992 = vpack.c.b16 %v8663, %v8656
    %v8993 = vpack.c.b16 %v8664, %v8657
    %v8994 = vpack.c.b16 %v8665, %v8658
    %v8995 = vpack.c.b16 %v8673, %v8666
    %v8996 = vpack.c.b16 %v8674, %v8667
    %v8997 = vpack.c.b16 %v8675, %v8668
    %v8998 = vpack.c.b16 %v8676, %v8669
    %v8999 = vpack.c.b16 %v8677, %v8670
    %v9000 = vpack.c.b16 %v8678, %v8671
    %v9001 = vpack.c.b16 %v8679, %v8672
    %v9002 = vpack.c.b16 %v8687, %v8680
    %v9003 = vpack.c.b16 %v8688, %v8681
    %v9004 = vpack.c.b16 %v8689, %v8682
    %v9005 = vpack.c.b16 %v8690, %v8683
    %v9006 = vpack.c.b16 %v8691, %v8684
    %v9007 = vpack.c.b16 %v8692, %v8685
    %v9008 = vpack.c.b16 %v8693, %v8686
    %v9009 = vpack.c.b16 %v8701, %v8694
    %v9010 = vpack.c.b16 %v8702, %v8695
    %v9011 = vpack.c.b16 %v8703, %v8696
    %v9012 = vpack.c.b16 %v8704, %v8697
    %v9013 = vpack.c.b16 %v8705, %v8698
    %v9014 = vpack.c.b16 %v8706, %v8699
    %v9015 = vpack.c.b16 %v8707, %v8700
    %v9016 = vpack.c.b16 %v8715, %v8708
    %v9017 = vpack.c.b16 %v8716, %v8709
    %v9018 = vpack.c.b16 %v8717, %v8710
    %v9019 = vpack.c.b16 %v8718, %v8711
    %v9020 = vpack.c.b16 %v8719, %v8712
    %v9021 = vpack.c.b16 %v8720, %v8713
    %v9022 = vpack.c.b16 %v8721, %v8714
    %v9023 = vpack.c.b16 %v8729, %v8722
    %v9024 = vpack.c.b16 %v8730, %v8723
    %v9025 = vpack.c.b16 %v8731, %v8724
    %v9026 = vpack.c.b16 %v8732, %v8725
    %v9027 = vpack.c.b16 %v8733, %v8726
    %v9028 = vpack.c.b16 %v8734, %v8727
    %v9029 = vpack.c.b16 %v8735, %v8728
    %v9030 = vpack.c.b16 %v8743, %v8736
    %v9031 = vpack.c.b16 %v8744, %v8737
    %v9032 = vpack.c.b16 %v8745, %v8738
    %v9033 = vpack.c.b16 %v8746, %v8739
    %v9034 = vpack.c.b16 %v8747, %v8740
    %v9035 = vpack.c.b16 %v8748, %v8741
    %v9036 = vpack.c.b16 %v8749, %v8742
    %v9037 = vpack.c.b16 %v8757, %v8750
    %v9038 = vpack.c.b16 %v8758, %v8751
    %v9039 = vpack.c.b16 %v8759, %v8752
    %v9040 = vpack.c.b16 %v8760, %v8753
    %v9041 = vpack.c.b16 %v8761, %v8754
    %v9042 = vpack.c.b16 %v8762, %v8755
    %v9043 = vpack.c.b16 %v8763, %v8756
    %9324 = vmatprep.subr.bf16.mxu0 %v8814
    %9325 = vmatpush1.bf16.msra.mxu0 %v8813
    %9326 = vmatprep.subr.bf16.mxu0 %v8807
    %9327 = vmatpush1.bf16.msra.mxu0 %v8806
    %9328 = vmatprep.subr.bf16.mxu0 %v8800
    %9329 = vmatpush1.bf16.msra.mxu0 %v8799
    %9330 = vmatprep.subr.bf16.mxu0 %v8793
    %9331 = vmatpush1.bf16.msra.mxu0 %v8792
    %9332 = vmatprep.subr.bf16.mxu0 %v8786
    %9333 = vmatpush1.bf16.msra.mxu0 %v8785
    %9334 = vmatprep.subr.bf16.mxu0 %v8779
    %9335 = vmatpush1.bf16.msra.mxu0 %v8778
    %9336 = vmatprep.subr.bf16.mxu0 %v8772
    %9337 = vmatpush1.bf16.msra.mxu0 %v8771
    %9338 = vmatprep.subr.bf16.mxu0 %v8765
    %9339 = vmatpush1.bf16.msra.mxu0 %v8764
    %9340 = vmatprep.subr.bf16.mxu0 %v8870
    %9341 = vmatpush2.bf16.msra.mxu0 %v8869
    %9342 = vmatprep.subr.bf16.mxu0 %v8863
    %9343 = vmatpush2.bf16.msra.mxu0 %v8862
    %9344 = vmatprep.subr.bf16.mxu0 %v8856
    %9345 = vmatpush2.bf16.msra.mxu0 %v8855
    %9346 = vmatprep.subr.bf16.mxu0 %v8849
    %9347 = vmatpush2.bf16.msra.mxu0 %v8848
    %9348 = vmatprep.subr.bf16.mxu0 %v8842
    %9349 = vmatpush2.bf16.msra.mxu0 %v8841
    %9350 = vmatprep.subr.bf16.mxu0 %v8835
    %9351 = vmatpush2.bf16.msra.mxu0 %v8834
    %9352 = vmatprep.subr.bf16.mxu0 %v8828
    %9353 = vmatpush2.bf16.msra.mxu0 %v8827
    %9354 = vmatprep.subr.bf16.mxu0 %v8821
    %9355 = vmatpush2.bf16.msra.mxu0 %v8820
    %9356 = vmatprep.mubr.bf16.mxu0 %v7523
    %9357 = vmatmul.mubr.bf16.gmra.mxu0 %v7522
    %v9358 = vpop.f32.mrf.mxu0
    %v9359 = vadd.f32 %v7852, %v9358
    %v9360 = vpop.f32.mrf.mxu0
    %v9361 = vadd.f32 %v7856, %v9360
    %v9362 = vpop.f32.mrf.mxu0
    %v9363 = vpop.f32.mrf.mxu0
    %9364 = vdwg.mxu0
    %9365 = vmatprep.subr.bf16.mxu0 %v8926
    %9366 = vmatpush1.bf16.msra.mxu0 %v8925
    %9367 = vmatprep.subr.bf16.mxu0 %v8919
    %9368 = vmatpush1.bf16.msra.mxu0 %v8918
    %9369 = vmatprep.subr.bf16.mxu0 %v8912
    %9370 = vmatpush1.bf16.msra.mxu0 %v8911
    %9371 = vmatprep.subr.bf16.mxu0 %v8905
    %9372 = vmatpush1.bf16.msra.mxu0 %v8904
    %9373 = vmatprep.subr.bf16.mxu0 %v8898
    %9374 = vmatpush1.bf16.msra.mxu0 %v8897
    %9375 = vmatprep.subr.bf16.mxu0 %v8891
    %9376 = vmatpush1.bf16.msra.mxu0 %v8890
    %9377 = vmatprep.subr.bf16.mxu0 %v8884
    %9378 = vmatpush1.bf16.msra.mxu0 %v8883
    %9379 = vmatprep.subr.bf16.mxu0 %v8877
    %9380 = vmatpush1.bf16.msra.mxu0 %v8876
    %9381 = vmatprep.subr.bf16.mxu0 %v8982
    %9382 = vmatpush2.bf16.msra.mxu0 %v8981
    %9383 = vmatprep.subr.bf16.mxu0 %v8975
    %9384 = vmatpush2.bf16.msra.mxu0 %v8974
    %9385 = vmatprep.subr.bf16.mxu0 %v8968
    %9386 = vmatpush2.bf16.msra.mxu0 %v8967
    %9387 = vmatprep.subr.bf16.mxu0 %v8961
    %9388 = vmatpush2.bf16.msra.mxu0 %v8960
    %9389 = vmatprep.subr.bf16.mxu0 %v8954
    %9390 = vmatpush2.bf16.msra.mxu0 %v8953
    %9391 = vmatprep.subr.bf16.mxu0 %v8947
    %9392 = vmatpush2.bf16.msra.mxu0 %v8946
    %9393 = vmatprep.subr.bf16.mxu0 %v8940
    %9394 = vmatpush2.bf16.msra.mxu0 %v8939
    %9395 = vmatprep.subr.bf16.mxu0 %v8933
    %9396 = vmatpush2.bf16.msra.mxu0 %v8932
    %9397 = vmatprep.mubr.bf16.mxu0 %v7525
    %9398 = vmatmul.mubr.bf16.gmra.mxu0 %v7524
    %v9399 = vpop.f32.mrf.mxu0
    %v9400 = vadd.f32 %v9359, %v9399
    %v9401 = vpop.f32.mrf.mxu0
    %v9402 = vadd.f32 %v9361, %v9401
    %v9403 = vpop.f32.mrf.mxu0
    %v9404 = vpop.f32.mrf.mxu0
    %9405 = vdwg.mxu0
    %9406 = vmatprep.subr.bf16.mxu0 %v9038
    %9407 = vmatpush1.bf16.msra.mxu0 %v9037
    %9408 = vmatprep.subr.bf16.mxu0 %v9031
    %9409 = vmatpush1.bf16.msra.mxu0 %v9030
    %9410 = vmatprep.subr.bf16.mxu0 %v9024
    %9411 = vmatpush1.bf16.msra.mxu0 %v9023
    %9412 = vmatprep.subr.bf16.mxu0 %v9017
    %9413 = vmatpush1.bf16.msra.mxu0 %v9016
    %9414 = vmatprep.subr.bf16.mxu0 %v9010
    %9415 = vmatpush1.bf16.msra.mxu0 %v9009
    %9416 = vmatprep.subr.bf16.mxu0 %v9003
    %9417 = vmatpush1.bf16.msra.mxu0 %v9002
    %9418 = vmatprep.subr.bf16.mxu0 %v8996
    %9419 = vmatpush1.bf16.msra.mxu0 %v8995
    %9420 = vmatprep.subr.bf16.mxu0 %v8989
    %9421 = vmatpush1.bf16.msra.mxu0 %v8988
    %9422 = vmatprep.subr.bf16.mxu0 0
    %9423 = vmatpush2.bf16.msra.mxu0 0
    %9424 = vmatprep.subr.bf16.mxu0 0
    %9425 = vmatpush2.bf16.msra.mxu0 0
    %9426 = vmatprep.subr.bf16.mxu0 0
    %9427 = vmatpush2.bf16.msra.mxu0 0
    %9428 = vmatprep.subr.bf16.mxu0 0
    %9429 = vmatpush2.bf16.msra.mxu0 0
    %9430 = vmatprep.subr.bf16.mxu0 0
    %9431 = vmatpush2.bf16.msra.mxu0 0
    %9432 = vmatprep.subr.bf16.mxu0 0
    %9433 = vmatpush2.bf16.msra.mxu0 0
    %9434 = vmatprep.subr.bf16.mxu0 0
    %9435 = vmatpush2.bf16.msra.mxu0 0
    %9436 = vmatprep.subr.bf16.mxu0 0
    %9437 = vmatpush2.bf16.msra.mxu0 0
    %9438 = vmatprep.mubr.bf16.mxu0 0
    %9439 = vmatmul.mubr.bf16.gmra.mxu0 %v7526
    %v9440 = vpop.f32.mrf.mxu0
    %v9441 = vadd.f32 %v9400, %v9440
    %v9442 = vpop.f32.mrf.mxu0
    %v9443 = vadd.f32 %v9402, %v9442
    %v9444 = vpop.f32.mrf.mxu0
    %v9445 = vpop.f32.mrf.mxu0
    %9446 = vdwg.mxu0
    %9447 = vmatprep.subr.bf16.mxu0 %v8816
    %9448 = vmatpush1.bf16.msra.mxu0 %v8815
    %9449 = vmatprep.subr.bf16.mxu0 %v8809
    %9450 = vmatpush1.bf16.msra.mxu0 %v8808
    %9451 = vmatprep.subr.bf16.mxu0 %v8802
    %9452 = vmatpush1.bf16.msra.mxu0 %v8801
    %9453 = vmatprep.subr.bf16.mxu0 %v8795
    %9454 = vmatpush1.bf16.msra.mxu0 %v8794
    %9455 = vmatprep.subr.bf16.mxu0 %v8788
    %9456 = vmatpush1.bf16.msra.mxu0 %v8787
    %9457 = vmatprep.subr.bf16.mxu0 %v8781
    %9458 = vmatpush1.bf16.msra.mxu0 %v8780
    %9459 = vmatprep.subr.bf16.mxu0 %v8774
    %9460 = vmatpush1.bf16.msra.mxu0 %v8773
    %9461 = vmatprep.subr.bf16.mxu0 %v8767
    %9462 = vmatpush1.bf16.msra.mxu0 %v8766
    %9463 = vmatprep.subr.bf16.mxu0 %v8872
    %9464 = vmatpush2.bf16.msra.mxu0 %v8871
    %9465 = vmatprep.subr.bf16.mxu0 %v8865
    %9466 = vmatpush2.bf16.msra.mxu0 %v8864
    %9467 = vmatprep.subr.bf16.mxu0 %v8858
    %9468 = vmatpush2.bf16.msra.mxu0 %v8857
    %9469 = vmatprep.subr.bf16.mxu0 %v8851
    %9470 = vmatpush2.bf16.msra.mxu0 %v8850
    %9471 = vmatprep.subr.bf16.mxu0 %v8844
    %9472 = vmatpush2.bf16.msra.mxu0 %v8843
    %9473 = vmatprep.subr.bf16.mxu0 %v8837
    %9474 = vmatpush2.bf16.msra.mxu0 %v8836
    %9475 = vmatprep.subr.bf16.mxu0 %v8830
    %9476 = vmatpush2.bf16.msra.mxu0 %v8829
    %9477 = vmatprep.subr.bf16.mxu0 %v8823
    %9478 = vmatpush2.bf16.msra.mxu0 %v8822
    %9479 = vmatprep.mubr.bf16.mxu0 %v7523
    %9480 = vmatmul.mubr.bf16.gmra.mxu0 %v7522
    %v9481 = vpop.f32.mrf.mxu0
    %v9482 = vadd.f32 %v7860, %v9481
    %v9483 = vpop.f32.mrf.mxu0
    %v9484 = vadd.f32 %v7864, %v9483
    %v9485 = vpop.f32.mrf.mxu0
    %v9486 = vpop.f32.mrf.mxu0
    %9487 = vdwg.mxu0
    %9488 = vmatprep.subr.bf16.mxu0 %v8928
    %9489 = vmatpush1.bf16.msra.mxu0 %v8927
    %9490 = vmatprep.subr.bf16.mxu0 %v8921
    %9491 = vmatpush1.bf16.msra.mxu0 %v8920
    %9492 = vmatprep.subr.bf16.mxu0 %v8914
    %9493 = vmatpush1.bf16.msra.mxu0 %v8913
    %9494 = vmatprep.subr.bf16.mxu0 %v8907
    %9495 = vmatpush1.bf16.msra.mxu0 %v8906
    %9496 = vmatprep.subr.bf16.mxu0 %v8900
    %9497 = vmatpush1.bf16.msra.mxu0 %v8899
    %9498 = vmatprep.subr.bf16.mxu0 %v8893
    %9499 = vmatpush1.bf16.msra.mxu0 %v8892
    %9500 = vmatprep.subr.bf16.mxu0 %v8886
    %9501 = vmatpush1.bf16.msra.mxu0 %v8885
    %9502 = vmatprep.subr.bf16.mxu0 %v8879
    %9503 = vmatpush1.bf16.msra.mxu0 %v8878
    %9504 = vmatprep.subr.bf16.mxu0 %v8984
    %9505 = vmatpush2.bf16.msra.mxu0 %v8983
    %9506 = vmatprep.subr.bf16.mxu0 %v8977
    %9507 = vmatpush2.bf16.msra.mxu0 %v8976
    %9508 = vmatprep.subr.bf16.mxu0 %v8970
    %9509 = vmatpush2.bf16.msra.mxu0 %v8969
    %9510 = vmatprep.subr.bf16.mxu0 %v8963
    %9511 = vmatpush2.bf16.msra.mxu0 %v8962
    %9512 = vmatprep.subr.bf16.mxu0 %v8956
    %9513 = vmatpush2.bf16.msra.mxu0 %v8955
    %9514 = vmatprep.subr.bf16.mxu0 %v8949
    %9515 = vmatpush2.bf16.msra.mxu0 %v8948
    %9516 = vmatprep.subr.bf16.mxu0 %v8942
    %9517 = vmatpush2.bf16.msra.mxu0 %v8941
    %9518 = vmatprep.subr.bf16.mxu0 %v8935
    %9519 = vmatpush2.bf16.msra.mxu0 %v8934
    %9520 = vmatprep.mubr.bf16.mxu0 %v7525
    %9521 = vmatmul.mubr.bf16.gmra.mxu0 %v7524
    %v9522 = vpop.f32.mrf.mxu0
    %v9523 = vadd.f32 %v9482, %v9522
    %v9524 = vpop.f32.mrf.mxu0
    %v9525 = vadd.f32 %v9484, %v9524
    %v9526 = vpop.f32.mrf.mxu0
    %v9527 = vpop.f32.mrf.mxu0
    %9528 = vdwg.mxu0
    %9529 = vmatprep.subr.bf16.mxu0 %v9040
    %9530 = vmatpush1.bf16.msra.mxu0 %v9039
    %9531 = vmatprep.subr.bf16.mxu0 %v9033
    %9532 = vmatpush1.bf16.msra.mxu0 %v9032
    %9533 = vmatprep.subr.bf16.mxu0 %v9026
    %9534 = vmatpush1.bf16.msra.mxu0 %v9025
    %9535 = vmatprep.subr.bf16.mxu0 %v9019
    %9536 = vmatpush1.bf16.msra.mxu0 %v9018
    %9537 = vmatprep.subr.bf16.mxu0 %v9012
    %9538 = vmatpush1.bf16.msra.mxu0 %v9011
    %9539 = vmatprep.subr.bf16.mxu0 %v9005
    %9540 = vmatpush1.bf16.msra.mxu0 %v9004
    %9541 = vmatprep.subr.bf16.mxu0 %v8998
    %9542 = vmatpush1.bf16.msra.mxu0 %v8997
    %9543 = vmatprep.subr.bf16.mxu0 %v8991
    %9544 = vmatpush1.bf16.msra.mxu0 %v8990
    %9545 = vmatprep.subr.bf16.mxu0 0
    %9546 = vmatpush2.bf16.msra.mxu0 0
    %9547 = vmatprep.subr.bf16.mxu0 0
    %9548 = vmatpush2.bf16.msra.mxu0 0
    %9549 = vmatprep.subr.bf16.mxu0 0
    %9550 = vmatpush2.bf16.msra.mxu0 0
    %9551 = vmatprep.subr.bf16.mxu0 0
    %9552 = vmatpush2.bf16.msra.mxu0 0
    %9553 = vmatprep.subr.bf16.mxu0 0
    %9554 = vmatpush2.bf16.msra.mxu0 0
    %9555 = vmatprep.subr.bf16.mxu0 0
    %9556 = vmatpush2.bf16.msra.mxu0 0
    %9557 = vmatprep.subr.bf16.mxu0 0
    %9558 = vmatpush2.bf16.msra.mxu0 0
    %9559 = vmatprep.subr.bf16.mxu0 0
    %9560 = vmatpush2.bf16.msra.mxu0 0
    %9561 = vmatprep.mubr.bf16.mxu0 0
    %9562 = vmatmul.mubr.bf16.gmra.mxu0 %v7526
    %v9563 = vpop.f32.mrf.mxu0
    %v9564 = vadd.f32 %v9523, %v9563
    %v9565 = vpop.f32.mrf.mxu0
    %v9566 = vadd.f32 %v9525, %v9565
    %v9567 = vpop.f32.mrf.mxu0
    %v9568 = vpop.f32.mrf.mxu0
    %9569 = vdwg.mxu0
    %9570 = vmatprep.subr.bf16.mxu0 %v8818
    %9571 = vmatpush1.bf16.msra.mxu0 %v8817
    %9572 = vmatprep.subr.bf16.mxu0 %v8811
    %9573 = vmatpush1.bf16.msra.mxu0 %v8810
    %9574 = vmatprep.subr.bf16.mxu0 %v8804
    %9575 = vmatpush1.bf16.msra.mxu0 %v8803
    %9576 = vmatprep.subr.bf16.mxu0 %v8797
    %9577 = vmatpush1.bf16.msra.mxu0 %v8796
    %9578 = vmatprep.subr.bf16.mxu0 %v8790
    %9579 = vmatpush1.bf16.msra.mxu0 %v8789
    %9580 = vmatprep.subr.bf16.mxu0 %v8783
    %9581 = vmatpush1.bf16.msra.mxu0 %v8782
    %9582 = vmatprep.subr.bf16.mxu0 %v8776
    %9583 = vmatpush1.bf16.msra.mxu0 %v8775
    %9584 = vmatprep.subr.bf16.mxu0 %v8769
    %9585 = vmatpush1.bf16.msra.mxu0 %v8768
    %9586 = vmatprep.subr.bf16.mxu0 %v8874
    %9587 = vmatpush2.bf16.msra.mxu0 %v8873
    %9588 = vmatprep.subr.bf16.mxu0 %v8867
    %9589 = vmatpush2.bf16.msra.mxu0 %v8866
    %9590 = vmatprep.subr.bf16.mxu0 %v8860
    %9591 = vmatpush2.bf16.msra.mxu0 %v8859
    %9592 = vmatprep.subr.bf16.mxu0 %v8853
    %9593 = vmatpush2.bf16.msra.mxu0 %v8852
    %9594 = vmatprep.subr.bf16.mxu0 %v8846
    %9595 = vmatpush2.bf16.msra.mxu0 %v8845
    %9596 = vmatprep.subr.bf16.mxu0 %v8839
    %9597 = vmatpush2.bf16.msra.mxu0 %v8838
    %9598 = vmatprep.subr.bf16.mxu0 %v8832
    %9599 = vmatpush2.bf16.msra.mxu0 %v8831
    %9600 = vmatprep.subr.bf16.mxu0 %v8825
    %9601 = vmatpush2.bf16.msra.mxu0 %v8824
    %9602 = vmatprep.mubr.bf16.mxu0 %v7523
    %9603 = vmatmul.mubr.bf16.gmra.mxu0 %v7522
    %v9604 = vpop.f32.mrf.mxu0
    %v9605 = vadd.f32 %v7868, %v9604
    %v9606 = vpop.f32.mrf.mxu0
    %v9607 = vadd.f32 %v7872, %v9606
    %v9608 = vpop.f32.mrf.mxu0
    %v9609 = vpop.f32.mrf.mxu0
    %9610 = vdwg.mxu0
    %9611 = vmatprep.subr.bf16.mxu0 %v8930
    %9612 = vmatpush1.bf16.msra.mxu0 %v8929
    %9613 = vmatprep.subr.bf16.mxu0 %v8923
    %9614 = vmatpush1.bf16.msra.mxu0 %v8922
    %9615 = vmatprep.subr.bf16.mxu0 %v8916
    %9616 = vmatpush1.bf16.msra.mxu0 %v8915
    %9617 = vmatprep.subr.bf16.mxu0 %v8909
    %9618 = vmatpush1.bf16.msra.mxu0 %v8908
    %9619 = vmatprep.subr.bf16.mxu0 %v8902
    %9620 = vmatpush1.bf16.msra.mxu0 %v8901
    %9621 = vmatprep.subr.bf16.mxu0 %v8895
    %9622 = vmatpush1.bf16.msra.mxu0 %v8894
    %9623 = vmatprep.subr.bf16.mxu0 %v8888
    %9624 = vmatpush1.bf16.msra.mxu0 %v8887
    %9625 = vmatprep.subr.bf16.mxu0 %v8881
    %9626 = vmatpush1.bf16.msra.mxu0 %v8880
    %9627 = vmatprep.subr.bf16.mxu0 %v8986
    %9628 = vmatpush2.bf16.msra.mxu0 %v8985
    %9629 = vmatprep.subr.bf16.mxu0 %v8979
    %9630 = vmatpush2.bf16.msra.mxu0 %v8978
    %9631 = vmatprep.subr.bf16.mxu0 %v8972
    %9632 = vmatpush2.bf16.msra.mxu0 %v8971
    %9633 = vmatprep.subr.bf16.mxu0 %v8965
    %9634 = vmatpush2.bf16.msra.mxu0 %v8964
    %9635 = vmatprep.subr.bf16.mxu0 %v8958
    %9636 = vmatpush2.bf16.msra.mxu0 %v8957
    %9637 = vmatprep.subr.bf16.mxu0 %v8951
    %9638 = vmatpush2.bf16.msra.mxu0 %v8950
    %9639 = vmatprep.subr.bf16.mxu0 %v8944
    %9640 = vmatpush2.bf16.msra.mxu0 %v8943
    %9641 = vmatprep.subr.bf16.mxu0 %v8937
    %9642 = vmatpush2.bf16.msra.mxu0 %v8936
    %9643 = vmatprep.mubr.bf16.mxu0 %v7525
    %9644 = vmatmul.mubr.bf16.gmra.mxu0 %v7524
    %v9645 = vpop.f32.mrf.mxu0
    %v9646 = vadd.f32 %v9605, %v9645
    %v9647 = vpop.f32.mrf.mxu0
    %v9648 = vadd.f32 %v9607, %v9647
    %v9649 = vpop.f32.mrf.mxu0
    %v9650 = vpop.f32.mrf.mxu0
    %9651 = vdwg.mxu0
    %9652 = vmatprep.subr.bf16.mxu0 %v9042
    %9653 = vmatpush1.bf16.msra.mxu0 %v9041
    %9654 = vmatprep.subr.bf16.mxu0 %v9035
    %9655 = vmatpush1.bf16.msra.mxu0 %v9034
    %9656 = vmatprep.subr.bf16.mxu0 %v9028
    %9657 = vmatpush1.bf16.msra.mxu0 %v9027
    %9658 = vmatprep.subr.bf16.mxu0 %v9021
    %9659 = vmatpush1.bf16.msra.mxu0 %v9020
    %9660 = vmatprep.subr.bf16.mxu0 %v9014
    %9661 = vmatpush1.bf16.msra.mxu0 %v9013
    %9662 = vmatprep.subr.bf16.mxu0 %v9007
    %9663 = vmatpush1.bf16.msra.mxu0 %v9006
    %9664 = vmatprep.subr.bf16.mxu0 %v9000
    %9665 = vmatpush1.bf16.msra.mxu0 %v8999
    %9666 = vmatprep.subr.bf16.mxu0 %v8993
    %9667 = vmatpush1.bf16.msra.mxu0 %v8992
    %9668 = vmatprep.subr.bf16.mxu0 0
    %9669 = vmatpush2.bf16.msra.mxu0 0
    %9670 = vmatprep.subr.bf16.mxu0 0
    %9671 = vmatpush2.bf16.msra.mxu0 0
    %9672 = vmatprep.subr.bf16.mxu0 0
    %9673 = vmatpush2.bf16.msra.mxu0 0
    %9674 = vmatprep.subr.bf16.mxu0 0
    %9675 = vmatpush2.bf16.msra.mxu0 0
    %9676 = vmatprep.subr.bf16.mxu0 0
    %9677 = vmatpush2.bf16.msra.mxu0 0
    %9678 = vmatprep.subr.bf16.mxu0 0
    %9679 = vmatpush2.bf16.msra.mxu0 0
    %9680 = vmatprep.subr.bf16.mxu0 0
    %9681 = vmatpush2.bf16.msra.mxu0 0
    %9682 = vmatprep.subr.bf16.mxu0 0
    %9683 = vmatpush2.bf16.msra.mxu0 0
    %9684 = vmatprep.mubr.bf16.mxu0 0
    %9685 = vmatmul.mubr.bf16.gmra.mxu0 %v7526
    %v9686 = vpop.f32.mrf.mxu0
    %v9687 = vadd.f32 %v9646, %v9686
    %v9688 = vpop.f32.mrf.mxu0
    %v9689 = vadd.f32 %v9648, %v9688
    %v9690 = vpop.f32.mrf.mxu0
    %v9691 = vpop.f32.mrf.mxu0
    %9692 = vdwg.mxu0
    %9693 = vmatprep.subr.bf16.mxu0 0
    %9694 = vmatpush1.bf16.msra.mxu0 %v8819
    %9695 = vmatprep.subr.bf16.mxu0 0
    %9696 = vmatpush1.bf16.msra.mxu0 %v8812
    %9697 = vmatprep.subr.bf16.mxu0 0
    %9698 = vmatpush1.bf16.msra.mxu0 %v8805
    %9699 = vmatprep.subr.bf16.mxu0 0
    %9700 = vmatpush1.bf16.msra.mxu0 %v8798
    %9701 = vmatprep.subr.bf16.mxu0 0
    %9702 = vmatpush1.bf16.msra.mxu0 %v8791
    %9703 = vmatprep.subr.bf16.mxu0 0
    %9704 = vmatpush1.bf16.msra.mxu0 %v8784
    %9705 = vmatprep.subr.bf16.mxu0 0
    %9706 = vmatpush1.bf16.msra.mxu0 %v8777
    %9707 = vmatprep.subr.bf16.mxu0 0
    %9708 = vmatpush1.bf16.msra.mxu0 %v8770
    %9709 = vmatprep.subr.bf16.mxu0 0
    %9710 = vmatpush2.bf16.msra.mxu0 %v8875
    %9711 = vmatprep.subr.bf16.mxu0 0
    %9712 = vmatpush2.bf16.msra.mxu0 %v8868
    %9713 = vmatprep.subr.bf16.mxu0 0
    %9714 = vmatpush2.bf16.msra.mxu0 %v8861
    %9715 = vmatprep.subr.bf16.mxu0 0
    %9716 = vmatpush2.bf16.msra.mxu0 %v8854
    %9717 = vmatprep.subr.bf16.mxu0 0
    %9718 = vmatpush2.bf16.msra.mxu0 %v8847
    %9719 = vmatprep.subr.bf16.mxu0 0
    %9720 = vmatpush2.bf16.msra.mxu0 %v8840
    %9721 = vmatprep.subr.bf16.mxu0 0
    %9722 = vmatpush2.bf16.msra.mxu0 %v8833
    %9723 = vmatprep.subr.bf16.mxu0 0
    %9724 = vmatpush2.bf16.msra.mxu0 %v8826
    %9725 = vmatprep.mubr.bf16.mxu0 %v7523
    %9726 = vmatmul.mubr.bf16.gmra.mxu0 %v7522
    %v9727 = vpop.f32.mrf.mxu0
    %v9728 = vadd.f32 %v7876, %v9727
    %v9729 = vpop.f32.mrf.mxu0
    %v9730 = vpop.f32.mrf.mxu0
    %v9731 = vpop.f32.mrf.mxu0
    %9732 = vdwg.mxu0
    %9733 = vmatprep.subr.bf16.mxu0 0
    %9734 = vmatpush1.bf16.msra.mxu0 %v8931
    %9735 = vmatprep.subr.bf16.mxu0 0
    %9736 = vmatpush1.bf16.msra.mxu0 %v8924
    %9737 = vmatprep.subr.bf16.mxu0 0
    %9738 = vmatpush1.bf16.msra.mxu0 %v8917
    %9739 = vmatprep.subr.bf16.mxu0 0
    %9740 = vmatpush1.bf16.msra.mxu0 %v8910
    %9741 = vmatprep.subr.bf16.mxu0 0
    %9742 = vmatpush1.bf16.msra.mxu0 %v8903
    %9743 = vmatprep.subr.bf16.mxu0 0
    %9744 = vmatpush1.bf16.msra.mxu0 %v8896
    %9745 = vmatprep.subr.bf16.mxu0 0
    %9746 = vmatpush1.bf16.msra.mxu0 %v8889
    %9747 = vmatprep.subr.bf16.mxu0 0
    %9748 = vmatpush1.bf16.msra.mxu0 %v8882
    %9749 = vmatprep.subr.bf16.mxu0 0
    %9750 = vmatpush2.bf16.msra.mxu0 %v8987
    %9751 = vmatprep.subr.bf16.mxu0 0
    %9752 = vmatpush2.bf16.msra.mxu0 %v8980
    %9753 = vmatprep.subr.bf16.mxu0 0
    %9754 = vmatpush2.bf16.msra.mxu0 %v8973
    %9755 = vmatprep.subr.bf16.mxu0 0
    %9756 = vmatpush2.bf16.msra.mxu0 %v8966
    %9757 = vmatprep.subr.bf16.mxu0 0
    %9758 = vmatpush2.bf16.msra.mxu0 %v8959
    %9759 = vmatprep.subr.bf16.mxu0 0
    %9760 = vmatpush2.bf16.msra.mxu0 %v8952
    %9761 = vmatprep.subr.bf16.mxu0 0
    %9762 = vmatpush2.bf16.msra.mxu0 %v8945
    %9763 = vmatprep.subr.bf16.mxu0 0
    %9764 = vmatpush2.bf16.msra.mxu0 %v8938
    %9765 = vmatprep.mubr.bf16.mxu0 %v7525
    %9766 = vmatmul.mubr.bf16.gmra.mxu0 %v7524
    %v9767 = vpop.f32.mrf.mxu0
    %v9768 = vadd.f32 %v9728, %v9767
    %v9769 = vpop.f32.mrf.mxu0
    %v9770 = vpop.f32.mrf.mxu0
    %v9771 = vpop.f32.mrf.mxu0
    %9772 = vdwg.mxu0
    %9773 = vmatprep.subr.bf16.mxu0 0
    %9774 = vmatpush1.bf16.msra.mxu0 %v9043
    %9775 = vmatprep.subr.bf16.mxu0 0
    %9776 = vmatpush1.bf16.msra.mxu0 %v9036
    %9777 = vmatprep.subr.bf16.mxu0 0
    %9778 = vmatpush1.bf16.msra.mxu0 %v9029
    %9779 = vmatprep.subr.bf16.mxu0 0
    %9780 = vmatpush1.bf16.msra.mxu0 %v9022
    %9781 = vmatprep.subr.bf16.mxu0 0
    %9782 = vmatpush1.bf16.msra.mxu0 %v9015
    %9783 = vmatprep.subr.bf16.mxu0 0
    %9784 = vmatpush1.bf16.msra.mxu0 %v9008
    %9785 = vmatprep.subr.bf16.mxu0 0
    %9786 = vmatpush1.bf16.msra.mxu0 %v9001
    %9787 = vmatprep.subr.bf16.mxu0 0
    %9788 = vmatpush1.bf16.msra.mxu0 %v8994
    %9789 = vmatprep.subr.bf16.mxu0 0
    %9790 = vmatpush2.bf16.msra.mxu0 0
    %9791 = vmatprep.subr.bf16.mxu0 0
    %9792 = vmatpush2.bf16.msra.mxu0 0
    %9793 = vmatprep.subr.bf16.mxu0 0
    %9794 = vmatpush2.bf16.msra.mxu0 0
    %9795 = vmatprep.subr.bf16.mxu0 0
    %9796 = vmatpush2.bf16.msra.mxu0 0
    %9797 = vmatprep.subr.bf16.mxu0 0
    %9798 = vmatpush2.bf16.msra.mxu0 0
    %9799 = vmatprep.subr.bf16.mxu0 0
    %9800 = vmatpush2.bf16.msra.mxu0 0
    %9801 = vmatprep.subr.bf16.mxu0 0
    %9802 = vmatpush2.bf16.msra.mxu0 0
    %9803 = vmatprep.subr.bf16.mxu0 0
    %9804 = vmatpush2.bf16.msra.mxu0 0
    %9805 = vmatprep.mubr.bf16.mxu0 0
    %9806 = vmatmul.mubr.bf16.gmra.mxu0 %v7526
    %v9807 = vpop.f32.mrf.mxu0
    %v9808 = vadd.f32 %v9768, %v9807
    %v9809 = vpop.f32.mrf.mxu0
    %v9810 = vpop.f32.mrf.mxu0
    %v9811 = vpop.f32.mrf.mxu0
    %9812 = vdwg.mxu0
    %v9813 = vsub.f32 0.0, %v9441
    %v9814 = vsub.f32 0.0, %v9443
    %v9815 = vsub.f32 0.0, %v9564
    %v9816 = vsub.f32 0.0, %v9566
    %v9817 = vsub.f32 0.0, %v9687
    %v9818 = vsub.f32 0.0, %v9689
    %v9819 = vsub.f32 0.0, %v9808
    %v9820 = vmul.f32 %v9813, 1.442695
    %v9821 = vpow.pop %v9820
    %v9822 = vmul.f32 %v9814, 1.442695
    %v9823 = vpow.pop %v9822
    %v9824 = vmul.f32 %v9815, 1.442695
    %v9825 = vpow.pop %v9824
    %v9826 = vmul.f32 %v9816, 1.442695
    %v9827 = vpow.pop %v9826
    %v9828 = vmul.f32 %v9817, 1.442695
    %v9829 = vpow.pop %v9828
    %v9830 = vmul.f32 %v9818, 1.442695
    %v9831 = vpow.pop %v9830
    %v9832 = vmul.f32 %v9819, 1.442695
    %v9833 = vpow.pop %v9832
    %v9834 = vadd.f32 %v9821, 1.0
    %v9835 = vadd.f32 %v9823, 1.0
    %v9836 = vadd.f32 %v9825, 1.0
    %v9837 = vadd.f32 %v9827, 1.0
    %v9838 = vadd.f32 %v9829, 1.0
    %v9839 = vadd.f32 %v9831, 1.0
    %v9840 = vadd.f32 %v9833, 1.0
    %v9841 = vrcp.pop %v9834
    %v9842 = vrcp.pop %v9835
    %v9843 = vrcp.pop %v9836
    %v9844 = vrcp.pop %v9837
    %v9845 = vrcp.pop %v9838
    %v9846 = vrcp.pop %v9839
    %v9847 = vrcp.pop %v9840
    %v9848 = vmax.f32 %v9841, 0.0
    %v9849 = vmax.f32 %v9842, 0.0
    %v9850 = vmax.f32 %v9843, 0.0
    %v9851 = vmax.f32 %v9844, 0.0
    %v9852 = vmax.f32 %v9845, 0.0
    %v9853 = vmax.f32 %v9846, 0.0
    %v9854 = vmax.f32 %v9847, 0.0
    %v9855 = vmin.f32 %v9848, 1.0
    %v9856 = vmin.f32 %v9849, 1.0
    %v9857 = vmin.f32 %v9850, 1.0
    %v9858 = vmin.f32 %v9851, 1.0
    %v9859 = vmin.f32 %v9852, 1.0
    %v9860 = vmin.f32 %v9853, 1.0
    %v9861 = vmin.f32 %v9854, 1.0
    %9862 = vst [vmem:[%s16] sm:$0xff] %v9855
    %9863 = vst [vmem:[%s16 + $0x8] sm:$0xff] %v9856
    %9864 = vst [vmem:[%s16 + $0x10] sm:$0xff] %v9857
    %9865 = vst [vmem:[%s16 + $0x18] sm:$0xff] %v9858
    %9866 = vst [vmem:[%s16 + $0x20] sm:$0xff] %v9859
    %9867 = vst [vmem:[%s16 + $0x28] sm:$0xff] %v9860
    %9868 = vst [vmem:[%s16 + $0x30] sm:$0xff] %v9861
    %9869 = vst [vmem:[%s17] sm:$0xff] %v4830
    %9870 = vst [vmem:[%s18] sm:$0xff] %v5277
    %9871 = vst [vmem:[%s19] sm:$0xff] %v5287
    // Predicated region
    $region122: #{linear_vae_forward.1} parent=1 // pred_check
      _
    $region123: #{linear_vae_forward.1} parent=1 // pred_check_branch
      %9873 = sbr.rel (0) target = $region125
    $region124: #{linear_vae_forward.1} parent=1 // pred_region
      _
    $region125: #{linear_vae_forward.1} parent=1 // pred_fallthru
      _
    // Predicated region
    $region126: #{linear_vae_forward.1} parent=1 // pred_check
      _
    $region127: #{linear_vae_forward.1} parent=1 // pred_check_branch
      %9875 = sbr.rel (0) target = $region129
    $region128: #{linear_vae_forward.1} parent=1 // pred_region
      _
    $region129: #{linear_vae_forward.1} parent=1 // pred_fallthru
      _
    // Predicated region
    $region130: #{linear_vae_forward.1} parent=1 // pred_check
      _
    $region131: #{linear_vae_forward.1} parent=1 // pred_check_branch
      %9877 = sbr.rel (0) target = $region133
    $region132: #{linear_vae_forward.1} parent=1 // pred_region
      _
    $region133: #{linear_vae_forward.1} parent=1 // pred_fallthru
      _
    // Predicated region
    $region134: #{linear_vae_forward.1} parent=1 // pred_check
      _
    $region135: #{linear_vae_forward.1} parent=1 // pred_check_branch
      %9879 = sbr.rel (0) target = $region137
    $region136: #{linear_vae_forward.1} parent=1 // pred_region
      _
    $region137: #{linear_vae_forward.1} parent=1 // pred_fallthru
      _
    // Predicated region
    $region138: #{linear_vae_forward.1} parent=1 // pred_check
      _
    $region139: #{linear_vae_forward.1} parent=1 // pred_check_branch
      %9881 = sbr.rel (0) target = $region141
    $region140: #{linear_vae_forward.1} parent=1 // pred_region
      _
    $region141: #{linear_vae_forward.1} parent=1 // pred_fallthru
      _
    // Predicated region
    $region142: #{linear_vae_forward.1} parent=1 // pred_check
      _
    $region143: #{linear_vae_forward.1} parent=1 // pred_check_branch
      %9883 = sbr.rel (0) target = $region145
    $region144: #{linear_vae_forward.1} parent=1 // pred_region
      _
    $region145: #{linear_vae_forward.1} parent=1 // pred_fallthru
      _
    // Predicated region
    $region146: #{linear_vae_forward.1} parent=1 // pred_check
      _
    $region147: #{linear_vae_forward.1} parent=1 // pred_check_branch
      %9885 = sbr.rel (0) target = $region149
    $region148: #{linear_vae_forward.1} parent=1 // pred_region
      _
    $region149: #{linear_vae_forward.1} parent=1 // pred_fallthru
      _
    // Predicated region
    $region150: #{linear_vae_forward.1} parent=1 // pred_check
      _
    $region151: #{linear_vae_forward.1} parent=1 // pred_check_branch
      %9887 = sbr.rel (0) target = $region153
    $region152: #{linear_vae_forward.1} parent=1 // pred_region
      _
    $region153: #{linear_vae_forward.1} parent=1 // pred_fallthru
      _
    %9888 = vsyncpa [#allocation3], 1
    %9889 = vsyncpa [#allocation5], 1
    %9890 = vsyncpa [#allocation8], 1
    %9891 = vsyncpa [#allocation11], 1
    %9892 = vsyncpa [#allocation14], 1
    %9893 = vsyncpa [#allocation17], 1
    %9894 = vsyncpa [#allocation20], 1
    %9895 = vsyncpa [#allocation23], 1

</llo_original>
